<compile_context>
chip_gen: v7x
topology: tpu7x:2x2x1
jax: 0.10.0
libtpu: 0.0.40
codegen_flags: <defaults>
</compile_context>

<pallas_src>
import jax
import jax.numpy as jnp
from jax import lax
from jax.experimental import pallas as pl
from jax.experimental.pallas import tpu as pltpu
import numpy as np

H = 32        # hidden size
V = 64        # vocab size
L = 8         # input sequence length
MAX_LEN = 6   # greedy decode length (max_length argument)
SOS = 1       # SOS_token

_HIGH = lax.Precision.HIGHEST


def _gru_gates(gi, gh, h, bhn):
    """GRU gate math given precomputed gi = x@Wi + b and gh = h@Wh.

    gi, gh : (1, 3H) columns = [r | z | n]
    bhn    : (1, H)  hidden bias of the n gate (kept separate per PyTorch GRU:
             n = tanh(gi_n + r * (gh_n + bh_n))).
    One sigmoid covers both r and z (contiguous 2H lanes -> single EUP pass).
    """
    rz = jax.nn.sigmoid(gi[:, 0:2 * H] + gh[:, 0:2 * H])
    r = rz[:, 0:H]
    z = rz[:, H:2 * H]
    n = jnp.tanh(gi[:, 2 * H:3 * H] + r * (gh[:, 2 * H:3 * H] + bhn))
    return (1.0 - z) * n + z * h


# ---------------------------------------------------------------------------
# Fused kernel: bidirectional GRU encoder + full greedy-search decode loop.
#   tok_ref : (1, MAX_LEN) int32    (all_tokens)
#   sc_ref  : (1, MAX_LEN) float32  (all_scores = max softmax probability)
# ---------------------------------------------------------------------------
def fused_kernel(seq_ref,                                   # SMEM (L,) int32
                 emb_ref,                                   # (V, H)
                 ewif_ref, ewhf_ref, ebf_ref, ebhnf_ref,    # encoder fwd GRU
                 ewib_ref, ewhb_ref, ebb_ref, ebhnb_ref,    # encoder bwd GRU
                 dewi_ref, dwh_ref, dbhn_ref,               # decoder GRU (emb folded into dewi)
                 wc1_ref, wc2_ref, bc_ref, wo_ref, bo_ref,  # concat / out layers
                 tok_ref, sc_ref,                           # outputs
                 x_s, gif_s, gib_s):                        # VMEM scratch
    # ---------------- Encoder ----------------
    # 1) Gather all L input embeddings into one (L, H) tile (static row writes).
    for t in range(L):                                      # fully unrolled
        x_s[t:t + 1, :] = emb_ref[pl.ds(seq_ref[t], 1), :]  # in-kernel row gather
    x_all = x_s[...]                                        # (L, H)

    # 2) HOISTED input-gate matmuls: one (L,H)@(H,3H) per direction, biases
    #    folded in.  Kept as two matmuls (both off the recurrent chain; a fused
    #    192-col RHS would be 2 passes on v5e anyway).
    gif_s[...] = jnp.dot(x_all, ewif_ref[...],
                         preferred_element_type=jnp.float32) + ebf_ref[...]
    gib_s[...] = jnp.dot(x_all, ewib_ref[...],
                         preferred_element_type=jnp.float32) + ebb_ref[...]

    # 3) Interleaved fwd/bwd recurrence; only h @ Wh remains on the serial
    #    chain.  Summed bidirectional outputs accumulate into the SAME (L, H)
    #    tile that held the embeddings (already consumed by the matmuls above).
    h_f = jnp.zeros((1, H), jnp.float32)
    h_b = jnp.zeros((1, H), jnp.float32)
    for t in range(L):                                      # fully unrolled
        tb = L - 1 - t
        gh_f = jnp.dot(h_f, ewhf_ref[...], preferred_element_type=jnp.float32)
        gh_b = jnp.dot(h_b, ewhb_ref[...], preferred_element_type=jnp.float32)
        h_f = _gru_gates(gif_s[t:t + 1, :], gh_f, h_f, ebhnf_ref[...])
        h_b = _gru_gates(gib_s[tb:tb + 1, :], gh_b, h_b, ebhnb_ref[...])
        if t < L // 2:                       # first writer of rows t and tb
            x_s[t:t + 1, :] = h_f
            x_s[tb:tb + 1, :] = h_b
        else:                                # rows already hold the other direction
            x_s[t:t + 1, :] = x_s[t:t + 1, :] + h_f
            x_s[tb:tb + 1, :] = x_s[tb:tb + 1, :] + h_b
    enc = x_s[...]                           # (L, H): tutorial sums the directions

    # Hoisted once out of the decode loop: enc @ Wc2, so that the per-step
    # context never materializes (context @ Wc2 == attn @ (enc @ Wc2)).
    enc_wc2 = jnp.dot(enc, wc2_ref[...], preferred_element_type=jnp.float32)  # (L, H)

    # ---------------- Greedy decode loop (GreedySearchDecoder.forward) ------
    iota_v = lax.broadcasted_iota(jnp.int32, (1, V), 1)
    h = h_f                                  # decoder_hidden = encoder_hidden[:n_layers]
    tok = jnp.full((1, 1), SOS, jnp.int32)   # decoder_input = SOS
    for t in range(MAX_LEN):                 # fully unrolled
        # Embedding lookup + input-gate weights + input bias all folded into
        # dewi host-side: gi = onehot @ (E @ Wi + b) -- single MXU op.
        onehot = (iota_v == tok).astype(jnp.float32)                           # (1, V)
        gi = jnp.dot(onehot, dewi_ref[...], preferred_element_type=jnp.float32)
        gh = jnp.dot(h, dwh_ref[...], preferred_element_type=jnp.float32)
        h = _gru_gates(gi, gh, h, dbhnf(dbhn_ref)) if False else _gru_gates(gi, gh, h, dbhn_ref[...])  # (1, H)
        # Luong "dot" attention, lane-major: energies (1, L) = h @ enc^T
        # (transposed contraction handled inside the MXU op; softmax runs
        # along lanes, not sublanes).  Exact divide -- keeps argmax faithful.
        energies = lax.dot_general(h, enc, (((1,), (1,)), ((), ())),
                                   preferred_element_type=jnp.float32)          # (1, L)
        e = jnp.exp(energies - jnp.max(energies, axis=1, keepdims=True))
        attn = e / jnp.sum(e, axis=1, keepdims=True)                            # (1, L)
        # concat layer: tanh(h @ Wc1 + (attn @ enc) @ Wc2 + bc), with the second
        # term re-associated to attn @ enc_wc2 (hoisted), saving one serial MXU
        # round trip and the XLU sublane reduction per step.
        concat_out = jnp.tanh(
            jnp.dot(h, wc1_ref[...], preferred_element_type=jnp.float32)
            + jnp.dot(attn, enc_wc2, preferred_element_type=jnp.float32)
            + bc_ref[...])                                                       # (1, H)
        logits = jnp.dot(concat_out, wo_ref[...],
                         preferred_element_type=jnp.float32) + bo_ref[...]       # (1, V)
        # torch.max(softmax(logits), dim=1):
        #   index == argmax(logits) (first index on ties, like torch.max)
        #   value == 1 / sum(exp(logits - max))  (max softmax probability, exact)
        mx_l = jnp.max(logits, axis=1, keepdims=True)                            # (1, 1)
        p = jnp.exp(logits - mx_l)
        score = 1.0 / jnp.sum(p, axis=1, keepdims=True)                          # (1, 1)
        tok = jnp.min(jnp.where(logits == mx_l, iota_v, V),
                      axis=1, keepdims=True).astype(jnp.int32)                   # (1, 1)
        tok_ref[:, t:t + 1] = tok
        sc_ref[:, t:t + 1] = score


# tiny shim so the editor-time typo guard above never triggers at runtime
def dbhnf(r):
    return r[...]


# ---------------------------------------------------------------------------
# Wrapper: one fused pallas_call (no grid; everything is VMEM/SMEM resident).
# ---------------------------------------------------------------------------
_VMEM = pl.BlockSpec(memory_space=pltpu.MemorySpace.VMEM)
_SMEM = pl.BlockSpec(memory_space=pltpu.MemorySpace.SMEM)


def greedy_search_decode(input_seq, input_length, max_length, params):
    # input_seq: (L, 1) int32 token ids.  We assume input_length == L.
    # TODO(synk): packed-sequence trimming for input_length < L is not modeled.
    del input_length
    assert max_length == MAX_LEN
    seq = input_seq[:, 0].astype(jnp.int32)            # (L,) token ids -> SMEM

    # One-time host-side fold: decoder embedding + input-gate weights + bias.
    dewi = (jnp.dot(params["embedding"], params["dec_wi"], precision=_HIGH)
            + params["dec_b"])                          # (V, 3H), ~24 KB

    tokens, scores = pl.pallas_call(
        fused_kernel,
        out_shape=(jax.ShapeDtypeStruct((1, MAX_LEN), jnp.int32),
                   jax.ShapeDtypeStruct((1, MAX_LEN), jnp.float32)),
        in_specs=[_SMEM] + [_VMEM] * 17,
        out_specs=(_VMEM, _VMEM),
        scratch_shapes=[pltpu.VMEM((L, H), jnp.float32),       # embeddings, then summed enc outputs
                        pltpu.VMEM((L, 3 * H), jnp.float32),   # hoisted fwd input gates
                        pltpu.VMEM((L, 3 * H), jnp.float32)],  # hoisted bwd input gates
    )(seq, params["embedding"],
      params["enc_wi_f"], params["enc_wh_f"], params["enc_b_f"], params["enc_bhn_f"],
      params["enc_wi_b"], params["enc_wh_b"], params["enc_b_b"], params["enc_bhn_b"],
      dewi, params["dec_wh"], params["dec_bhn"],
      params["wc1"], params["wc2"], params["bc"], params["wo"], params["bo"])

    return tokens[0], scores[0]        # (MAX_LEN,) each, like torch's 1-D outputs


# ---------------------------------------------------------------------------
# Pure-JAX reference (same math, exact softmax, high-precision matmuls).
# ---------------------------------------------------------------------------
def reference(input_seq, params):
    seq = input_seq[:, 0]
    emb = params["embedding"]

    def gru(x, h, wi, wh, b, bhn):
        gi = jnp.dot(x, wi, precision=_HIGH) + b
        gh = jnp.dot(h, wh, precision=_HIGH)
        r = jax.nn.sigmoid(gi[:, 0:H] + gh[:, 0:H])
        z = jax.nn.sigmoid(gi[:, H:2 * H] + gh[:, H:2 * H])
        n = jnp.tanh(gi[:, 2 * H:] + r * (gh[:, 2 * H:] + bhn))
        return (1.0 - z) * n + z * h

    h_f = jnp.zeros((1, H), jnp.float32)
    h_b = jnp.zeros((1, H), jnp.float32)
    outs_f = [None] * L
    outs_b = [None] * L
    for t in range(L):
        tb = L - 1 - t
        h_f = gru(emb[seq[t]][None, :], h_f, params["enc_wi_f"],
                  params["enc_wh_f"], params["enc_b_f"], params["enc_bhn_f"])
        h_b = gru(emb[seq[tb]][None, :], h_b, params["enc_wi_b"],
                  params["enc_wh_b"], params["enc_b_b"], params["enc_bhn_b"])
        outs_f[t] = h_f
        outs_b[tb] = h_b
    enc = jnp.concatenate(outs_f, 0) + jnp.concatenate(outs_b, 0)

    h = h_f
    tok = jnp.int32(SOS)
    toks, scs = [], []
    for _ in range(MAX_LEN):
        x = emb[tok][None, :]
        h = gru(x, h, params["dec_wi"], params["dec_wh"],
                params["dec_b"], params["dec_bhn"])
        energies = jnp.sum(enc * h, axis=1)                              # (L,)
        e = jnp.exp(energies - jnp.max(energies))
        attn = (e / jnp.sum(e))[None, :]                                 # (1, L)
        context = jnp.dot(attn, enc, precision=_HIGH)                    # (1, H)
        co = jnp.tanh(jnp.dot(h, params["wc1"], precision=_HIGH)
                      + jnp.dot(context, params["wc2"], precision=_HIGH)
                      + params["bc"])
        logits = jnp.dot(co, params["wo"], precision=_HIGH) + params["bo"]
        p = jnp.exp(logits - jnp.max(logits))
        probs = p / jnp.sum(p)
        scs.append(jnp.max(probs))
        tok = jnp.argmax(probs[0]).astype(jnp.int32)
        toks.append(tok)
    return jnp.stack(toks), jnp.stack(scs)


def make_params(key):
    # Gate-stacked, transposed GRU params (pre-folded r/z biases), equivalent to
    # PyTorch's weight_ih/weight_hh/bias_ih/bias_hh in gate order (r, z, n).
    ks = jax.random.split(key, 20)
    n = lambda k, s: (0.1 * jax.random.normal(k, s)).astype(jnp.float32)
    return {
        "embedding": n(ks[0], (V, H)),
        "enc_wi_f": n(ks[1], (H, 3 * H)), "enc_wh_f": n(ks[2], (H, 3 * H)),
        "enc_b_f":  n(ks[3], (1, 3 * H)), "enc_bhn_f": n(ks[4], (1, H)),
        "enc_wi_b": n(ks[5], (H, 3 * H)), "enc_wh_b": n(ks[6], (H, 3 * H)),
        "enc_b_b":  n(ks[7], (1, 3 * H)), "enc_bhn_b": n(ks[8], (1, H)),
        "dec_wi":   n(ks[9], (H, 3 * H)), "dec_wh":   n(ks[10], (H, 3 * H)),
        "dec_b":    n(ks[11], (1, 3 * H)), "dec_bhn": n(ks[12], (1, H)),
        "wc1": n(ks[13], (H, H)), "wc2": n(ks[14], (H, H)), "bc": n(ks[15], (1, H)),
        "wo": n(ks[16], (H, V)), "bo": n(ks[17], (1, V)),
    }


if __name__ == "__main__":
    key = jax.random.PRNGKey(0)
    pkey, skey = jax.random.split(key)
    params = make_params(pkey)
    input_seq = jax.random.randint(skey, (L, 1), 2, V, dtype=jnp.int32)  # (L, 1) tokens
    input_length = jnp.array([L], dtype=jnp.int32)

    tokens, scores = greedy_search_decode(input_seq, input_length, MAX_LEN, params)
    tokens = jax.block_until_ready(tokens)
    scores = jax.block_until_ready(scores)

    ref_tokens, ref_scores = reference(input_seq, params)
    assert tokens.shape == (MAX_LEN,) and scores.shape == (MAX_LEN,)
    assert np.array_equal(np.asarray(tokens), np.asarray(ref_tokens)), (tokens, ref_tokens)
    assert np.allclose(np.asarray(scores), np.asarray(ref_scores), rtol=5e-3, atol=1e-4), (
        scores, ref_scores)
    print("KERNEL_OK")
</pallas_src>

<mosaic_0001>
module attributes {stable_mosaic.version = 11 : i64} {
  func.func @fused_kernel(%arg0: memref<8xi32, #tpu.memory_space<smem>>, %arg1: memref<64x32xf32, #tpu.memory_space<vmem>>, %arg2: memref<32x96xf32, #tpu.memory_space<vmem>>, %arg3: memref<32x96xf32, #tpu.memory_space<vmem>>, %arg4: memref<1x96xf32, #tpu.memory_space<vmem>>, %arg5: memref<1x32xf32, #tpu.memory_space<vmem>>, %arg6: memref<32x96xf32, #tpu.memory_space<vmem>>, %arg7: memref<32x96xf32, #tpu.memory_space<vmem>>, %arg8: memref<1x96xf32, #tpu.memory_space<vmem>>, %arg9: memref<1x32xf32, #tpu.memory_space<vmem>>, %arg10: memref<64x96xf32, #tpu.memory_space<vmem>>, %arg11: memref<32x96xf32, #tpu.memory_space<vmem>>, %arg12: memref<1x32xf32, #tpu.memory_space<vmem>>, %arg13: memref<32x32xf32, #tpu.memory_space<vmem>>, %arg14: memref<32x32xf32, #tpu.memory_space<vmem>>, %arg15: memref<1x32xf32, #tpu.memory_space<vmem>>, %arg16: memref<32x64xf32, #tpu.memory_space<vmem>>, %arg17: memref<1x64xf32, #tpu.memory_space<vmem>>, %arg18: memref<1x6xi32, #tpu.memory_space<vmem>>, %arg19: memref<1x6xf32, #tpu.memory_space<vmem>>, %arg20: memref<8x32xf32, #tpu.memory_space<vmem>>, %arg21: memref<8x96xf32, #tpu.memory_space<vmem>>, %arg22: memref<8x96xf32, #tpu.memory_space<vmem>>) attributes {dimension_semantics = [], scalar_prefetch = 0 : i64, scratch_operands = 3 : i64, tpu.core_type = #tpu.core_type<tc>} {
    %c0 = arith.constant 0 : index
    %0 = memref.load %arg0[%c0] : memref<8xi32, #tpu.memory_space<smem>>
    %1 = arith.index_cast %0 : i32 to index
    %c0_0 = arith.constant 0 : index
    %2 = vector.load %arg1[%1, %c0_0] : memref<64x32xf32, #tpu.memory_space<vmem>>, vector<1x32xf32>
    %c0_1 = arith.constant 0 : index
    %c0_2 = arith.constant 0 : index
    %3 = vector.load %arg20[%c0_1, %c0_2] : memref<8x32xf32, #tpu.memory_space<vmem>>, vector<1x32xf32>
    tpu.vector_store %arg20[%c0_1, %c0_2], %2 {strides = array<i32>} : memref<8x32xf32, #tpu.memory_space<vmem>>, vector<1x32xf32>,
    %c1 = arith.constant 1 : index
    %4 = memref.load %arg0[%c1] : memref<8xi32, #tpu.memory_space<smem>>
    %5 = arith.index_cast %4 : i32 to index
    %c0_3 = arith.constant 0 : index
    %6 = vector.load %arg1[%5, %c0_3] : memref<64x32xf32, #tpu.memory_space<vmem>>, vector<1x32xf32>
    %c1_4 = arith.constant 1 : index
    %c0_5 = arith.constant 0 : index
    %7 = vector.load %arg20[%c1_4, %c0_5] : memref<8x32xf32, #tpu.memory_space<vmem>>, vector<1x32xf32>
    tpu.vector_store %arg20[%c1_4, %c0_5], %6 {strides = array<i32>} : memref<8x32xf32, #tpu.memory_space<vmem>>, vector<1x32xf32>,
    %c2 = arith.constant 2 : index
    %8 = memref.load %arg0[%c2] : memref<8xi32, #tpu.memory_space<smem>>
    %9 = arith.index_cast %8 : i32 to index
    %c0_6 = arith.constant 0 : index
    %10 = vector.load %arg1[%9, %c0_6] : memref<64x32xf32, #tpu.memory_space<vmem>>, vector<1x32xf32>
    %c2_7 = arith.constant 2 : index
    %c0_8 = arith.constant 0 : index
    %11 = vector.load %arg20[%c2_7, %c0_8] : memref<8x32xf32, #tpu.memory_space<vmem>>, vector<1x32xf32>
    tpu.vector_store %arg20[%c2_7, %c0_8], %10 {strides = array<i32>} : memref<8x32xf32, #tpu.memory_space<vmem>>, vector<1x32xf32>,
    %c3 = arith.constant 3 : index
    %12 = memref.load %arg0[%c3] : memref<8xi32, #tpu.memory_space<smem>>
    %13 = arith.index_cast %12 : i32 to index
    %c0_9 = arith.constant 0 : index
    %14 = vector.load %arg1[%13, %c0_9] : memref<64x32xf32, #tpu.memory_space<vmem>>, vector<1x32xf32>
    %c3_10 = arith.constant 3 : index
    %c0_11 = arith.constant 0 : index
    %15 = vector.load %arg20[%c3_10, %c0_11] : memref<8x32xf32, #tpu.memory_space<vmem>>, vector<1x32xf32>
    tpu.vector_store %arg20[%c3_10, %c0_11], %14 {strides = array<i32>} : memref<8x32xf32, #tpu.memory_space<vmem>>, vector<1x32xf32>,
    %c4 = arith.constant 4 : index
    %16 = memref.load %arg0[%c4] : memref<8xi32, #tpu.memory_space<smem>>
    %17 = arith.index_cast %16 : i32 to index
    %c0_12 = arith.constant 0 : index
    %18 = vector.load %arg1[%17, %c0_12] : memref<64x32xf32, #tpu.memory_space<vmem>>, vector<1x32xf32>
    %c4_13 = arith.constant 4 : index
    %c0_14 = arith.constant 0 : index
    %19 = vector.load %arg20[%c4_13, %c0_14] : memref<8x32xf32, #tpu.memory_space<vmem>>, vector<1x32xf32>
    tpu.vector_store %arg20[%c4_13, %c0_14], %18 {strides = array<i32>} : memref<8x32xf32, #tpu.memory_space<vmem>>, vector<1x32xf32>,
    %c5 = arith.constant 5 : index
    %20 = memref.load %arg0[%c5] : memref<8xi32, #tpu.memory_space<smem>>
    %21 = arith.index_cast %20 : i32 to index
    %c0_15 = arith.constant 0 : index
    %22 = vector.load %arg1[%21, %c0_15] : memref<64x32xf32, #tpu.memory_space<vmem>>, vector<1x32xf32>
    %c5_16 = arith.constant 5 : index
    %c0_17 = arith.constant 0 : index
    %23 = vector.load %arg20[%c5_16, %c0_17] : memref<8x32xf32, #tpu.memory_space<vmem>>, vector<1x32xf32>
    tpu.vector_store %arg20[%c5_16, %c0_17], %22 {strides = array<i32>} : memref<8x32xf32, #tpu.memory_space<vmem>>, vector<1x32xf32>,
    %c6 = arith.constant 6 : index
    %24 = memref.load %arg0[%c6] : memref<8xi32, #tpu.memory_space<smem>>
    %25 = arith.index_cast %24 : i32 to index
    %c0_18 = arith.constant 0 : index
    %26 = vector.load %arg1[%25, %c0_18] : memref<64x32xf32, #tpu.memory_space<vmem>>, vector<1x32xf32>
    %c6_19 = arith.constant 6 : index
    %c0_20 = arith.constant 0 : index
    %27 = vector.load %arg20[%c6_19, %c0_20] : memref<8x32xf32, #tpu.memory_space<vmem>>, vector<1x32xf32>
    tpu.vector_store %arg20[%c6_19, %c0_20], %26 {strides = array<i32>} : memref<8x32xf32, #tpu.memory_space<vmem>>, vector<1x32xf32>,
    %c7 = arith.constant 7 : index
    %28 = memref.load %arg0[%c7] : memref<8xi32, #tpu.memory_space<smem>>
    %29 = arith.index_cast %28 : i32 to index
    %c0_21 = arith.constant 0 : index
    %30 = vector.load %arg1[%29, %c0_21] : memref<64x32xf32, #tpu.memory_space<vmem>>, vector<1x32xf32>
    %c7_22 = arith.constant 7 : index
    %c0_23 = arith.constant 0 : index
    %31 = vector.load %arg20[%c7_22, %c0_23] : memref<8x32xf32, #tpu.memory_space<vmem>>, vector<1x32xf32>
    tpu.vector_store %arg20[%c7_22, %c0_23], %30 {strides = array<i32>} : memref<8x32xf32, #tpu.memory_space<vmem>>, vector<1x32xf32>,
    %c0_24 = arith.constant 0 : index
    %c0_25 = arith.constant 0 : index
    %32 = vector.load %arg20[%c0_24, %c0_25] : memref<8x32xf32, #tpu.memory_space<vmem>>, vector<8x32xf32>
    %c0_26 = arith.constant 0 : index
    %c0_27 = arith.constant 0 : index
    %33 = vector.load %arg2[%c0_26, %c0_27] : memref<32x96xf32, #tpu.memory_space<vmem>>, vector<32x96xf32>
    %cst = arith.constant dense<0.000000e+00> : vector<8x96xf32>
    %34 = tpu.matmul %32, %33, %cst {dimension_numbers = #tpu.dot_dimension_numbers<[1], [0], [0], [1], [0, 0, 1, 1], [], []>} : vector<8x32xf32>, vector<32x96xf32>, vector<8x96xf32> -> vector<8x96xf32>
    %c0_28 = arith.constant 0 : index
    %c0_29 = arith.constant 0 : index
    %35 = vector.load %arg4[%c0_28, %c0_29] : memref<1x96xf32, #tpu.memory_space<vmem>>, vector<1x96xf32>
    %36 = vector.broadcast %35 : vector<1x96xf32> to vector<8x96xf32>
    %37 = arith.addf %34, %36 : vector<8x96xf32>
    %c0_30 = arith.constant 0 : index
    %c0_31 = arith.constant 0 : index
    %38 = vector.load %arg21[%c0_30, %c0_31] : memref<8x96xf32, #tpu.memory_space<vmem>>, vector<8x96xf32>
    tpu.vector_store %arg21[%c0_30, %c0_31], %37 {strides = array<i32>} : memref<8x96xf32, #tpu.memory_space<vmem>>, vector<8x96xf32>,
    %c0_32 = arith.constant 0 : index
    %c0_33 = arith.constant 0 : index
    %39 = vector.load %arg6[%c0_32, %c0_33] : memref<32x96xf32, #tpu.memory_space<vmem>>, vector<32x96xf32>
    %cst_34 = arith.constant dense<0.000000e+00> : vector<8x96xf32>
    %40 = tpu.matmul %32, %39, %cst_34 {dimension_numbers = #tpu.dot_dimension_numbers<[1], [0], [0], [1], [0, 0, 1, 1], [], []>} : vector<8x32xf32>, vector<32x96xf32>, vector<8x96xf32> -> vector<8x96xf32>
    %c0_35 = arith.constant 0 : index
    %c0_36 = arith.constant 0 : index
    %41 = vector.load %arg8[%c0_35, %c0_36] : memref<1x96xf32, #tpu.memory_space<vmem>>, vector<1x96xf32>
    %42 = vector.broadcast %41 : vector<1x96xf32> to vector<8x96xf32>
    %43 = arith.addf %40, %42 : vector<8x96xf32>
    %c0_37 = arith.constant 0 : index
    %c0_38 = arith.constant 0 : index
    %44 = vector.load %arg22[%c0_37, %c0_38] : memref<8x96xf32, #tpu.memory_space<vmem>>, vector<8x96xf32>
    tpu.vector_store %arg22[%c0_37, %c0_38], %43 {strides = array<i32>} : memref<8x96xf32, #tpu.memory_space<vmem>>, vector<8x96xf32>,
    %cst_39 = arith.constant 0.000000e+00 : f32
    %45 = vector.broadcast %cst_39 : f32 to vector<1x32xf32>
    %cst_40 = arith.constant 0.000000e+00 : f32
    %46 = vector.broadcast %cst_40 : f32 to vector<1x32xf32>
    %c0_41 = arith.constant 0 : index
    %c0_42 = arith.constant 0 : index
    %47 = vector.load %arg3[%c0_41, %c0_42] : memref<32x96xf32, #tpu.memory_space<vmem>>, vector<32x96xf32>
    %cst_43 = arith.constant dense<0.000000e+00> : vector<1x96xf32>
    %48 = tpu.matmul %45, %47, %cst_43 {dimension_numbers = #tpu.dot_dimension_numbers<[1], [0], [0], [1], [0, 0, 1, 1], [], []>} : vector<1x32xf32>, vector<32x96xf32>, vector<1x96xf32> -> vector<1x96xf32>
    %c0_44 = arith.constant 0 : index
    %c0_45 = arith.constant 0 : index
    %49 = vector.load %arg7[%c0_44, %c0_45] : memref<32x96xf32, #tpu.memory_space<vmem>>, vector<32x96xf32>
    %cst_46 = arith.constant dense<0.000000e+00> : vector<1x96xf32>
    %50 = tpu.matmul %46, %49, %cst_46 {dimension_numbers = #tpu.dot_dimension_numbers<[1], [0], [0], [1], [0, 0, 1, 1], [], []>} : vector<1x32xf32>, vector<32x96xf32>, vector<1x96xf32> -> vector<1x96xf32>
    %c0_47 = arith.constant 0 : index
    %c0_48 = arith.constant 0 : index
    %51 = vector.load %arg21[%c0_47, %c0_48] : memref<8x96xf32, #tpu.memory_space<vmem>>, vector<1x96xf32>
    %c0_49 = arith.constant 0 : index
    %c0_50 = arith.constant 0 : index
    %52 = vector.load %arg5[%c0_49, %c0_50] : memref<1x32xf32, #tpu.memory_space<vmem>>, vector<1x32xf32>
    %53 = vector.extract_strided_slice %51 {offsets = [0, 0], sizes = [1, 64], strides = [1, 1]} : vector<1x96xf32> to vector<1x64xf32>
    %54 = vector.extract_strided_slice %48 {offsets = [0, 0], sizes = [1, 64], strides = [1, 1]} : vector<1x96xf32> to vector<1x64xf32>
    %55 = arith.addf %53, %54 : vector<1x64xf32>
    %56 = arith.negf %55 : vector<1x64xf32>
    %57 = math.exp %56 : vector<1x64xf32>
    %cst_51 = arith.constant 1.000000e+00 : f32
    %58 = vector.broadcast %cst_51 : f32 to vector<1x64xf32>
    %59 = arith.addf %58, %57 : vector<1x64xf32>
    %60 = arith.divf %58, %59 : vector<1x64xf32>
    %61 = vector.extract_strided_slice %60 {offsets = [0, 0], sizes = [1, 32], strides = [1, 1]} : vector<1x64xf32> to vector<1x32xf32>
    %62 = vector.extract_strided_slice %60 {offsets = [0, 32], sizes = [1, 32], strides = [1, 1]} : vector<1x64xf32> to vector<1x32xf32>
    %63 = vector.extract_strided_slice %51 {offsets = [0, 64], sizes = [1, 32], strides = [1, 1]} : vector<1x96xf32> to vector<1x32xf32>
    %64 = vector.extract_strided_slice %48 {offsets = [0, 64], sizes = [1, 32], strides = [1, 1]} : vector<1x96xf32> to vector<1x32xf32>
    %65 = arith.addf %64, %52 : vector<1x32xf32>
    %66 = arith.mulf %61, %65 : vector<1x32xf32>
    %67 = arith.addf %63, %66 : vector<1x32xf32>
    %68 = math.tanh %67 : vector<1x32xf32>
    %cst_52 = arith.constant 1.000000e+00 : f32
    %69 = vector.broadcast %cst_52 : f32 to vector<1x32xf32>
    %70 = arith.subf %69, %62 : vector<1x32xf32>
    %71 = arith.mulf %70, %68 : vector<1x32xf32>
    %72 = arith.mulf %62, %45 : vector<1x32xf32>
    %73 = arith.addf %71, %72 : vector<1x32xf32>
    %c7_53 = arith.constant 7 : index
    %c0_54 = arith.constant 0 : index
    %74 = vector.load %arg22[%c7_53, %c0_54] : memref<8x96xf32, #tpu.memory_space<vmem>>, vector<1x96xf32>
    %c0_55 = arith.constant 0 : index
    %c0_56 = arith.constant 0 : index
    %75 = vector.load %arg9[%c0_55, %c0_56] : memref<1x32xf32, #tpu.memory_space<vmem>>, vector<1x32xf32>
    %76 = vector.extract_strided_slice %74 {offsets = [0, 0], sizes = [1, 64], strides = [1, 1]} : vector<1x96xf32> to vector<1x64xf32>
    %77 = vector.extract_strided_slice %50 {offsets = [0, 0], sizes = [1, 64], strides = [1, 1]} : vector<1x96xf32> to vector<1x64xf32>
    %78 = arith.addf %76, %77 : vector<1x64xf32>
    %79 = arith.negf %78 : vector<1x64xf32>
    %80 = math.exp %79 : vector<1x64xf32>
    %cst_57 = arith.constant 1.000000e+00 : f32
    %81 = vector.broadcast %cst_57 : f32 to vector<1x64xf32>
    %82 = arith.addf %81, %80 : vector<1x64xf32>
    %83 = arith.divf %81, %82 : vector<1x64xf32>
    %84 = vector.extract_strided_slice %83 {offsets = [0, 0], sizes = [1, 32], strides = [1, 1]} : vector<1x64xf32> to vector<1x32xf32>
    %85 = vector.extract_strided_slice %83 {offsets = [0, 32], sizes = [1, 32], strides = [1, 1]} : vector<1x64xf32> to vector<1x32xf32>
    %86 = vector.extract_strided_slice %74 {offsets = [0, 64], sizes = [1, 32], strides = [1, 1]} : vector<1x96xf32> to vector<1x32xf32>
    %87 = vector.extract_strided_slice %50 {offsets = [0, 64], sizes = [1, 32], strides = [1, 1]} : vector<1x96xf32> to vector<1x32xf32>
    %88 = arith.addf %87, %75 : vector<1x32xf32>
    %89 = arith.mulf %84, %88 : vector<1x32xf32>
    %90 = arith.addf %86, %89 : vector<1x32xf32>
    %91 = math.tanh %90 : vector<1x32xf32>
    %cst_58 = arith.constant 1.000000e+00 : f32
    %92 = vector.broadcast %cst_58 : f32 to vector<1x32xf32>
    %93 = arith.subf %92, %85 : vector<1x32xf32>
    %94 = arith.mulf %93, %91 : vector<1x32xf32>
    %95 = arith.mulf %85, %46 : vector<1x32xf32>
    %96 = arith.addf %94, %95 : vector<1x32xf32>
    %c0_59 = arith.constant 0 : index
    %c0_60 = arith.constant 0 : index
    %97 = vector.load %arg20[%c0_59, %c0_60] : memref<8x32xf32, #tpu.memory_space<vmem>>, vector<1x32xf32>
    tpu.vector_store %arg20[%c0_59, %c0_60], %73 {strides = array<i32>} : memref<8x32xf32, #tpu.memory_space<vmem>>, vector<1x32xf32>,
    %c7_61 = arith.constant 7 : index
    %c0_62 = arith.constant 0 : index
    %98 = vector.load %arg20[%c7_61, %c0_62] : memref<8x32xf32, #tpu.memory_space<vmem>>, vector<1x32xf32>
    tpu.vector_store %arg20[%c7_61, %c0_62], %96 {strides = array<i32>} : memref<8x32xf32, #tpu.memory_space<vmem>>, vector<1x32xf32>,
    %c0_63 = arith.constant 0 : index
    %c0_64 = arith.constant 0 : index
    %99 = vector.load %arg3[%c0_63, %c0_64] : memref<32x96xf32, #tpu.memory_space<vmem>>, vector<32x96xf32>
    %cst_65 = arith.constant dense<0.000000e+00> : vector<1x96xf32>
    %100 = tpu.matmul %73, %99, %cst_65 {dimension_numbers = #tpu.dot_dimension_numbers<[1], [0], [0], [1], [0, 0, 1, 1], [], []>} : vector<1x32xf32>, vector<32x96xf32>, vector<1x96xf32> -> vector<1x96xf32>
    %c0_66 = arith.constant 0 : index
    %c0_67 = arith.constant 0 : index
    %101 = vector.load %arg7[%c0_66, %c0_67] : memref<32x96xf32, #tpu.memory_space<vmem>>, vector<32x96xf32>
    %cst_68 = arith.constant dense<0.000000e+00> : vector<1x96xf32>
    %102 = tpu.matmul %96, %101, %cst_68 {dimension_numbers = #tpu.dot_dimension_numbers<[1], [0], [0], [1], [0, 0, 1, 1], [], []>} : vector<1x32xf32>, vector<32x96xf32>, vector<1x96xf32> -> vector<1x96xf32>
    %c1_69 = arith.constant 1 : index
    %c0_70 = arith.constant 0 : index
    %103 = vector.load %arg21[%c1_69, %c0_70] : memref<8x96xf32, #tpu.memory_space<vmem>>, vector<1x96xf32>
    %c0_71 = arith.constant 0 : index
    %c0_72 = arith.constant 0 : index
    %104 = vector.load %arg5[%c0_71, %c0_72] : memref<1x32xf32, #tpu.memory_space<vmem>>, vector<1x32xf32>
    %105 = vector.extract_strided_slice %103 {offsets = [0, 0], sizes = [1, 64], strides = [1, 1]} : vector<1x96xf32> to vector<1x64xf32>
    %106 = vector.extract_strided_slice %100 {offsets = [0, 0], sizes = [1, 64], strides = [1, 1]} : vector<1x96xf32> to vector<1x64xf32>
    %107 = arith.addf %105, %106 : vector<1x64xf32>
    %108 = arith.negf %107 : vector<1x64xf32>
    %109 = math.exp %108 : vector<1x64xf32>
    %cst_73 = arith.constant 1.000000e+00 : f32
    %110 = vector.broadcast %cst_73 : f32 to vector<1x64xf32>
    %111 = arith.addf %110, %109 : vector<1x64xf32>
    %112 = arith.divf %110, %111 : vector<1x64xf32>
    %113 = vector.extract_strided_slice %112 {offsets = [0, 0], sizes = [1, 32], strides = [1, 1]} : vector<1x64xf32> to vector<1x32xf32>
    %114 = vector.extract_strided_slice %112 {offsets = [0, 32], sizes = [1, 32], strides = [1, 1]} : vector<1x64xf32> to vector<1x32xf32>
    %115 = vector.extract_strided_slice %103 {offsets = [0, 64], sizes = [1, 32], strides = [1, 1]} : vector<1x96xf32> to vector<1x32xf32>
    %116 = vector.extract_strided_slice %100 {offsets = [0, 64], sizes = [1, 32], strides = [1, 1]} : vector<1x96xf32> to vector<1x32xf32>
    %117 = arith.addf %116, %104 : vector<1x32xf32>
    %118 = arith.mulf %113, %117 : vector<1x32xf32>
    %119 = arith.addf %115, %118 : vector<1x32xf32>
    %120 = math.tanh %119 : vector<1x32xf32>
    %cst_74 = arith.constant 1.000000e+00 : f32
    %121 = vector.broadcast %cst_74 : f32 to vector<1x32xf32>
    %122 = arith.subf %121, %114 : vector<1x32xf32>
    %123 = arith.mulf %122, %120 : vector<1x32xf32>
    %124 = arith.mulf %114, %73 : vector<1x32xf32>
    %125 = arith.addf %123, %124 : vector<1x32xf32>
    %c6_75 = arith.constant 6 : index
    %c0_76 = arith.constant 0 : index
    %126 = vector.load %arg22[%c6_75, %c0_76] : memref<8x96xf32, #tpu.memory_space<vmem>>, vector<1x96xf32>
    %c0_77 = arith.constant 0 : index
    %c0_78 = arith.constant 0 : index
    %127 = vector.load %arg9[%c0_77, %c0_78] : memref<1x32xf32, #tpu.memory_space<vmem>>, vector<1x32xf32>
    %128 = vector.extract_strided_slice %126 {offsets = [0, 0], sizes = [1, 64], strides = [1, 1]} : vector<1x96xf32> to vector<1x64xf32>
    %129 = vector.extract_strided_slice %102 {offsets = [0, 0], sizes = [1, 64], strides = [1, 1]} : vector<1x96xf32> to vector<1x64xf32>
    %130 = arith.addf %128, %129 : vector<1x64xf32>
    %131 = arith.negf %130 : vector<1x64xf32>
    %132 = math.exp %131 : vector<1x64xf32>
    %cst_79 = arith.constant 1.000000e+00 : f32
    %133 = vector.broadcast %cst_79 : f32 to vector<1x64xf32>
    %134 = arith.addf %133, %132 : vector<1x64xf32>
    %135 = arith.divf %133, %134 : vector<1x64xf32>
    %136 = vector.extract_strided_slice %135 {offsets = [0, 0], sizes = [1, 32], strides = [1, 1]} : vector<1x64xf32> to vector<1x32xf32>
    %137 = vector.extract_strided_slice %135 {offsets = [0, 32], sizes = [1, 32], strides = [1, 1]} : vector<1x64xf32> to vector<1x32xf32>
    %138 = vector.extract_strided_slice %126 {offsets = [0, 64], sizes = [1, 32], strides = [1, 1]} : vector<1x96xf32> to vector<1x32xf32>
    %139 = vector.extract_strided_slice %102 {offsets = [0, 64], sizes = [1, 32], strides = [1, 1]} : vector<1x96xf32> to vector<1x32xf32>
    %140 = arith.addf %139, %127 : vector<1x32xf32>
    %141 = arith.mulf %136, %140 : vector<1x32xf32>
    %142 = arith.addf %138, %141 : vector<1x32xf32>
    %143 = math.tanh %142 : vector<1x32xf32>
    %cst_80 = arith.constant 1.000000e+00 : f32
    %144 = vector.broadcast %cst_80 : f32 to vector<1x32xf32>
    %145 = arith.subf %144, %137 : vector<1x32xf32>
    %146 = arith.mulf %145, %143 : vector<1x32xf32>
    %147 = arith.mulf %137, %96 : vector<1x32xf32>
    %148 = arith.addf %146, %147 : vector<1x32xf32>
    %c1_81 = arith.constant 1 : index
    %c0_82 = arith.constant 0 : index
    %149 = vector.load %arg20[%c1_81, %c0_82] : memref<8x32xf32, #tpu.memory_space<vmem>>, vector<1x32xf32>
    tpu.vector_store %arg20[%c1_81, %c0_82], %125 {strides = array<i32>} : memref<8x32xf32, #tpu.memory_space<vmem>>, vector<1x32xf32>,
    %c6_83 = arith.constant 6 : index
    %c0_84 = arith.constant 0 : index
    %150 = vector.load %arg20[%c6_83, %c0_84] : memref<8x32xf32, #tpu.memory_space<vmem>>, vector<1x32xf32>
    tpu.vector_store %arg20[%c6_83, %c0_84], %148 {strides = array<i32>} : memref<8x32xf32, #tpu.memory_space<vmem>>, vector<1x32xf32>,
    %c0_85 = arith.constant 0 : index
    %c0_86 = arith.constant 0 : index
    %151 = vector.load %arg3[%c0_85, %c0_86] : memref<32x96xf32, #tpu.memory_space<vmem>>, vector<32x96xf32>
    %cst_87 = arith.constant dense<0.000000e+00> : vector<1x96xf32>
    %152 = tpu.matmul %125, %151, %cst_87 {dimension_numbers = #tpu.dot_dimension_numbers<[1], [0], [0], [1], [0, 0, 1, 1], [], []>} : vector<1x32xf32>, vector<32x96xf32>, vector<1x96xf32> -> vector<1x96xf32>
    %c0_88 = arith.constant 0 : index
    %c0_89 = arith.constant 0 : index
    %153 = vector.load %arg7[%c0_88, %c0_89] : memref<32x96xf32, #tpu.memory_space<vmem>>, vector<32x96xf32>
    %cst_90 = arith.constant dense<0.000000e+00> : vector<1x96xf32>
    %154 = tpu.matmul %148, %153, %cst_90 {dimension_numbers = #tpu.dot_dimension_numbers<[1], [0], [0], [1], [0, 0, 1, 1], [], []>} : vector<1x32xf32>, vector<32x96xf32>, vector<1x96xf32> -> vector<1x96xf32>
    %c2_91 = arith.constant 2 : index
    %c0_92 = arith.constant 0 : index
    %155 = vector.load %arg21[%c2_91, %c0_92] : memref<8x96xf32, #tpu.memory_space<vmem>>, vector<1x96xf32>
    %c0_93 = arith.constant 0 : index
    %c0_94 = arith.constant 0 : index
    %156 = vector.load %arg5[%c0_93, %c0_94] : memref<1x32xf32, #tpu.memory_space<vmem>>, vector<1x32xf32>
    %157 = vector.extract_strided_slice %155 {offsets = [0, 0], sizes = [1, 64], strides = [1, 1]} : vector<1x96xf32> to vector<1x64xf32>
    %158 = vector.extract_strided_slice %152 {offsets = [0, 0], sizes = [1, 64], strides = [1, 1]} : vector<1x96xf32> to vector<1x64xf32>
    %159 = arith.addf %157, %158 : vector<1x64xf32>
    %160 = arith.negf %159 : vector<1x64xf32>
    %161 = math.exp %160 : vector<1x64xf32>
    %cst_95 = arith.constant 1.000000e+00 : f32
    %162 = vector.broadcast %cst_95 : f32 to vector<1x64xf32>
    %163 = arith.addf %162, %161 : vector<1x64xf32>
    %164 = arith.divf %162, %163 : vector<1x64xf32>
    %165 = vector.extract_strided_slice %164 {offsets = [0, 0], sizes = [1, 32], strides = [1, 1]} : vector<1x64xf32> to vector<1x32xf32>
    %166 = vector.extract_strided_slice %164 {offsets = [0, 32], sizes = [1, 32], strides = [1, 1]} : vector<1x64xf32> to vector<1x32xf32>
    %167 = vector.extract_strided_slice %155 {offsets = [0, 64], sizes = [1, 32], strides = [1, 1]} : vector<1x96xf32> to vector<1x32xf32>
    %168 = vector.extract_strided_slice %152 {offsets = [0, 64], sizes = [1, 32], strides = [1, 1]} : vector<1x96xf32> to vector<1x32xf32>
    %169 = arith.addf %168, %156 : vector<1x32xf32>
    %170 = arith.mulf %165, %169 : vector<1x32xf32>
    %171 = arith.addf %167, %170 : vector<1x32xf32>
    %172 = math.tanh %171 : vector<1x32xf32>
    %cst_96 = arith.constant 1.000000e+00 : f32
    %173 = vector.broadcast %cst_96 : f32 to vector<1x32xf32>
    %174 = arith.subf %173, %166 : vector<1x32xf32>
    %175 = arith.mulf %174, %172 : vector<1x32xf32>
    %176 = arith.mulf %166, %125 : vector<1x32xf32>
    %177 = arith.addf %175, %176 : vector<1x32xf32>
    %c5_97 = arith.constant 5 : index
    %c0_98 = arith.constant 0 : index
    %178 = vector.load %arg22[%c5_97, %c0_98] : memref<8x96xf32, #tpu.memory_space<vmem>>, vector<1x96xf32>
    %c0_99 = arith.constant 0 : index
    %c0_100 = arith.constant 0 : index
    %179 = vector.load %arg9[%c0_99, %c0_100] : memref<1x32xf32, #tpu.memory_space<vmem>>, vector<1x32xf32>
    %180 = vector.extract_strided_slice %178 {offsets = [0, 0], sizes = [1, 64], strides = [1, 1]} : vector<1x96xf32> to vector<1x64xf32>
    %181 = vector.extract_strided_slice %154 {offsets = [0, 0], sizes = [1, 64], strides = [1, 1]} : vector<1x96xf32> to vector<1x64xf32>
    %182 = arith.addf %180, %181 : vector<1x64xf32>
    %183 = arith.negf %182 : vector<1x64xf32>
    %184 = math.exp %183 : vector<1x64xf32>
    %cst_101 = arith.constant 1.000000e+00 : f32
    %185 = vector.broadcast %cst_101 : f32 to vector<1x64xf32>
    %186 = arith.addf %185, %184 : vector<1x64xf32>
    %187 = arith.divf %185, %186 : vector<1x64xf32>
    %188 = vector.extract_strided_slice %187 {offsets = [0, 0], sizes = [1, 32], strides = [1, 1]} : vector<1x64xf32> to vector<1x32xf32>
    %189 = vector.extract_strided_slice %187 {offsets = [0, 32], sizes = [1, 32], strides = [1, 1]} : vector<1x64xf32> to vector<1x32xf32>
    %190 = vector.extract_strided_slice %178 {offsets = [0, 64], sizes = [1, 32], strides = [1, 1]} : vector<1x96xf32> to vector<1x32xf32>
    %191 = vector.extract_strided_slice %154 {offsets = [0, 64], sizes = [1, 32], strides = [1, 1]} : vector<1x96xf32> to vector<1x32xf32>
    %192 = arith.addf %191, %179 : vector<1x32xf32>
    %193 = arith.mulf %188, %192 : vector<1x32xf32>
    %194 = arith.addf %190, %193 : vector<1x32xf32>
    %195 = math.tanh %194 : vector<1x32xf32>
    %cst_102 = arith.constant 1.000000e+00 : f32
    %196 = vector.broadcast %cst_102 : f32 to vector<1x32xf32>
    %197 = arith.subf %196, %189 : vector<1x32xf32>
    %198 = arith.mulf %197, %195 : vector<1x32xf32>
    %199 = arith.mulf %189, %148 : vector<1x32xf32>
    %200 = arith.addf %198, %199 : vector<1x32xf32>
    %c2_103 = arith.constant 2 : index
    %c0_104 = arith.constant 0 : index
    %201 = vector.load %arg20[%c2_103, %c0_104] : memref<8x32xf32, #tpu.memory_space<vmem>>, vector<1x32xf32>
    tpu.vector_store %arg20[%c2_103, %c0_104], %177 {strides = array<i32>} : memref<8x32xf32, #tpu.memory_space<vmem>>, vector<1x32xf32>,
    %c5_105 = arith.constant 5 : index
    %c0_106 = arith.constant 0 : index
    %202 = vector.load %arg20[%c5_105, %c0_106] : memref<8x32xf32, #tpu.memory_space<vmem>>, vector<1x32xf32>
    tpu.vector_store %arg20[%c5_105, %c0_106], %200 {strides = array<i32>} : memref<8x32xf32, #tpu.memory_space<vmem>>, vector<1x32xf32>,
    %c0_107 = arith.constant 0 : index
    %c0_108 = arith.constant 0 : index
    %203 = vector.load %arg3[%c0_107, %c0_108] : memref<32x96xf32, #tpu.memory_space<vmem>>, vector<32x96xf32>
    %cst_109 = arith.constant dense<0.000000e+00> : vector<1x96xf32>
    %204 = tpu.matmul %177, %203, %cst_109 {dimension_numbers = #tpu.dot_dimension_numbers<[1], [0], [0], [1], [0, 0, 1, 1], [], []>} : vector<1x32xf32>, vector<32x96xf32>, vector<1x96xf32> -> vector<1x96xf32>
    %c0_110 = arith.constant 0 : index
    %c0_111 = arith.constant 0 : index
    %205 = vector.load %arg7[%c0_110, %c0_111] : memref<32x96xf32, #tpu.memory_space<vmem>>, vector<32x96xf32>
    %cst_112 = arith.constant dense<0.000000e+00> : vector<1x96xf32>
    %206 = tpu.matmul %200, %205, %cst_112 {dimension_numbers = #tpu.dot_dimension_numbers<[1], [0], [0], [1], [0, 0, 1, 1], [], []>} : vector<1x32xf32>, vector<32x96xf32>, vector<1x96xf32> -> vector<1x96xf32>
    %c3_113 = arith.constant 3 : index
    %c0_114 = arith.constant 0 : index
    %207 = vector.load %arg21[%c3_113, %c0_114] : memref<8x96xf32, #tpu.memory_space<vmem>>, vector<1x96xf32>
    %c0_115 = arith.constant 0 : index
    %c0_116 = arith.constant 0 : index
    %208 = vector.load %arg5[%c0_115, %c0_116] : memref<1x32xf32, #tpu.memory_space<vmem>>, vector<1x32xf32>
    %209 = vector.extract_strided_slice %207 {offsets = [0, 0], sizes = [1, 64], strides = [1, 1]} : vector<1x96xf32> to vector<1x64xf32>
    %210 = vector.extract_strided_slice %204 {offsets = [0, 0], sizes = [1, 64], strides = [1, 1]} : vector<1x96xf32> to vector<1x64xf32>
    %211 = arith.addf %209, %210 : vector<1x64xf32>
    %212 = arith.negf %211 : vector<1x64xf32>
    %213 = math.exp %212 : vector<1x64xf32>
    %cst_117 = arith.constant 1.000000e+00 : f32
    %214 = vector.broadcast %cst_117 : f32 to vector<1x64xf32>
    %215 = arith.addf %214, %213 : vector<1x64xf32>
    %216 = arith.divf %214, %215 : vector<1x64xf32>
    %217 = vector.extract_strided_slice %216 {offsets = [0, 0], sizes = [1, 32], strides = [1, 1]} : vector<1x64xf32> to vector<1x32xf32>
    %218 = vector.extract_strided_slice %216 {offsets = [0, 32], sizes = [1, 32], strides = [1, 1]} : vector<1x64xf32> to vector<1x32xf32>
    %219 = vector.extract_strided_slice %207 {offsets = [0, 64], sizes = [1, 32], strides = [1, 1]} : vector<1x96xf32> to vector<1x32xf32>
    %220 = vector.extract_strided_slice %204 {offsets = [0, 64], sizes = [1, 32], strides = [1, 1]} : vector<1x96xf32> to vector<1x32xf32>
    %221 = arith.addf %220, %208 : vector<1x32xf32>
    %222 = arith.mulf %217, %221 : vector<1x32xf32>
    %223 = arith.addf %219, %222 : vector<1x32xf32>
    %224 = math.tanh %223 : vector<1x32xf32>
    %cst_118 = arith.constant 1.000000e+00 : f32
    %225 = vector.broadcast %cst_118 : f32 to vector<1x32xf32>
    %226 = arith.subf %225, %218 : vector<1x32xf32>
    %227 = arith.mulf %226, %224 : vector<1x32xf32>
    %228 = arith.mulf %218, %177 : vector<1x32xf32>
    %229 = arith.addf %227, %228 : vector<1x32xf32>
    %c4_119 = arith.constant 4 : index
    %c0_120 = arith.constant 0 : index
    %230 = vector.load %arg22[%c4_119, %c0_120] : memref<8x96xf32, #tpu.memory_space<vmem>>, vector<1x96xf32>
    %c0_121 = arith.constant 0 : index
    %c0_122 = arith.constant 0 : index
    %231 = vector.load %arg9[%c0_121, %c0_122] : memref<1x32xf32, #tpu.memory_space<vmem>>, vector<1x32xf32>
    %232 = vector.extract_strided_slice %230 {offsets = [0, 0], sizes = [1, 64], strides = [1, 1]} : vector<1x96xf32> to vector<1x64xf32>
    %233 = vector.extract_strided_slice %206 {offsets = [0, 0], sizes = [1, 64], strides = [1, 1]} : vector<1x96xf32> to vector<1x64xf32>
    %234 = arith.addf %232, %233 : vector<1x64xf32>
    %235 = arith.negf %234 : vector<1x64xf32>
    %236 = math.exp %235 : vector<1x64xf32>
    %cst_123 = arith.constant 1.000000e+00 : f32
    %237 = vector.broadcast %cst_123 : f32 to vector<1x64xf32>
    %238 = arith.addf %237, %236 : vector<1x64xf32>
    %239 = arith.divf %237, %238 : vector<1x64xf32>
    %240 = vector.extract_strided_slice %239 {offsets = [0, 0], sizes = [1, 32], strides = [1, 1]} : vector<1x64xf32> to vector<1x32xf32>
    %241 = vector.extract_strided_slice %239 {offsets = [0, 32], sizes = [1, 32], strides = [1, 1]} : vector<1x64xf32> to vector<1x32xf32>
    %242 = vector.extract_strided_slice %230 {offsets = [0, 64], sizes = [1, 32], strides = [1, 1]} : vector<1x96xf32> to vector<1x32xf32>
    %243 = vector.extract_strided_slice %206 {offsets = [0, 64], sizes = [1, 32], strides = [1, 1]} : vector<1x96xf32> to vector<1x32xf32>
    %244 = arith.addf %243, %231 : vector<1x32xf32>
    %245 = arith.mulf %240, %244 : vector<1x32xf32>
    %246 = arith.addf %242, %245 : vector<1x32xf32>
    %247 = math.tanh %246 : vector<1x32xf32>
    %cst_124 = arith.constant 1.000000e+00 : f32
    %248 = vector.broadcast %cst_124 : f32 to vector<1x32xf32>
    %249 = arith.subf %248, %241 : vector<1x32xf32>
    %250 = arith.mulf %249, %247 : vector<1x32xf32>
    %251 = arith.mulf %241, %200 : vector<1x32xf32>
    %252 = arith.addf %250, %251 : vector<1x32xf32>
    %c3_125 = arith.constant 3 : index
    %c0_126 = arith.constant 0 : index
    %253 = vector.load %arg20[%c3_125, %c0_126] : memref<8x32xf32, #tpu.memory_space<vmem>>, vector<1x32xf32>
    tpu.vector_store %arg20[%c3_125, %c0_126], %229 {strides = array<i32>} : memref<8x32xf32, #tpu.memory_space<vmem>>, vector<1x32xf32>,
    %c4_127 = arith.constant 4 : index
    %c0_128 = arith.constant 0 : index
    %254 = vector.load %arg20[%c4_127, %c0_128] : memref<8x32xf32, #tpu.memory_space<vmem>>, vector<1x32xf32>
    tpu.vector_store %arg20[%c4_127, %c0_128], %252 {strides = array<i32>} : memref<8x32xf32, #tpu.memory_space<vmem>>, vector<1x32xf32>,
    %c0_129 = arith.constant 0 : index
    %c0_130 = arith.constant 0 : index
    %255 = vector.load %arg3[%c0_129, %c0_130] : memref<32x96xf32, #tpu.memory_space<vmem>>, vector<32x96xf32>
    %cst_131 = arith.constant dense<0.000000e+00> : vector<1x96xf32>
    %256 = tpu.matmul %229, %255, %cst_131 {dimension_numbers = #tpu.dot_dimension_numbers<[1], [0], [0], [1], [0, 0, 1, 1], [], []>} : vector<1x32xf32>, vector<32x96xf32>, vector<1x96xf32> -> vector<1x96xf32>
    %c0_132 = arith.constant 0 : index
    %c0_133 = arith.constant 0 : index
    %257 = vector.load %arg7[%c0_132, %c0_133] : memref<32x96xf32, #tpu.memory_space<vmem>>, vector<32x96xf32>
    %cst_134 = arith.constant dense<0.000000e+00> : vector<1x96xf32>
    %258 = tpu.matmul %252, %257, %cst_134 {dimension_numbers = #tpu.dot_dimension_numbers<[1], [0], [0], [1], [0, 0, 1, 1], [], []>} : vector<1x32xf32>, vector<32x96xf32>, vector<1x96xf32> -> vector<1x96xf32>
    %c4_135 = arith.constant 4 : index
    %c0_136 = arith.constant 0 : index
    %259 = vector.load %arg21[%c4_135, %c0_136] : memref<8x96xf32, #tpu.memory_space<vmem>>, vector<1x96xf32>
    %c0_137 = arith.constant 0 : index
    %c0_138 = arith.constant 0 : index
    %260 = vector.load %arg5[%c0_137, %c0_138] : memref<1x32xf32, #tpu.memory_space<vmem>>, vector<1x32xf32>
    %261 = vector.extract_strided_slice %259 {offsets = [0, 0], sizes = [1, 64], strides = [1, 1]} : vector<1x96xf32> to vector<1x64xf32>
    %262 = vector.extract_strided_slice %256 {offsets = [0, 0], sizes = [1, 64], strides = [1, 1]} : vector<1x96xf32> to vector<1x64xf32>
    %263 = arith.addf %261, %262 : vector<1x64xf32>
    %264 = arith.negf %263 : vector<1x64xf32>
    %265 = math.exp %264 : vector<1x64xf32>
    %cst_139 = arith.constant 1.000000e+00 : f32
    %266 = vector.broadcast %cst_139 : f32 to vector<1x64xf32>
    %267 = arith.addf %266, %265 : vector<1x64xf32>
    %268 = arith.divf %266, %267 : vector<1x64xf32>
    %269 = vector.extract_strided_slice %268 {offsets = [0, 0], sizes = [1, 32], strides = [1, 1]} : vector<1x64xf32> to vector<1x32xf32>
    %270 = vector.extract_strided_slice %268 {offsets = [0, 32], sizes = [1, 32], strides = [1, 1]} : vector<1x64xf32> to vector<1x32xf32>
    %271 = vector.extract_strided_slice %259 {offsets = [0, 64], sizes = [1, 32], strides = [1, 1]} : vector<1x96xf32> to vector<1x32xf32>
    %272 = vector.extract_strided_slice %256 {offsets = [0, 64], sizes = [1, 32], strides = [1, 1]} : vector<1x96xf32> to vector<1x32xf32>
    %273 = arith.addf %272, %260 : vector<1x32xf32>
    %274 = arith.mulf %269, %273 : vector<1x32xf32>
    %275 = arith.addf %271, %274 : vector<1x32xf32>
    %276 = math.tanh %275 : vector<1x32xf32>
    %cst_140 = arith.constant 1.000000e+00 : f32
    %277 = vector.broadcast %cst_140 : f32 to vector<1x32xf32>
    %278 = arith.subf %277, %270 : vector<1x32xf32>
    %279 = arith.mulf %278, %276 : vector<1x32xf32>
    %280 = arith.mulf %270, %229 : vector<1x32xf32>
    %281 = arith.addf %279, %280 : vector<1x32xf32>
    %c3_141 = arith.constant 3 : index
    %c0_142 = arith.constant 0 : index
    %282 = vector.load %arg22[%c3_141, %c0_142] : memref<8x96xf32, #tpu.memory_space<vmem>>, vector<1x96xf32>
    %c0_143 = arith.constant 0 : index
    %c0_144 = arith.constant 0 : index
    %283 = vector.load %arg9[%c0_143, %c0_144] : memref<1x32xf32, #tpu.memory_space<vmem>>, vector<1x32xf32>
    %284 = vector.extract_strided_slice %282 {offsets = [0, 0], sizes = [1, 64], strides = [1, 1]} : vector<1x96xf32> to vector<1x64xf32>
    %285 = vector.extract_strided_slice %258 {offsets = [0, 0], sizes = [1, 64], strides = [1, 1]} : vector<1x96xf32> to vector<1x64xf32>
    %286 = arith.addf %284, %285 : vector<1x64xf32>
    %287 = arith.negf %286 : vector<1x64xf32>
    %288 = math.exp %287 : vector<1x64xf32>
    %cst_145 = arith.constant 1.000000e+00 : f32
    %289 = vector.broadcast %cst_145 : f32 to vector<1x64xf32>
    %290 = arith.addf %289, %288 : vector<1x64xf32>
    %291 = arith.divf %289, %290 : vector<1x64xf32>
    %292 = vector.extract_strided_slice %291 {offsets = [0, 0], sizes = [1, 32], strides = [1, 1]} : vector<1x64xf32> to vector<1x32xf32>
    %293 = vector.extract_strided_slice %291 {offsets = [0, 32], sizes = [1, 32], strides = [1, 1]} : vector<1x64xf32> to vector<1x32xf32>
    %294 = vector.extract_strided_slice %282 {offsets = [0, 64], sizes = [1, 32], strides = [1, 1]} : vector<1x96xf32> to vector<1x32xf32>
    %295 = vector.extract_strided_slice %258 {offsets = [0, 64], sizes = [1, 32], strides = [1, 1]} : vector<1x96xf32> to vector<1x32xf32>
    %296 = arith.addf %295, %283 : vector<1x32xf32>
    %297 = arith.mulf %292, %296 : vector<1x32xf32>
    %298 = arith.addf %294, %297 : vector<1x32xf32>
    %299 = math.tanh %298 : vector<1x32xf32>
    %cst_146 = arith.constant 1.000000e+00 : f32
    %300 = vector.broadcast %cst_146 : f32 to vector<1x32xf32>
    %301 = arith.subf %300, %293 : vector<1x32xf32>
    %302 = arith.mulf %301, %299 : vector<1x32xf32>
    %303 = arith.mulf %293, %252 : vector<1x32xf32>
    %304 = arith.addf %302, %303 : vector<1x32xf32>
    %c4_147 = arith.constant 4 : index
    %c0_148 = arith.constant 0 : index
    %305 = vector.load %arg20[%c4_147, %c0_148] : memref<8x32xf32, #tpu.memory_space<vmem>>, vector<1x32xf32>
    %306 = arith.addf %305, %281 : vector<1x32xf32>
    %c4_149 = arith.constant 4 : index
    %c0_150 = arith.constant 0 : index
    %307 = vector.load %arg20[%c4_149, %c0_150] : memref<8x32xf32, #tpu.memory_space<vmem>>, vector<1x32xf32>
    tpu.vector_store %arg20[%c4_149, %c0_150], %306 {strides = array<i32>} : memref<8x32xf32, #tpu.memory_space<vmem>>, vector<1x32xf32>,
    %c3_151 = arith.constant 3 : index
    %c0_152 = arith.constant 0 : index
    %308 = vector.load %arg20[%c3_151, %c0_152] : memref<8x32xf32, #tpu.memory_space<vmem>>, vector<1x32xf32>
    %309 = arith.addf %308, %304 : vector<1x32xf32>
    %c3_153 = arith.constant 3 : index
    %c0_154 = arith.constant 0 : index
    %310 = vector.load %arg20[%c3_153, %c0_154] : memref<8x32xf32, #tpu.memory_space<vmem>>, vector<1x32xf32>
    tpu.vector_store %arg20[%c3_153, %c0_154], %309 {strides = array<i32>} : memref<8x32xf32, #tpu.memory_space<vmem>>, vector<1x32xf32>,
    %c0_155 = arith.constant 0 : index
    %c0_156 = arith.constant 0 : index
    %311 = vector.load %arg3[%c0_155, %c0_156] : memref<32x96xf32, #tpu.memory_space<vmem>>, vector<32x96xf32>
    %cst_157 = arith.constant dense<0.000000e+00> : vector<1x96xf32>
    %312 = tpu.matmul %281, %311, %cst_157 {dimension_numbers = #tpu.dot_dimension_numbers<[1], [0], [0], [1], [0, 0, 1, 1], [], []>} : vector<1x32xf32>, vector<32x96xf32>, vector<1x96xf32> -> vector<1x96xf32>
    %c0_158 = arith.constant 0 : index
    %c0_159 = arith.constant 0 : index
    %313 = vector.load %arg7[%c0_158, %c0_159] : memref<32x96xf32, #tpu.memory_space<vmem>>, vector<32x96xf32>
    %cst_160 = arith.constant dense<0.000000e+00> : vector<1x96xf32>
    %314 = tpu.matmul %304, %313, %cst_160 {dimension_numbers = #tpu.dot_dimension_numbers<[1], [0], [0], [1], [0, 0, 1, 1], [], []>} : vector<1x32xf32>, vector<32x96xf32>, vector<1x96xf32> -> vector<1x96xf32>
    %c5_161 = arith.constant 5 : index
    %c0_162 = arith.constant 0 : index
    %315 = vector.load %arg21[%c5_161, %c0_162] : memref<8x96xf32, #tpu.memory_space<vmem>>, vector<1x96xf32>
    %c0_163 = arith.constant 0 : index
    %c0_164 = arith.constant 0 : index
    %316 = vector.load %arg5[%c0_163, %c0_164] : memref<1x32xf32, #tpu.memory_space<vmem>>, vector<1x32xf32>
    %317 = vector.extract_strided_slice %315 {offsets = [0, 0], sizes = [1, 64], strides = [1, 1]} : vector<1x96xf32> to vector<1x64xf32>
    %318 = vector.extract_strided_slice %312 {offsets = [0, 0], sizes = [1, 64], strides = [1, 1]} : vector<1x96xf32> to vector<1x64xf32>
    %319 = arith.addf %317, %318 : vector<1x64xf32>
    %320 = arith.negf %319 : vector<1x64xf32>
    %321 = math.exp %320 : vector<1x64xf32>
    %cst_165 = arith.constant 1.000000e+00 : f32
    %322 = vector.broadcast %cst_165 : f32 to vector<1x64xf32>
    %323 = arith.addf %322, %321 : vector<1x64xf32>
    %324 = arith.divf %322, %323 : vector<1x64xf32>
    %325 = vector.extract_strided_slice %324 {offsets = [0, 0], sizes = [1, 32], strides = [1, 1]} : vector<1x64xf32> to vector<1x32xf32>
    %326 = vector.extract_strided_slice %324 {offsets = [0, 32], sizes = [1, 32], strides = [1, 1]} : vector<1x64xf32> to vector<1x32xf32>
    %327 = vector.extract_strided_slice %315 {offsets = [0, 64], sizes = [1, 32], strides = [1, 1]} : vector<1x96xf32> to vector<1x32xf32>
    %328 = vector.extract_strided_slice %312 {offsets = [0, 64], sizes = [1, 32], strides = [1, 1]} : vector<1x96xf32> to vector<1x32xf32>
    %329 = arith.addf %328, %316 : vector<1x32xf32>
    %330 = arith.mulf %325, %329 : vector<1x32xf32>
    %331 = arith.addf %327, %330 : vector<1x32xf32>
    %332 = math.tanh %331 : vector<1x32xf32>
    %cst_166 = arith.constant 1.000000e+00 : f32
    %333 = vector.broadcast %cst_166 : f32 to vector<1x32xf32>
    %334 = arith.subf %333, %326 : vector<1x32xf32>
    %335 = arith.mulf %334, %332 : vector<1x32xf32>
    %336 = arith.mulf %326, %281 : vector<1x32xf32>
    %337 = arith.addf %335, %336 : vector<1x32xf32>
    %c2_167 = arith.constant 2 : index
    %c0_168 = arith.constant 0 : index
    %338 = vector.load %arg22[%c2_167, %c0_168] : memref<8x96xf32, #tpu.memory_space<vmem>>, vector<1x96xf32>
    %c0_169 = arith.constant 0 : index
    %c0_170 = arith.constant 0 : index
    %339 = vector.load %arg9[%c0_169, %c0_170] : memref<1x32xf32, #tpu.memory_space<vmem>>, vector<1x32xf32>
    %340 = vector.extract_strided_slice %338 {offsets = [0, 0], sizes = [1, 64], strides = [1, 1]} : vector<1x96xf32> to vector<1x64xf32>
    %341 = vector.extract_strided_slice %314 {offsets = [0, 0], sizes = [1, 64], strides = [1, 1]} : vector<1x96xf32> to vector<1x64xf32>
    %342 = arith.addf %340, %341 : vector<1x64xf32>
    %343 = arith.negf %342 : vector<1x64xf32>
    %344 = math.exp %343 : vector<1x64xf32>
    %cst_171 = arith.constant 1.000000e+00 : f32
    %345 = vector.broadcast %cst_171 : f32 to vector<1x64xf32>
    %346 = arith.addf %345, %344 : vector<1x64xf32>
    %347 = arith.divf %345, %346 : vector<1x64xf32>
    %348 = vector.extract_strided_slice %347 {offsets = [0, 0], sizes = [1, 32], strides = [1, 1]} : vector<1x64xf32> to vector<1x32xf32>
    %349 = vector.extract_strided_slice %347 {offsets = [0, 32], sizes = [1, 32], strides = [1, 1]} : vector<1x64xf32> to vector<1x32xf32>
    %350 = vector.extract_strided_slice %338 {offsets = [0, 64], sizes = [1, 32], strides = [1, 1]} : vector<1x96xf32> to vector<1x32xf32>
    %351 = vector.extract_strided_slice %314 {offsets = [0, 64], sizes = [1, 32], strides = [1, 1]} : vector<1x96xf32> to vector<1x32xf32>
    %352 = arith.addf %351, %339 : vector<1x32xf32>
    %353 = arith.mulf %348, %352 : vector<1x32xf32>
    %354 = arith.addf %350, %353 : vector<1x32xf32>
    %355 = math.tanh %354 : vector<1x32xf32>
    %cst_172 = arith.constant 1.000000e+00 : f32
    %356 = vector.broadcast %cst_172 : f32 to vector<1x32xf32>
    %357 = arith.subf %356, %349 : vector<1x32xf32>
    %358 = arith.mulf %357, %355 : vector<1x32xf32>
    %359 = arith.mulf %349, %304 : vector<1x32xf32>
    %360 = arith.addf %358, %359 : vector<1x32xf32>
    %c5_173 = arith.constant 5 : index
    %c0_174 = arith.constant 0 : index
    %361 = vector.load %arg20[%c5_173, %c0_174] : memref<8x32xf32, #tpu.memory_space<vmem>>, vector<1x32xf32>
    %362 = arith.addf %361, %337 : vector<1x32xf32>
    %c5_175 = arith.constant 5 : index
    %c0_176 = arith.constant 0 : index
    %363 = vector.load %arg20[%c5_175, %c0_176] : memref<8x32xf32, #tpu.memory_space<vmem>>, vector<1x32xf32>
    tpu.vector_store %arg20[%c5_175, %c0_176], %362 {strides = array<i32>} : memref<8x32xf32, #tpu.memory_space<vmem>>, vector<1x32xf32>,
    %c2_177 = arith.constant 2 : index
    %c0_178 = arith.constant 0 : index
    %364 = vector.load %arg20[%c2_177, %c0_178] : memref<8x32xf32, #tpu.memory_space<vmem>>, vector<1x32xf32>
    %365 = arith.addf %364, %360 : vector<1x32xf32>
    %c2_179 = arith.constant 2 : index
    %c0_180 = arith.constant 0 : index
    %366 = vector.load %arg20[%c2_179, %c0_180] : memref<8x32xf32, #tpu.memory_space<vmem>>, vector<1x32xf32>
    tpu.vector_store %arg20[%c2_179, %c0_180], %365 {strides = array<i32>} : memref<8x32xf32, #tpu.memory_space<vmem>>, vector<1x32xf32>,
    %c0_181 = arith.constant 0 : index
    %c0_182 = arith.constant 0 : index
    %367 = vector.load %arg3[%c0_181, %c0_182] : memref<32x96xf32, #tpu.memory_space<vmem>>, vector<32x96xf32>
    %cst_183 = arith.constant dense<0.000000e+00> : vector<1x96xf32>
    %368 = tpu.matmul %337, %367, %cst_183 {dimension_numbers = #tpu.dot_dimension_numbers<[1], [0], [0], [1], [0, 0, 1, 1], [], []>} : vector<1x32xf32>, vector<32x96xf32>, vector<1x96xf32> -> vector<1x96xf32>
    %c0_184 = arith.constant 0 : index
    %c0_185 = arith.constant 0 : index
    %369 = vector.load %arg7[%c0_184, %c0_185] : memref<32x96xf32, #tpu.memory_space<vmem>>, vector<32x96xf32>
    %cst_186 = arith.constant dense<0.000000e+00> : vector<1x96xf32>
    %370 = tpu.matmul %360, %369, %cst_186 {dimension_numbers = #tpu.dot_dimension_numbers<[1], [0], [0], [1], [0, 0, 1, 1], [], []>} : vector<1x32xf32>, vector<32x96xf32>, vector<1x96xf32> -> vector<1x96xf32>
    %c6_187 = arith.constant 6 : index
    %c0_188 = arith.constant 0 : index
    %371 = vector.load %arg21[%c6_187, %c0_188] : memref<8x96xf32, #tpu.memory_space<vmem>>, vector<1x96xf32>
    %c0_189 = arith.constant 0 : index
    %c0_190 = arith.constant 0 : index
    %372 = vector.load %arg5[%c0_189, %c0_190] : memref<1x32xf32, #tpu.memory_space<vmem>>, vector<1x32xf32>
    %373 = vector.extract_strided_slice %371 {offsets = [0, 0], sizes = [1, 64], strides = [1, 1]} : vector<1x96xf32> to vector<1x64xf32>
    %374 = vector.extract_strided_slice %368 {offsets = [0, 0], sizes = [1, 64], strides = [1, 1]} : vector<1x96xf32> to vector<1x64xf32>
    %375 = arith.addf %373, %374 : vector<1x64xf32>
    %376 = arith.negf %375 : vector<1x64xf32>
    %377 = math.exp %376 : vector<1x64xf32>
    %cst_191 = arith.constant 1.000000e+00 : f32
    %378 = vector.broadcast %cst_191 : f32 to vector<1x64xf32>
    %379 = arith.addf %378, %377 : vector<1x64xf32>
    %380 = arith.divf %378, %379 : vector<1x64xf32>
    %381 = vector.extract_strided_slice %380 {offsets = [0, 0], sizes = [1, 32], strides = [1, 1]} : vector<1x64xf32> to vector<1x32xf32>
    %382 = vector.extract_strided_slice %380 {offsets = [0, 32], sizes = [1, 32], strides = [1, 1]} : vector<1x64xf32> to vector<1x32xf32>
    %383 = vector.extract_strided_slice %371 {offsets = [0, 64], sizes = [1, 32], strides = [1, 1]} : vector<1x96xf32> to vector<1x32xf32>
    %384 = vector.extract_strided_slice %368 {offsets = [0, 64], sizes = [1, 32], strides = [1, 1]} : vector<1x96xf32> to vector<1x32xf32>
    %385 = arith.addf %384, %372 : vector<1x32xf32>
    %386 = arith.mulf %381, %385 : vector<1x32xf32>
    %387 = arith.addf %383, %386 : vector<1x32xf32>
    %388 = math.tanh %387 : vector<1x32xf32>
    %cst_192 = arith.constant 1.000000e+00 : f32
    %389 = vector.broadcast %cst_192 : f32 to vector<1x32xf32>
    %390 = arith.subf %389, %382 : vector<1x32xf32>
    %391 = arith.mulf %390, %388 : vector<1x32xf32>
    %392 = arith.mulf %382, %337 : vector<1x32xf32>
    %393 = arith.addf %391, %392 : vector<1x32xf32>
    %c1_193 = arith.constant 1 : index
    %c0_194 = arith.constant 0 : index
    %394 = vector.load %arg22[%c1_193, %c0_194] : memref<8x96xf32, #tpu.memory_space<vmem>>, vector<1x96xf32>
    %c0_195 = arith.constant 0 : index
    %c0_196 = arith.constant 0 : index
    %395 = vector.load %arg9[%c0_195, %c0_196] : memref<1x32xf32, #tpu.memory_space<vmem>>, vector<1x32xf32>
    %396 = vector.extract_strided_slice %394 {offsets = [0, 0], sizes = [1, 64], strides = [1, 1]} : vector<1x96xf32> to vector<1x64xf32>
    %397 = vector.extract_strided_slice %370 {offsets = [0, 0], sizes = [1, 64], strides = [1, 1]} : vector<1x96xf32> to vector<1x64xf32>
    %398 = arith.addf %396, %397 : vector<1x64xf32>
    %399 = arith.negf %398 : vector<1x64xf32>
    %400 = math.exp %399 : vector<1x64xf32>
    %cst_197 = arith.constant 1.000000e+00 : f32
    %401 = vector.broadcast %cst_197 : f32 to vector<1x64xf32>
    %402 = arith.addf %401, %400 : vector<1x64xf32>
    %403 = arith.divf %401, %402 : vector<1x64xf32>
    %404 = vector.extract_strided_slice %403 {offsets = [0, 0], sizes = [1, 32], strides = [1, 1]} : vector<1x64xf32> to vector<1x32xf32>
    %405 = vector.extract_strided_slice %403 {offsets = [0, 32], sizes = [1, 32], strides = [1, 1]} : vector<1x64xf32> to vector<1x32xf32>
    %406 = vector.extract_strided_slice %394 {offsets = [0, 64], sizes = [1, 32], strides = [1, 1]} : vector<1x96xf32> to vector<1x32xf32>
    %407 = vector.extract_strided_slice %370 {offsets = [0, 64], sizes = [1, 32], strides = [1, 1]} : vector<1x96xf32> to vector<1x32xf32>
    %408 = arith.addf %407, %395 : vector<1x32xf32>
    %409 = arith.mulf %404, %408 : vector<1x32xf32>
    %410 = arith.addf %406, %409 : vector<1x32xf32>
    %411 = math.tanh %410 : vector<1x32xf32>
    %cst_198 = arith.constant 1.000000e+00 : f32
    %412 = vector.broadcast %cst_198 : f32 to vector<1x32xf32>
    %413 = arith.subf %412, %405 : vector<1x32xf32>
    %414 = arith.mulf %413, %411 : vector<1x32xf32>
    %415 = arith.mulf %405, %360 : vector<1x32xf32>
    %416 = arith.addf %414, %415 : vector<1x32xf32>
    %c6_199 = arith.constant 6 : index
    %c0_200 = arith.constant 0 : index
    %417 = vector.load %arg20[%c6_199, %c0_200] : memref<8x32xf32, #tpu.memory_space<vmem>>, vector<1x32xf32>
    %418 = arith.addf %417, %393 : vector<1x32xf32>
    %c6_201 = arith.constant 6 : index
    %c0_202 = arith.constant 0 : index
    %419 = vector.load %arg20[%c6_201, %c0_202] : memref<8x32xf32, #tpu.memory_space<vmem>>, vector<1x32xf32>
    tpu.vector_store %arg20[%c6_201, %c0_202], %418 {strides = array<i32>} : memref<8x32xf32, #tpu.memory_space<vmem>>, vector<1x32xf32>,
    %c1_203 = arith.constant 1 : index
    %c0_204 = arith.constant 0 : index
    %420 = vector.load %arg20[%c1_203, %c0_204] : memref<8x32xf32, #tpu.memory_space<vmem>>, vector<1x32xf32>
    %421 = arith.addf %420, %416 : vector<1x32xf32>
    %c1_205 = arith.constant 1 : index
    %c0_206 = arith.constant 0 : index
    %422 = vector.load %arg20[%c1_205, %c0_206] : memref<8x32xf32, #tpu.memory_space<vmem>>, vector<1x32xf32>
    tpu.vector_store %arg20[%c1_205, %c0_206], %421 {strides = array<i32>} : memref<8x32xf32, #tpu.memory_space<vmem>>, vector<1x32xf32>,
    %c0_207 = arith.constant 0 : index
    %c0_208 = arith.constant 0 : index
    %423 = vector.load %arg3[%c0_207, %c0_208] : memref<32x96xf32, #tpu.memory_space<vmem>>, vector<32x96xf32>
    %cst_209 = arith.constant dense<0.000000e+00> : vector<1x96xf32>
    %424 = tpu.matmul %393, %423, %cst_209 {dimension_numbers = #tpu.dot_dimension_numbers<[1], [0], [0], [1], [0, 0, 1, 1], [], []>} : vector<1x32xf32>, vector<32x96xf32>, vector<1x96xf32> -> vector<1x96xf32>
    %c0_210 = arith.constant 0 : index
    %c0_211 = arith.constant 0 : index
    %425 = vector.load %arg7[%c0_210, %c0_211] : memref<32x96xf32, #tpu.memory_space<vmem>>, vector<32x96xf32>
    %cst_212 = arith.constant dense<0.000000e+00> : vector<1x96xf32>
    %426 = tpu.matmul %416, %425, %cst_212 {dimension_numbers = #tpu.dot_dimension_numbers<[1], [0], [0], [1], [0, 0, 1, 1], [], []>} : vector<1x32xf32>, vector<32x96xf32>, vector<1x96xf32> -> vector<1x96xf32>
    %c7_213 = arith.constant 7 : index
    %c0_214 = arith.constant 0 : index
    %427 = vector.load %arg21[%c7_213, %c0_214] : memref<8x96xf32, #tpu.memory_space<vmem>>, vector<1x96xf32>
    %c0_215 = arith.constant 0 : index
    %c0_216 = arith.constant 0 : index
    %428 = vector.load %arg5[%c0_215, %c0_216] : memref<1x32xf32, #tpu.memory_space<vmem>>, vector<1x32xf32>
    %429 = vector.extract_strided_slice %427 {offsets = [0, 0], sizes = [1, 64], strides = [1, 1]} : vector<1x96xf32> to vector<1x64xf32>
    %430 = vector.extract_strided_slice %424 {offsets = [0, 0], sizes = [1, 64], strides = [1, 1]} : vector<1x96xf32> to vector<1x64xf32>
    %431 = arith.addf %429, %430 : vector<1x64xf32>
    %432 = arith.negf %431 : vector<1x64xf32>
    %433 = math.exp %432 : vector<1x64xf32>
    %cst_217 = arith.constant 1.000000e+00 : f32
    %434 = vector.broadcast %cst_217 : f32 to vector<1x64xf32>
    %435 = arith.addf %434, %433 : vector<1x64xf32>
    %436 = arith.divf %434, %435 : vector<1x64xf32>
    %437 = vector.extract_strided_slice %436 {offsets = [0, 0], sizes = [1, 32], strides = [1, 1]} : vector<1x64xf32> to vector<1x32xf32>
    %438 = vector.extract_strided_slice %436 {offsets = [0, 32], sizes = [1, 32], strides = [1, 1]} : vector<1x64xf32> to vector<1x32xf32>
    %439 = vector.extract_strided_slice %427 {offsets = [0, 64], sizes = [1, 32], strides = [1, 1]} : vector<1x96xf32> to vector<1x32xf32>
    %440 = vector.extract_strided_slice %424 {offsets = [0, 64], sizes = [1, 32], strides = [1, 1]} : vector<1x96xf32> to vector<1x32xf32>
    %441 = arith.addf %440, %428 : vector<1x32xf32>
    %442 = arith.mulf %437, %441 : vector<1x32xf32>
    %443 = arith.addf %439, %442 : vector<1x32xf32>
    %444 = math.tanh %443 : vector<1x32xf32>
    %cst_218 = arith.constant 1.000000e+00 : f32
    %445 = vector.broadcast %cst_218 : f32 to vector<1x32xf32>
    %446 = arith.subf %445, %438 : vector<1x32xf32>
    %447 = arith.mulf %446, %444 : vector<1x32xf32>
    %448 = arith.mulf %438, %393 : vector<1x32xf32>
    %449 = arith.addf %447, %448 : vector<1x32xf32>
    %c0_219 = arith.constant 0 : index
    %c0_220 = arith.constant 0 : index
    %450 = vector.load %arg22[%c0_219, %c0_220] : memref<8x96xf32, #tpu.memory_space<vmem>>, vector<1x96xf32>
    %c0_221 = arith.constant 0 : index
    %c0_222 = arith.constant 0 : index
    %451 = vector.load %arg9[%c0_221, %c0_222] : memref<1x32xf32, #tpu.memory_space<vmem>>, vector<1x32xf32>
    %452 = vector.extract_strided_slice %450 {offsets = [0, 0], sizes = [1, 64], strides = [1, 1]} : vector<1x96xf32> to vector<1x64xf32>
    %453 = vector.extract_strided_slice %426 {offsets = [0, 0], sizes = [1, 64], strides = [1, 1]} : vector<1x96xf32> to vector<1x64xf32>
    %454 = arith.addf %452, %453 : vector<1x64xf32>
    %455 = arith.negf %454 : vector<1x64xf32>
    %456 = math.exp %455 : vector<1x64xf32>
    %cst_223 = arith.constant 1.000000e+00 : f32
    %457 = vector.broadcast %cst_223 : f32 to vector<1x64xf32>
    %458 = arith.addf %457, %456 : vector<1x64xf32>
    %459 = arith.divf %457, %458 : vector<1x64xf32>
    %460 = vector.extract_strided_slice %459 {offsets = [0, 0], sizes = [1, 32], strides = [1, 1]} : vector<1x64xf32> to vector<1x32xf32>
    %461 = vector.extract_strided_slice %459 {offsets = [0, 32], sizes = [1, 32], strides = [1, 1]} : vector<1x64xf32> to vector<1x32xf32>
    %462 = vector.extract_strided_slice %450 {offsets = [0, 64], sizes = [1, 32], strides = [1, 1]} : vector<1x96xf32> to vector<1x32xf32>
    %463 = vector.extract_strided_slice %426 {offsets = [0, 64], sizes = [1, 32], strides = [1, 1]} : vector<1x96xf32> to vector<1x32xf32>
    %464 = arith.addf %463, %451 : vector<1x32xf32>
    %465 = arith.mulf %460, %464 : vector<1x32xf32>
    %466 = arith.addf %462, %465 : vector<1x32xf32>
    %467 = math.tanh %466 : vector<1x32xf32>
    %cst_224 = arith.constant 1.000000e+00 : f32
    %468 = vector.broadcast %cst_224 : f32 to vector<1x32xf32>
    %469 = arith.subf %468, %461 : vector<1x32xf32>
    %470 = arith.mulf %469, %467 : vector<1x32xf32>
    %471 = arith.mulf %461, %416 : vector<1x32xf32>
    %472 = arith.addf %470, %471 : vector<1x32xf32>
    %c7_225 = arith.constant 7 : index
    %c0_226 = arith.constant 0 : index
    %473 = vector.load %arg20[%c7_225, %c0_226] : memref<8x32xf32, #tpu.memory_space<vmem>>, vector<1x32xf32>
    %474 = arith.addf %473, %449 : vector<1x32xf32>
    %c7_227 = arith.constant 7 : index
    %c0_228 = arith.constant 0 : index
    %475 = vector.load %arg20[%c7_227, %c0_228] : memref<8x32xf32, #tpu.memory_space<vmem>>, vector<1x32xf32>
    tpu.vector_store %arg20[%c7_227, %c0_228], %474 {strides = array<i32>} : memref<8x32xf32, #tpu.memory_space<vmem>>, vector<1x32xf32>,
    %c0_229 = arith.constant 0 : index
    %c0_230 = arith.constant 0 : index
    %476 = vector.load %arg20[%c0_229, %c0_230] : memref<8x32xf32, #tpu.memory_space<vmem>>, vector<1x32xf32>
    %477 = arith.addf %476, %472 : vector<1x32xf32>
    %c0_231 = arith.constant 0 : index
    %c0_232 = arith.constant 0 : index
    %478 = vector.load %arg20[%c0_231, %c0_232] : memref<8x32xf32, #tpu.memory_space<vmem>>, vector<1x32xf32>
    tpu.vector_store %arg20[%c0_231, %c0_232], %477 {strides = array<i32>} : memref<8x32xf32, #tpu.memory_space<vmem>>, vector<1x32xf32>,
    %c0_233 = arith.constant 0 : index
    %c0_234 = arith.constant 0 : index
    %479 = vector.load %arg20[%c0_233, %c0_234] : memref<8x32xf32, #tpu.memory_space<vmem>>, vector<8x32xf32>
    %c0_235 = arith.constant 0 : index
    %c0_236 = arith.constant 0 : index
    %480 = vector.load %arg14[%c0_235, %c0_236] : memref<32x32xf32, #tpu.memory_space<vmem>>, vector<32x32xf32>
    %cst_237 = arith.constant dense<0.000000e+00> : vector<8x32xf32>
    %481 = tpu.matmul %479, %480, %cst_237 {dimension_numbers = #tpu.dot_dimension_numbers<[1], [0], [0], [1], [0, 0, 1, 1], [], []>} : vector<8x32xf32>, vector<32x32xf32>, vector<8x32xf32> -> vector<8x32xf32>
    %482 = tpu.iota {dimensions = array<i32: 1>} : vector<1x64xi32>
    %c1_i32 = arith.constant 1 : i32
    %483 = vector.broadcast %c1_i32 : i32 to vector<1x1xi32>
    %484 = vector.broadcast %483 : vector<1x1xi32> to vector<1x64xi32>
    %485 = arith.cmpi eq, %482, %484 : vector<1x64xi32>
    %486 = arith.extui %485 : vector<1x64xi1> to vector<1x64xi32>
    %487 = arith.sitofp %486 : vector<1x64xi32> to vector<1x64xf32>
    %c0_238 = arith.constant 0 : index
    %c0_239 = arith.constant 0 : index
    %488 = vector.load %arg10[%c0_238, %c0_239] : memref<64x96xf32, #tpu.memory_space<vmem>>, vector<64x96xf32>
    %cst_240 = arith.constant dense<0.000000e+00> : vector<1x96xf32>
    %489 = tpu.matmul %487, %488, %cst_240 {dimension_numbers = #tpu.dot_dimension_numbers<[1], [0], [0], [1], [0, 0, 1, 1], [], []>} : vector<1x64xf32>, vector<64x96xf32>, vector<1x96xf32> -> vector<1x96xf32>
    %c0_241 = arith.constant 0 : index
    %c0_242 = arith.constant 0 : index
    %490 = vector.load %arg11[%c0_241, %c0_242] : memref<32x96xf32, #tpu.memory_space<vmem>>, vector<32x96xf32>
    %cst_243 = arith.constant dense<0.000000e+00> : vector<1x96xf32>
    %491 = tpu.matmul %449, %490, %cst_243 {dimension_numbers = #tpu.dot_dimension_numbers<[1], [0], [0], [1], [0, 0, 1, 1], [], []>} : vector<1x32xf32>, vector<32x96xf32>, vector<1x96xf32> -> vector<1x96xf32>
    %c0_244 = arith.constant 0 : index
    %c0_245 = arith.constant 0 : index
    %492 = vector.load %arg12[%c0_244, %c0_245] : memref<1x32xf32, #tpu.memory_space<vmem>>, vector<1x32xf32>
    %493 = vector.extract_strided_slice %489 {offsets = [0, 0], sizes = [1, 64], strides = [1, 1]} : vector<1x96xf32> to vector<1x64xf32>
    %494 = vector.extract_strided_slice %491 {offsets = [0, 0], sizes = [1, 64], strides = [1, 1]} : vector<1x96xf32> to vector<1x64xf32>
    %495 = arith.addf %493, %494 : vector<1x64xf32>
    %496 = arith.negf %495 : vector<1x64xf32>
    %497 = math.exp %496 : vector<1x64xf32>
    %cst_246 = arith.constant 1.000000e+00 : f32
    %498 = vector.broadcast %cst_246 : f32 to vector<1x64xf32>
    %499 = arith.addf %498, %497 : vector<1x64xf32>
    %500 = arith.divf %498, %499 : vector<1x64xf32>
    %501 = vector.extract_strided_slice %500 {offsets = [0, 0], sizes = [1, 32], strides = [1, 1]} : vector<1x64xf32> to vector<1x32xf32>
    %502 = vector.extract_strided_slice %500 {offsets = [0, 32], sizes = [1, 32], strides = [1, 1]} : vector<1x64xf32> to vector<1x32xf32>
    %503 = vector.extract_strided_slice %489 {offsets = [0, 64], sizes = [1, 32], strides = [1, 1]} : vector<1x96xf32> to vector<1x32xf32>
    %504 = vector.extract_strided_slice %491 {offsets = [0, 64], sizes = [1, 32], strides = [1, 1]} : vector<1x96xf32> to vector<1x32xf32>
    %505 = arith.addf %504, %492 : vector<1x32xf32>
    %506 = arith.mulf %501, %505 : vector<1x32xf32>
    %507 = arith.addf %503, %506 : vector<1x32xf32>
    %508 = math.tanh %507 : vector<1x32xf32>
    %cst_247 = arith.constant 1.000000e+00 : f32
    %509 = vector.broadcast %cst_247 : f32 to vector<1x32xf32>
    %510 = arith.subf %509, %502 : vector<1x32xf32>
    %511 = arith.mulf %510, %508 : vector<1x32xf32>
    %512 = arith.mulf %502, %449 : vector<1x32xf32>
    %513 = arith.addf %511, %512 : vector<1x32xf32>
    %cst_248 = arith.constant dense<0.000000e+00> : vector<1x8xf32>
    %514 = tpu.matmul %513, %479, %cst_248 {dimension_numbers = #tpu.dot_dimension_numbers<[1], [1], [0], [0], [0, 0, 1, 0], [], []>} : vector<1x32xf32>, vector<8x32xf32>, vector<1x8xf32> -> vector<1x8xf32>
    %cst_249 = arith.constant dense<0xFF800000> : vector<1xf32>
    %515 = vector.multi_reduction <maximumf>, %514, %cst_249 [1] : vector<1x8xf32> to vector<1xf32>
    %516 = vector.shape_cast %515 : vector<1xf32> to vector<1x1xf32>
    %517 = vector.broadcast %516 : vector<1x1xf32> to vector<1x8xf32>
    %518 = arith.subf %514, %517 : vector<1x8xf32>
    %519 = math.exp %518 : vector<1x8xf32>
    %cst_250 = arith.constant dense<0.000000e+00> : vector<1xf32>
    %520 = vector.multi_reduction <add>, %519, %cst_250 [1] : vector<1x8xf32> to vector<1xf32>
    %521 = vector.shape_cast %520 : vector<1xf32> to vector<1x1xf32>
    %522 = vector.broadcast %521 : vector<1x1xf32> to vector<1x8xf32>
    %523 = arith.divf %519, %522 : vector<1x8xf32>
    %c0_251 = arith.constant 0 : index
    %c0_252 = arith.constant 0 : index
    %524 = vector.load %arg13[%c0_251, %c0_252] : memref<32x32xf32, #tpu.memory_space<vmem>>, vector<32x32xf32>
    %cst_253 = arith.constant dense<0.000000e+00> : vector<1x32xf32>
    %525 = tpu.matmul %513, %524, %cst_253 {dimension_numbers = #tpu.dot_dimension_numbers<[1], [0], [0], [1], [0, 0, 1, 1], [], []>} : vector<1x32xf32>, vector<32x32xf32>, vector<1x32xf32> -> vector<1x32xf32>
    %cst_254 = arith.constant dense<0.000000e+00> : vector<1x32xf32>
    %526 = tpu.matmul %523, %481, %cst_254 {dimension_numbers = #tpu.dot_dimension_numbers<[1], [0], [0], [1], [0, 0, 1, 1], [], []>} : vector<1x8xf32>, vector<8x32xf32>, vector<1x32xf32> -> vector<1x32xf32>
    %527 = arith.addf %525, %526 : vector<1x32xf32>
    %c0_255 = arith.constant 0 : index
    %c0_256 = arith.constant 0 : index
    %528 = vector.load %arg15[%c0_255, %c0_256] : memref<1x32xf32, #tpu.memory_space<vmem>>, vector<1x32xf32>
    %529 = arith.addf %527, %528 : vector<1x32xf32>
    %530 = math.tanh %529 : vector<1x32xf32>
    %c0_257 = arith.constant 0 : index
    %c0_258 = arith.constant 0 : index
    %531 = vector.load %arg16[%c0_257, %c0_258] : memref<32x64xf32, #tpu.memory_space<vmem>>, vector<32x64xf32>
    %cst_259 = arith.constant dense<0.000000e+00> : vector<1x64xf32>
    %532 = tpu.matmul %530, %531, %cst_259 {dimension_numbers = #tpu.dot_dimension_numbers<[1], [0], [0], [1], [0, 0, 1, 1], [], []>} : vector<1x32xf32>, vector<32x64xf32>, vector<1x64xf32> -> vector<1x64xf32>
    %c0_260 = arith.constant 0 : index
    %c0_261 = arith.constant 0 : index
    %533 = vector.load %arg17[%c0_260, %c0_261] : memref<1x64xf32, #tpu.memory_space<vmem>>, vector<1x64xf32>
    %534 = arith.addf %532, %533 : vector<1x64xf32>
    %cst_262 = arith.constant dense<0xFF800000> : vector<1xf32>
    %535 = vector.multi_reduction <maximumf>, %534, %cst_262 [1] : vector<1x64xf32> to vector<1xf32>
    %536 = vector.shape_cast %535 : vector<1xf32> to vector<1x1xf32>
    %537 = vector.broadcast %536 : vector<1x1xf32> to vector<1x64xf32>
    %538 = arith.subf %534, %537 : vector<1x64xf32>
    %539 = math.exp %538 : vector<1x64xf32>
    %cst_263 = arith.constant dense<0.000000e+00> : vector<1xf32>
    %540 = vector.multi_reduction <add>, %539, %cst_263 [1] : vector<1x64xf32> to vector<1xf32>
    %541 = vector.shape_cast %540 : vector<1xf32> to vector<1x1xf32>
    %cst_264 = arith.constant 1.000000e+00 : f32
    %542 = vector.broadcast %cst_264 : f32 to vector<1x1xf32>
    %543 = arith.divf %542, %541 : vector<1x1xf32>
    %544 = vector.broadcast %536 : vector<1x1xf32> to vector<1x64xf32>
    %545 = arith.cmpf oeq, %534, %544 : vector<1x64xf32>
    %c64_i32 = arith.constant 64 : i32
    %546 = vector.broadcast %c64_i32 : i32 to vector<1x64xi32>
    %547 = arith.select %545, %482, %546 : vector<1x64xi1>, vector<1x64xi32>
    %cst_265 = arith.constant dense<2147483647> : vector<1xi32>
    %548 = vector.multi_reduction <minsi>, %547, %cst_265 [1] : vector<1x64xi32> to vector<1xi32>
    %549 = vector.shape_cast %548 : vector<1xi32> to vector<1x1xi32>
    %c0_266 = arith.constant 0 : index
    %c0_267 = arith.constant 0 : index
    %550 = vector.load %arg18[%c0_266, %c0_267] : memref<1x6xi32, #tpu.memory_space<vmem>>, vector<1x1xi32>
    tpu.vector_store %arg18[%c0_266, %c0_267], %549 {strides = array<i32>} : memref<1x6xi32, #tpu.memory_space<vmem>>, vector<1x1xi32>,
    %c0_268 = arith.constant 0 : index
    %c0_269 = arith.constant 0 : index
    %551 = vector.load %arg19[%c0_268, %c0_269] : memref<1x6xf32, #tpu.memory_space<vmem>>, vector<1x1xf32>
    tpu.vector_store %arg19[%c0_268, %c0_269], %543 {strides = array<i32>} : memref<1x6xf32, #tpu.memory_space<vmem>>, vector<1x1xf32>,
    %552 = vector.broadcast %549 : vector<1x1xi32> to vector<1x64xi32>
    %553 = arith.cmpi eq, %482, %552 : vector<1x64xi32>
    %554 = arith.extui %553 : vector<1x64xi1> to vector<1x64xi32>
    %555 = arith.sitofp %554 : vector<1x64xi32> to vector<1x64xf32>
    %c0_270 = arith.constant 0 : index
    %c0_271 = arith.constant 0 : index
    %556 = vector.load %arg10[%c0_270, %c0_271] : memref<64x96xf32, #tpu.memory_space<vmem>>, vector<64x96xf32>
    %cst_272 = arith.constant dense<0.000000e+00> : vector<1x96xf32>
    %557 = tpu.matmul %555, %556, %cst_272 {dimension_numbers = #tpu.dot_dimension_numbers<[1], [0], [0], [1], [0, 0, 1, 1], [], []>} : vector<1x64xf32>, vector<64x96xf32>, vector<1x96xf32> -> vector<1x96xf32>
    %c0_273 = arith.constant 0 : index
    %c0_274 = arith.constant 0 : index
    %558 = vector.load %arg11[%c0_273, %c0_274] : memref<32x96xf32, #tpu.memory_space<vmem>>, vector<32x96xf32>
    %cst_275 = arith.constant dense<0.000000e+00> : vector<1x96xf32>
    %559 = tpu.matmul %513, %558, %cst_275 {dimension_numbers = #tpu.dot_dimension_numbers<[1], [0], [0], [1], [0, 0, 1, 1], [], []>} : vector<1x32xf32>, vector<32x96xf32>, vector<1x96xf32> -> vector<1x96xf32>
    %c0_276 = arith.constant 0 : index
    %c0_277 = arith.constant 0 : index
    %560 = vector.load %arg12[%c0_276, %c0_277] : memref<1x32xf32, #tpu.memory_space<vmem>>, vector<1x32xf32>
    %561 = vector.extract_strided_slice %557 {offsets = [0, 0], sizes = [1, 64], strides = [1, 1]} : vector<1x96xf32> to vector<1x64xf32>
    %562 = vector.extract_strided_slice %559 {offsets = [0, 0], sizes = [1, 64], strides = [1, 1]} : vector<1x96xf32> to vector<1x64xf32>
    %563 = arith.addf %561, %562 : vector<1x64xf32>
    %564 = arith.negf %563 : vector<1x64xf32>
    %565 = math.exp %564 : vector<1x64xf32>
    %cst_278 = arith.constant 1.000000e+00 : f32
    %566 = vector.broadcast %cst_278 : f32 to vector<1x64xf32>
    %567 = arith.addf %566, %565 : vector<1x64xf32>
    %568 = arith.divf %566, %567 : vector<1x64xf32>
    %569 = vector.extract_strided_slice %568 {offsets = [0, 0], sizes = [1, 32], strides = [1, 1]} : vector<1x64xf32> to vector<1x32xf32>
    %570 = vector.extract_strided_slice %568 {offsets = [0, 32], sizes = [1, 32], strides = [1, 1]} : vector<1x64xf32> to vector<1x32xf32>
    %571 = vector.extract_strided_slice %557 {offsets = [0, 64], sizes = [1, 32], strides = [1, 1]} : vector<1x96xf32> to vector<1x32xf32>
    %572 = vector.extract_strided_slice %559 {offsets = [0, 64], sizes = [1, 32], strides = [1, 1]} : vector<1x96xf32> to vector<1x32xf32>
    %573 = arith.addf %572, %560 : vector<1x32xf32>
    %574 = arith.mulf %569, %573 : vector<1x32xf32>
    %575 = arith.addf %571, %574 : vector<1x32xf32>
    %576 = math.tanh %575 : vector<1x32xf32>
    %cst_279 = arith.constant 1.000000e+00 : f32
    %577 = vector.broadcast %cst_279 : f32 to vector<1x32xf32>
    %578 = arith.subf %577, %570 : vector<1x32xf32>
    %579 = arith.mulf %578, %576 : vector<1x32xf32>
    %580 = arith.mulf %570, %513 : vector<1x32xf32>
    %581 = arith.addf %579, %580 : vector<1x32xf32>
    %cst_280 = arith.constant dense<0.000000e+00> : vector<1x8xf32>
    %582 = tpu.matmul %581, %479, %cst_280 {dimension_numbers = #tpu.dot_dimension_numbers<[1], [1], [0], [0], [0, 0, 1, 0], [], []>} : vector<1x32xf32>, vector<8x32xf32>, vector<1x8xf32> -> vector<1x8xf32>
    %cst_281 = arith.constant dense<0xFF800000> : vector<1xf32>
    %583 = vector.multi_reduction <maximumf>, %582, %cst_281 [1] : vector<1x8xf32> to vector<1xf32>
    %584 = vector.shape_cast %583 : vector<1xf32> to vector<1x1xf32>
    %585 = vector.broadcast %584 : vector<1x1xf32> to vector<1x8xf32>
    %586 = arith.subf %582, %585 : vector<1x8xf32>
    %587 = math.exp %586 : vector<1x8xf32>
    %cst_282 = arith.constant dense<0.000000e+00> : vector<1xf32>
    %588 = vector.multi_reduction <add>, %587, %cst_282 [1] : vector<1x8xf32> to vector<1xf32>
    %589 = vector.shape_cast %588 : vector<1xf32> to vector<1x1xf32>
    %590 = vector.broadcast %589 : vector<1x1xf32> to vector<1x8xf32>
    %591 = arith.divf %587, %590 : vector<1x8xf32>
    %c0_283 = arith.constant 0 : index
    %c0_284 = arith.constant 0 : index
    %592 = vector.load %arg13[%c0_283, %c0_284] : memref<32x32xf32, #tpu.memory_space<vmem>>, vector<32x32xf32>
    %cst_285 = arith.constant dense<0.000000e+00> : vector<1x32xf32>
    %593 = tpu.matmul %581, %592, %cst_285 {dimension_numbers = #tpu.dot_dimension_numbers<[1], [0], [0], [1], [0, 0, 1, 1], [], []>} : vector<1x32xf32>, vector<32x32xf32>, vector<1x32xf32> -> vector<1x32xf32>
    %cst_286 = arith.constant dense<0.000000e+00> : vector<1x32xf32>
    %594 = tpu.matmul %591, %481, %cst_286 {dimension_numbers = #tpu.dot_dimension_numbers<[1], [0], [0], [1], [0, 0, 1, 1], [], []>} : vector<1x8xf32>, vector<8x32xf32>, vector<1x32xf32> -> vector<1x32xf32>
    %595 = arith.addf %593, %594 : vector<1x32xf32>
    %c0_287 = arith.constant 0 : index
    %c0_288 = arith.constant 0 : index
    %596 = vector.load %arg15[%c0_287, %c0_288] : memref<1x32xf32, #tpu.memory_space<vmem>>, vector<1x32xf32>
    %597 = arith.addf %595, %596 : vector<1x32xf32>
    %598 = math.tanh %597 : vector<1x32xf32>
    %c0_289 = arith.constant 0 : index
    %c0_290 = arith.constant 0 : index
    %599 = vector.load %arg16[%c0_289, %c0_290] : memref<32x64xf32, #tpu.memory_space<vmem>>, vector<32x64xf32>
    %cst_291 = arith.constant dense<0.000000e+00> : vector<1x64xf32>
    %600 = tpu.matmul %598, %599, %cst_291 {dimension_numbers = #tpu.dot_dimension_numbers<[1], [0], [0], [1], [0, 0, 1, 1], [], []>} : vector<1x32xf32>, vector<32x64xf32>, vector<1x64xf32> -> vector<1x64xf32>
    %c0_292 = arith.constant 0 : index
    %c0_293 = arith.constant 0 : index
    %601 = vector.load %arg17[%c0_292, %c0_293] : memref<1x64xf32, #tpu.memory_space<vmem>>, vector<1x64xf32>
    %602 = arith.addf %600, %601 : vector<1x64xf32>
    %cst_294 = arith.constant dense<0xFF800000> : vector<1xf32>
    %603 = vector.multi_reduction <maximumf>, %602, %cst_294 [1] : vector<1x64xf32> to vector<1xf32>
    %604 = vector.shape_cast %603 : vector<1xf32> to vector<1x1xf32>
    %605 = vector.broadcast %604 : vector<1x1xf32> to vector<1x64xf32>
    %606 = arith.subf %602, %605 : vector<1x64xf32>
    %607 = math.exp %606 : vector<1x64xf32>
    %cst_295 = arith.constant dense<0.000000e+00> : vector<1xf32>
    %608 = vector.multi_reduction <add>, %607, %cst_295 [1] : vector<1x64xf32> to vector<1xf32>
    %609 = vector.shape_cast %608 : vector<1xf32> to vector<1x1xf32>
    %cst_296 = arith.constant 1.000000e+00 : f32
    %610 = vector.broadcast %cst_296 : f32 to vector<1x1xf32>
    %611 = arith.divf %610, %609 : vector<1x1xf32>
    %612 = vector.broadcast %604 : vector<1x1xf32> to vector<1x64xf32>
    %613 = arith.cmpf oeq, %602, %612 : vector<1x64xf32>
    %c64_i32_297 = arith.constant 64 : i32
    %614 = vector.broadcast %c64_i32_297 : i32 to vector<1x64xi32>
    %615 = arith.select %613, %482, %614 : vector<1x64xi1>, vector<1x64xi32>
    %cst_298 = arith.constant dense<2147483647> : vector<1xi32>
    %616 = vector.multi_reduction <minsi>, %615, %cst_298 [1] : vector<1x64xi32> to vector<1xi32>
    %617 = vector.shape_cast %616 : vector<1xi32> to vector<1x1xi32>
    %c0_299 = arith.constant 0 : index
    %c1_300 = arith.constant 1 : index
    %618 = vector.load %arg18[%c0_299, %c1_300] : memref<1x6xi32, #tpu.memory_space<vmem>>, vector<1x1xi32>
    tpu.vector_store %arg18[%c0_299, %c1_300], %617 {strides = array<i32>} : memref<1x6xi32, #tpu.memory_space<vmem>>, vector<1x1xi32>,
    %c0_301 = arith.constant 0 : index
    %c1_302 = arith.constant 1 : index
    %619 = vector.load %arg19[%c0_301, %c1_302] : memref<1x6xf32, #tpu.memory_space<vmem>>, vector<1x1xf32>
    tpu.vector_store %arg19[%c0_301, %c1_302], %611 {strides = array<i32>} : memref<1x6xf32, #tpu.memory_space<vmem>>, vector<1x1xf32>,
    %620 = vector.broadcast %617 : vector<1x1xi32> to vector<1x64xi32>
    %621 = arith.cmpi eq, %482, %620 : vector<1x64xi32>
    %622 = arith.extui %621 : vector<1x64xi1> to vector<1x64xi32>
    %623 = arith.sitofp %622 : vector<1x64xi32> to vector<1x64xf32>
    %c0_303 = arith.constant 0 : index
    %c0_304 = arith.constant 0 : index
    %624 = vector.load %arg10[%c0_303, %c0_304] : memref<64x96xf32, #tpu.memory_space<vmem>>, vector<64x96xf32>
    %cst_305 = arith.constant dense<0.000000e+00> : vector<1x96xf32>
    %625 = tpu.matmul %623, %624, %cst_305 {dimension_numbers = #tpu.dot_dimension_numbers<[1], [0], [0], [1], [0, 0, 1, 1], [], []>} : vector<1x64xf32>, vector<64x96xf32>, vector<1x96xf32> -> vector<1x96xf32>
    %c0_306 = arith.constant 0 : index
    %c0_307 = arith.constant 0 : index
    %626 = vector.load %arg11[%c0_306, %c0_307] : memref<32x96xf32, #tpu.memory_space<vmem>>, vector<32x96xf32>
    %cst_308 = arith.constant dense<0.000000e+00> : vector<1x96xf32>
    %627 = tpu.matmul %581, %626, %cst_308 {dimension_numbers = #tpu.dot_dimension_numbers<[1], [0], [0], [1], [0, 0, 1, 1], [], []>} : vector<1x32xf32>, vector<32x96xf32>, vector<1x96xf32> -> vector<1x96xf32>
    %c0_309 = arith.constant 0 : index
    %c0_310 = arith.constant 0 : index
    %628 = vector.load %arg12[%c0_309, %c0_310] : memref<1x32xf32, #tpu.memory_space<vmem>>, vector<1x32xf32>
    %629 = vector.extract_strided_slice %625 {offsets = [0, 0], sizes = [1, 64], strides = [1, 1]} : vector<1x96xf32> to vector<1x64xf32>
    %630 = vector.extract_strided_slice %627 {offsets = [0, 0], sizes = [1, 64], strides = [1, 1]} : vector<1x96xf32> to vector<1x64xf32>
    %631 = arith.addf %629, %630 : vector<1x64xf32>
    %632 = arith.negf %631 : vector<1x64xf32>
    %633 = math.exp %632 : vector<1x64xf32>
    %cst_311 = arith.constant 1.000000e+00 : f32
    %634 = vector.broadcast %cst_311 : f32 to vector<1x64xf32>
    %635 = arith.addf %634, %633 : vector<1x64xf32>
    %636 = arith.divf %634, %635 : vector<1x64xf32>
    %637 = vector.extract_strided_slice %636 {offsets = [0, 0], sizes = [1, 32], strides = [1, 1]} : vector<1x64xf32> to vector<1x32xf32>
    %638 = vector.extract_strided_slice %636 {offsets = [0, 32], sizes = [1, 32], strides = [1, 1]} : vector<1x64xf32> to vector<1x32xf32>
    %639 = vector.extract_strided_slice %625 {offsets = [0, 64], sizes = [1, 32], strides = [1, 1]} : vector<1x96xf32> to vector<1x32xf32>
    %640 = vector.extract_strided_slice %627 {offsets = [0, 64], sizes = [1, 32], strides = [1, 1]} : vector<1x96xf32> to vector<1x32xf32>
    %641 = arith.addf %640, %628 : vector<1x32xf32>
    %642 = arith.mulf %637, %641 : vector<1x32xf32>
    %643 = arith.addf %639, %642 : vector<1x32xf32>
    %644 = math.tanh %643 : vector<1x32xf32>
    %cst_312 = arith.constant 1.000000e+00 : f32
    %645 = vector.broadcast %cst_312 : f32 to vector<1x32xf32>
    %646 = arith.subf %645, %638 : vector<1x32xf32>
    %647 = arith.mulf %646, %644 : vector<1x32xf32>
    %648 = arith.mulf %638, %581 : vector<1x32xf32>
    %649 = arith.addf %647, %648 : vector<1x32xf32>
    %cst_313 = arith.constant dense<0.000000e+00> : vector<1x8xf32>
    %650 = tpu.matmul %649, %479, %cst_313 {dimension_numbers = #tpu.dot_dimension_numbers<[1], [1], [0], [0], [0, 0, 1, 0], [], []>} : vector<1x32xf32>, vector<8x32xf32>, vector<1x8xf32> -> vector<1x8xf32>
    %cst_314 = arith.constant dense<0xFF800000> : vector<1xf32>
    %651 = vector.multi_reduction <maximumf>, %650, %cst_314 [1] : vector<1x8xf32> to vector<1xf32>
    %652 = vector.shape_cast %651 : vector<1xf32> to vector<1x1xf32>
    %653 = vector.broadcast %652 : vector<1x1xf32> to vector<1x8xf32>
    %654 = arith.subf %650, %653 : vector<1x8xf32>
    %655 = math.exp %654 : vector<1x8xf32>
    %cst_315 = arith.constant dense<0.000000e+00> : vector<1xf32>
    %656 = vector.multi_reduction <add>, %655, %cst_315 [1] : vector<1x8xf32> to vector<1xf32>
    %657 = vector.shape_cast %656 : vector<1xf32> to vector<1x1xf32>
    %658 = vector.broadcast %657 : vector<1x1xf32> to vector<1x8xf32>
    %659 = arith.divf %655, %658 : vector<1x8xf32>
    %c0_316 = arith.constant 0 : index
    %c0_317 = arith.constant 0 : index
    %660 = vector.load %arg13[%c0_316, %c0_317] : memref<32x32xf32, #tpu.memory_space<vmem>>, vector<32x32xf32>
    %cst_318 = arith.constant dense<0.000000e+00> : vector<1x32xf32>
    %661 = tpu.matmul %649, %660, %cst_318 {dimension_numbers = #tpu.dot_dimension_numbers<[1], [0], [0], [1], [0, 0, 1, 1], [], []>} : vector<1x32xf32>, vector<32x32xf32>, vector<1x32xf32> -> vector<1x32xf32>
    %cst_319 = arith.constant dense<0.000000e+00> : vector<1x32xf32>
    %662 = tpu.matmul %659, %481, %cst_319 {dimension_numbers = #tpu.dot_dimension_numbers<[1], [0], [0], [1], [0, 0, 1, 1], [], []>} : vector<1x8xf32>, vector<8x32xf32>, vector<1x32xf32> -> vector<1x32xf32>
    %663 = arith.addf %661, %662 : vector<1x32xf32>
    %c0_320 = arith.constant 0 : index
    %c0_321 = arith.constant 0 : index
    %664 = vector.load %arg15[%c0_320, %c0_321] : memref<1x32xf32, #tpu.memory_space<vmem>>, vector<1x32xf32>
    %665 = arith.addf %663, %664 : vector<1x32xf32>
    %666 = math.tanh %665 : vector<1x32xf32>
    %c0_322 = arith.constant 0 : index
    %c0_323 = arith.constant 0 : index
    %667 = vector.load %arg16[%c0_322, %c0_323] : memref<32x64xf32, #tpu.memory_space<vmem>>, vector<32x64xf32>
    %cst_324 = arith.constant dense<0.000000e+00> : vector<1x64xf32>
    %668 = tpu.matmul %666, %667, %cst_324 {dimension_numbers = #tpu.dot_dimension_numbers<[1], [0], [0], [1], [0, 0, 1, 1], [], []>} : vector<1x32xf32>, vector<32x64xf32>, vector<1x64xf32> -> vector<1x64xf32>
    %c0_325 = arith.constant 0 : index
    %c0_326 = arith.constant 0 : index
    %669 = vector.load %arg17[%c0_325, %c0_326] : memref<1x64xf32, #tpu.memory_space<vmem>>, vector<1x64xf32>
    %670 = arith.addf %668, %669 : vector<1x64xf32>
    %cst_327 = arith.constant dense<0xFF800000> : vector<1xf32>
    %671 = vector.multi_reduction <maximumf>, %670, %cst_327 [1] : vector<1x64xf32> to vector<1xf32>
    %672 = vector.shape_cast %671 : vector<1xf32> to vector<1x1xf32>
    %673 = vector.broadcast %672 : vector<1x1xf32> to vector<1x64xf32>
    %674 = arith.subf %670, %673 : vector<1x64xf32>
    %675 = math.exp %674 : vector<1x64xf32>
    %cst_328 = arith.constant dense<0.000000e+00> : vector<1xf32>
    %676 = vector.multi_reduction <add>, %675, %cst_328 [1] : vector<1x64xf32> to vector<1xf32>
    %677 = vector.shape_cast %676 : vector<1xf32> to vector<1x1xf32>
    %cst_329 = arith.constant 1.000000e+00 : f32
    %678 = vector.broadcast %cst_329 : f32 to vector<1x1xf32>
    %679 = arith.divf %678, %677 : vector<1x1xf32>
    %680 = vector.broadcast %672 : vector<1x1xf32> to vector<1x64xf32>
    %681 = arith.cmpf oeq, %670, %680 : vector<1x64xf32>
    %c64_i32_330 = arith.constant 64 : i32
    %682 = vector.broadcast %c64_i32_330 : i32 to vector<1x64xi32>
    %683 = arith.select %681, %482, %682 : vector<1x64xi1>, vector<1x64xi32>
    %cst_331 = arith.constant dense<2147483647> : vector<1xi32>
    %684 = vector.multi_reduction <minsi>, %683, %cst_331 [1] : vector<1x64xi32> to vector<1xi32>
    %685 = vector.shape_cast %684 : vector<1xi32> to vector<1x1xi32>
    %c0_332 = arith.constant 0 : index
    %c2_333 = arith.constant 2 : index
    %686 = vector.load %arg18[%c0_332, %c2_333] : memref<1x6xi32, #tpu.memory_space<vmem>>, vector<1x1xi32>
    tpu.vector_store %arg18[%c0_332, %c2_333], %685 {strides = array<i32>} : memref<1x6xi32, #tpu.memory_space<vmem>>, vector<1x1xi32>,
    %c0_334 = arith.constant 0 : index
    %c2_335 = arith.constant 2 : index
    %687 = vector.load %arg19[%c0_334, %c2_335] : memref<1x6xf32, #tpu.memory_space<vmem>>, vector<1x1xf32>
    tpu.vector_store %arg19[%c0_334, %c2_335], %679 {strides = array<i32>} : memref<1x6xf32, #tpu.memory_space<vmem>>, vector<1x1xf32>,
    %688 = vector.broadcast %685 : vector<1x1xi32> to vector<1x64xi32>
    %689 = arith.cmpi eq, %482, %688 : vector<1x64xi32>
    %690 = arith.extui %689 : vector<1x64xi1> to vector<1x64xi32>
    %691 = arith.sitofp %690 : vector<1x64xi32> to vector<1x64xf32>
    %c0_336 = arith.constant 0 : index
    %c0_337 = arith.constant 0 : index
    %692 = vector.load %arg10[%c0_336, %c0_337] : memref<64x96xf32, #tpu.memory_space<vmem>>, vector<64x96xf32>
    %cst_338 = arith.constant dense<0.000000e+00> : vector<1x96xf32>
    %693 = tpu.matmul %691, %692, %cst_338 {dimension_numbers = #tpu.dot_dimension_numbers<[1], [0], [0], [1], [0, 0, 1, 1], [], []>} : vector<1x64xf32>, vector<64x96xf32>, vector<1x96xf32> -> vector<1x96xf32>
    %c0_339 = arith.constant 0 : index
    %c0_340 = arith.constant 0 : index
    %694 = vector.load %arg11[%c0_339, %c0_340] : memref<32x96xf32, #tpu.memory_space<vmem>>, vector<32x96xf32>
    %cst_341 = arith.constant dense<0.000000e+00> : vector<1x96xf32>
    %695 = tpu.matmul %649, %694, %cst_341 {dimension_numbers = #tpu.dot_dimension_numbers<[1], [0], [0], [1], [0, 0, 1, 1], [], []>} : vector<1x32xf32>, vector<32x96xf32>, vector<1x96xf32> -> vector<1x96xf32>
    %c0_342 = arith.constant 0 : index
    %c0_343 = arith.constant 0 : index
    %696 = vector.load %arg12[%c0_342, %c0_343] : memref<1x32xf32, #tpu.memory_space<vmem>>, vector<1x32xf32>
    %697 = vector.extract_strided_slice %693 {offsets = [0, 0], sizes = [1, 64], strides = [1, 1]} : vector<1x96xf32> to vector<1x64xf32>
    %698 = vector.extract_strided_slice %695 {offsets = [0, 0], sizes = [1, 64], strides = [1, 1]} : vector<1x96xf32> to vector<1x64xf32>
    %699 = arith.addf %697, %698 : vector<1x64xf32>
    %700 = arith.negf %699 : vector<1x64xf32>
    %701 = math.exp %700 : vector<1x64xf32>
    %cst_344 = arith.constant 1.000000e+00 : f32
    %702 = vector.broadcast %cst_344 : f32 to vector<1x64xf32>
    %703 = arith.addf %702, %701 : vector<1x64xf32>
    %704 = arith.divf %702, %703 : vector<1x64xf32>
    %705 = vector.extract_strided_slice %704 {offsets = [0, 0], sizes = [1, 32], strides = [1, 1]} : vector<1x64xf32> to vector<1x32xf32>
    %706 = vector.extract_strided_slice %704 {offsets = [0, 32], sizes = [1, 32], strides = [1, 1]} : vector<1x64xf32> to vector<1x32xf32>
    %707 = vector.extract_strided_slice %693 {offsets = [0, 64], sizes = [1, 32], strides = [1, 1]} : vector<1x96xf32> to vector<1x32xf32>
    %708 = vector.extract_strided_slice %695 {offsets = [0, 64], sizes = [1, 32], strides = [1, 1]} : vector<1x96xf32> to vector<1x32xf32>
    %709 = arith.addf %708, %696 : vector<1x32xf32>
    %710 = arith.mulf %705, %709 : vector<1x32xf32>
    %711 = arith.addf %707, %710 : vector<1x32xf32>
    %712 = math.tanh %711 : vector<1x32xf32>
    %cst_345 = arith.constant 1.000000e+00 : f32
    %713 = vector.broadcast %cst_345 : f32 to vector<1x32xf32>
    %714 = arith.subf %713, %706 : vector<1x32xf32>
    %715 = arith.mulf %714, %712 : vector<1x32xf32>
    %716 = arith.mulf %706, %649 : vector<1x32xf32>
    %717 = arith.addf %715, %716 : vector<1x32xf32>
    %cst_346 = arith.constant dense<0.000000e+00> : vector<1x8xf32>
    %718 = tpu.matmul %717, %479, %cst_346 {dimension_numbers = #tpu.dot_dimension_numbers<[1], [1], [0], [0], [0, 0, 1, 0], [], []>} : vector<1x32xf32>, vector<8x32xf32>, vector<1x8xf32> -> vector<1x8xf32>
    %cst_347 = arith.constant dense<0xFF800000> : vector<1xf32>
    %719 = vector.multi_reduction <maximumf>, %718, %cst_347 [1] : vector<1x8xf32> to vector<1xf32>
    %720 = vector.shape_cast %719 : vector<1xf32> to vector<1x1xf32>
    %721 = vector.broadcast %720 : vector<1x1xf32> to vector<1x8xf32>
    %722 = arith.subf %718, %721 : vector<1x8xf32>
    %723 = math.exp %722 : vector<1x8xf32>
    %cst_348 = arith.constant dense<0.000000e+00> : vector<1xf32>
    %724 = vector.multi_reduction <add>, %723, %cst_348 [1] : vector<1x8xf32> to vector<1xf32>
    %725 = vector.shape_cast %724 : vector<1xf32> to vector<1x1xf32>
    %726 = vector.broadcast %725 : vector<1x1xf32> to vector<1x8xf32>
    %727 = arith.divf %723, %726 : vector<1x8xf32>
    %c0_349 = arith.constant 0 : index
    %c0_350 = arith.constant 0 : index
    %728 = vector.load %arg13[%c0_349, %c0_350] : memref<32x32xf32, #tpu.memory_space<vmem>>, vector<32x32xf32>
    %cst_351 = arith.constant dense<0.000000e+00> : vector<1x32xf32>
    %729 = tpu.matmul %717, %728, %cst_351 {dimension_numbers = #tpu.dot_dimension_numbers<[1], [0], [0], [1], [0, 0, 1, 1], [], []>} : vector<1x32xf32>, vector<32x32xf32>, vector<1x32xf32> -> vector<1x32xf32>
    %cst_352 = arith.constant dense<0.000000e+00> : vector<1x32xf32>
    %730 = tpu.matmul %727, %481, %cst_352 {dimension_numbers = #tpu.dot_dimension_numbers<[1], [0], [0], [1], [0, 0, 1, 1], [], []>} : vector<1x8xf32>, vector<8x32xf32>, vector<1x32xf32> -> vector<1x32xf32>
    %731 = arith.addf %729, %730 : vector<1x32xf32>
    %c0_353 = arith.constant 0 : index
    %c0_354 = arith.constant 0 : index
    %732 = vector.load %arg15[%c0_353, %c0_354] : memref<1x32xf32, #tpu.memory_space<vmem>>, vector<1x32xf32>
    %733 = arith.addf %731, %732 : vector<1x32xf32>
    %734 = math.tanh %733 : vector<1x32xf32>
    %c0_355 = arith.constant 0 : index
    %c0_356 = arith.constant 0 : index
    %735 = vector.load %arg16[%c0_355, %c0_356] : memref<32x64xf32, #tpu.memory_space<vmem>>, vector<32x64xf32>
    %cst_357 = arith.constant dense<0.000000e+00> : vector<1x64xf32>
    %736 = tpu.matmul %734, %735, %cst_357 {dimension_numbers = #tpu.dot_dimension_numbers<[1], [0], [0], [1], [0, 0, 1, 1], [], []>} : vector<1x32xf32>, vector<32x64xf32>, vector<1x64xf32> -> vector<1x64xf32>
    %c0_358 = arith.constant 0 : index
    %c0_359 = arith.constant 0 : index
    %737 = vector.load %arg17[%c0_358, %c0_359] : memref<1x64xf32, #tpu.memory_space<vmem>>, vector<1x64xf32>
    %738 = arith.addf %736, %737 : vector<1x64xf32>
    %cst_360 = arith.constant dense<0xFF800000> : vector<1xf32>
    %739 = vector.multi_reduction <maximumf>, %738, %cst_360 [1] : vector<1x64xf32> to vector<1xf32>
    %740 = vector.shape_cast %739 : vector<1xf32> to vector<1x1xf32>
    %741 = vector.broadcast %740 : vector<1x1xf32> to vector<1x64xf32>
    %742 = arith.subf %738, %741 : vector<1x64xf32>
    %743 = math.exp %742 : vector<1x64xf32>
    %cst_361 = arith.constant dense<0.000000e+00> : vector<1xf32>
    %744 = vector.multi_reduction <add>, %743, %cst_361 [1] : vector<1x64xf32> to vector<1xf32>
    %745 = vector.shape_cast %744 : vector<1xf32> to vector<1x1xf32>
    %cst_362 = arith.constant 1.000000e+00 : f32
    %746 = vector.broadcast %cst_362 : f32 to vector<1x1xf32>
    %747 = arith.divf %746, %745 : vector<1x1xf32>
    %748 = vector.broadcast %740 : vector<1x1xf32> to vector<1x64xf32>
    %749 = arith.cmpf oeq, %738, %748 : vector<1x64xf32>
    %c64_i32_363 = arith.constant 64 : i32
    %750 = vector.broadcast %c64_i32_363 : i32 to vector<1x64xi32>
    %751 = arith.select %749, %482, %750 : vector<1x64xi1>, vector<1x64xi32>
    %cst_364 = arith.constant dense<2147483647> : vector<1xi32>
    %752 = vector.multi_reduction <minsi>, %751, %cst_364 [1] : vector<1x64xi32> to vector<1xi32>
    %753 = vector.shape_cast %752 : vector<1xi32> to vector<1x1xi32>
    %c0_365 = arith.constant 0 : index
    %c3_366 = arith.constant 3 : index
    %754 = vector.load %arg18[%c0_365, %c3_366] : memref<1x6xi32, #tpu.memory_space<vmem>>, vector<1x1xi32>
    tpu.vector_store %arg18[%c0_365, %c3_366], %753 {strides = array<i32>} : memref<1x6xi32, #tpu.memory_space<vmem>>, vector<1x1xi32>,
    %c0_367 = arith.constant 0 : index
    %c3_368 = arith.constant 3 : index
    %755 = vector.load %arg19[%c0_367, %c3_368] : memref<1x6xf32, #tpu.memory_space<vmem>>, vector<1x1xf32>
    tpu.vector_store %arg19[%c0_367, %c3_368], %747 {strides = array<i32>} : memref<1x6xf32, #tpu.memory_space<vmem>>, vector<1x1xf32>,
    %756 = vector.broadcast %753 : vector<1x1xi32> to vector<1x64xi32>
    %757 = arith.cmpi eq, %482, %756 : vector<1x64xi32>
    %758 = arith.extui %757 : vector<1x64xi1> to vector<1x64xi32>
    %759 = arith.sitofp %758 : vector<1x64xi32> to vector<1x64xf32>
    %c0_369 = arith.constant 0 : index
    %c0_370 = arith.constant 0 : index
    %760 = vector.load %arg10[%c0_369, %c0_370] : memref<64x96xf32, #tpu.memory_space<vmem>>, vector<64x96xf32>
    %cst_371 = arith.constant dense<0.000000e+00> : vector<1x96xf32>
    %761 = tpu.matmul %759, %760, %cst_371 {dimension_numbers = #tpu.dot_dimension_numbers<[1], [0], [0], [1], [0, 0, 1, 1], [], []>} : vector<1x64xf32>, vector<64x96xf32>, vector<1x96xf32> -> vector<1x96xf32>
    %c0_372 = arith.constant 0 : index
    %c0_373 = arith.constant 0 : index
    %762 = vector.load %arg11[%c0_372, %c0_373] : memref<32x96xf32, #tpu.memory_space<vmem>>, vector<32x96xf32>
    %cst_374 = arith.constant dense<0.000000e+00> : vector<1x96xf32>
    %763 = tpu.matmul %717, %762, %cst_374 {dimension_numbers = #tpu.dot_dimension_numbers<[1], [0], [0], [1], [0, 0, 1, 1], [], []>} : vector<1x32xf32>, vector<32x96xf32>, vector<1x96xf32> -> vector<1x96xf32>
    %c0_375 = arith.constant 0 : index
    %c0_376 = arith.constant 0 : index
    %764 = vector.load %arg12[%c0_375, %c0_376] : memref<1x32xf32, #tpu.memory_space<vmem>>, vector<1x32xf32>
    %765 = vector.extract_strided_slice %761 {offsets = [0, 0], sizes = [1, 64], strides = [1, 1]} : vector<1x96xf32> to vector<1x64xf32>
    %766 = vector.extract_strided_slice %763 {offsets = [0, 0], sizes = [1, 64], strides = [1, 1]} : vector<1x96xf32> to vector<1x64xf32>
    %767 = arith.addf %765, %766 : vector<1x64xf32>
    %768 = arith.negf %767 : vector<1x64xf32>
    %769 = math.exp %768 : vector<1x64xf32>
    %cst_377 = arith.constant 1.000000e+00 : f32
    %770 = vector.broadcast %cst_377 : f32 to vector<1x64xf32>
    %771 = arith.addf %770, %769 : vector<1x64xf32>
    %772 = arith.divf %770, %771 : vector<1x64xf32>
    %773 = vector.extract_strided_slice %772 {offsets = [0, 0], sizes = [1, 32], strides = [1, 1]} : vector<1x64xf32> to vector<1x32xf32>
    %774 = vector.extract_strided_slice %772 {offsets = [0, 32], sizes = [1, 32], strides = [1, 1]} : vector<1x64xf32> to vector<1x32xf32>
    %775 = vector.extract_strided_slice %761 {offsets = [0, 64], sizes = [1, 32], strides = [1, 1]} : vector<1x96xf32> to vector<1x32xf32>
    %776 = vector.extract_strided_slice %763 {offsets = [0, 64], sizes = [1, 32], strides = [1, 1]} : vector<1x96xf32> to vector<1x32xf32>
    %777 = arith.addf %776, %764 : vector<1x32xf32>
    %778 = arith.mulf %773, %777 : vector<1x32xf32>
    %779 = arith.addf %775, %778 : vector<1x32xf32>
    %780 = math.tanh %779 : vector<1x32xf32>
    %cst_378 = arith.constant 1.000000e+00 : f32
    %781 = vector.broadcast %cst_378 : f32 to vector<1x32xf32>
    %782 = arith.subf %781, %774 : vector<1x32xf32>
    %783 = arith.mulf %782, %780 : vector<1x32xf32>
    %784 = arith.mulf %774, %717 : vector<1x32xf32>
    %785 = arith.addf %783, %784 : vector<1x32xf32>
    %cst_379 = arith.constant dense<0.000000e+00> : vector<1x8xf32>
    %786 = tpu.matmul %785, %479, %cst_379 {dimension_numbers = #tpu.dot_dimension_numbers<[1], [1], [0], [0], [0, 0, 1, 0], [], []>} : vector<1x32xf32>, vector<8x32xf32>, vector<1x8xf32> -> vector<1x8xf32>
    %cst_380 = arith.constant dense<0xFF800000> : vector<1xf32>
    %787 = vector.multi_reduction <maximumf>, %786, %cst_380 [1] : vector<1x8xf32> to vector<1xf32>
    %788 = vector.shape_cast %787 : vector<1xf32> to vector<1x1xf32>
    %789 = vector.broadcast %788 : vector<1x1xf32> to vector<1x8xf32>
    %790 = arith.subf %786, %789 : vector<1x8xf32>
    %791 = math.exp %790 : vector<1x8xf32>
    %cst_381 = arith.constant dense<0.000000e+00> : vector<1xf32>
    %792 = vector.multi_reduction <add>, %791, %cst_381 [1] : vector<1x8xf32> to vector<1xf32>
    %793 = vector.shape_cast %792 : vector<1xf32> to vector<1x1xf32>
    %794 = vector.broadcast %793 : vector<1x1xf32> to vector<1x8xf32>
    %795 = arith.divf %791, %794 : vector<1x8xf32>
    %c0_382 = arith.constant 0 : index
    %c0_383 = arith.constant 0 : index
    %796 = vector.load %arg13[%c0_382, %c0_383] : memref<32x32xf32, #tpu.memory_space<vmem>>, vector<32x32xf32>
    %cst_384 = arith.constant dense<0.000000e+00> : vector<1x32xf32>
    %797 = tpu.matmul %785, %796, %cst_384 {dimension_numbers = #tpu.dot_dimension_numbers<[1], [0], [0], [1], [0, 0, 1, 1], [], []>} : vector<1x32xf32>, vector<32x32xf32>, vector<1x32xf32> -> vector<1x32xf32>
    %cst_385 = arith.constant dense<0.000000e+00> : vector<1x32xf32>
    %798 = tpu.matmul %795, %481, %cst_385 {dimension_numbers = #tpu.dot_dimension_numbers<[1], [0], [0], [1], [0, 0, 1, 1], [], []>} : vector<1x8xf32>, vector<8x32xf32>, vector<1x32xf32> -> vector<1x32xf32>
    %799 = arith.addf %797, %798 : vector<1x32xf32>
    %c0_386 = arith.constant 0 : index
    %c0_387 = arith.constant 0 : index
    %800 = vector.load %arg15[%c0_386, %c0_387] : memref<1x32xf32, #tpu.memory_space<vmem>>, vector<1x32xf32>
    %801 = arith.addf %799, %800 : vector<1x32xf32>
    %802 = math.tanh %801 : vector<1x32xf32>
    %c0_388 = arith.constant 0 : index
    %c0_389 = arith.constant 0 : index
    %803 = vector.load %arg16[%c0_388, %c0_389] : memref<32x64xf32, #tpu.memory_space<vmem>>, vector<32x64xf32>
    %cst_390 = arith.constant dense<0.000000e+00> : vector<1x64xf32>
    %804 = tpu.matmul %802, %803, %cst_390 {dimension_numbers = #tpu.dot_dimension_numbers<[1], [0], [0], [1], [0, 0, 1, 1], [], []>} : vector<1x32xf32>, vector<32x64xf32>, vector<1x64xf32> -> vector<1x64xf32>
    %c0_391 = arith.constant 0 : index
    %c0_392 = arith.constant 0 : index
    %805 = vector.load %arg17[%c0_391, %c0_392] : memref<1x64xf32, #tpu.memory_space<vmem>>, vector<1x64xf32>
    %806 = arith.addf %804, %805 : vector<1x64xf32>
    %cst_393 = arith.constant dense<0xFF800000> : vector<1xf32>
    %807 = vector.multi_reduction <maximumf>, %806, %cst_393 [1] : vector<1x64xf32> to vector<1xf32>
    %808 = vector.shape_cast %807 : vector<1xf32> to vector<1x1xf32>
    %809 = vector.broadcast %808 : vector<1x1xf32> to vector<1x64xf32>
    %810 = arith.subf %806, %809 : vector<1x64xf32>
    %811 = math.exp %810 : vector<1x64xf32>
    %cst_394 = arith.constant dense<0.000000e+00> : vector<1xf32>
    %812 = vector.multi_reduction <add>, %811, %cst_394 [1] : vector<1x64xf32> to vector<1xf32>
    %813 = vector.shape_cast %812 : vector<1xf32> to vector<1x1xf32>
    %cst_395 = arith.constant 1.000000e+00 : f32
    %814 = vector.broadcast %cst_395 : f32 to vector<1x1xf32>
    %815 = arith.divf %814, %813 : vector<1x1xf32>
    %816 = vector.broadcast %808 : vector<1x1xf32> to vector<1x64xf32>
    %817 = arith.cmpf oeq, %806, %816 : vector<1x64xf32>
    %c64_i32_396 = arith.constant 64 : i32
    %818 = vector.broadcast %c64_i32_396 : i32 to vector<1x64xi32>
    %819 = arith.select %817, %482, %818 : vector<1x64xi1>, vector<1x64xi32>
    %cst_397 = arith.constant dense<2147483647> : vector<1xi32>
    %820 = vector.multi_reduction <minsi>, %819, %cst_397 [1] : vector<1x64xi32> to vector<1xi32>
    %821 = vector.shape_cast %820 : vector<1xi32> to vector<1x1xi32>
    %c0_398 = arith.constant 0 : index
    %c4_399 = arith.constant 4 : index
    %822 = vector.load %arg18[%c0_398, %c4_399] : memref<1x6xi32, #tpu.memory_space<vmem>>, vector<1x1xi32>
    tpu.vector_store %arg18[%c0_398, %c4_399], %821 {strides = array<i32>} : memref<1x6xi32, #tpu.memory_space<vmem>>, vector<1x1xi32>,
    %c0_400 = arith.constant 0 : index
    %c4_401 = arith.constant 4 : index
    %823 = vector.load %arg19[%c0_400, %c4_401] : memref<1x6xf32, #tpu.memory_space<vmem>>, vector<1x1xf32>
    tpu.vector_store %arg19[%c0_400, %c4_401], %815 {strides = array<i32>} : memref<1x6xf32, #tpu.memory_space<vmem>>, vector<1x1xf32>,
    %824 = vector.broadcast %821 : vector<1x1xi32> to vector<1x64xi32>
    %825 = arith.cmpi eq, %482, %824 : vector<1x64xi32>
    %826 = arith.extui %825 : vector<1x64xi1> to vector<1x64xi32>
    %827 = arith.sitofp %826 : vector<1x64xi32> to vector<1x64xf32>
    %c0_402 = arith.constant 0 : index
    %c0_403 = arith.constant 0 : index
    %828 = vector.load %arg10[%c0_402, %c0_403] : memref<64x96xf32, #tpu.memory_space<vmem>>, vector<64x96xf32>
    %cst_404 = arith.constant dense<0.000000e+00> : vector<1x96xf32>
    %829 = tpu.matmul %827, %828, %cst_404 {dimension_numbers = #tpu.dot_dimension_numbers<[1], [0], [0], [1], [0, 0, 1, 1], [], []>} : vector<1x64xf32>, vector<64x96xf32>, vector<1x96xf32> -> vector<1x96xf32>
    %c0_405 = arith.constant 0 : index
    %c0_406 = arith.constant 0 : index
    %830 = vector.load %arg11[%c0_405, %c0_406] : memref<32x96xf32, #tpu.memory_space<vmem>>, vector<32x96xf32>
    %cst_407 = arith.constant dense<0.000000e+00> : vector<1x96xf32>
    %831 = tpu.matmul %785, %830, %cst_407 {dimension_numbers = #tpu.dot_dimension_numbers<[1], [0], [0], [1], [0, 0, 1, 1], [], []>} : vector<1x32xf32>, vector<32x96xf32>, vector<1x96xf32> -> vector<1x96xf32>
    %c0_408 = arith.constant 0 : index
    %c0_409 = arith.constant 0 : index
    %832 = vector.load %arg12[%c0_408, %c0_409] : memref<1x32xf32, #tpu.memory_space<vmem>>, vector<1x32xf32>
    %833 = vector.extract_strided_slice %829 {offsets = [0, 0], sizes = [1, 64], strides = [1, 1]} : vector<1x96xf32> to vector<1x64xf32>
    %834 = vector.extract_strided_slice %831 {offsets = [0, 0], sizes = [1, 64], strides = [1, 1]} : vector<1x96xf32> to vector<1x64xf32>
    %835 = arith.addf %833, %834 : vector<1x64xf32>
    %836 = arith.negf %835 : vector<1x64xf32>
    %837 = math.exp %836 : vector<1x64xf32>
    %cst_410 = arith.constant 1.000000e+00 : f32
    %838 = vector.broadcast %cst_410 : f32 to vector<1x64xf32>
    %839 = arith.addf %838, %837 : vector<1x64xf32>
    %840 = arith.divf %838, %839 : vector<1x64xf32>
    %841 = vector.extract_strided_slice %840 {offsets = [0, 0], sizes = [1, 32], strides = [1, 1]} : vector<1x64xf32> to vector<1x32xf32>
    %842 = vector.extract_strided_slice %840 {offsets = [0, 32], sizes = [1, 32], strides = [1, 1]} : vector<1x64xf32> to vector<1x32xf32>
    %843 = vector.extract_strided_slice %829 {offsets = [0, 64], sizes = [1, 32], strides = [1, 1]} : vector<1x96xf32> to vector<1x32xf32>
    %844 = vector.extract_strided_slice %831 {offsets = [0, 64], sizes = [1, 32], strides = [1, 1]} : vector<1x96xf32> to vector<1x32xf32>
    %845 = arith.addf %844, %832 : vector<1x32xf32>
    %846 = arith.mulf %841, %845 : vector<1x32xf32>
    %847 = arith.addf %843, %846 : vector<1x32xf32>
    %848 = math.tanh %847 : vector<1x32xf32>
    %cst_411 = arith.constant 1.000000e+00 : f32
    %849 = vector.broadcast %cst_411 : f32 to vector<1x32xf32>
    %850 = arith.subf %849, %842 : vector<1x32xf32>
    %851 = arith.mulf %850, %848 : vector<1x32xf32>
    %852 = arith.mulf %842, %785 : vector<1x32xf32>
    %853 = arith.addf %851, %852 : vector<1x32xf32>
    %cst_412 = arith.constant dense<0.000000e+00> : vector<1x8xf32>
    %854 = tpu.matmul %853, %479, %cst_412 {dimension_numbers = #tpu.dot_dimension_numbers<[1], [1], [0], [0], [0, 0, 1, 0], [], []>} : vector<1x32xf32>, vector<8x32xf32>, vector<1x8xf32> -> vector<1x8xf32>
    %cst_413 = arith.constant dense<0xFF800000> : vector<1xf32>
    %855 = vector.multi_reduction <maximumf>, %854, %cst_413 [1] : vector<1x8xf32> to vector<1xf32>
    %856 = vector.shape_cast %855 : vector<1xf32> to vector<1x1xf32>
    %857 = vector.broadcast %856 : vector<1x1xf32> to vector<1x8xf32>
    %858 = arith.subf %854, %857 : vector<1x8xf32>
    %859 = math.exp %858 : vector<1x8xf32>
    %cst_414 = arith.constant dense<0.000000e+00> : vector<1xf32>
    %860 = vector.multi_reduction <add>, %859, %cst_414 [1] : vector<1x8xf32> to vector<1xf32>
    %861 = vector.shape_cast %860 : vector<1xf32> to vector<1x1xf32>
    %862 = vector.broadcast %861 : vector<1x1xf32> to vector<1x8xf32>
    %863 = arith.divf %859, %862 : vector<1x8xf32>
    %c0_415 = arith.constant 0 : index
    %c0_416 = arith.constant 0 : index
    %864 = vector.load %arg13[%c0_415, %c0_416] : memref<32x32xf32, #tpu.memory_space<vmem>>, vector<32x32xf32>
    %cst_417 = arith.constant dense<0.000000e+00> : vector<1x32xf32>
    %865 = tpu.matmul %853, %864, %cst_417 {dimension_numbers = #tpu.dot_dimension_numbers<[1], [0], [0], [1], [0, 0, 1, 1], [], []>} : vector<1x32xf32>, vector<32x32xf32>, vector<1x32xf32> -> vector<1x32xf32>
    %cst_418 = arith.constant dense<0.000000e+00> : vector<1x32xf32>
    %866 = tpu.matmul %863, %481, %cst_418 {dimension_numbers = #tpu.dot_dimension_numbers<[1], [0], [0], [1], [0, 0, 1, 1], [], []>} : vector<1x8xf32>, vector<8x32xf32>, vector<1x32xf32> -> vector<1x32xf32>
    %867 = arith.addf %865, %866 : vector<1x32xf32>
    %c0_419 = arith.constant 0 : index
    %c0_420 = arith.constant 0 : index
    %868 = vector.load %arg15[%c0_419, %c0_420] : memref<1x32xf32, #tpu.memory_space<vmem>>, vector<1x32xf32>
    %869 = arith.addf %867, %868 : vector<1x32xf32>
    %870 = math.tanh %869 : vector<1x32xf32>
    %c0_421 = arith.constant 0 : index
    %c0_422 = arith.constant 0 : index
    %871 = vector.load %arg16[%c0_421, %c0_422] : memref<32x64xf32, #tpu.memory_space<vmem>>, vector<32x64xf32>
    %cst_423 = arith.constant dense<0.000000e+00> : vector<1x64xf32>
    %872 = tpu.matmul %870, %871, %cst_423 {dimension_numbers = #tpu.dot_dimension_numbers<[1], [0], [0], [1], [0, 0, 1, 1], [], []>} : vector<1x32xf32>, vector<32x64xf32>, vector<1x64xf32> -> vector<1x64xf32>
    %c0_424 = arith.constant 0 : index
    %c0_425 = arith.constant 0 : index
    %873 = vector.load %arg17[%c0_424, %c0_425] : memref<1x64xf32, #tpu.memory_space<vmem>>, vector<1x64xf32>
    %874 = arith.addf %872, %873 : vector<1x64xf32>
    %cst_426 = arith.constant dense<0xFF800000> : vector<1xf32>
    %875 = vector.multi_reduction <maximumf>, %874, %cst_426 [1] : vector<1x64xf32> to vector<1xf32>
    %876 = vector.shape_cast %875 : vector<1xf32> to vector<1x1xf32>
    %877 = vector.broadcast %876 : vector<1x1xf32> to vector<1x64xf32>
    %878 = arith.subf %874, %877 : vector<1x64xf32>
    %879 = math.exp %878 : vector<1x64xf32>
    %cst_427 = arith.constant dense<0.000000e+00> : vector<1xf32>
    %880 = vector.multi_reduction <add>, %879, %cst_427 [1] : vector<1x64xf32> to vector<1xf32>
    %881 = vector.shape_cast %880 : vector<1xf32> to vector<1x1xf32>
    %cst_428 = arith.constant 1.000000e+00 : f32
    %882 = vector.broadcast %cst_428 : f32 to vector<1x1xf32>
    %883 = arith.divf %882, %881 : vector<1x1xf32>
    %884 = vector.broadcast %876 : vector<1x1xf32> to vector<1x64xf32>
    %885 = arith.cmpf oeq, %874, %884 : vector<1x64xf32>
    %c64_i32_429 = arith.constant 64 : i32
    %886 = vector.broadcast %c64_i32_429 : i32 to vector<1x64xi32>
    %887 = arith.select %885, %482, %886 : vector<1x64xi1>, vector<1x64xi32>
    %cst_430 = arith.constant dense<2147483647> : vector<1xi32>
    %888 = vector.multi_reduction <minsi>, %887, %cst_430 [1] : vector<1x64xi32> to vector<1xi32>
    %889 = vector.shape_cast %888 : vector<1xi32> to vector<1x1xi32>
    %c0_431 = arith.constant 0 : index
    %c5_432 = arith.constant 5 : index
    %890 = vector.load %arg18[%c0_431, %c5_432] : memref<1x6xi32, #tpu.memory_space<vmem>>, vector<1x1xi32>
    tpu.vector_store %arg18[%c0_431, %c5_432], %889 {strides = array<i32>} : memref<1x6xi32, #tpu.memory_space<vmem>>, vector<1x1xi32>,
    %c0_433 = arith.constant 0 : index
    %c5_434 = arith.constant 5 : index
    %891 = vector.load %arg19[%c0_433, %c5_434] : memref<1x6xf32, #tpu.memory_space<vmem>>, vector<1x1xf32>
    tpu.vector_store %arg19[%c0_433, %c5_434], %883 {strides = array<i32>} : memref<1x6xf32, #tpu.memory_space<vmem>>, vector<1x1xf32>,
    return
  }
}

</mosaic_0001>

<llo_original>
// kernel: tpu_custom_call.1
$region0: #{tpu_custom_call.1}
  #allocation0 [shape = 'u32[]', space=smem, size = 0x4, offset = 0x4, fixed_abs, tag = 'smem constant byte address 0x4 - core index']
  #allocation1 [shape = 'u32[144,128]{1,0:T(1,128)}', space=vmem, size = 0x12000, scoped, tag = 'internal scratch']
  #allocation2 [shape = 'f32[8,32]{1,0:T(8,128)}', space=vmem, size = 0x1000, scoped, tag = 'scratch operand']
  #allocation3 [shape = 'f32[8,96]{1,0:T(8,128)}', space=vmem, size = 0x1000, scoped, tag = 'scratch operand']
  #allocation4 [shape = 'f32[8,96]{1,0:T(8,128)}', space=vmem, size = 0x1000, scoped, tag = 'scratch operand']
  %s0 = inlined_call_operand.vmem [shape: s32[8], index: 0, kind: input, shape index: {}]
  %s1 = inlined_call_operand.vmem [shape: f32[64,32], index: 1, kind: input, shape index: {}]
  %s2 = inlined_call_operand.vmem [shape: f32[32,96], index: 2, kind: input, shape index: {}]
  %s3 = inlined_call_operand.hbm [shape: f32[32,96], index: 3, kind: input, shape index: {}]
  %s4 = inlined_call_operand.vmem [shape: f32[1,96], index: 4, kind: input, shape index: {}]
  %s5 = inlined_call_operand.hbm [shape: f32[1,32], index: 5, kind: input, shape index: {}]
  %s6 = inlined_call_operand.hbm [shape: f32[32,96], index: 6, kind: input, shape index: {}]
  %s7 = inlined_call_operand.hbm [shape: f32[32,96], index: 7, kind: input, shape index: {}]
  %s8 = inlined_call_operand.hbm [shape: f32[1,96], index: 8, kind: input, shape index: {}]
  %s9 = inlined_call_operand.hbm [shape: f32[1,32], index: 9, kind: input, shape index: {}]
  %s10 = inlined_call_operand.vmem [shape: f32[64,96], index: 10, kind: input, shape index: {}]
  %s11 = inlined_call_operand.vmem [shape: f32[32,96], index: 11, kind: input, shape index: {}]
  %s12 = inlined_call_operand.vmem [shape: f32[1,32], index: 12, kind: input, shape index: {}]
  %s13 = inlined_call_operand.hbm [shape: f32[32,32], index: 13, kind: input, shape index: {}]
  %s14 = inlined_call_operand.hbm [shape: f32[32,32], index: 14, kind: input, shape index: {}]
  %s15 = inlined_call_operand.vmem [shape: f32[1,32], index: 15, kind: input, shape index: {}]
  %s16 = inlined_call_operand.hbm [shape: f32[32,64], index: 16, kind: input, shape index: {}]
  %s17 = inlined_call_operand.vmem [shape: f32[1,64], index: 17, kind: input, shape index: {}]
  %s18 = inlined_call_operand.hbm [shape: s32[1,6], index: 18, kind: output, shape index: {0}]
  %s19 = inlined_call_operand.hbm [shape: f32[1,6], index: 19, kind: output, shape index: {1}]
  %20 = xla_tuple %s18, %s19
  %s21 = sld [smem:[#allocation0]]
  $region130: #{tpu_custom_call.1} parent=0
    _
  %s23 = ssub.s32 1, %s21
  %s24 = scalar_select 0, %s23, %s21
  $region1: #{tpu_custom_call.1} parent=0
    #allocation5 [shape = 'u8[512]{0}', space=smem, size = 0x200, scoped, tag = 'input window, operand 0, single buffered']
    #allocation6 [shape = 's32[1]{0}', space=sflag, size = 0x4, scoped, tag = 'scoped memory for tpu_custom_call.1']
    #allocation7 [shape = 's32[1]{0}', space=sflag, size = 0x4, scoped, tag = 'scoped memory for tpu_custom_call.1']
    #allocation8 [shape = 's32[1]{0}', space=sflag, size = 0x4, scoped, tag = 'scoped memory for tpu_custom_call.1']
    #allocation9 [shape = 'u8[16384]{0}', space=vmem, size = 0x4000, scoped, tag = 'input window, operand 3, single buffered']
    #allocation10 [shape = 'u8[512]{0}', space=vmem, size = 0x400, scoped, tag = 'input window, operand 5, single buffered']
    #allocation11 [shape = 's32[1]{0}', space=sflag, size = 0x4, scoped, tag = 'scoped memory for tpu_custom_call.1']
    #allocation12 [shape = 'u8[16384]{0}', space=vmem, size = 0x4000, scoped, tag = 'input window, operand 6, single buffered']
    #allocation13 [shape = 'u8[16384]{0}', space=vmem, size = 0x4000, scoped, tag = 'input window, operand 7, single buffered']
    #allocation14 [shape = 's32[1]{0}', space=sflag, size = 0x4, scoped, tag = 'scoped memory for tpu_custom_call.1']
    #allocation15 [shape = 'u8[512]{0}', space=vmem, size = 0x400, scoped, tag = 'input window, operand 8, single buffered']
    #allocation16 [shape = 'u8[512]{0}', space=vmem, size = 0x400, scoped, tag = 'input window, operand 9, single buffered']
    #allocation17 [shape = 's32[1]{0}', space=sflag, size = 0x4, scoped, tag = 'scoped memory for tpu_custom_call.1']
    #allocation18 [shape = 'u8[16384]{0}', space=vmem, size = 0x4000, scoped, tag = 'input window, operand 13, single buffered']
    #allocation19 [shape = 'u8[16384]{0}', space=vmem, size = 0x4000, scoped, tag = 'input window, operand 14, single buffered']
    #allocation20 [shape = 's32[1]{0}', space=sflag, size = 0x4, scoped, tag = 'scoped memory for tpu_custom_call.1']
    #allocation21 [shape = 'u8[16384]{0}', space=vmem, size = 0x4000, scoped, tag = 'input window, operand 16, single buffered']
    #allocation22 [shape = 'u8[512]{0}', space=vmem, size = 0x400, scoped, tag = 'output window, operand 0, single buffered']
    #allocation23 [shape = 'u8[512]{0}', space=vmem, size = 0x400, scoped, tag = 'output window, operand 1, single buffered']
    #allocation24 [shape = 's32[1]{0}', space=sflag, size = 0x4, scoped, tag = 'scoped memory for tpu_custom_call.1']
    %25 = vsyncpa [#allocation8], 0
    %26 = vsyncpa [#allocation6], 0
    %27 = vsyncpa [#allocation11], 0
    %28 = vsyncpa [#allocation14], 0
    %29 = vsyncpa [#allocation17], 0
    %30 = vsyncpa [#allocation20], 0
    %31 = vsyncpa [#allocation7], 0
    %32 = vsyncpa [#allocation24], 0
    // Predicated region
    $region2: #{tpu_custom_call.1} parent=1 // pred_check
      _
    $region3: #{tpu_custom_call.1} parent=1 // pred_check_branch
      %34 = sbr.rel (0) target = $region5
    $region4: #{tpu_custom_call.1} parent=1 // pred_region
      %s36 = ssub.s32 16, 16
      %37 = vsyncadd [#allocation8], %s36
      %s39 = sshll.u32 %s0, 4
      %s40 = int_to_ptr.vmem [resolvable:$true] %s39
      %42 = dma.vmem_to_smem %s40, 16, [#allocation5], [#allocation8]
    $region5: #{tpu_custom_call.1} parent=1 // pred_fallthru
      _
    // Predicated region
    $region6: #{tpu_custom_call.1} parent=1 // pred_check
      _
    $region7: #{tpu_custom_call.1} parent=1 // pred_check_branch
      %44 = sbr.rel (0) target = $region9
    $region8: #{tpu_custom_call.1} parent=1 // pred_region
      _
    $region9: #{tpu_custom_call.1} parent=1 // pred_fallthru
      _
    // Predicated region
    $region10: #{tpu_custom_call.1} parent=1 // pred_check
      _
    $region11: #{tpu_custom_call.1} parent=1 // pred_check_branch
      %46 = sbr.rel (0) target = $region13
    $region12: #{tpu_custom_call.1} parent=1 // pred_region
      _
    $region13: #{tpu_custom_call.1} parent=1 // pred_fallthru
      _
    // Predicated region
    $region14: #{tpu_custom_call.1} parent=1 // pred_check
      _
    $region15: #{tpu_custom_call.1} parent=1 // pred_check_branch
      %48 = sbr.rel (0) target = $region17
    $region16: #{tpu_custom_call.1} parent=1 // pred_region
      %s50 = ssub.s32 512, 512
      %51 = vsyncadd [#allocation6], %s50
      %s52 = sshll.u32 [#allocation9], 4
      %s53 = int_to_ptr.vmem [resolvable:$true] %s52
      %58 = dma.hbm_to_vmem [thread:$0]  %s3, 512, %s53, [#allocation6], 128, 128, 8
    $region17: #{tpu_custom_call.1} parent=1 // pred_fallthru
      _
    // Predicated region
    $region18: #{tpu_custom_call.1} parent=1 // pred_check
      _
    $region19: #{tpu_custom_call.1} parent=1 // pred_check_branch
      %60 = sbr.rel (0) target = $region21
    $region20: #{tpu_custom_call.1} parent=1 // pred_region
      _
    $region21: #{tpu_custom_call.1} parent=1 // pred_fallthru
      _
    // Predicated region
    $region22: #{tpu_custom_call.1} parent=1 // pred_check
      _
    $region23: #{tpu_custom_call.1} parent=1 // pred_check_branch
      %62 = sbr.rel (0) target = $region25
    $region24: #{tpu_custom_call.1} parent=1 // pred_region
      %s64 = ssub.s32 16, 16
      %65 = vsyncadd [#allocation11], %s64
      %s67 = sshll.u32 [#allocation10], 4
      %s68 = int_to_ptr.vmem [resolvable:$true] %s67
      %70 = dma.hbm_to_vmem [thread:$0]  %s5, 16, %s68, [#allocation11]
    $region25: #{tpu_custom_call.1} parent=1 // pred_fallthru
      _
    // Predicated region
    $region26: #{tpu_custom_call.1} parent=1 // pred_check
      _
    $region27: #{tpu_custom_call.1} parent=1 // pred_check_branch
      %72 = sbr.rel (0) target = $region29
    $region28: #{tpu_custom_call.1} parent=1 // pred_region
      %s74 = ssub.s32 512, 512
      %75 = vsyncadd [#allocation11], %s74
      %s76 = sshll.u32 [#allocation12], 4
      %s77 = int_to_ptr.vmem [resolvable:$true] %s76
      %82 = dma.hbm_to_vmem [thread:$0]  %s6, 512, %s77, [#allocation11], 128, 128, 8
    $region29: #{tpu_custom_call.1} parent=1 // pred_fallthru
      _
    // Predicated region
    $region30: #{tpu_custom_call.1} parent=1 // pred_check
      _
    $region31: #{tpu_custom_call.1} parent=1 // pred_check_branch
      %84 = sbr.rel (0) target = $region33
    $region32: #{tpu_custom_call.1} parent=1 // pred_region
      %s86 = ssub.s32 512, 512
      %87 = vsyncadd [#allocation14], %s86
      %s88 = sshll.u32 [#allocation13], 4
      %s89 = int_to_ptr.vmem [resolvable:$true] %s88
      %94 = dma.hbm_to_vmem [thread:$0]  %s7, 512, %s89, [#allocation14], 128, 128, 8
    $region33: #{tpu_custom_call.1} parent=1 // pred_fallthru
      _
    // Predicated region
    $region34: #{tpu_custom_call.1} parent=1 // pred_check
      _
    $region35: #{tpu_custom_call.1} parent=1 // pred_check_branch
      %96 = sbr.rel (0) target = $region37
    $region36: #{tpu_custom_call.1} parent=1 // pred_region
      %s98 = ssub.s32 16, 16
      %99 = vsyncadd [#allocation14], %s98
      %s101 = sshll.u32 [#allocation15], 4
      %s102 = int_to_ptr.vmem [resolvable:$true] %s101
      %104 = dma.hbm_to_vmem [thread:$0]  %s8, 16, %s102, [#allocation14]
    $region37: #{tpu_custom_call.1} parent=1 // pred_fallthru
      _
    // Predicated region
    $region38: #{tpu_custom_call.1} parent=1 // pred_check
      _
    $region39: #{tpu_custom_call.1} parent=1 // pred_check_branch
      %106 = sbr.rel (0) target = $region41
    $region40: #{tpu_custom_call.1} parent=1 // pred_region
      %s108 = ssub.s32 16, 16
      %109 = vsyncadd [#allocation17], %s108
      %s111 = sshll.u32 [#allocation16], 4
      %s112 = int_to_ptr.vmem [resolvable:$true] %s111
      %114 = dma.hbm_to_vmem [thread:$0]  %s9, 16, %s112, [#allocation17]
    $region41: #{tpu_custom_call.1} parent=1 // pred_fallthru
      _
    // Predicated region
    $region42: #{tpu_custom_call.1} parent=1 // pred_check
      _
    $region43: #{tpu_custom_call.1} parent=1 // pred_check_branch
      %116 = sbr.rel (0) target = $region45
    $region44: #{tpu_custom_call.1} parent=1 // pred_region
      _
    $region45: #{tpu_custom_call.1} parent=1 // pred_fallthru
      _
    // Predicated region
    $region46: #{tpu_custom_call.1} parent=1 // pred_check
      _
    $region47: #{tpu_custom_call.1} parent=1 // pred_check_branch
      %118 = sbr.rel (0) target = $region49
    $region48: #{tpu_custom_call.1} parent=1 // pred_region
      _
    $region49: #{tpu_custom_call.1} parent=1 // pred_fallthru
      _
    // Predicated region
    $region50: #{tpu_custom_call.1} parent=1 // pred_check
      _
    $region51: #{tpu_custom_call.1} parent=1 // pred_check_branch
      %120 = sbr.rel (0) target = $region53
    $region52: #{tpu_custom_call.1} parent=1 // pred_region
      _
    $region53: #{tpu_custom_call.1} parent=1 // pred_fallthru
      _
    // Predicated region
    $region54: #{tpu_custom_call.1} parent=1 // pred_check
      _
    $region55: #{tpu_custom_call.1} parent=1 // pred_check_branch
      %122 = sbr.rel (0) target = $region57
    $region56: #{tpu_custom_call.1} parent=1 // pred_region
      %s124 = ssub.s32 512, 512
      %125 = vsyncadd [#allocation17], %s124
      %s126 = sshll.u32 [#allocation18], 4
      %s127 = int_to_ptr.vmem [resolvable:$true] %s126
      %132 = dma.hbm_to_vmem [thread:$0]  %s13, 512, %s127, [#allocation17], 128, 128, 8
    $region57: #{tpu_custom_call.1} parent=1 // pred_fallthru
      _
    // Predicated region
    $region58: #{tpu_custom_call.1} parent=1 // pred_check
      _
    $region59: #{tpu_custom_call.1} parent=1 // pred_check_branch
      %134 = sbr.rel (0) target = $region61
    $region60: #{tpu_custom_call.1} parent=1 // pred_region
      %s136 = ssub.s32 512, 512
      %137 = vsyncadd [#allocation20], %s136
      %s138 = sshll.u32 [#allocation19], 4
      %s139 = int_to_ptr.vmem [resolvable:$true] %s138
      %144 = dma.hbm_to_vmem [thread:$0]  %s14, 512, %s139, [#allocation20], 128, 128, 8
    $region61: #{tpu_custom_call.1} parent=1 // pred_fallthru
      _
    // Predicated region
    $region62: #{tpu_custom_call.1} parent=1 // pred_check
      _
    $region63: #{tpu_custom_call.1} parent=1 // pred_check_branch
      %146 = sbr.rel (0) target = $region65
    $region64: #{tpu_custom_call.1} parent=1 // pred_region
      _
    $region65: #{tpu_custom_call.1} parent=1 // pred_fallthru
      _
    // Predicated region
    $region66: #{tpu_custom_call.1} parent=1 // pred_check
      _
    $region67: #{tpu_custom_call.1} parent=1 // pred_check_branch
      %148 = sbr.rel (0) target = $region69
    $region68: #{tpu_custom_call.1} parent=1 // pred_region
      %s150 = ssub.s32 512, 512
      %151 = vsyncadd [#allocation20], %s150
      %s152 = sshll.u32 [#allocation21], 4
      %s153 = int_to_ptr.vmem [resolvable:$true] %s152
      %158 = dma.hbm_to_vmem [thread:$0]  %s16, 512, %s153, [#allocation20], 128, 128, 8
    $region69: #{tpu_custom_call.1} parent=1 // pred_fallthru
      _
    // Predicated region
    $region70: #{tpu_custom_call.1} parent=1 // pred_check
      _
    $region71: #{tpu_custom_call.1} parent=1 // pred_check_branch
      %160 = sbr.rel (0) target = $region73
    $region72: #{tpu_custom_call.1} parent=1 // pred_region
      _
    $region73: #{tpu_custom_call.1} parent=1 // pred_fallthru
      _
    // Predicated region
    $region74: #{tpu_custom_call.1} parent=1 // pred_check
      _
    $region75: #{tpu_custom_call.1} parent=1 // pred_check_branch
      %162 = sbr.rel (0) target = $region77
    $region76: #{tpu_custom_call.1} parent=1 // pred_region
      %163 = dma.done [#allocation8], 16
    $region77: #{tpu_custom_call.1} parent=1 // pred_fallthru
      _
    // Predicated region
    $region78: #{tpu_custom_call.1} parent=1 // pred_check
      _
    $region79: #{tpu_custom_call.1} parent=1 // pred_check_branch
      %165 = sbr.rel (0) target = $region81
    $region80: #{tpu_custom_call.1} parent=1 // pred_region
      %166 = dma.done [#allocation6], 512
    $region81: #{tpu_custom_call.1} parent=1 // pred_fallthru
      _
    // Predicated region
    $region82: #{tpu_custom_call.1} parent=1 // pred_check
      _
    $region83: #{tpu_custom_call.1} parent=1 // pred_check_branch
      %168 = sbr.rel (0) target = $region85
    $region84: #{tpu_custom_call.1} parent=1 // pred_region
      %169 = dma.done [#allocation11], 16
    $region85: #{tpu_custom_call.1} parent=1 // pred_fallthru
      _
    // Predicated region
    $region86: #{tpu_custom_call.1} parent=1 // pred_check
      _
    $region87: #{tpu_custom_call.1} parent=1 // pred_check_branch
      %171 = sbr.rel (0) target = $region89
    $region88: #{tpu_custom_call.1} parent=1 // pred_region
      %172 = dma.done [#allocation11], 512
    $region89: #{tpu_custom_call.1} parent=1 // pred_fallthru
      _
    // Predicated region
    $region90: #{tpu_custom_call.1} parent=1 // pred_check
      _
    $region91: #{tpu_custom_call.1} parent=1 // pred_check_branch
      %174 = sbr.rel (0) target = $region93
    $region92: #{tpu_custom_call.1} parent=1 // pred_region
      %175 = dma.done [#allocation14], 512
    $region93: #{tpu_custom_call.1} parent=1 // pred_fallthru
      _
    // Predicated region
    $region94: #{tpu_custom_call.1} parent=1 // pred_check
      _
    $region95: #{tpu_custom_call.1} parent=1 // pred_check_branch
      %177 = sbr.rel (0) target = $region97
    $region96: #{tpu_custom_call.1} parent=1 // pred_region
      %178 = dma.done [#allocation14], 16
    $region97: #{tpu_custom_call.1} parent=1 // pred_fallthru
      _
    // Predicated region
    $region98: #{tpu_custom_call.1} parent=1 // pred_check
      _
    $region99: #{tpu_custom_call.1} parent=1 // pred_check_branch
      %180 = sbr.rel (0) target = $region101
    $region100: #{tpu_custom_call.1} parent=1 // pred_region
      %181 = dma.done [#allocation17], 16
    $region101: #{tpu_custom_call.1} parent=1 // pred_fallthru
      _
    // Predicated region
    $region102: #{tpu_custom_call.1} parent=1 // pred_check
      _
    $region103: #{tpu_custom_call.1} parent=1 // pred_check_branch
      %183 = sbr.rel (0) target = $region105
    $region104: #{tpu_custom_call.1} parent=1 // pred_region
      %184 = dma.done [#allocation17], 512
    $region105: #{tpu_custom_call.1} parent=1 // pred_fallthru
      _
    // Predicated region
    $region106: #{tpu_custom_call.1} parent=1 // pred_check
      _
    $region107: #{tpu_custom_call.1} parent=1 // pred_check_branch
      %186 = sbr.rel (0) target = $region109
    $region108: #{tpu_custom_call.1} parent=1 // pred_region
      %187 = dma.done [#allocation20], 512
    $region109: #{tpu_custom_call.1} parent=1 // pred_fallthru
      _
    // Predicated region
    $region110: #{tpu_custom_call.1} parent=1 // pred_check
      _
    $region111: #{tpu_custom_call.1} parent=1 // pred_check_branch
      %189 = sbr.rel (0) target = $region113
    $region112: #{tpu_custom_call.1} parent=1 // pred_region
      %190 = dma.done [#allocation20], 512
    $region113: #{tpu_custom_call.1} parent=1 // pred_fallthru
      _
    %191 = sfence
    %s192 = sld [smem:[#allocation5]]
    %s193 = scalar_lea.vmem %s1, %s192
    %v194 = vld [vmem:[%s193] sm:$0x1]
    %vm195 = vcmask 253952
    %196 = vst.msk [vmem:[#allocation2] sm:$0x1] %vm195, %v194
    %s197 = sld [smem:[#allocation5 + $0x1]]
    %s198 = scalar_lea.vmem %s1, %s197
    %v199 = vld [vmem:[%s198] sm:$0x1]
    %200 = vst.msk [vmem:[#allocation2 + $0x1] sm:$0x1] %vm195, %v199
    %s201 = sld [smem:[#allocation5 + $0x2]]
    %s202 = scalar_lea.vmem %s1, %s201
    %v203 = vld [vmem:[%s202] sm:$0x1]
    %204 = vst.msk [vmem:[#allocation2 + $0x2] sm:$0x1] %vm195, %v203
    %s205 = sld [smem:[#allocation5 + $0x3]]
    %s206 = scalar_lea.vmem %s1, %s205
    %v207 = vld [vmem:[%s206] sm:$0x1]
    %208 = vst.msk [vmem:[#allocation2 + $0x3] sm:$0x1] %vm195, %v207
    %s209 = sld [smem:[#allocation5 + $0x4]]
    %s210 = scalar_lea.vmem %s1, %s209
    %v211 = vld [vmem:[%s210] sm:$0x1]
    %212 = vst.msk [vmem:[#allocation2 + $0x4] sm:$0x1] %vm195, %v211
    %s213 = sld [smem:[#allocation5 + $0x5]]
    %s214 = scalar_lea.vmem %s1, %s213
    %v215 = vld [vmem:[%s214] sm:$0x1]
    %216 = vst.msk [vmem:[#allocation2 + $0x5] sm:$0x1] %vm195, %v215
    %s217 = sld [smem:[#allocation5 + $0x6]]
    %s218 = scalar_lea.vmem %s1, %s217
    %v219 = vld [vmem:[%s218] sm:$0x1]
    %220 = vst.msk [vmem:[#allocation2 + $0x6] sm:$0x1] %vm195, %v219
    %s221 = sld [smem:[#allocation5 + $0x7]]
    %s222 = scalar_lea.vmem %s1, %s221
    %v223 = vld [vmem:[%s222] sm:$0x1]
    %224 = vst.msk [vmem:[#allocation2 + $0x7] sm:$0x1] %vm195, %v223
    %v225 = vld [vmem:[#allocation2] sm:$0xff]
    %v226 = vld [vmem:[%s2] sm:$0xff]
    %v227 = vld [vmem:[%s2 + $0x8] sm:$0xff]
    %v228 = vld [vmem:[%s2 + $0x10] sm:$0xff]
    %v229 = vld [vmem:[%s2 + $0x18] sm:$0xff]
    %v230 = vld [vmem:[%s4] sm:$0x1]
    %v232 = vlaneseq
    %v233 = vshrl.u32 %v232, 7
    %v234 = vsub.s32 0, %v233
    %v235 = vrot.slane %v230, %v234
    %vm237 = vcmask 261120
    %v239 = vsel %vm237, %v225, 0
    %241 = vmatprep.subr.mxu0 0.0
    %242 = vmatpush1.msra.mxu0 %v226
    %243 = vmatprep.subr.mxu0 0.0
    %244 = vmatpush1.msra.mxu0 %v227
    %245 = vmatprep.subr.mxu0 0.0
    %246 = vmatpush1.msra.mxu0 %v228
    %247 = vmatprep.subr.mxu0 0.0
    %248 = vmatpush1.msra.mxu0 %v229
    %249 = vmatprep.subr.mxu0 0.0
    %250 = vmatpush1.msra.mxu0 0.0
    %251 = vmatprep.subr.mxu0 0.0
    %252 = vmatpush1.msra.mxu0 0.0
    %253 = vmatprep.subr.mxu0 0.0
    %254 = vmatpush1.msra.mxu0 0.0
    %255 = vmatprep.subr.mxu0 0.0
    %256 = vmatpush1.msra.mxu0 0.0
    %257 = vmatprep.subr.mxu0 0.0
    %258 = vmatpush1.msra.mxu0 0.0
    %259 = vmatprep.subr.mxu0 0.0
    %260 = vmatpush1.msra.mxu0 0.0
    %261 = vmatprep.subr.mxu0 0.0
    %262 = vmatpush1.msra.mxu0 0.0
    %263 = vmatprep.subr.mxu0 0.0
    %264 = vmatpush1.msra.mxu0 0.0
    %265 = vmatprep.subr.mxu0 0.0
    %266 = vmatpush1.msra.mxu0 0.0
    %267 = vmatprep.subr.mxu0 0.0
    %268 = vmatpush1.msra.mxu0 0.0
    %269 = vmatprep.subr.mxu0 0.0
    %270 = vmatpush1.msra.mxu0 0.0
    %271 = vmatprep.subr.mxu0 0.0
    %272 = vmatpush1.msra.mxu0 0.0
    %273 = vmatprep.subr.mxu0 0.0
    %274 = vmatpush1.msra.mxu0 0.0
    %275 = vmatprep.subr.mxu0 0.0
    %276 = vmatpush1.msra.mxu0 0.0
    %277 = vmatprep.subr.mxu0 0.0
    %278 = vmatpush1.msra.mxu0 0.0
    %279 = vmatprep.subr.mxu0 0.0
    %280 = vmatpush1.msra.mxu0 0.0
    %281 = vmatprep.subr.mxu0 0.0
    %282 = vmatpush1.msra.mxu0 0.0
    %283 = vmatprep.subr.mxu0 0.0
    %284 = vmatpush1.msra.mxu0 0.0
    %285 = vmatprep.subr.mxu0 0.0
    %286 = vmatpush1.msra.mxu0 0.0
    %287 = vmatprep.subr.mxu0 0.0
    %288 = vmatpush1.msra.mxu0 0.0
    %289 = vmatprep.subr.mxu0 0.0
    %290 = vmatpush1.msra.mxu0 0.0
    %291 = vmatprep.subr.mxu0 0.0
    %292 = vmatpush1.msra.mxu0 0.0
    %293 = vmatprep.subr.mxu0 0.0
    %294 = vmatpush1.msra.mxu0 0.0
    %295 = vmatprep.subr.mxu0 0.0
    %296 = vmatpush1.msra.mxu0 0.0
    %297 = vmatprep.subr.mxu0 0.0
    %298 = vmatpush1.msra.mxu0 0.0
    %299 = vmatprep.subr.mxu0 0.0
    %300 = vmatpush1.msra.mxu0 0.0
    %301 = vmatprep.subr.mxu0 0.0
    %302 = vmatpush1.msra.mxu0 0.0
    %303 = vmatprep.subr.mxu0 0.0
    %304 = vmatpush1.msra.mxu0 0.0
    %305 = vmatprep.mubr.f32.mxu0 0.0
    %306 = vmatmul.mubr.f32.gmra.mrb[0].mxu0 %v239
    %v307 = vpop.f32.mrb[0].mxu0
    %v308 = vadd.f32 %v235, %v307
    %v309 = vpop.f32.mrb[0].mxu0
    %310 = vdwg.mxu0
    %vm311 = vcmask 785408
    %312 = vst.msk [vmem:[#allocation3] sm:$0xff] %vm311, %v308
    %v313 = vld [vmem:[#allocation12] sm:$0xff]
    %v314 = vld [vmem:[#allocation12 + $0x8] sm:$0xff]
    %v315 = vld [vmem:[#allocation12 + $0x10] sm:$0xff]
    %v316 = vld [vmem:[#allocation12 + $0x18] sm:$0xff]
    %v317 = vld [vmem:[#allocation15] sm:$0x1]
    %v319 = vlaneseq
    %v320 = vshrl.u32 %v319, 7
    %v321 = vsub.s32 0, %v320
    %v322 = vrot.slane %v317, %v321
    %324 = vmatprep.subr.mxu0 0.0
    %325 = vmatpush1.msra.mxu0 %v313
    %326 = vmatprep.subr.mxu0 0.0
    %327 = vmatpush1.msra.mxu0 %v314
    %328 = vmatprep.subr.mxu0 0.0
    %329 = vmatpush1.msra.mxu0 %v315
    %330 = vmatprep.subr.mxu0 0.0
    %331 = vmatpush1.msra.mxu0 %v316
    %332 = vmatprep.subr.mxu0 0.0
    %333 = vmatpush1.msra.mxu0 0.0
    %334 = vmatprep.subr.mxu0 0.0
    %335 = vmatpush1.msra.mxu0 0.0
    %336 = vmatprep.subr.mxu0 0.0
    %337 = vmatpush1.msra.mxu0 0.0
    %338 = vmatprep.subr.mxu0 0.0
    %339 = vmatpush1.msra.mxu0 0.0
    %340 = vmatprep.subr.mxu0 0.0
    %341 = vmatpush1.msra.mxu0 0.0
    %342 = vmatprep.subr.mxu0 0.0
    %343 = vmatpush1.msra.mxu0 0.0
    %344 = vmatprep.subr.mxu0 0.0
    %345 = vmatpush1.msra.mxu0 0.0
    %346 = vmatprep.subr.mxu0 0.0
    %347 = vmatpush1.msra.mxu0 0.0
    %348 = vmatprep.subr.mxu0 0.0
    %349 = vmatpush1.msra.mxu0 0.0
    %350 = vmatprep.subr.mxu0 0.0
    %351 = vmatpush1.msra.mxu0 0.0
    %352 = vmatprep.subr.mxu0 0.0
    %353 = vmatpush1.msra.mxu0 0.0
    %354 = vmatprep.subr.mxu0 0.0
    %355 = vmatpush1.msra.mxu0 0.0
    %356 = vmatprep.subr.mxu0 0.0
    %357 = vmatpush1.msra.mxu0 0.0
    %358 = vmatprep.subr.mxu0 0.0
    %359 = vmatpush1.msra.mxu0 0.0
    %360 = vmatprep.subr.mxu0 0.0
    %361 = vmatpush1.msra.mxu0 0.0
    %362 = vmatprep.subr.mxu0 0.0
    %363 = vmatpush1.msra.mxu0 0.0
    %364 = vmatprep.subr.mxu0 0.0
    %365 = vmatpush1.msra.mxu0 0.0
    %366 = vmatprep.subr.mxu0 0.0
    %367 = vmatpush1.msra.mxu0 0.0
    %368 = vmatprep.subr.mxu0 0.0
    %369 = vmatpush1.msra.mxu0 0.0
    %370 = vmatprep.subr.mxu0 0.0
    %371 = vmatpush1.msra.mxu0 0.0
    %372 = vmatprep.subr.mxu0 0.0
    %373 = vmatpush1.msra.mxu0 0.0
    %374 = vmatprep.subr.mxu0 0.0
    %375 = vmatpush1.msra.mxu0 0.0
    %376 = vmatprep.subr.mxu0 0.0
    %377 = vmatpush1.msra.mxu0 0.0
    %378 = vmatprep.subr.mxu0 0.0
    %379 = vmatpush1.msra.mxu0 0.0
    %380 = vmatprep.subr.mxu0 0.0
    %381 = vmatpush1.msra.mxu0 0.0
    %382 = vmatprep.subr.mxu0 0.0
    %383 = vmatpush1.msra.mxu0 0.0
    %384 = vmatprep.subr.mxu0 0.0
    %385 = vmatpush1.msra.mxu0 0.0
    %386 = vmatprep.subr.mxu0 0.0
    %387 = vmatpush1.msra.mxu0 0.0
    %388 = vmatprep.mubr.f32.mxu0 0.0
    %389 = vmatmul.mubr.f32.gmra.mrb[0].mxu0 %v239
    %v390 = vpop.f32.mrb[0].mxu0
    %v391 = vadd.f32 %v322, %v390
    %v392 = vpop.f32.mrb[0].mxu0
    %393 = vdwg.mxu0
    %394 = vst.msk [vmem:[#allocation4] sm:$0xff] %vm311, %v391
    %v395 = vld [vmem:[#allocation9] sm:$0xff]
    %v396 = vld [vmem:[#allocation9 + $0x8] sm:$0xff]
    %v397 = vld [vmem:[#allocation9 + $0x10] sm:$0xff]
    %v398 = vld [vmem:[#allocation9 + $0x18] sm:$0xff]
    %v400 = vsel %vm237, 0.0, 0
    %402 = vmatprep.subr.mxu0 0.0
    %403 = vmatpush1.msra.mxu0 %v395
    %404 = vmatprep.subr.mxu0 0.0
    %405 = vmatpush1.msra.mxu0 %v396
    %406 = vmatprep.subr.mxu0 0.0
    %407 = vmatpush1.msra.mxu0 %v397
    %408 = vmatprep.subr.mxu0 0.0
    %409 = vmatpush1.msra.mxu0 %v398
    %410 = vmatprep.subr.mxu0 0.0
    %411 = vmatpush1.msra.mxu0 0.0
    %412 = vmatprep.subr.mxu0 0.0
    %413 = vmatpush1.msra.mxu0 0.0
    %414 = vmatprep.subr.mxu0 0.0
    %415 = vmatpush1.msra.mxu0 0.0
    %416 = vmatprep.subr.mxu0 0.0
    %417 = vmatpush1.msra.mxu0 0.0
    %418 = vmatprep.subr.mxu0 0.0
    %419 = vmatpush1.msra.mxu0 0.0
    %420 = vmatprep.subr.mxu0 0.0
    %421 = vmatpush1.msra.mxu0 0.0
    %422 = vmatprep.subr.mxu0 0.0
    %423 = vmatpush1.msra.mxu0 0.0
    %424 = vmatprep.subr.mxu0 0.0
    %425 = vmatpush1.msra.mxu0 0.0
    %426 = vmatprep.subr.mxu0 0.0
    %427 = vmatpush1.msra.mxu0 0.0
    %428 = vmatprep.subr.mxu0 0.0
    %429 = vmatpush1.msra.mxu0 0.0
    %430 = vmatprep.subr.mxu0 0.0
    %431 = vmatpush1.msra.mxu0 0.0
    %432 = vmatprep.subr.mxu0 0.0
    %433 = vmatpush1.msra.mxu0 0.0
    %434 = vmatprep.subr.mxu0 0.0
    %435 = vmatpush1.msra.mxu0 0.0
    %436 = vmatprep.subr.mxu0 0.0
    %437 = vmatpush1.msra.mxu0 0.0
    %438 = vmatprep.subr.mxu0 0.0
    %439 = vmatpush1.msra.mxu0 0.0
    %440 = vmatprep.subr.mxu0 0.0
    %441 = vmatpush1.msra.mxu0 0.0
    %442 = vmatprep.subr.mxu0 0.0
    %443 = vmatpush1.msra.mxu0 0.0
    %444 = vmatprep.subr.mxu0 0.0
    %445 = vmatpush1.msra.mxu0 0.0
    %446 = vmatprep.subr.mxu0 0.0
    %447 = vmatpush1.msra.mxu0 0.0
    %448 = vmatprep.subr.mxu0 0.0
    %449 = vmatpush1.msra.mxu0 0.0
    %450 = vmatprep.subr.mxu0 0.0
    %451 = vmatpush1.msra.mxu0 0.0
    %452 = vmatprep.subr.mxu0 0.0
    %453 = vmatpush1.msra.mxu0 0.0
    %454 = vmatprep.subr.mxu0 0.0
    %455 = vmatpush1.msra.mxu0 0.0
    %456 = vmatprep.subr.mxu0 0.0
    %457 = vmatpush1.msra.mxu0 0.0
    %458 = vmatprep.subr.mxu0 0.0
    %459 = vmatpush1.msra.mxu0 0.0
    %460 = vmatprep.subr.mxu0 0.0
    %461 = vmatpush1.msra.mxu0 0.0
    %462 = vmatprep.subr.mxu0 0.0
    %463 = vmatpush1.msra.mxu0 0.0
    %464 = vmatprep.subr.mxu0 0.0
    %465 = vmatpush1.msra.mxu0 0.0
    %466 = vmatprep.mubr.f32.mxu0 0.0
    %467 = vmatmul.mubr.f32.gmra.mrb[0].mxu0 %v400
    %v468 = vpop.f32.mrb[0].mxu0
    %v469 = vadd.f32 0.0, %v468
    %v470 = vpop.f32.mrb[0].mxu0
    %471 = vdwg.mxu0
    %v472 = vld [vmem:[#allocation13] sm:$0xff]
    %v473 = vld [vmem:[#allocation13 + $0x8] sm:$0xff]
    %v474 = vld [vmem:[#allocation13 + $0x10] sm:$0xff]
    %v475 = vld [vmem:[#allocation13 + $0x18] sm:$0xff]
    %476 = vmatprep.subr.mxu0 0.0
    %477 = vmatpush1.msra.mxu0 %v472
    %478 = vmatprep.subr.mxu0 0.0
    %479 = vmatpush1.msra.mxu0 %v473
    %480 = vmatprep.subr.mxu0 0.0
    %481 = vmatpush1.msra.mxu0 %v474
    %482 = vmatprep.subr.mxu0 0.0
    %483 = vmatpush1.msra.mxu0 %v475
    %484 = vmatprep.subr.mxu0 0.0
    %485 = vmatpush1.msra.mxu0 0.0
    %486 = vmatprep.subr.mxu0 0.0
    %487 = vmatpush1.msra.mxu0 0.0
    %488 = vmatprep.subr.mxu0 0.0
    %489 = vmatpush1.msra.mxu0 0.0
    %490 = vmatprep.subr.mxu0 0.0
    %491 = vmatpush1.msra.mxu0 0.0
    %492 = vmatprep.subr.mxu0 0.0
    %493 = vmatpush1.msra.mxu0 0.0
    %494 = vmatprep.subr.mxu0 0.0
    %495 = vmatpush1.msra.mxu0 0.0
    %496 = vmatprep.subr.mxu0 0.0
    %497 = vmatpush1.msra.mxu0 0.0
    %498 = vmatprep.subr.mxu0 0.0
    %499 = vmatpush1.msra.mxu0 0.0
    %500 = vmatprep.subr.mxu0 0.0
    %501 = vmatpush1.msra.mxu0 0.0
    %502 = vmatprep.subr.mxu0 0.0
    %503 = vmatpush1.msra.mxu0 0.0
    %504 = vmatprep.subr.mxu0 0.0
    %505 = vmatpush1.msra.mxu0 0.0
    %506 = vmatprep.subr.mxu0 0.0
    %507 = vmatpush1.msra.mxu0 0.0
    %508 = vmatprep.subr.mxu0 0.0
    %509 = vmatpush1.msra.mxu0 0.0
    %510 = vmatprep.subr.mxu0 0.0
    %511 = vmatpush1.msra.mxu0 0.0
    %512 = vmatprep.subr.mxu0 0.0
    %513 = vmatpush1.msra.mxu0 0.0
    %514 = vmatprep.subr.mxu0 0.0
    %515 = vmatpush1.msra.mxu0 0.0
    %516 = vmatprep.subr.mxu0 0.0
    %517 = vmatpush1.msra.mxu0 0.0
    %518 = vmatprep.subr.mxu0 0.0
    %519 = vmatpush1.msra.mxu0 0.0
    %520 = vmatprep.subr.mxu0 0.0
    %521 = vmatpush1.msra.mxu0 0.0
    %522 = vmatprep.subr.mxu0 0.0
    %523 = vmatpush1.msra.mxu0 0.0
    %524 = vmatprep.subr.mxu0 0.0
    %525 = vmatpush1.msra.mxu0 0.0
    %526 = vmatprep.subr.mxu0 0.0
    %527 = vmatpush1.msra.mxu0 0.0
    %528 = vmatprep.subr.mxu0 0.0
    %529 = vmatpush1.msra.mxu0 0.0
    %530 = vmatprep.subr.mxu0 0.0
    %531 = vmatpush1.msra.mxu0 0.0
    %532 = vmatprep.subr.mxu0 0.0
    %533 = vmatpush1.msra.mxu0 0.0
    %534 = vmatprep.subr.mxu0 0.0
    %535 = vmatpush1.msra.mxu0 0.0
    %536 = vmatprep.subr.mxu0 0.0
    %537 = vmatpush1.msra.mxu0 0.0
    %538 = vmatprep.subr.mxu0 0.0
    %539 = vmatpush1.msra.mxu0 0.0
    %540 = vmatprep.mubr.f32.mxu0 0.0
    %541 = vmatmul.mubr.f32.gmra.mrb[0].mxu0 %v400
    %v542 = vpop.f32.mrb[0].mxu0
    %v543 = vadd.f32 0.0, %v542
    %v544 = vpop.f32.mrb[0].mxu0
    %545 = vdwg.mxu0
    %v546 = vld [vmem:[#allocation3] sm:$0x1]
    %v547 = vld [vmem:[#allocation10] sm:$0x1]
    %v548 = vadd.f32 %v546, %v469
    %v549 = vxor.u32 %v548, 2147483648
    %v550 = vmul.f32 %v549, 1.442695
    %v551 = vpow.pop %v550
    %v552 = vadd.f32 %v551, 1.0
    %v553 = vrcp.pop %v552
    %v554 = vmul.f32 1.0, %v553
    %v556 = vlaneseq
    %v557 = vshrl.u32 %v556, 7
    %v558 = vsub.s32 0, %v557
    %v559 = vrot.slane %v547, %v558
    %560 = vrot.lane.b32.xlu0 %v559, 64
    %v561 = vpop.permute.xlu0 %560
    %v563 = vadd.f32 %v469, %v561
    %565 = vrot.lane.b32.xlu0 %v563, 64
    %v566 = vpop.permute.xlu0 %565
    %v568 = vmul.f32 %v554, %v566
    %570 = vrot.lane.b32.xlu0 %v568, 64
    %v571 = vpop.permute.xlu0 %570
    %v573 = vadd.f32 %v546, %v571
    %v574 = vtanh.pop %v573
    %v575 = vsub.f32 1.0, %v554
    %577 = vrot.lane.b32.xlu0 %v574, 96
    %v578 = vpop.permute.xlu0 %577
    %v580 = vmul.f32 %v575, %v578
    %v581 = vmul.f32 %v554, 0.0
    %v582 = vadd.f32 %v580, %v581
    %v583 = vld [vmem:[#allocation4 + $0x7] sm:$0x1]
    %v584 = vld [vmem:[#allocation16] sm:$0x1]
    %v585 = vadd.f32 %v583, %v543
    %v586 = vxor.u32 %v585, 2147483648
    %v587 = vmul.f32 %v586, 1.442695
    %v588 = vpow.pop %v587
    %v589 = vadd.f32 %v588, 1.0
    %v590 = vrcp.pop %v589
    %v591 = vmul.f32 1.0, %v590
    %v593 = vlaneseq
    %v594 = vshrl.u32 %v593, 7
    %v595 = vsub.s32 0, %v594
    %v596 = vrot.slane %v584, %v595
    %597 = vrot.lane.b32.xlu0 %v596, 64
    %v598 = vpop.permute.xlu0 %597
    %v600 = vadd.f32 %v543, %v598
    %602 = vrot.lane.b32.xlu0 %v600, 64
    %v603 = vpop.permute.xlu0 %602
    %v605 = vmul.f32 %v591, %v603
    %607 = vrot.lane.b32.xlu0 %v605, 64
    %v608 = vpop.permute.xlu0 %607
    %v610 = vadd.f32 %v583, %v608
    %v611 = vtanh.pop %v610
    %v612 = vsub.f32 1.0, %v591
    %614 = vrot.lane.b32.xlu0 %v611, 96
    %v615 = vpop.permute.xlu0 %614
    %v617 = vmul.f32 %v612, %v615
    %v618 = vmul.f32 %v591, 0.0
    %v619 = vadd.f32 %v617, %v618
    %621 = vrot.lane.b32.xlu0 %v582, 96
    %v622 = vpop.permute.xlu0 %621
    %624 = vst.msk [vmem:[#allocation2] sm:$0x1] %vm195, %v622
    %626 = vrot.lane.b32.xlu0 %v619, 96
    %v627 = vpop.permute.xlu0 %626
    %629 = vst.msk [vmem:[#allocation2 + $0x7] sm:$0x1] %vm195, %v627
    %v630 = vld [vmem:[#allocation9] sm:$0xff]
    %v631 = vld [vmem:[#allocation9 + $0x8] sm:$0xff]
    %v632 = vld [vmem:[#allocation9 + $0x10] sm:$0xff]
    %v633 = vld [vmem:[#allocation9 + $0x18] sm:$0xff]
    %v634 = vsel %vm237, %v622, 0
    %636 = vmatprep.subr.mxu0 0.0
    %637 = vmatpush1.msra.mxu0 %v630
    %638 = vmatprep.subr.mxu0 0.0
    %639 = vmatpush1.msra.mxu0 %v631
    %640 = vmatprep.subr.mxu0 0.0
    %641 = vmatpush1.msra.mxu0 %v632
    %642 = vmatprep.subr.mxu0 0.0
    %643 = vmatpush1.msra.mxu0 %v633
    %644 = vmatprep.subr.mxu0 0.0
    %645 = vmatpush1.msra.mxu0 0.0
    %646 = vmatprep.subr.mxu0 0.0
    %647 = vmatpush1.msra.mxu0 0.0
    %648 = vmatprep.subr.mxu0 0.0
    %649 = vmatpush1.msra.mxu0 0.0
    %650 = vmatprep.subr.mxu0 0.0
    %651 = vmatpush1.msra.mxu0 0.0
    %652 = vmatprep.subr.mxu0 0.0
    %653 = vmatpush1.msra.mxu0 0.0
    %654 = vmatprep.subr.mxu0 0.0
    %655 = vmatpush1.msra.mxu0 0.0
    %656 = vmatprep.subr.mxu0 0.0
    %657 = vmatpush1.msra.mxu0 0.0
    %658 = vmatprep.subr.mxu0 0.0
    %659 = vmatpush1.msra.mxu0 0.0
    %660 = vmatprep.subr.mxu0 0.0
    %661 = vmatpush1.msra.mxu0 0.0
    %662 = vmatprep.subr.mxu0 0.0
    %663 = vmatpush1.msra.mxu0 0.0
    %664 = vmatprep.subr.mxu0 0.0
    %665 = vmatpush1.msra.mxu0 0.0
    %666 = vmatprep.subr.mxu0 0.0
    %667 = vmatpush1.msra.mxu0 0.0
    %668 = vmatprep.subr.mxu0 0.0
    %669 = vmatpush1.msra.mxu0 0.0
    %670 = vmatprep.subr.mxu0 0.0
    %671 = vmatpush1.msra.mxu0 0.0
    %672 = vmatprep.subr.mxu0 0.0
    %673 = vmatpush1.msra.mxu0 0.0
    %674 = vmatprep.subr.mxu0 0.0
    %675 = vmatpush1.msra.mxu0 0.0
    %676 = vmatprep.subr.mxu0 0.0
    %677 = vmatpush1.msra.mxu0 0.0
    %678 = vmatprep.subr.mxu0 0.0
    %679 = vmatpush1.msra.mxu0 0.0
    %680 = vmatprep.subr.mxu0 0.0
    %681 = vmatpush1.msra.mxu0 0.0
    %682 = vmatprep.subr.mxu0 0.0
    %683 = vmatpush1.msra.mxu0 0.0
    %684 = vmatprep.subr.mxu0 0.0
    %685 = vmatpush1.msra.mxu0 0.0
    %686 = vmatprep.subr.mxu0 0.0
    %687 = vmatpush1.msra.mxu0 0.0
    %688 = vmatprep.subr.mxu0 0.0
    %689 = vmatpush1.msra.mxu0 0.0
    %690 = vmatprep.subr.mxu0 0.0
    %691 = vmatpush1.msra.mxu0 0.0
    %692 = vmatprep.subr.mxu0 0.0
    %693 = vmatpush1.msra.mxu0 0.0
    %694 = vmatprep.subr.mxu0 0.0
    %695 = vmatpush1.msra.mxu0 0.0
    %696 = vmatprep.subr.mxu0 0.0
    %697 = vmatpush1.msra.mxu0 0.0
    %698 = vmatprep.subr.mxu0 0.0
    %699 = vmatpush1.msra.mxu0 0.0
    %700 = vmatprep.mubr.f32.mxu0 0.0
    %701 = vmatmul.mubr.f32.gmra.mrb[0].mxu0 %v634
    %v702 = vpop.f32.mrb[0].mxu0
    %v703 = vadd.f32 0.0, %v702
    %v704 = vpop.f32.mrb[0].mxu0
    %705 = vdwg.mxu0
    %v706 = vld [vmem:[#allocation13] sm:$0xff]
    %v707 = vld [vmem:[#allocation13 + $0x8] sm:$0xff]
    %v708 = vld [vmem:[#allocation13 + $0x10] sm:$0xff]
    %v709 = vld [vmem:[#allocation13 + $0x18] sm:$0xff]
    %v710 = vsel %vm237, %v627, 0
    %712 = vmatprep.subr.mxu0 0.0
    %713 = vmatpush1.msra.mxu0 %v706
    %714 = vmatprep.subr.mxu0 0.0
    %715 = vmatpush1.msra.mxu0 %v707
    %716 = vmatprep.subr.mxu0 0.0
    %717 = vmatpush1.msra.mxu0 %v708
    %718 = vmatprep.subr.mxu0 0.0
    %719 = vmatpush1.msra.mxu0 %v709
    %720 = vmatprep.subr.mxu0 0.0
    %721 = vmatpush1.msra.mxu0 0.0
    %722 = vmatprep.subr.mxu0 0.0
    %723 = vmatpush1.msra.mxu0 0.0
    %724 = vmatprep.subr.mxu0 0.0
    %725 = vmatpush1.msra.mxu0 0.0
    %726 = vmatprep.subr.mxu0 0.0
    %727 = vmatpush1.msra.mxu0 0.0
    %728 = vmatprep.subr.mxu0 0.0
    %729 = vmatpush1.msra.mxu0 0.0
    %730 = vmatprep.subr.mxu0 0.0
    %731 = vmatpush1.msra.mxu0 0.0
    %732 = vmatprep.subr.mxu0 0.0
    %733 = vmatpush1.msra.mxu0 0.0
    %734 = vmatprep.subr.mxu0 0.0
    %735 = vmatpush1.msra.mxu0 0.0
    %736 = vmatprep.subr.mxu0 0.0
    %737 = vmatpush1.msra.mxu0 0.0
    %738 = vmatprep.subr.mxu0 0.0
    %739 = vmatpush1.msra.mxu0 0.0
    %740 = vmatprep.subr.mxu0 0.0
    %741 = vmatpush1.msra.mxu0 0.0
    %742 = vmatprep.subr.mxu0 0.0
    %743 = vmatpush1.msra.mxu0 0.0
    %744 = vmatprep.subr.mxu0 0.0
    %745 = vmatpush1.msra.mxu0 0.0
    %746 = vmatprep.subr.mxu0 0.0
    %747 = vmatpush1.msra.mxu0 0.0
    %748 = vmatprep.subr.mxu0 0.0
    %749 = vmatpush1.msra.mxu0 0.0
    %750 = vmatprep.subr.mxu0 0.0
    %751 = vmatpush1.msra.mxu0 0.0
    %752 = vmatprep.subr.mxu0 0.0
    %753 = vmatpush1.msra.mxu0 0.0
    %754 = vmatprep.subr.mxu0 0.0
    %755 = vmatpush1.msra.mxu0 0.0
    %756 = vmatprep.subr.mxu0 0.0
    %757 = vmatpush1.msra.mxu0 0.0
    %758 = vmatprep.subr.mxu0 0.0
    %759 = vmatpush1.msra.mxu0 0.0
    %760 = vmatprep.subr.mxu0 0.0
    %761 = vmatpush1.msra.mxu0 0.0
    %762 = vmatprep.subr.mxu0 0.0
    %763 = vmatpush1.msra.mxu0 0.0
    %764 = vmatprep.subr.mxu0 0.0
    %765 = vmatpush1.msra.mxu0 0.0
    %766 = vmatprep.subr.mxu0 0.0
    %767 = vmatpush1.msra.mxu0 0.0
    %768 = vmatprep.subr.mxu0 0.0
    %769 = vmatpush1.msra.mxu0 0.0
    %770 = vmatprep.subr.mxu0 0.0
    %771 = vmatpush1.msra.mxu0 0.0
    %772 = vmatprep.subr.mxu0 0.0
    %773 = vmatpush1.msra.mxu0 0.0
    %774 = vmatprep.subr.mxu0 0.0
    %775 = vmatpush1.msra.mxu0 0.0
    %776 = vmatprep.mubr.f32.mxu0 0.0
    %777 = vmatmul.mubr.f32.gmra.mrb[0].mxu0 %v710
    %v778 = vpop.f32.mrb[0].mxu0
    %v779 = vadd.f32 0.0, %v778
    %v780 = vpop.f32.mrb[0].mxu0
    %781 = vdwg.mxu0
    %v782 = vld [vmem:[#allocation3 + $0x1] sm:$0x1]
    %v783 = vld [vmem:[#allocation10] sm:$0x1]
    %v784 = vadd.f32 %v782, %v703
    %v785 = vxor.u32 %v784, 2147483648
    %v786 = vmul.f32 %v785, 1.442695
    %v787 = vpow.pop %v786
    %v788 = vadd.f32 %v787, 1.0
    %v789 = vrcp.pop %v788
    %v790 = vmul.f32 1.0, %v789
    %v792 = vlaneseq
    %v793 = vshrl.u32 %v792, 7
    %v794 = vsub.s32 0, %v793
    %v795 = vrot.slane %v783, %v794
    %796 = vrot.lane.b32.xlu0 %v795, 64
    %v797 = vpop.permute.xlu0 %796
    %v799 = vadd.f32 %v703, %v797
    %801 = vrot.lane.b32.xlu0 %v799, 64
    %v802 = vpop.permute.xlu0 %801
    %v804 = vmul.f32 %v790, %v802
    %806 = vrot.lane.b32.xlu0 %v804, 64
    %v807 = vpop.permute.xlu0 %806
    %v809 = vadd.f32 %v782, %v807
    %v810 = vtanh.pop %v809
    %v811 = vsub.f32 1.0, %v790
    %813 = vrot.lane.b32.xlu0 %v810, 96
    %v814 = vpop.permute.xlu0 %813
    %v816 = vmul.f32 %v811, %v814
    %v817 = vmul.f32 %v790, %v582
    %v818 = vadd.f32 %v816, %v817
    %v819 = vld [vmem:[#allocation4 + $0x6] sm:$0x1]
    %v820 = vld [vmem:[#allocation16] sm:$0x1]
    %v821 = vadd.f32 %v819, %v779
    %v822 = vxor.u32 %v821, 2147483648
    %v823 = vmul.f32 %v822, 1.442695
    %v824 = vpow.pop %v823
    %v825 = vadd.f32 %v824, 1.0
    %v826 = vrcp.pop %v825
    %v827 = vmul.f32 1.0, %v826
    %v829 = vlaneseq
    %v830 = vshrl.u32 %v829, 7
    %v831 = vsub.s32 0, %v830
    %v832 = vrot.slane %v820, %v831
    %833 = vrot.lane.b32.xlu0 %v832, 64
    %v834 = vpop.permute.xlu0 %833
    %v836 = vadd.f32 %v779, %v834
    %838 = vrot.lane.b32.xlu0 %v836, 64
    %v839 = vpop.permute.xlu0 %838
    %v841 = vmul.f32 %v827, %v839
    %843 = vrot.lane.b32.xlu0 %v841, 64
    %v844 = vpop.permute.xlu0 %843
    %v846 = vadd.f32 %v819, %v844
    %v847 = vtanh.pop %v846
    %v848 = vsub.f32 1.0, %v827
    %850 = vrot.lane.b32.xlu0 %v847, 96
    %v851 = vpop.permute.xlu0 %850
    %v853 = vmul.f32 %v848, %v851
    %v854 = vmul.f32 %v827, %v619
    %v855 = vadd.f32 %v853, %v854
    %857 = vrot.lane.b32.xlu0 %v818, 96
    %v858 = vpop.permute.xlu0 %857
    %860 = vst.msk [vmem:[#allocation2 + $0x1] sm:$0x1] %vm195, %v858
    %862 = vrot.lane.b32.xlu0 %v855, 96
    %v863 = vpop.permute.xlu0 %862
    %865 = vst.msk [vmem:[#allocation2 + $0x6] sm:$0x1] %vm195, %v863
    %v866 = vld [vmem:[#allocation9] sm:$0xff]
    %v867 = vld [vmem:[#allocation9 + $0x8] sm:$0xff]
    %v868 = vld [vmem:[#allocation9 + $0x10] sm:$0xff]
    %v869 = vld [vmem:[#allocation9 + $0x18] sm:$0xff]
    %v870 = vsel %vm237, %v858, 0
    %872 = vmatprep.subr.mxu0 0.0
    %873 = vmatpush1.msra.mxu0 %v866
    %874 = vmatprep.subr.mxu0 0.0
    %875 = vmatpush1.msra.mxu0 %v867
    %876 = vmatprep.subr.mxu0 0.0
    %877 = vmatpush1.msra.mxu0 %v868
    %878 = vmatprep.subr.mxu0 0.0
    %879 = vmatpush1.msra.mxu0 %v869
    %880 = vmatprep.subr.mxu0 0.0
    %881 = vmatpush1.msra.mxu0 0.0
    %882 = vmatprep.subr.mxu0 0.0
    %883 = vmatpush1.msra.mxu0 0.0
    %884 = vmatprep.subr.mxu0 0.0
    %885 = vmatpush1.msra.mxu0 0.0
    %886 = vmatprep.subr.mxu0 0.0
    %887 = vmatpush1.msra.mxu0 0.0
    %888 = vmatprep.subr.mxu0 0.0
    %889 = vmatpush1.msra.mxu0 0.0
    %890 = vmatprep.subr.mxu0 0.0
    %891 = vmatpush1.msra.mxu0 0.0
    %892 = vmatprep.subr.mxu0 0.0
    %893 = vmatpush1.msra.mxu0 0.0
    %894 = vmatprep.subr.mxu0 0.0
    %895 = vmatpush1.msra.mxu0 0.0
    %896 = vmatprep.subr.mxu0 0.0
    %897 = vmatpush1.msra.mxu0 0.0
    %898 = vmatprep.subr.mxu0 0.0
    %899 = vmatpush1.msra.mxu0 0.0
    %900 = vmatprep.subr.mxu0 0.0
    %901 = vmatpush1.msra.mxu0 0.0
    %902 = vmatprep.subr.mxu0 0.0
    %903 = vmatpush1.msra.mxu0 0.0
    %904 = vmatprep.subr.mxu0 0.0
    %905 = vmatpush1.msra.mxu0 0.0
    %906 = vmatprep.subr.mxu0 0.0
    %907 = vmatpush1.msra.mxu0 0.0
    %908 = vmatprep.subr.mxu0 0.0
    %909 = vmatpush1.msra.mxu0 0.0
    %910 = vmatprep.subr.mxu0 0.0
    %911 = vmatpush1.msra.mxu0 0.0
    %912 = vmatprep.subr.mxu0 0.0
    %913 = vmatpush1.msra.mxu0 0.0
    %914 = vmatprep.subr.mxu0 0.0
    %915 = vmatpush1.msra.mxu0 0.0
    %916 = vmatprep.subr.mxu0 0.0
    %917 = vmatpush1.msra.mxu0 0.0
    %918 = vmatprep.subr.mxu0 0.0
    %919 = vmatpush1.msra.mxu0 0.0
    %920 = vmatprep.subr.mxu0 0.0
    %921 = vmatpush1.msra.mxu0 0.0
    %922 = vmatprep.subr.mxu0 0.0
    %923 = vmatpush1.msra.mxu0 0.0
    %924 = vmatprep.subr.mxu0 0.0
    %925 = vmatpush1.msra.mxu0 0.0
    %926 = vmatprep.subr.mxu0 0.0
    %927 = vmatpush1.msra.mxu0 0.0
    %928 = vmatprep.subr.mxu0 0.0
    %929 = vmatpush1.msra.mxu0 0.0
    %930 = vmatprep.subr.mxu0 0.0
    %931 = vmatpush1.msra.mxu0 0.0
    %932 = vmatprep.subr.mxu0 0.0
    %933 = vmatpush1.msra.mxu0 0.0
    %934 = vmatprep.subr.mxu0 0.0
    %935 = vmatpush1.msra.mxu0 0.0
    %936 = vmatprep.mubr.f32.mxu0 0.0
    %937 = vmatmul.mubr.f32.gmra.mrb[0].mxu0 %v870
    %v938 = vpop.f32.mrb[0].mxu0
    %v939 = vadd.f32 0.0, %v938
    %v940 = vpop.f32.mrb[0].mxu0
    %941 = vdwg.mxu0
    %v942 = vld [vmem:[#allocation13] sm:$0xff]
    %v943 = vld [vmem:[#allocation13 + $0x8] sm:$0xff]
    %v944 = vld [vmem:[#allocation13 + $0x10] sm:$0xff]
    %v945 = vld [vmem:[#allocation13 + $0x18] sm:$0xff]
    %v946 = vsel %vm237, %v863, 0
    %948 = vmatprep.subr.mxu0 0.0
    %949 = vmatpush1.msra.mxu0 %v942
    %950 = vmatprep.subr.mxu0 0.0
    %951 = vmatpush1.msra.mxu0 %v943
    %952 = vmatprep.subr.mxu0 0.0
    %953 = vmatpush1.msra.mxu0 %v944
    %954 = vmatprep.subr.mxu0 0.0
    %955 = vmatpush1.msra.mxu0 %v945
    %956 = vmatprep.subr.mxu0 0.0
    %957 = vmatpush1.msra.mxu0 0.0
    %958 = vmatprep.subr.mxu0 0.0
    %959 = vmatpush1.msra.mxu0 0.0
    %960 = vmatprep.subr.mxu0 0.0
    %961 = vmatpush1.msra.mxu0 0.0
    %962 = vmatprep.subr.mxu0 0.0
    %963 = vmatpush1.msra.mxu0 0.0
    %964 = vmatprep.subr.mxu0 0.0
    %965 = vmatpush1.msra.mxu0 0.0
    %966 = vmatprep.subr.mxu0 0.0
    %967 = vmatpush1.msra.mxu0 0.0
    %968 = vmatprep.subr.mxu0 0.0
    %969 = vmatpush1.msra.mxu0 0.0
    %970 = vmatprep.subr.mxu0 0.0
    %971 = vmatpush1.msra.mxu0 0.0
    %972 = vmatprep.subr.mxu0 0.0
    %973 = vmatpush1.msra.mxu0 0.0
    %974 = vmatprep.subr.mxu0 0.0
    %975 = vmatpush1.msra.mxu0 0.0
    %976 = vmatprep.subr.mxu0 0.0
    %977 = vmatpush1.msra.mxu0 0.0
    %978 = vmatprep.subr.mxu0 0.0
    %979 = vmatpush1.msra.mxu0 0.0
    %980 = vmatprep.subr.mxu0 0.0
    %981 = vmatpush1.msra.mxu0 0.0
    %982 = vmatprep.subr.mxu0 0.0
    %983 = vmatpush1.msra.mxu0 0.0
    %984 = vmatprep.subr.mxu0 0.0
    %985 = vmatpush1.msra.mxu0 0.0
    %986 = vmatprep.subr.mxu0 0.0
    %987 = vmatpush1.msra.mxu0 0.0
    %988 = vmatprep.subr.mxu0 0.0
    %989 = vmatpush1.msra.mxu0 0.0
    %990 = vmatprep.subr.mxu0 0.0
    %991 = vmatpush1.msra.mxu0 0.0
    %992 = vmatprep.subr.mxu0 0.0
    %993 = vmatpush1.msra.mxu0 0.0
    %994 = vmatprep.subr.mxu0 0.0
    %995 = vmatpush1.msra.mxu0 0.0
    %996 = vmatprep.subr.mxu0 0.0
    %997 = vmatpush1.msra.mxu0 0.0
    %998 = vmatprep.subr.mxu0 0.0
    %999 = vmatpush1.msra.mxu0 0.0
    %1000 = vmatprep.subr.mxu0 0.0
    %1001 = vmatpush1.msra.mxu0 0.0
    %1002 = vmatprep.subr.mxu0 0.0
    %1003 = vmatpush1.msra.mxu0 0.0
    %1004 = vmatprep.subr.mxu0 0.0
    %1005 = vmatpush1.msra.mxu0 0.0
    %1006 = vmatprep.subr.mxu0 0.0
    %1007 = vmatpush1.msra.mxu0 0.0
    %1008 = vmatprep.subr.mxu0 0.0
    %1009 = vmatpush1.msra.mxu0 0.0
    %1010 = vmatprep.subr.mxu0 0.0
    %1011 = vmatpush1.msra.mxu0 0.0
    %1012 = vmatprep.mubr.f32.mxu0 0.0
    %1013 = vmatmul.mubr.f32.gmra.mrb[0].mxu0 %v946
    %v1014 = vpop.f32.mrb[0].mxu0
    %v1015 = vadd.f32 0.0, %v1014
    %v1016 = vpop.f32.mrb[0].mxu0
    %1017 = vdwg.mxu0
    %v1018 = vld [vmem:[#allocation3 + $0x2] sm:$0x1]
    %v1019 = vld [vmem:[#allocation10] sm:$0x1]
    %v1020 = vadd.f32 %v1018, %v939
    %v1021 = vxor.u32 %v1020, 2147483648
    %v1022 = vmul.f32 %v1021, 1.442695
    %v1023 = vpow.pop %v1022
    %v1024 = vadd.f32 %v1023, 1.0
    %v1025 = vrcp.pop %v1024
    %v1026 = vmul.f32 1.0, %v1025
    %v1028 = vlaneseq
    %v1029 = vshrl.u32 %v1028, 7
    %v1030 = vsub.s32 0, %v1029
    %v1031 = vrot.slane %v1019, %v1030
    %1032 = vrot.lane.b32.xlu0 %v1031, 64
    %v1033 = vpop.permute.xlu0 %1032
    %v1035 = vadd.f32 %v939, %v1033
    %1037 = vrot.lane.b32.xlu0 %v1035, 64
    %v1038 = vpop.permute.xlu0 %1037
    %v1040 = vmul.f32 %v1026, %v1038
    %1042 = vrot.lane.b32.xlu0 %v1040, 64
    %v1043 = vpop.permute.xlu0 %1042
    %v1045 = vadd.f32 %v1018, %v1043
    %v1046 = vtanh.pop %v1045
    %v1047 = vsub.f32 1.0, %v1026
    %1049 = vrot.lane.b32.xlu0 %v1046, 96
    %v1050 = vpop.permute.xlu0 %1049
    %v1052 = vmul.f32 %v1047, %v1050
    %v1053 = vmul.f32 %v1026, %v818
    %v1054 = vadd.f32 %v1052, %v1053
    %v1055 = vld [vmem:[#allocation4 + $0x5] sm:$0x1]
    %v1056 = vld [vmem:[#allocation16] sm:$0x1]
    %v1057 = vadd.f32 %v1055, %v1015
    %v1058 = vxor.u32 %v1057, 2147483648
    %v1059 = vmul.f32 %v1058, 1.442695
    %v1060 = vpow.pop %v1059
    %v1061 = vadd.f32 %v1060, 1.0
    %v1062 = vrcp.pop %v1061
    %v1063 = vmul.f32 1.0, %v1062
    %v1065 = vlaneseq
    %v1066 = vshrl.u32 %v1065, 7
    %v1067 = vsub.s32 0, %v1066
    %v1068 = vrot.slane %v1056, %v1067
    %1069 = vrot.lane.b32.xlu0 %v1068, 64
    %v1070 = vpop.permute.xlu0 %1069
    %v1072 = vadd.f32 %v1015, %v1070
    %1074 = vrot.lane.b32.xlu0 %v1072, 64
    %v1075 = vpop.permute.xlu0 %1074
    %v1077 = vmul.f32 %v1063, %v1075
    %1079 = vrot.lane.b32.xlu0 %v1077, 64
    %v1080 = vpop.permute.xlu0 %1079
    %v1082 = vadd.f32 %v1055, %v1080
    %v1083 = vtanh.pop %v1082
    %v1084 = vsub.f32 1.0, %v1063
    %1086 = vrot.lane.b32.xlu0 %v1083, 96
    %v1087 = vpop.permute.xlu0 %1086
    %v1089 = vmul.f32 %v1084, %v1087
    %v1090 = vmul.f32 %v1063, %v855
    %v1091 = vadd.f32 %v1089, %v1090
    %1093 = vrot.lane.b32.xlu0 %v1054, 96
    %v1094 = vpop.permute.xlu0 %1093
    %1096 = vst.msk [vmem:[#allocation2 + $0x2] sm:$0x1] %vm195, %v1094
    %1098 = vrot.lane.b32.xlu0 %v1091, 96
    %v1099 = vpop.permute.xlu0 %1098
    %1101 = vst.msk [vmem:[#allocation2 + $0x5] sm:$0x1] %vm195, %v1099
    %v1102 = vld [vmem:[#allocation9] sm:$0xff]
    %v1103 = vld [vmem:[#allocation9 + $0x8] sm:$0xff]
    %v1104 = vld [vmem:[#allocation9 + $0x10] sm:$0xff]
    %v1105 = vld [vmem:[#allocation9 + $0x18] sm:$0xff]
    %v1106 = vsel %vm237, %v1094, 0
    %1108 = vmatprep.subr.mxu0 0.0
    %1109 = vmatpush1.msra.mxu0 %v1102
    %1110 = vmatprep.subr.mxu0 0.0
    %1111 = vmatpush1.msra.mxu0 %v1103
    %1112 = vmatprep.subr.mxu0 0.0
    %1113 = vmatpush1.msra.mxu0 %v1104
    %1114 = vmatprep.subr.mxu0 0.0
    %1115 = vmatpush1.msra.mxu0 %v1105
    %1116 = vmatprep.subr.mxu0 0.0
    %1117 = vmatpush1.msra.mxu0 0.0
    %1118 = vmatprep.subr.mxu0 0.0
    %1119 = vmatpush1.msra.mxu0 0.0
    %1120 = vmatprep.subr.mxu0 0.0
    %1121 = vmatpush1.msra.mxu0 0.0
    %1122 = vmatprep.subr.mxu0 0.0
    %1123 = vmatpush1.msra.mxu0 0.0
    %1124 = vmatprep.subr.mxu0 0.0
    %1125 = vmatpush1.msra.mxu0 0.0
    %1126 = vmatprep.subr.mxu0 0.0
    %1127 = vmatpush1.msra.mxu0 0.0
    %1128 = vmatprep.subr.mxu0 0.0
    %1129 = vmatpush1.msra.mxu0 0.0
    %1130 = vmatprep.subr.mxu0 0.0
    %1131 = vmatpush1.msra.mxu0 0.0
    %1132 = vmatprep.subr.mxu0 0.0
    %1133 = vmatpush1.msra.mxu0 0.0
    %1134 = vmatprep.subr.mxu0 0.0
    %1135 = vmatpush1.msra.mxu0 0.0
    %1136 = vmatprep.subr.mxu0 0.0
    %1137 = vmatpush1.msra.mxu0 0.0
    %1138 = vmatprep.subr.mxu0 0.0
    %1139 = vmatpush1.msra.mxu0 0.0
    %1140 = vmatprep.subr.mxu0 0.0
    %1141 = vmatpush1.msra.mxu0 0.0
    %1142 = vmatprep.subr.mxu0 0.0
    %1143 = vmatpush1.msra.mxu0 0.0
    %1144 = vmatprep.subr.mxu0 0.0
    %1145 = vmatpush1.msra.mxu0 0.0
    %1146 = vmatprep.subr.mxu0 0.0
    %1147 = vmatpush1.msra.mxu0 0.0
    %1148 = vmatprep.subr.mxu0 0.0
    %1149 = vmatpush1.msra.mxu0 0.0
    %1150 = vmatprep.subr.mxu0 0.0
    %1151 = vmatpush1.msra.mxu0 0.0
    %1152 = vmatprep.subr.mxu0 0.0
    %1153 = vmatpush1.msra.mxu0 0.0
    %1154 = vmatprep.subr.mxu0 0.0
    %1155 = vmatpush1.msra.mxu0 0.0
    %1156 = vmatprep.subr.mxu0 0.0
    %1157 = vmatpush1.msra.mxu0 0.0
    %1158 = vmatprep.subr.mxu0 0.0
    %1159 = vmatpush1.msra.mxu0 0.0
    %1160 = vmatprep.subr.mxu0 0.0
    %1161 = vmatpush1.msra.mxu0 0.0
    %1162 = vmatprep.subr.mxu0 0.0
    %1163 = vmatpush1.msra.mxu0 0.0
    %1164 = vmatprep.subr.mxu0 0.0
    %1165 = vmatpush1.msra.mxu0 0.0
    %1166 = vmatprep.subr.mxu0 0.0
    %1167 = vmatpush1.msra.mxu0 0.0
    %1168 = vmatprep.subr.mxu0 0.0
    %1169 = vmatpush1.msra.mxu0 0.0
    %1170 = vmatprep.subr.mxu0 0.0
    %1171 = vmatpush1.msra.mxu0 0.0
    %1172 = vmatprep.mubr.f32.mxu0 0.0
    %1173 = vmatmul.mubr.f32.gmra.mrb[0].mxu0 %v1106
    %v1174 = vpop.f32.mrb[0].mxu0
    %v1175 = vadd.f32 0.0, %v1174
    %v1176 = vpop.f32.mrb[0].mxu0
    %1177 = vdwg.mxu0
    %v1178 = vld [vmem:[#allocation13] sm:$0xff]
    %v1179 = vld [vmem:[#allocation13 + $0x8] sm:$0xff]
    %v1180 = vld [vmem:[#allocation13 + $0x10] sm:$0xff]
    %v1181 = vld [vmem:[#allocation13 + $0x18] sm:$0xff]
    %v1182 = vsel %vm237, %v1099, 0
    %1184 = vmatprep.subr.mxu0 0.0
    %1185 = vmatpush1.msra.mxu0 %v1178
    %1186 = vmatprep.subr.mxu0 0.0
    %1187 = vmatpush1.msra.mxu0 %v1179
    %1188 = vmatprep.subr.mxu0 0.0
    %1189 = vmatpush1.msra.mxu0 %v1180
    %1190 = vmatprep.subr.mxu0 0.0
    %1191 = vmatpush1.msra.mxu0 %v1181
    %1192 = vmatprep.subr.mxu0 0.0
    %1193 = vmatpush1.msra.mxu0 0.0
    %1194 = vmatprep.subr.mxu0 0.0
    %1195 = vmatpush1.msra.mxu0 0.0
    %1196 = vmatprep.subr.mxu0 0.0
    %1197 = vmatpush1.msra.mxu0 0.0
    %1198 = vmatprep.subr.mxu0 0.0
    %1199 = vmatpush1.msra.mxu0 0.0
    %1200 = vmatprep.subr.mxu0 0.0
    %1201 = vmatpush1.msra.mxu0 0.0
    %1202 = vmatprep.subr.mxu0 0.0
    %1203 = vmatpush1.msra.mxu0 0.0
    %1204 = vmatprep.subr.mxu0 0.0
    %1205 = vmatpush1.msra.mxu0 0.0
    %1206 = vmatprep.subr.mxu0 0.0
    %1207 = vmatpush1.msra.mxu0 0.0
    %1208 = vmatprep.subr.mxu0 0.0
    %1209 = vmatpush1.msra.mxu0 0.0
    %1210 = vmatprep.subr.mxu0 0.0
    %1211 = vmatpush1.msra.mxu0 0.0
    %1212 = vmatprep.subr.mxu0 0.0
    %1213 = vmatpush1.msra.mxu0 0.0
    %1214 = vmatprep.subr.mxu0 0.0
    %1215 = vmatpush1.msra.mxu0 0.0
    %1216 = vmatprep.subr.mxu0 0.0
    %1217 = vmatpush1.msra.mxu0 0.0
    %1218 = vmatprep.subr.mxu0 0.0
    %1219 = vmatpush1.msra.mxu0 0.0
    %1220 = vmatprep.subr.mxu0 0.0
    %1221 = vmatpush1.msra.mxu0 0.0
    %1222 = vmatprep.subr.mxu0 0.0
    %1223 = vmatpush1.msra.mxu0 0.0
    %1224 = vmatprep.subr.mxu0 0.0
    %1225 = vmatpush1.msra.mxu0 0.0
    %1226 = vmatprep.subr.mxu0 0.0
    %1227 = vmatpush1.msra.mxu0 0.0
    %1228 = vmatprep.subr.mxu0 0.0
    %1229 = vmatpush1.msra.mxu0 0.0
    %1230 = vmatprep.subr.mxu0 0.0
    %1231 = vmatpush1.msra.mxu0 0.0
    %1232 = vmatprep.subr.mxu0 0.0
    %1233 = vmatpush1.msra.mxu0 0.0
    %1234 = vmatprep.subr.mxu0 0.0
    %1235 = vmatpush1.msra.mxu0 0.0
    %1236 = vmatprep.subr.mxu0 0.0
    %1237 = vmatpush1.msra.mxu0 0.0
    %1238 = vmatprep.subr.mxu0 0.0
    %1239 = vmatpush1.msra.mxu0 0.0
    %1240 = vmatprep.subr.mxu0 0.0
    %1241 = vmatpush1.msra.mxu0 0.0
    %1242 = vmatprep.subr.mxu0 0.0
    %1243 = vmatpush1.msra.mxu0 0.0
    %1244 = vmatprep.subr.mxu0 0.0
    %1245 = vmatpush1.msra.mxu0 0.0
    %1246 = vmatprep.subr.mxu0 0.0
    %1247 = vmatpush1.msra.mxu0 0.0
    %1248 = vmatprep.mubr.f32.mxu0 0.0
    %1249 = vmatmul.mubr.f32.gmra.mrb[0].mxu0 %v1182
    %v1250 = vpop.f32.mrb[0].mxu0
    %v1251 = vadd.f32 0.0, %v1250
    %v1252 = vpop.f32.mrb[0].mxu0
    %1253 = vdwg.mxu0
    %v1254 = vld [vmem:[#allocation3 + $0x3] sm:$0x1]
    %v1255 = vld [vmem:[#allocation10] sm:$0x1]
    %v1256 = vadd.f32 %v1254, %v1175
    %v1257 = vxor.u32 %v1256, 2147483648
    %v1258 = vmul.f32 %v1257, 1.442695
    %v1259 = vpow.pop %v1258
    %v1260 = vadd.f32 %v1259, 1.0
    %v1261 = vrcp.pop %v1260
    %v1262 = vmul.f32 1.0, %v1261
    %v1264 = vlaneseq
    %v1265 = vshrl.u32 %v1264, 7
    %v1266 = vsub.s32 0, %v1265
    %v1267 = vrot.slane %v1255, %v1266
    %1268 = vrot.lane.b32.xlu0 %v1267, 64
    %v1269 = vpop.permute.xlu0 %1268
    %v1271 = vadd.f32 %v1175, %v1269
    %1273 = vrot.lane.b32.xlu0 %v1271, 64
    %v1274 = vpop.permute.xlu0 %1273
    %v1276 = vmul.f32 %v1262, %v1274
    %1278 = vrot.lane.b32.xlu0 %v1276, 64
    %v1279 = vpop.permute.xlu0 %1278
    %v1281 = vadd.f32 %v1254, %v1279
    %v1282 = vtanh.pop %v1281
    %v1283 = vsub.f32 1.0, %v1262
    %1285 = vrot.lane.b32.xlu0 %v1282, 96
    %v1286 = vpop.permute.xlu0 %1285
    %v1288 = vmul.f32 %v1283, %v1286
    %v1289 = vmul.f32 %v1262, %v1054
    %v1290 = vadd.f32 %v1288, %v1289
    %v1291 = vld [vmem:[#allocation4 + $0x4] sm:$0x1]
    %v1292 = vld [vmem:[#allocation16] sm:$0x1]
    %v1293 = vadd.f32 %v1291, %v1251
    %v1294 = vxor.u32 %v1293, 2147483648
    %v1295 = vmul.f32 %v1294, 1.442695
    %v1296 = vpow.pop %v1295
    %v1297 = vadd.f32 %v1296, 1.0
    %v1298 = vrcp.pop %v1297
    %v1299 = vmul.f32 1.0, %v1298
    %v1301 = vlaneseq
    %v1302 = vshrl.u32 %v1301, 7
    %v1303 = vsub.s32 0, %v1302
    %v1304 = vrot.slane %v1292, %v1303
    %1305 = vrot.lane.b32.xlu0 %v1304, 64
    %v1306 = vpop.permute.xlu0 %1305
    %v1308 = vadd.f32 %v1251, %v1306
    %1310 = vrot.lane.b32.xlu0 %v1308, 64
    %v1311 = vpop.permute.xlu0 %1310
    %v1313 = vmul.f32 %v1299, %v1311
    %1315 = vrot.lane.b32.xlu0 %v1313, 64
    %v1316 = vpop.permute.xlu0 %1315
    %v1318 = vadd.f32 %v1291, %v1316
    %v1319 = vtanh.pop %v1318
    %v1320 = vsub.f32 1.0, %v1299
    %1322 = vrot.lane.b32.xlu0 %v1319, 96
    %v1323 = vpop.permute.xlu0 %1322
    %v1325 = vmul.f32 %v1320, %v1323
    %v1326 = vmul.f32 %v1299, %v1091
    %v1327 = vadd.f32 %v1325, %v1326
    %1329 = vrot.lane.b32.xlu0 %v1290, 96
    %v1330 = vpop.permute.xlu0 %1329
    %1332 = vst.msk [vmem:[#allocation2 + $0x3] sm:$0x1] %vm195, %v1330
    %1334 = vrot.lane.b32.xlu0 %v1327, 96
    %v1335 = vpop.permute.xlu0 %1334
    %1337 = vst.msk [vmem:[#allocation2 + $0x4] sm:$0x1] %vm195, %v1335
    %v1338 = vld [vmem:[#allocation9] sm:$0xff]
    %v1339 = vld [vmem:[#allocation9 + $0x8] sm:$0xff]
    %v1340 = vld [vmem:[#allocation9 + $0x10] sm:$0xff]
    %v1341 = vld [vmem:[#allocation9 + $0x18] sm:$0xff]
    %v1342 = vsel %vm237, %v1330, 0
    %1344 = vmatprep.subr.mxu0 0.0
    %1345 = vmatpush1.msra.mxu0 %v1338
    %1346 = vmatprep.subr.mxu0 0.0
    %1347 = vmatpush1.msra.mxu0 %v1339
    %1348 = vmatprep.subr.mxu0 0.0
    %1349 = vmatpush1.msra.mxu0 %v1340
    %1350 = vmatprep.subr.mxu0 0.0
    %1351 = vmatpush1.msra.mxu0 %v1341
    %1352 = vmatprep.subr.mxu0 0.0
    %1353 = vmatpush1.msra.mxu0 0.0
    %1354 = vmatprep.subr.mxu0 0.0
    %1355 = vmatpush1.msra.mxu0 0.0
    %1356 = vmatprep.subr.mxu0 0.0
    %1357 = vmatpush1.msra.mxu0 0.0
    %1358 = vmatprep.subr.mxu0 0.0
    %1359 = vmatpush1.msra.mxu0 0.0
    %1360 = vmatprep.subr.mxu0 0.0
    %1361 = vmatpush1.msra.mxu0 0.0
    %1362 = vmatprep.subr.mxu0 0.0
    %1363 = vmatpush1.msra.mxu0 0.0
    %1364 = vmatprep.subr.mxu0 0.0
    %1365 = vmatpush1.msra.mxu0 0.0
    %1366 = vmatprep.subr.mxu0 0.0
    %1367 = vmatpush1.msra.mxu0 0.0
    %1368 = vmatprep.subr.mxu0 0.0
    %1369 = vmatpush1.msra.mxu0 0.0
    %1370 = vmatprep.subr.mxu0 0.0
    %1371 = vmatpush1.msra.mxu0 0.0
    %1372 = vmatprep.subr.mxu0 0.0
    %1373 = vmatpush1.msra.mxu0 0.0
    %1374 = vmatprep.subr.mxu0 0.0
    %1375 = vmatpush1.msra.mxu0 0.0
    %1376 = vmatprep.subr.mxu0 0.0
    %1377 = vmatpush1.msra.mxu0 0.0
    %1378 = vmatprep.subr.mxu0 0.0
    %1379 = vmatpush1.msra.mxu0 0.0
    %1380 = vmatprep.subr.mxu0 0.0
    %1381 = vmatpush1.msra.mxu0 0.0
    %1382 = vmatprep.subr.mxu0 0.0
    %1383 = vmatpush1.msra.mxu0 0.0
    %1384 = vmatprep.subr.mxu0 0.0
    %1385 = vmatpush1.msra.mxu0 0.0
    %1386 = vmatprep.subr.mxu0 0.0
    %1387 = vmatpush1.msra.mxu0 0.0
    %1388 = vmatprep.subr.mxu0 0.0
    %1389 = vmatpush1.msra.mxu0 0.0
    %1390 = vmatprep.subr.mxu0 0.0
    %1391 = vmatpush1.msra.mxu0 0.0
    %1392 = vmatprep.subr.mxu0 0.0
    %1393 = vmatpush1.msra.mxu0 0.0
    %1394 = vmatprep.subr.mxu0 0.0
    %1395 = vmatpush1.msra.mxu0 0.0
    %1396 = vmatprep.subr.mxu0 0.0
    %1397 = vmatpush1.msra.mxu0 0.0
    %1398 = vmatprep.subr.mxu0 0.0
    %1399 = vmatpush1.msra.mxu0 0.0
    %1400 = vmatprep.subr.mxu0 0.0
    %1401 = vmatpush1.msra.mxu0 0.0
    %1402 = vmatprep.subr.mxu0 0.0
    %1403 = vmatpush1.msra.mxu0 0.0
    %1404 = vmatprep.subr.mxu0 0.0
    %1405 = vmatpush1.msra.mxu0 0.0
    %1406 = vmatprep.subr.mxu0 0.0
    %1407 = vmatpush1.msra.mxu0 0.0
    %1408 = vmatprep.mubr.f32.mxu0 0.0
    %1409 = vmatmul.mubr.f32.gmra.mrb[0].mxu0 %v1342
    %v1410 = vpop.f32.mrb[0].mxu0
    %v1411 = vadd.f32 0.0, %v1410
    %v1412 = vpop.f32.mrb[0].mxu0
    %1413 = vdwg.mxu0
    %v1414 = vld [vmem:[#allocation13] sm:$0xff]
    %v1415 = vld [vmem:[#allocation13 + $0x8] sm:$0xff]
    %v1416 = vld [vmem:[#allocation13 + $0x10] sm:$0xff]
    %v1417 = vld [vmem:[#allocation13 + $0x18] sm:$0xff]
    %v1418 = vsel %vm237, %v1335, 0
    %1420 = vmatprep.subr.mxu0 0.0
    %1421 = vmatpush1.msra.mxu0 %v1414
    %1422 = vmatprep.subr.mxu0 0.0
    %1423 = vmatpush1.msra.mxu0 %v1415
    %1424 = vmatprep.subr.mxu0 0.0
    %1425 = vmatpush1.msra.mxu0 %v1416
    %1426 = vmatprep.subr.mxu0 0.0
    %1427 = vmatpush1.msra.mxu0 %v1417
    %1428 = vmatprep.subr.mxu0 0.0
    %1429 = vmatpush1.msra.mxu0 0.0
    %1430 = vmatprep.subr.mxu0 0.0
    %1431 = vmatpush1.msra.mxu0 0.0
    %1432 = vmatprep.subr.mxu0 0.0
    %1433 = vmatpush1.msra.mxu0 0.0
    %1434 = vmatprep.subr.mxu0 0.0
    %1435 = vmatpush1.msra.mxu0 0.0
    %1436 = vmatprep.subr.mxu0 0.0
    %1437 = vmatpush1.msra.mxu0 0.0
    %1438 = vmatprep.subr.mxu0 0.0
    %1439 = vmatpush1.msra.mxu0 0.0
    %1440 = vmatprep.subr.mxu0 0.0
    %1441 = vmatpush1.msra.mxu0 0.0
    %1442 = vmatprep.subr.mxu0 0.0
    %1443 = vmatpush1.msra.mxu0 0.0
    %1444 = vmatprep.subr.mxu0 0.0
    %1445 = vmatpush1.msra.mxu0 0.0
    %1446 = vmatprep.subr.mxu0 0.0
    %1447 = vmatpush1.msra.mxu0 0.0
    %1448 = vmatprep.subr.mxu0 0.0
    %1449 = vmatpush1.msra.mxu0 0.0
    %1450 = vmatprep.subr.mxu0 0.0
    %1451 = vmatpush1.msra.mxu0 0.0
    %1452 = vmatprep.subr.mxu0 0.0
    %1453 = vmatpush1.msra.mxu0 0.0
    %1454 = vmatprep.subr.mxu0 0.0
    %1455 = vmatpush1.msra.mxu0 0.0
    %1456 = vmatprep.subr.mxu0 0.0
    %1457 = vmatpush1.msra.mxu0 0.0
    %1458 = vmatprep.subr.mxu0 0.0
    %1459 = vmatpush1.msra.mxu0 0.0
    %1460 = vmatprep.subr.mxu0 0.0
    %1461 = vmatpush1.msra.mxu0 0.0
    %1462 = vmatprep.subr.mxu0 0.0
    %1463 = vmatpush1.msra.mxu0 0.0
    %1464 = vmatprep.subr.mxu0 0.0
    %1465 = vmatpush1.msra.mxu0 0.0
    %1466 = vmatprep.subr.mxu0 0.0
    %1467 = vmatpush1.msra.mxu0 0.0
    %1468 = vmatprep.subr.mxu0 0.0
    %1469 = vmatpush1.msra.mxu0 0.0
    %1470 = vmatprep.subr.mxu0 0.0
    %1471 = vmatpush1.msra.mxu0 0.0
    %1472 = vmatprep.subr.mxu0 0.0
    %1473 = vmatpush1.msra.mxu0 0.0
    %1474 = vmatprep.subr.mxu0 0.0
    %1475 = vmatpush1.msra.mxu0 0.0
    %1476 = vmatprep.subr.mxu0 0.0
    %1477 = vmatpush1.msra.mxu0 0.0
    %1478 = vmatprep.subr.mxu0 0.0
    %1479 = vmatpush1.msra.mxu0 0.0
    %1480 = vmatprep.subr.mxu0 0.0
    %1481 = vmatpush1.msra.mxu0 0.0
    %1482 = vmatprep.subr.mxu0 0.0
    %1483 = vmatpush1.msra.mxu0 0.0
    %1484 = vmatprep.mubr.f32.mxu0 0.0
    %1485 = vmatmul.mubr.f32.gmra.mrb[0].mxu0 %v1418
    %v1486 = vpop.f32.mrb[0].mxu0
    %v1487 = vadd.f32 0.0, %v1486
    %v1488 = vpop.f32.mrb[0].mxu0
    %1489 = vdwg.mxu0
    %v1490 = vld [vmem:[#allocation3 + $0x4] sm:$0x1]
    %v1491 = vld [vmem:[#allocation10] sm:$0x1]
    %v1492 = vadd.f32 %v1490, %v1411
    %v1493 = vxor.u32 %v1492, 2147483648
    %v1494 = vmul.f32 %v1493, 1.442695
    %v1495 = vpow.pop %v1494
    %v1496 = vadd.f32 %v1495, 1.0
    %v1497 = vrcp.pop %v1496
    %v1498 = vmul.f32 1.0, %v1497
    %v1500 = vlaneseq
    %v1501 = vshrl.u32 %v1500, 7
    %v1502 = vsub.s32 0, %v1501
    %v1503 = vrot.slane %v1491, %v1502
    %1504 = vrot.lane.b32.xlu0 %v1503, 64
    %v1505 = vpop.permute.xlu0 %1504
    %v1507 = vadd.f32 %v1411, %v1505
    %1509 = vrot.lane.b32.xlu0 %v1507, 64
    %v1510 = vpop.permute.xlu0 %1509
    %v1512 = vmul.f32 %v1498, %v1510
    %1514 = vrot.lane.b32.xlu0 %v1512, 64
    %v1515 = vpop.permute.xlu0 %1514
    %v1517 = vadd.f32 %v1490, %v1515
    %v1518 = vtanh.pop %v1517
    %v1519 = vsub.f32 1.0, %v1498
    %1521 = vrot.lane.b32.xlu0 %v1518, 96
    %v1522 = vpop.permute.xlu0 %1521
    %v1524 = vmul.f32 %v1519, %v1522
    %v1525 = vmul.f32 %v1498, %v1290
    %v1526 = vadd.f32 %v1524, %v1525
    %v1527 = vld [vmem:[#allocation4 + $0x3] sm:$0x1]
    %v1528 = vld [vmem:[#allocation16] sm:$0x1]
    %v1529 = vadd.f32 %v1527, %v1487
    %v1530 = vxor.u32 %v1529, 2147483648
    %v1531 = vmul.f32 %v1530, 1.442695
    %v1532 = vpow.pop %v1531
    %v1533 = vadd.f32 %v1532, 1.0
    %v1534 = vrcp.pop %v1533
    %v1535 = vmul.f32 1.0, %v1534
    %v1537 = vlaneseq
    %v1538 = vshrl.u32 %v1537, 7
    %v1539 = vsub.s32 0, %v1538
    %v1540 = vrot.slane %v1528, %v1539
    %1541 = vrot.lane.b32.xlu0 %v1540, 64
    %v1542 = vpop.permute.xlu0 %1541
    %v1544 = vadd.f32 %v1487, %v1542
    %1546 = vrot.lane.b32.xlu0 %v1544, 64
    %v1547 = vpop.permute.xlu0 %1546
    %v1549 = vmul.f32 %v1535, %v1547
    %1551 = vrot.lane.b32.xlu0 %v1549, 64
    %v1552 = vpop.permute.xlu0 %1551
    %v1554 = vadd.f32 %v1527, %v1552
    %v1555 = vtanh.pop %v1554
    %v1556 = vsub.f32 1.0, %v1535
    %1558 = vrot.lane.b32.xlu0 %v1555, 96
    %v1559 = vpop.permute.xlu0 %1558
    %v1561 = vmul.f32 %v1556, %v1559
    %v1562 = vmul.f32 %v1535, %v1327
    %v1563 = vadd.f32 %v1561, %v1562
    %v1564 = vld [vmem:[#allocation2 + $0x4] sm:$0x1]
    %1566 = vrot.lane.b32.xlu0 %v1526, 96
    %v1567 = vpop.permute.xlu0 %1566
    %v1569 = vadd.f32 %v1564, %v1567
    %1570 = vst.msk [vmem:[#allocation2 + $0x4] sm:$0x1] %vm195, %v1569
    %v1571 = vld [vmem:[#allocation2 + $0x3] sm:$0x1]
    %1573 = vrot.lane.b32.xlu0 %v1563, 96
    %v1574 = vpop.permute.xlu0 %1573
    %v1576 = vadd.f32 %v1571, %v1574
    %1577 = vst.msk [vmem:[#allocation2 + $0x3] sm:$0x1] %vm195, %v1576
    %v1578 = vld [vmem:[#allocation9] sm:$0xff]
    %v1579 = vld [vmem:[#allocation9 + $0x8] sm:$0xff]
    %v1580 = vld [vmem:[#allocation9 + $0x10] sm:$0xff]
    %v1581 = vld [vmem:[#allocation9 + $0x18] sm:$0xff]
    %v1582 = vsel %vm237, %v1567, 0
    %1584 = vmatprep.subr.mxu0 0.0
    %1585 = vmatpush1.msra.mxu0 %v1578
    %1586 = vmatprep.subr.mxu0 0.0
    %1587 = vmatpush1.msra.mxu0 %v1579
    %1588 = vmatprep.subr.mxu0 0.0
    %1589 = vmatpush1.msra.mxu0 %v1580
    %1590 = vmatprep.subr.mxu0 0.0
    %1591 = vmatpush1.msra.mxu0 %v1581
    %1592 = vmatprep.subr.mxu0 0.0
    %1593 = vmatpush1.msra.mxu0 0.0
    %1594 = vmatprep.subr.mxu0 0.0
    %1595 = vmatpush1.msra.mxu0 0.0
    %1596 = vmatprep.subr.mxu0 0.0
    %1597 = vmatpush1.msra.mxu0 0.0
    %1598 = vmatprep.subr.mxu0 0.0
    %1599 = vmatpush1.msra.mxu0 0.0
    %1600 = vmatprep.subr.mxu0 0.0
    %1601 = vmatpush1.msra.mxu0 0.0
    %1602 = vmatprep.subr.mxu0 0.0
    %1603 = vmatpush1.msra.mxu0 0.0
    %1604 = vmatprep.subr.mxu0 0.0
    %1605 = vmatpush1.msra.mxu0 0.0
    %1606 = vmatprep.subr.mxu0 0.0
    %1607 = vmatpush1.msra.mxu0 0.0
    %1608 = vmatprep.subr.mxu0 0.0
    %1609 = vmatpush1.msra.mxu0 0.0
    %1610 = vmatprep.subr.mxu0 0.0
    %1611 = vmatpush1.msra.mxu0 0.0
    %1612 = vmatprep.subr.mxu0 0.0
    %1613 = vmatpush1.msra.mxu0 0.0
    %1614 = vmatprep.subr.mxu0 0.0
    %1615 = vmatpush1.msra.mxu0 0.0
    %1616 = vmatprep.subr.mxu0 0.0
    %1617 = vmatpush1.msra.mxu0 0.0
    %1618 = vmatprep.subr.mxu0 0.0
    %1619 = vmatpush1.msra.mxu0 0.0
    %1620 = vmatprep.subr.mxu0 0.0
    %1621 = vmatpush1.msra.mxu0 0.0
    %1622 = vmatprep.subr.mxu0 0.0
    %1623 = vmatpush1.msra.mxu0 0.0
    %1624 = vmatprep.subr.mxu0 0.0
    %1625 = vmatpush1.msra.mxu0 0.0
    %1626 = vmatprep.subr.mxu0 0.0
    %1627 = vmatpush1.msra.mxu0 0.0
    %1628 = vmatprep.subr.mxu0 0.0
    %1629 = vmatpush1.msra.mxu0 0.0
    %1630 = vmatprep.subr.mxu0 0.0
    %1631 = vmatpush1.msra.mxu0 0.0
    %1632 = vmatprep.subr.mxu0 0.0
    %1633 = vmatpush1.msra.mxu0 0.0
    %1634 = vmatprep.subr.mxu0 0.0
    %1635 = vmatpush1.msra.mxu0 0.0
    %1636 = vmatprep.subr.mxu0 0.0
    %1637 = vmatpush1.msra.mxu0 0.0
    %1638 = vmatprep.subr.mxu0 0.0
    %1639 = vmatpush1.msra.mxu0 0.0
    %1640 = vmatprep.subr.mxu0 0.0
    %1641 = vmatpush1.msra.mxu0 0.0
    %1642 = vmatprep.subr.mxu0 0.0
    %1643 = vmatpush1.msra.mxu0 0.0
    %1644 = vmatprep.subr.mxu0 0.0
    %1645 = vmatpush1.msra.mxu0 0.0
    %1646 = vmatprep.subr.mxu0 0.0
    %1647 = vmatpush1.msra.mxu0 0.0
    %1648 = vmatprep.mubr.f32.mxu0 0.0
    %1649 = vmatmul.mubr.f32.gmra.mrb[0].mxu0 %v1582
    %v1650 = vpop.f32.mrb[0].mxu0
    %v1651 = vadd.f32 0.0, %v1650
    %v1652 = vpop.f32.mrb[0].mxu0
    %1653 = vdwg.mxu0
    %v1654 = vld [vmem:[#allocation13] sm:$0xff]
    %v1655 = vld [vmem:[#allocation13 + $0x8] sm:$0xff]
    %v1656 = vld [vmem:[#allocation13 + $0x10] sm:$0xff]
    %v1657 = vld [vmem:[#allocation13 + $0x18] sm:$0xff]
    %v1658 = vsel %vm237, %v1574, 0
    %1660 = vmatprep.subr.mxu0 0.0
    %1661 = vmatpush1.msra.mxu0 %v1654
    %1662 = vmatprep.subr.mxu0 0.0
    %1663 = vmatpush1.msra.mxu0 %v1655
    %1664 = vmatprep.subr.mxu0 0.0
    %1665 = vmatpush1.msra.mxu0 %v1656
    %1666 = vmatprep.subr.mxu0 0.0
    %1667 = vmatpush1.msra.mxu0 %v1657
    %1668 = vmatprep.subr.mxu0 0.0
    %1669 = vmatpush1.msra.mxu0 0.0
    %1670 = vmatprep.subr.mxu0 0.0
    %1671 = vmatpush1.msra.mxu0 0.0
    %1672 = vmatprep.subr.mxu0 0.0
    %1673 = vmatpush1.msra.mxu0 0.0
    %1674 = vmatprep.subr.mxu0 0.0
    %1675 = vmatpush1.msra.mxu0 0.0
    %1676 = vmatprep.subr.mxu0 0.0
    %1677 = vmatpush1.msra.mxu0 0.0
    %1678 = vmatprep.subr.mxu0 0.0
    %1679 = vmatpush1.msra.mxu0 0.0
    %1680 = vmatprep.subr.mxu0 0.0
    %1681 = vmatpush1.msra.mxu0 0.0
    %1682 = vmatprep.subr.mxu0 0.0
    %1683 = vmatpush1.msra.mxu0 0.0
    %1684 = vmatprep.subr.mxu0 0.0
    %1685 = vmatpush1.msra.mxu0 0.0
    %1686 = vmatprep.subr.mxu0 0.0
    %1687 = vmatpush1.msra.mxu0 0.0
    %1688 = vmatprep.subr.mxu0 0.0
    %1689 = vmatpush1.msra.mxu0 0.0
    %1690 = vmatprep.subr.mxu0 0.0
    %1691 = vmatpush1.msra.mxu0 0.0
    %1692 = vmatprep.subr.mxu0 0.0
    %1693 = vmatpush1.msra.mxu0 0.0
    %1694 = vmatprep.subr.mxu0 0.0
    %1695 = vmatpush1.msra.mxu0 0.0
    %1696 = vmatprep.subr.mxu0 0.0
    %1697 = vmatpush1.msra.mxu0 0.0
    %1698 = vmatprep.subr.mxu0 0.0
    %1699 = vmatpush1.msra.mxu0 0.0
    %1700 = vmatprep.subr.mxu0 0.0
    %1701 = vmatpush1.msra.mxu0 0.0
    %1702 = vmatprep.subr.mxu0 0.0
    %1703 = vmatpush1.msra.mxu0 0.0
    %1704 = vmatprep.subr.mxu0 0.0
    %1705 = vmatpush1.msra.mxu0 0.0
    %1706 = vmatprep.subr.mxu0 0.0
    %1707 = vmatpush1.msra.mxu0 0.0
    %1708 = vmatprep.subr.mxu0 0.0
    %1709 = vmatpush1.msra.mxu0 0.0
    %1710 = vmatprep.subr.mxu0 0.0
    %1711 = vmatpush1.msra.mxu0 0.0
    %1712 = vmatprep.subr.mxu0 0.0
    %1713 = vmatpush1.msra.mxu0 0.0
    %1714 = vmatprep.subr.mxu0 0.0
    %1715 = vmatpush1.msra.mxu0 0.0
    %1716 = vmatprep.subr.mxu0 0.0
    %1717 = vmatpush1.msra.mxu0 0.0
    %1718 = vmatprep.subr.mxu0 0.0
    %1719 = vmatpush1.msra.mxu0 0.0
    %1720 = vmatprep.subr.mxu0 0.0
    %1721 = vmatpush1.msra.mxu0 0.0
    %1722 = vmatprep.subr.mxu0 0.0
    %1723 = vmatpush1.msra.mxu0 0.0
    %1724 = vmatprep.mubr.f32.mxu0 0.0
    %1725 = vmatmul.mubr.f32.gmra.mrb[0].mxu0 %v1658
    %v1726 = vpop.f32.mrb[0].mxu0
    %v1727 = vadd.f32 0.0, %v1726
    %v1728 = vpop.f32.mrb[0].mxu0
    %1729 = vdwg.mxu0
    %v1730 = vld [vmem:[#allocation3 + $0x5] sm:$0x1]
    %v1731 = vld [vmem:[#allocation10] sm:$0x1]
    %v1732 = vadd.f32 %v1730, %v1651
    %v1733 = vxor.u32 %v1732, 2147483648
    %v1734 = vmul.f32 %v1733, 1.442695
    %v1735 = vpow.pop %v1734
    %v1736 = vadd.f32 %v1735, 1.0
    %v1737 = vrcp.pop %v1736
    %v1738 = vmul.f32 1.0, %v1737
    %v1740 = vlaneseq
    %v1741 = vshrl.u32 %v1740, 7
    %v1742 = vsub.s32 0, %v1741
    %v1743 = vrot.slane %v1731, %v1742
    %1744 = vrot.lane.b32.xlu0 %v1743, 64
    %v1745 = vpop.permute.xlu0 %1744
    %v1747 = vadd.f32 %v1651, %v1745
    %1749 = vrot.lane.b32.xlu0 %v1747, 64
    %v1750 = vpop.permute.xlu0 %1749
    %v1752 = vmul.f32 %v1738, %v1750
    %1754 = vrot.lane.b32.xlu0 %v1752, 64
    %v1755 = vpop.permute.xlu0 %1754
    %v1757 = vadd.f32 %v1730, %v1755
    %v1758 = vtanh.pop %v1757
    %v1759 = vsub.f32 1.0, %v1738
    %1761 = vrot.lane.b32.xlu0 %v1758, 96
    %v1762 = vpop.permute.xlu0 %1761
    %v1764 = vmul.f32 %v1759, %v1762
    %v1765 = vmul.f32 %v1738, %v1526
    %v1766 = vadd.f32 %v1764, %v1765
    %v1767 = vld [vmem:[#allocation4 + $0x2] sm:$0x1]
    %v1768 = vld [vmem:[#allocation16] sm:$0x1]
    %v1769 = vadd.f32 %v1767, %v1727
    %v1770 = vxor.u32 %v1769, 2147483648
    %v1771 = vmul.f32 %v1770, 1.442695
    %v1772 = vpow.pop %v1771
    %v1773 = vadd.f32 %v1772, 1.0
    %v1774 = vrcp.pop %v1773
    %v1775 = vmul.f32 1.0, %v1774
    %v1777 = vlaneseq
    %v1778 = vshrl.u32 %v1777, 7
    %v1779 = vsub.s32 0, %v1778
    %v1780 = vrot.slane %v1768, %v1779
    %1781 = vrot.lane.b32.xlu0 %v1780, 64
    %v1782 = vpop.permute.xlu0 %1781
    %v1784 = vadd.f32 %v1727, %v1782
    %1786 = vrot.lane.b32.xlu0 %v1784, 64
    %v1787 = vpop.permute.xlu0 %1786
    %v1789 = vmul.f32 %v1775, %v1787
    %1791 = vrot.lane.b32.xlu0 %v1789, 64
    %v1792 = vpop.permute.xlu0 %1791
    %v1794 = vadd.f32 %v1767, %v1792
    %v1795 = vtanh.pop %v1794
    %v1796 = vsub.f32 1.0, %v1775
    %1798 = vrot.lane.b32.xlu0 %v1795, 96
    %v1799 = vpop.permute.xlu0 %1798
    %v1801 = vmul.f32 %v1796, %v1799
    %v1802 = vmul.f32 %v1775, %v1563
    %v1803 = vadd.f32 %v1801, %v1802
    %v1804 = vld [vmem:[#allocation2 + $0x5] sm:$0x1]
    %1806 = vrot.lane.b32.xlu0 %v1766, 96
    %v1807 = vpop.permute.xlu0 %1806
    %v1809 = vadd.f32 %v1804, %v1807
    %1810 = vst.msk [vmem:[#allocation2 + $0x5] sm:$0x1] %vm195, %v1809
    %v1811 = vld [vmem:[#allocation2 + $0x2] sm:$0x1]
    %1813 = vrot.lane.b32.xlu0 %v1803, 96
    %v1814 = vpop.permute.xlu0 %1813
    %v1816 = vadd.f32 %v1811, %v1814
    %1817 = vst.msk [vmem:[#allocation2 + $0x2] sm:$0x1] %vm195, %v1816
    %v1818 = vld [vmem:[#allocation9] sm:$0xff]
    %v1819 = vld [vmem:[#allocation9 + $0x8] sm:$0xff]
    %v1820 = vld [vmem:[#allocation9 + $0x10] sm:$0xff]
    %v1821 = vld [vmem:[#allocation9 + $0x18] sm:$0xff]
    %v1822 = vsel %vm237, %v1807, 0
    %1824 = vmatprep.subr.mxu0 0.0
    %1825 = vmatpush1.msra.mxu0 %v1818
    %1826 = vmatprep.subr.mxu0 0.0
    %1827 = vmatpush1.msra.mxu0 %v1819
    %1828 = vmatprep.subr.mxu0 0.0
    %1829 = vmatpush1.msra.mxu0 %v1820
    %1830 = vmatprep.subr.mxu0 0.0
    %1831 = vmatpush1.msra.mxu0 %v1821
    %1832 = vmatprep.subr.mxu0 0.0
    %1833 = vmatpush1.msra.mxu0 0.0
    %1834 = vmatprep.subr.mxu0 0.0
    %1835 = vmatpush1.msra.mxu0 0.0
    %1836 = vmatprep.subr.mxu0 0.0
    %1837 = vmatpush1.msra.mxu0 0.0
    %1838 = vmatprep.subr.mxu0 0.0
    %1839 = vmatpush1.msra.mxu0 0.0
    %1840 = vmatprep.subr.mxu0 0.0
    %1841 = vmatpush1.msra.mxu0 0.0
    %1842 = vmatprep.subr.mxu0 0.0
    %1843 = vmatpush1.msra.mxu0 0.0
    %1844 = vmatprep.subr.mxu0 0.0
    %1845 = vmatpush1.msra.mxu0 0.0
    %1846 = vmatprep.subr.mxu0 0.0
    %1847 = vmatpush1.msra.mxu0 0.0
    %1848 = vmatprep.subr.mxu0 0.0
    %1849 = vmatpush1.msra.mxu0 0.0
    %1850 = vmatprep.subr.mxu0 0.0
    %1851 = vmatpush1.msra.mxu0 0.0
    %1852 = vmatprep.subr.mxu0 0.0
    %1853 = vmatpush1.msra.mxu0 0.0
    %1854 = vmatprep.subr.mxu0 0.0
    %1855 = vmatpush1.msra.mxu0 0.0
    %1856 = vmatprep.subr.mxu0 0.0
    %1857 = vmatpush1.msra.mxu0 0.0
    %1858 = vmatprep.subr.mxu0 0.0
    %1859 = vmatpush1.msra.mxu0 0.0
    %1860 = vmatprep.subr.mxu0 0.0
    %1861 = vmatpush1.msra.mxu0 0.0
    %1862 = vmatprep.subr.mxu0 0.0
    %1863 = vmatpush1.msra.mxu0 0.0
    %1864 = vmatprep.subr.mxu0 0.0
    %1865 = vmatpush1.msra.mxu0 0.0
    %1866 = vmatprep.subr.mxu0 0.0
    %1867 = vmatpush1.msra.mxu0 0.0
    %1868 = vmatprep.subr.mxu0 0.0
    %1869 = vmatpush1.msra.mxu0 0.0
    %1870 = vmatprep.subr.mxu0 0.0
    %1871 = vmatpush1.msra.mxu0 0.0
    %1872 = vmatprep.subr.mxu0 0.0
    %1873 = vmatpush1.msra.mxu0 0.0
    %1874 = vmatprep.subr.mxu0 0.0
    %1875 = vmatpush1.msra.mxu0 0.0
    %1876 = vmatprep.subr.mxu0 0.0
    %1877 = vmatpush1.msra.mxu0 0.0
    %1878 = vmatprep.subr.mxu0 0.0
    %1879 = vmatpush1.msra.mxu0 0.0
    %1880 = vmatprep.subr.mxu0 0.0
    %1881 = vmatpush1.msra.mxu0 0.0
    %1882 = vmatprep.subr.mxu0 0.0
    %1883 = vmatpush1.msra.mxu0 0.0
    %1884 = vmatprep.subr.mxu0 0.0
    %1885 = vmatpush1.msra.mxu0 0.0
    %1886 = vmatprep.subr.mxu0 0.0
    %1887 = vmatpush1.msra.mxu0 0.0
    %1888 = vmatprep.mubr.f32.mxu0 0.0
    %1889 = vmatmul.mubr.f32.gmra.mrb[0].mxu0 %v1822
    %v1890 = vpop.f32.mrb[0].mxu0
    %v1891 = vadd.f32 0.0, %v1890
    %v1892 = vpop.f32.mrb[0].mxu0
    %1893 = vdwg.mxu0
    %v1894 = vld [vmem:[#allocation13] sm:$0xff]
    %v1895 = vld [vmem:[#allocation13 + $0x8] sm:$0xff]
    %v1896 = vld [vmem:[#allocation13 + $0x10] sm:$0xff]
    %v1897 = vld [vmem:[#allocation13 + $0x18] sm:$0xff]
    %v1898 = vsel %vm237, %v1814, 0
    %1900 = vmatprep.subr.mxu0 0.0
    %1901 = vmatpush1.msra.mxu0 %v1894
    %1902 = vmatprep.subr.mxu0 0.0
    %1903 = vmatpush1.msra.mxu0 %v1895
    %1904 = vmatprep.subr.mxu0 0.0
    %1905 = vmatpush1.msra.mxu0 %v1896
    %1906 = vmatprep.subr.mxu0 0.0
    %1907 = vmatpush1.msra.mxu0 %v1897
    %1908 = vmatprep.subr.mxu0 0.0
    %1909 = vmatpush1.msra.mxu0 0.0
    %1910 = vmatprep.subr.mxu0 0.0
    %1911 = vmatpush1.msra.mxu0 0.0
    %1912 = vmatprep.subr.mxu0 0.0
    %1913 = vmatpush1.msra.mxu0 0.0
    %1914 = vmatprep.subr.mxu0 0.0
    %1915 = vmatpush1.msra.mxu0 0.0
    %1916 = vmatprep.subr.mxu0 0.0
    %1917 = vmatpush1.msra.mxu0 0.0
    %1918 = vmatprep.subr.mxu0 0.0
    %1919 = vmatpush1.msra.mxu0 0.0
    %1920 = vmatprep.subr.mxu0 0.0
    %1921 = vmatpush1.msra.mxu0 0.0
    %1922 = vmatprep.subr.mxu0 0.0
    %1923 = vmatpush1.msra.mxu0 0.0
    %1924 = vmatprep.subr.mxu0 0.0
    %1925 = vmatpush1.msra.mxu0 0.0
    %1926 = vmatprep.subr.mxu0 0.0
    %1927 = vmatpush1.msra.mxu0 0.0
    %1928 = vmatprep.subr.mxu0 0.0
    %1929 = vmatpush1.msra.mxu0 0.0
    %1930 = vmatprep.subr.mxu0 0.0
    %1931 = vmatpush1.msra.mxu0 0.0
    %1932 = vmatprep.subr.mxu0 0.0
    %1933 = vmatpush1.msra.mxu0 0.0
    %1934 = vmatprep.subr.mxu0 0.0
    %1935 = vmatpush1.msra.mxu0 0.0
    %1936 = vmatprep.subr.mxu0 0.0
    %1937 = vmatpush1.msra.mxu0 0.0
    %1938 = vmatprep.subr.mxu0 0.0
    %1939 = vmatpush1.msra.mxu0 0.0
    %1940 = vmatprep.subr.mxu0 0.0
    %1941 = vmatpush1.msra.mxu0 0.0
    %1942 = vmatprep.subr.mxu0 0.0
    %1943 = vmatpush1.msra.mxu0 0.0
    %1944 = vmatprep.subr.mxu0 0.0
    %1945 = vmatpush1.msra.mxu0 0.0
    %1946 = vmatprep.subr.mxu0 0.0
    %1947 = vmatpush1.msra.mxu0 0.0
    %1948 = vmatprep.subr.mxu0 0.0
    %1949 = vmatpush1.msra.mxu0 0.0
    %1950 = vmatprep.subr.mxu0 0.0
    %1951 = vmatpush1.msra.mxu0 0.0
    %1952 = vmatprep.subr.mxu0 0.0
    %1953 = vmatpush1.msra.mxu0 0.0
    %1954 = vmatprep.subr.mxu0 0.0
    %1955 = vmatpush1.msra.mxu0 0.0
    %1956 = vmatprep.subr.mxu0 0.0
    %1957 = vmatpush1.msra.mxu0 0.0
    %1958 = vmatprep.subr.mxu0 0.0
    %1959 = vmatpush1.msra.mxu0 0.0
    %1960 = vmatprep.subr.mxu0 0.0
    %1961 = vmatpush1.msra.mxu0 0.0
    %1962 = vmatprep.subr.mxu0 0.0
    %1963 = vmatpush1.msra.mxu0 0.0
    %1964 = vmatprep.mubr.f32.mxu0 0.0
    %1965 = vmatmul.mubr.f32.gmra.mrb[0].mxu0 %v1898
    %v1966 = vpop.f32.mrb[0].mxu0
    %v1967 = vadd.f32 0.0, %v1966
    %v1968 = vpop.f32.mrb[0].mxu0
    %1969 = vdwg.mxu0
    %v1970 = vld [vmem:[#allocation3 + $0x6] sm:$0x1]
    %v1971 = vld [vmem:[#allocation10] sm:$0x1]
    %v1972 = vadd.f32 %v1970, %v1891
    %v1973 = vxor.u32 %v1972, 2147483648
    %v1974 = vmul.f32 %v1973, 1.442695
    %v1975 = vpow.pop %v1974
    %v1976 = vadd.f32 %v1975, 1.0
    %v1977 = vrcp.pop %v1976
    %v1978 = vmul.f32 1.0, %v1977
    %v1980 = vlaneseq
    %v1981 = vshrl.u32 %v1980, 7
    %v1982 = vsub.s32 0, %v1981
    %v1983 = vrot.slane %v1971, %v1982
    %1984 = vrot.lane.b32.xlu0 %v1983, 64
    %v1985 = vpop.permute.xlu0 %1984
    %v1987 = vadd.f32 %v1891, %v1985
    %1989 = vrot.lane.b32.xlu0 %v1987, 64
    %v1990 = vpop.permute.xlu0 %1989
    %v1992 = vmul.f32 %v1978, %v1990
    %1994 = vrot.lane.b32.xlu0 %v1992, 64
    %v1995 = vpop.permute.xlu0 %1994
    %v1997 = vadd.f32 %v1970, %v1995
    %v1998 = vtanh.pop %v1997
    %v1999 = vsub.f32 1.0, %v1978
    %2001 = vrot.lane.b32.xlu0 %v1998, 96
    %v2002 = vpop.permute.xlu0 %2001
    %v2004 = vmul.f32 %v1999, %v2002
    %v2005 = vmul.f32 %v1978, %v1766
    %v2006 = vadd.f32 %v2004, %v2005
    %v2007 = vld [vmem:[#allocation4 + $0x1] sm:$0x1]
    %v2008 = vld [vmem:[#allocation16] sm:$0x1]
    %v2009 = vadd.f32 %v2007, %v1967
    %v2010 = vxor.u32 %v2009, 2147483648
    %v2011 = vmul.f32 %v2010, 1.442695
    %v2012 = vpow.pop %v2011
    %v2013 = vadd.f32 %v2012, 1.0
    %v2014 = vrcp.pop %v2013
    %v2015 = vmul.f32 1.0, %v2014
    %v2017 = vlaneseq
    %v2018 = vshrl.u32 %v2017, 7
    %v2019 = vsub.s32 0, %v2018
    %v2020 = vrot.slane %v2008, %v2019
    %2021 = vrot.lane.b32.xlu0 %v2020, 64
    %v2022 = vpop.permute.xlu0 %2021
    %v2024 = vadd.f32 %v1967, %v2022
    %2026 = vrot.lane.b32.xlu0 %v2024, 64
    %v2027 = vpop.permute.xlu0 %2026
    %v2029 = vmul.f32 %v2015, %v2027
    %2031 = vrot.lane.b32.xlu0 %v2029, 64
    %v2032 = vpop.permute.xlu0 %2031
    %v2034 = vadd.f32 %v2007, %v2032
    %v2035 = vtanh.pop %v2034
    %v2036 = vsub.f32 1.0, %v2015
    %2038 = vrot.lane.b32.xlu0 %v2035, 96
    %v2039 = vpop.permute.xlu0 %2038
    %v2041 = vmul.f32 %v2036, %v2039
    %v2042 = vmul.f32 %v2015, %v1803
    %v2043 = vadd.f32 %v2041, %v2042
    %v2044 = vld [vmem:[#allocation2 + $0x6] sm:$0x1]
    %2046 = vrot.lane.b32.xlu0 %v2006, 96
    %v2047 = vpop.permute.xlu0 %2046
    %v2049 = vadd.f32 %v2044, %v2047
    %2050 = vst.msk [vmem:[#allocation2 + $0x6] sm:$0x1] %vm195, %v2049
    %v2051 = vld [vmem:[#allocation2 + $0x1] sm:$0x1]
    %2053 = vrot.lane.b32.xlu0 %v2043, 96
    %v2054 = vpop.permute.xlu0 %2053
    %v2056 = vadd.f32 %v2051, %v2054
    %2057 = vst.msk [vmem:[#allocation2 + $0x1] sm:$0x1] %vm195, %v2056
    %v2058 = vld [vmem:[#allocation9] sm:$0xff]
    %v2059 = vld [vmem:[#allocation9 + $0x8] sm:$0xff]
    %v2060 = vld [vmem:[#allocation9 + $0x10] sm:$0xff]
    %v2061 = vld [vmem:[#allocation9 + $0x18] sm:$0xff]
    %v2062 = vsel %vm237, %v2047, 0
    %2064 = vmatprep.subr.mxu0 0.0
    %2065 = vmatpush1.msra.mxu0 %v2058
    %2066 = vmatprep.subr.mxu0 0.0
    %2067 = vmatpush1.msra.mxu0 %v2059
    %2068 = vmatprep.subr.mxu0 0.0
    %2069 = vmatpush1.msra.mxu0 %v2060
    %2070 = vmatprep.subr.mxu0 0.0
    %2071 = vmatpush1.msra.mxu0 %v2061
    %2072 = vmatprep.subr.mxu0 0.0
    %2073 = vmatpush1.msra.mxu0 0.0
    %2074 = vmatprep.subr.mxu0 0.0
    %2075 = vmatpush1.msra.mxu0 0.0
    %2076 = vmatprep.subr.mxu0 0.0
    %2077 = vmatpush1.msra.mxu0 0.0
    %2078 = vmatprep.subr.mxu0 0.0
    %2079 = vmatpush1.msra.mxu0 0.0
    %2080 = vmatprep.subr.mxu0 0.0
    %2081 = vmatpush1.msra.mxu0 0.0
    %2082 = vmatprep.subr.mxu0 0.0
    %2083 = vmatpush1.msra.mxu0 0.0
    %2084 = vmatprep.subr.mxu0 0.0
    %2085 = vmatpush1.msra.mxu0 0.0
    %2086 = vmatprep.subr.mxu0 0.0
    %2087 = vmatpush1.msra.mxu0 0.0
    %2088 = vmatprep.subr.mxu0 0.0
    %2089 = vmatpush1.msra.mxu0 0.0
    %2090 = vmatprep.subr.mxu0 0.0
    %2091 = vmatpush1.msra.mxu0 0.0
    %2092 = vmatprep.subr.mxu0 0.0
    %2093 = vmatpush1.msra.mxu0 0.0
    %2094 = vmatprep.subr.mxu0 0.0
    %2095 = vmatpush1.msra.mxu0 0.0
    %2096 = vmatprep.subr.mxu0 0.0
    %2097 = vmatpush1.msra.mxu0 0.0
    %2098 = vmatprep.subr.mxu0 0.0
    %2099 = vmatpush1.msra.mxu0 0.0
    %2100 = vmatprep.subr.mxu0 0.0
    %2101 = vmatpush1.msra.mxu0 0.0
    %2102 = vmatprep.subr.mxu0 0.0
    %2103 = vmatpush1.msra.mxu0 0.0
    %2104 = vmatprep.subr.mxu0 0.0
    %2105 = vmatpush1.msra.mxu0 0.0
    %2106 = vmatprep.subr.mxu0 0.0
    %2107 = vmatpush1.msra.mxu0 0.0
    %2108 = vmatprep.subr.mxu0 0.0
    %2109 = vmatpush1.msra.mxu0 0.0
    %2110 = vmatprep.subr.mxu0 0.0
    %2111 = vmatpush1.msra.mxu0 0.0
    %2112 = vmatprep.subr.mxu0 0.0
    %2113 = vmatpush1.msra.mxu0 0.0
    %2114 = vmatprep.subr.mxu0 0.0
    %2115 = vmatpush1.msra.mxu0 0.0
    %2116 = vmatprep.subr.mxu0 0.0
    %2117 = vmatpush1.msra.mxu0 0.0
    %2118 = vmatprep.subr.mxu0 0.0
    %2119 = vmatpush1.msra.mxu0 0.0
    %2120 = vmatprep.subr.mxu0 0.0
    %2121 = vmatpush1.msra.mxu0 0.0
    %2122 = vmatprep.subr.mxu0 0.0
    %2123 = vmatpush1.msra.mxu0 0.0
    %2124 = vmatprep.subr.mxu0 0.0
    %2125 = vmatpush1.msra.mxu0 0.0
    %2126 = vmatprep.subr.mxu0 0.0
    %2127 = vmatpush1.msra.mxu0 0.0
    %2128 = vmatprep.mubr.f32.mxu0 0.0
    %2129 = vmatmul.mubr.f32.gmra.mrb[0].mxu0 %v2062
    %v2130 = vpop.f32.mrb[0].mxu0
    %v2131 = vadd.f32 0.0, %v2130
    %v2132 = vpop.f32.mrb[0].mxu0
    %2133 = vdwg.mxu0
    %v2134 = vld [vmem:[#allocation13] sm:$0xff]
    %v2135 = vld [vmem:[#allocation13 + $0x8] sm:$0xff]
    %v2136 = vld [vmem:[#allocation13 + $0x10] sm:$0xff]
    %v2137 = vld [vmem:[#allocation13 + $0x18] sm:$0xff]
    %v2138 = vsel %vm237, %v2054, 0
    %2140 = vmatprep.subr.mxu0 0.0
    %2141 = vmatpush1.msra.mxu0 %v2134
    %2142 = vmatprep.subr.mxu0 0.0
    %2143 = vmatpush1.msra.mxu0 %v2135
    %2144 = vmatprep.subr.mxu0 0.0
    %2145 = vmatpush1.msra.mxu0 %v2136
    %2146 = vmatprep.subr.mxu0 0.0
    %2147 = vmatpush1.msra.mxu0 %v2137
    %2148 = vmatprep.subr.mxu0 0.0
    %2149 = vmatpush1.msra.mxu0 0.0
    %2150 = vmatprep.subr.mxu0 0.0
    %2151 = vmatpush1.msra.mxu0 0.0
    %2152 = vmatprep.subr.mxu0 0.0
    %2153 = vmatpush1.msra.mxu0 0.0
    %2154 = vmatprep.subr.mxu0 0.0
    %2155 = vmatpush1.msra.mxu0 0.0
    %2156 = vmatprep.subr.mxu0 0.0
    %2157 = vmatpush1.msra.mxu0 0.0
    %2158 = vmatprep.subr.mxu0 0.0
    %2159 = vmatpush1.msra.mxu0 0.0
    %2160 = vmatprep.subr.mxu0 0.0
    %2161 = vmatpush1.msra.mxu0 0.0
    %2162 = vmatprep.subr.mxu0 0.0
    %2163 = vmatpush1.msra.mxu0 0.0
    %2164 = vmatprep.subr.mxu0 0.0
    %2165 = vmatpush1.msra.mxu0 0.0
    %2166 = vmatprep.subr.mxu0 0.0
    %2167 = vmatpush1.msra.mxu0 0.0
    %2168 = vmatprep.subr.mxu0 0.0
    %2169 = vmatpush1.msra.mxu0 0.0
    %2170 = vmatprep.subr.mxu0 0.0
    %2171 = vmatpush1.msra.mxu0 0.0
    %2172 = vmatprep.subr.mxu0 0.0
    %2173 = vmatpush1.msra.mxu0 0.0
    %2174 = vmatprep.subr.mxu0 0.0
    %2175 = vmatpush1.msra.mxu0 0.0
    %2176 = vmatprep.subr.mxu0 0.0
    %2177 = vmatpush1.msra.mxu0 0.0
    %2178 = vmatprep.subr.mxu0 0.0
    %2179 = vmatpush1.msra.mxu0 0.0
    %2180 = vmatprep.subr.mxu0 0.0
    %2181 = vmatpush1.msra.mxu0 0.0
    %2182 = vmatprep.subr.mxu0 0.0
    %2183 = vmatpush1.msra.mxu0 0.0
    %2184 = vmatprep.subr.mxu0 0.0
    %2185 = vmatpush1.msra.mxu0 0.0
    %2186 = vmatprep.subr.mxu0 0.0
    %2187 = vmatpush1.msra.mxu0 0.0
    %2188 = vmatprep.subr.mxu0 0.0
    %2189 = vmatpush1.msra.mxu0 0.0
    %2190 = vmatprep.subr.mxu0 0.0
    %2191 = vmatpush1.msra.mxu0 0.0
    %2192 = vmatprep.subr.mxu0 0.0
    %2193 = vmatpush1.msra.mxu0 0.0
    %2194 = vmatprep.subr.mxu0 0.0
    %2195 = vmatpush1.msra.mxu0 0.0
    %2196 = vmatprep.subr.mxu0 0.0
    %2197 = vmatpush1.msra.mxu0 0.0
    %2198 = vmatprep.subr.mxu0 0.0
    %2199 = vmatpush1.msra.mxu0 0.0
    %2200 = vmatprep.subr.mxu0 0.0
    %2201 = vmatpush1.msra.mxu0 0.0
    %2202 = vmatprep.subr.mxu0 0.0
    %2203 = vmatpush1.msra.mxu0 0.0
    %2204 = vmatprep.mubr.f32.mxu0 0.0
    %2205 = vmatmul.mubr.f32.gmra.mrb[0].mxu0 %v2138
    %v2206 = vpop.f32.mrb[0].mxu0
    %v2207 = vadd.f32 0.0, %v2206
    %v2208 = vpop.f32.mrb[0].mxu0
    %2209 = vdwg.mxu0
    %v2210 = vld [vmem:[#allocation3 + $0x7] sm:$0x1]
    %v2211 = vld [vmem:[#allocation10] sm:$0x1]
    %v2212 = vadd.f32 %v2210, %v2131
    %v2213 = vxor.u32 %v2212, 2147483648
    %v2214 = vmul.f32 %v2213, 1.442695
    %v2215 = vpow.pop %v2214
    %v2216 = vadd.f32 %v2215, 1.0
    %v2217 = vrcp.pop %v2216
    %v2218 = vmul.f32 1.0, %v2217
    %v2220 = vlaneseq
    %v2221 = vshrl.u32 %v2220, 7
    %v2222 = vsub.s32 0, %v2221
    %v2223 = vrot.slane %v2211, %v2222
    %2224 = vrot.lane.b32.xlu0 %v2223, 64
    %v2225 = vpop.permute.xlu0 %2224
    %v2227 = vadd.f32 %v2131, %v2225
    %2229 = vrot.lane.b32.xlu0 %v2227, 64
    %v2230 = vpop.permute.xlu0 %2229
    %v2232 = vmul.f32 %v2218, %v2230
    %2234 = vrot.lane.b32.xlu0 %v2232, 64
    %v2235 = vpop.permute.xlu0 %2234
    %v2237 = vadd.f32 %v2210, %v2235
    %v2238 = vtanh.pop %v2237
    %v2239 = vsub.f32 1.0, %v2218
    %2241 = vrot.lane.b32.xlu0 %v2238, 96
    %v2242 = vpop.permute.xlu0 %2241
    %v2244 = vmul.f32 %v2239, %v2242
    %v2245 = vmul.f32 %v2218, %v2006
    %v2246 = vadd.f32 %v2244, %v2245
    %v2247 = vld [vmem:[#allocation4] sm:$0x1]
    %v2248 = vld [vmem:[#allocation16] sm:$0x1]
    %v2249 = vadd.f32 %v2247, %v2207
    %v2250 = vxor.u32 %v2249, 2147483648
    %v2251 = vmul.f32 %v2250, 1.442695
    %v2252 = vpow.pop %v2251
    %v2253 = vadd.f32 %v2252, 1.0
    %v2254 = vrcp.pop %v2253
    %v2255 = vmul.f32 1.0, %v2254
    %v2257 = vlaneseq
    %v2258 = vshrl.u32 %v2257, 7
    %v2259 = vsub.s32 0, %v2258
    %v2260 = vrot.slane %v2248, %v2259
    %2261 = vrot.lane.b32.xlu0 %v2260, 64
    %v2262 = vpop.permute.xlu0 %2261
    %v2264 = vadd.f32 %v2207, %v2262
    %2266 = vrot.lane.b32.xlu0 %v2264, 64
    %v2267 = vpop.permute.xlu0 %2266
    %v2269 = vmul.f32 %v2255, %v2267
    %2271 = vrot.lane.b32.xlu0 %v2269, 64
    %v2272 = vpop.permute.xlu0 %2271
    %v2274 = vadd.f32 %v2247, %v2272
    %v2275 = vtanh.pop %v2274
    %v2276 = vsub.f32 1.0, %v2255
    %2278 = vrot.lane.b32.xlu0 %v2275, 96
    %v2279 = vpop.permute.xlu0 %2278
    %v2281 = vmul.f32 %v2276, %v2279
    %v2282 = vmul.f32 %v2255, %v2043
    %v2283 = vadd.f32 %v2281, %v2282
    %v2284 = vld [vmem:[#allocation2 + $0x7] sm:$0x1]
    %2286 = vrot.lane.b32.xlu0 %v2246, 96
    %v2287 = vpop.permute.xlu0 %2286
    %v2289 = vadd.f32 %v2284, %v2287
    %2290 = vst.msk [vmem:[#allocation2 + $0x7] sm:$0x1] %vm195, %v2289
    %v2291 = vld [vmem:[#allocation2] sm:$0x1]
    %2293 = vrot.lane.b32.xlu0 %v2283, 96
    %v2294 = vpop.permute.xlu0 %2293
    %v2296 = vadd.f32 %v2291, %v2294
    %2297 = vst.msk [vmem:[#allocation2] sm:$0x1] %vm195, %v2296
    %v2298 = vld [vmem:[#allocation2] sm:$0xff]
    %v2299 = vld [vmem:[#allocation19] sm:$0xff]
    %v2300 = vld [vmem:[#allocation19 + $0x8] sm:$0xff]
    %v2301 = vld [vmem:[#allocation19 + $0x10] sm:$0xff]
    %v2302 = vld [vmem:[#allocation19 + $0x18] sm:$0xff]
    %v2304 = vsel %vm237, %v2298, 0
    %2306 = vmatprep.subr.mxu0 0.0
    %2307 = vmatpush1.msra.mxu0 %v2299
    %2308 = vmatprep.subr.mxu0 0.0
    %2309 = vmatpush1.msra.mxu0 %v2300
    %2310 = vmatprep.subr.mxu0 0.0
    %2311 = vmatpush1.msra.mxu0 %v2301
    %2312 = vmatprep.subr.mxu0 0.0
    %2313 = vmatpush1.msra.mxu0 %v2302
    %2314 = vmatprep.subr.mxu0 0.0
    %2315 = vmatpush1.msra.mxu0 0.0
    %2316 = vmatprep.subr.mxu0 0.0
    %2317 = vmatpush1.msra.mxu0 0.0
    %2318 = vmatprep.subr.mxu0 0.0
    %2319 = vmatpush1.msra.mxu0 0.0
    %2320 = vmatprep.subr.mxu0 0.0
    %2321 = vmatpush1.msra.mxu0 0.0
    %2322 = vmatprep.subr.mxu0 0.0
    %2323 = vmatpush1.msra.mxu0 0.0
    %2324 = vmatprep.subr.mxu0 0.0
    %2325 = vmatpush1.msra.mxu0 0.0
    %2326 = vmatprep.subr.mxu0 0.0
    %2327 = vmatpush1.msra.mxu0 0.0
    %2328 = vmatprep.subr.mxu0 0.0
    %2329 = vmatpush1.msra.mxu0 0.0
    %2330 = vmatprep.subr.mxu0 0.0
    %2331 = vmatpush1.msra.mxu0 0.0
    %2332 = vmatprep.subr.mxu0 0.0
    %2333 = vmatpush1.msra.mxu0 0.0
    %2334 = vmatprep.subr.mxu0 0.0
    %2335 = vmatpush1.msra.mxu0 0.0
    %2336 = vmatprep.subr.mxu0 0.0
    %2337 = vmatpush1.msra.mxu0 0.0
    %2338 = vmatprep.subr.mxu0 0.0
    %2339 = vmatpush1.msra.mxu0 0.0
    %2340 = vmatprep.subr.mxu0 0.0
    %2341 = vmatpush1.msra.mxu0 0.0
    %2342 = vmatprep.subr.mxu0 0.0
    %2343 = vmatpush1.msra.mxu0 0.0
    %2344 = vmatprep.subr.mxu0 0.0
    %2345 = vmatpush1.msra.mxu0 0.0
    %2346 = vmatprep.subr.mxu0 0.0
    %2347 = vmatpush1.msra.mxu0 0.0
    %2348 = vmatprep.subr.mxu0 0.0
    %2349 = vmatpush1.msra.mxu0 0.0
    %2350 = vmatprep.subr.mxu0 0.0
    %2351 = vmatpush1.msra.mxu0 0.0
    %2352 = vmatprep.subr.mxu0 0.0
    %2353 = vmatpush1.msra.mxu0 0.0
    %2354 = vmatprep.subr.mxu0 0.0
    %2355 = vmatpush1.msra.mxu0 0.0
    %2356 = vmatprep.subr.mxu0 0.0
    %2357 = vmatpush1.msra.mxu0 0.0
    %2358 = vmatprep.subr.mxu0 0.0
    %2359 = vmatpush1.msra.mxu0 0.0
    %2360 = vmatprep.subr.mxu0 0.0
    %2361 = vmatpush1.msra.mxu0 0.0
    %2362 = vmatprep.subr.mxu0 0.0
    %2363 = vmatpush1.msra.mxu0 0.0
    %2364 = vmatprep.subr.mxu0 0.0
    %2365 = vmatpush1.msra.mxu0 0.0
    %2366 = vmatprep.subr.mxu0 0.0
    %2367 = vmatpush1.msra.mxu0 0.0
    %2368 = vmatprep.subr.mxu0 0.0
    %2369 = vmatpush1.msra.mxu0 0.0
    %2370 = vmatprep.mubr.f32.mxu0 0.0
    %2371 = vmatmul.mubr.f32.gmra.mrb[0].mxu0 %v2304
    %v2372 = vpop.f32.mrb[0].mxu0
    %v2373 = vadd.f32 0.0, %v2372
    %v2374 = vpop.f32.mrb[0].mxu0
    %2375 = vdwg.mxu0
    %v2376 = vlaneseq
    %v2377 = vand.u32 %v2376, 127
    %vm2378 = vcmp.eq.s32.totalorder %v2377, 1
    %v2379 = vsel %vm2378, 1, 0
    %v2380 = vcvt.s32.f32 %v2379
    %v2381 = vld [vmem:[%s10] sm:$0xff]
    %v2382 = vld [vmem:[%s10 + $0x8] sm:$0xff]
    %v2383 = vld [vmem:[%s10 + $0x10] sm:$0xff]
    %v2384 = vld [vmem:[%s10 + $0x18] sm:$0xff]
    %v2385 = vld [vmem:[%s10 + $0x20] sm:$0xff]
    %v2386 = vld [vmem:[%s10 + $0x28] sm:$0xff]
    %v2387 = vld [vmem:[%s10 + $0x30] sm:$0xff]
    %v2388 = vld [vmem:[%s10 + $0x38] sm:$0xff]
    %vm2389 = vcmask 523264
    %v2391 = vsel %vm2389, %v2380, 0
    %2393 = vmatprep.subr.mxu0 0.0
    %2394 = vmatpush1.msra.mxu0 %v2381
    %2395 = vmatprep.subr.mxu0 0.0
    %2396 = vmatpush1.msra.mxu0 %v2382
    %2397 = vmatprep.subr.mxu0 0.0
    %2398 = vmatpush1.msra.mxu0 %v2383
    %2399 = vmatprep.subr.mxu0 0.0
    %2400 = vmatpush1.msra.mxu0 %v2384
    %2401 = vmatprep.subr.mxu0 0.0
    %2402 = vmatpush1.msra.mxu0 %v2385
    %2403 = vmatprep.subr.mxu0 0.0
    %2404 = vmatpush1.msra.mxu0 %v2386
    %2405 = vmatprep.subr.mxu0 0.0
    %2406 = vmatpush1.msra.mxu0 %v2387
    %2407 = vmatprep.subr.mxu0 0.0
    %2408 = vmatpush1.msra.mxu0 %v2388
    %2409 = vmatprep.subr.mxu0 0.0
    %2410 = vmatpush1.msra.mxu0 0.0
    %2411 = vmatprep.subr.mxu0 0.0
    %2412 = vmatpush1.msra.mxu0 0.0
    %2413 = vmatprep.subr.mxu0 0.0
    %2414 = vmatpush1.msra.mxu0 0.0
    %2415 = vmatprep.subr.mxu0 0.0
    %2416 = vmatpush1.msra.mxu0 0.0
    %2417 = vmatprep.subr.mxu0 0.0
    %2418 = vmatpush1.msra.mxu0 0.0
    %2419 = vmatprep.subr.mxu0 0.0
    %2420 = vmatpush1.msra.mxu0 0.0
    %2421 = vmatprep.subr.mxu0 0.0
    %2422 = vmatpush1.msra.mxu0 0.0
    %2423 = vmatprep.subr.mxu0 0.0
    %2424 = vmatpush1.msra.mxu0 0.0
    %2425 = vmatprep.subr.mxu0 0.0
    %2426 = vmatpush1.msra.mxu0 0.0
    %2427 = vmatprep.subr.mxu0 0.0
    %2428 = vmatpush1.msra.mxu0 0.0
    %2429 = vmatprep.subr.mxu0 0.0
    %2430 = vmatpush1.msra.mxu0 0.0
    %2431 = vmatprep.subr.mxu0 0.0
    %2432 = vmatpush1.msra.mxu0 0.0
    %2433 = vmatprep.subr.mxu0 0.0
    %2434 = vmatpush1.msra.mxu0 0.0
    %2435 = vmatprep.subr.mxu0 0.0
    %2436 = vmatpush1.msra.mxu0 0.0
    %2437 = vmatprep.subr.mxu0 0.0
    %2438 = vmatpush1.msra.mxu0 0.0
    %2439 = vmatprep.subr.mxu0 0.0
    %2440 = vmatpush1.msra.mxu0 0.0
    %2441 = vmatprep.subr.mxu0 0.0
    %2442 = vmatpush1.msra.mxu0 0.0
    %2443 = vmatprep.subr.mxu0 0.0
    %2444 = vmatpush1.msra.mxu0 0.0
    %2445 = vmatprep.subr.mxu0 0.0
    %2446 = vmatpush1.msra.mxu0 0.0
    %2447 = vmatprep.subr.mxu0 0.0
    %2448 = vmatpush1.msra.mxu0 0.0
    %2449 = vmatprep.subr.mxu0 0.0
    %2450 = vmatpush1.msra.mxu0 0.0
    %2451 = vmatprep.subr.mxu0 0.0
    %2452 = vmatpush1.msra.mxu0 0.0
    %2453 = vmatprep.subr.mxu0 0.0
    %2454 = vmatpush1.msra.mxu0 0.0
    %2455 = vmatprep.subr.mxu0 0.0
    %2456 = vmatpush1.msra.mxu0 0.0
    %2457 = vmatprep.mubr.f32.mxu0 0.0
    %2458 = vmatmul.mubr.f32.gmra.mrb[0].mxu0 %v2391
    %v2459 = vpop.f32.mrb[0].mxu0
    %v2460 = vadd.f32 0.0, %v2459
    %v2461 = vpop.f32.mrb[0].mxu0
    %2462 = vdwg.mxu0
    %v2463 = vld [vmem:[%s11] sm:$0xff]
    %v2464 = vld [vmem:[%s11 + $0x8] sm:$0xff]
    %v2465 = vld [vmem:[%s11 + $0x10] sm:$0xff]
    %v2466 = vld [vmem:[%s11 + $0x18] sm:$0xff]
    %v2467 = vsel %vm237, %v2287, 0
    %2469 = vmatprep.subr.mxu0 0.0
    %2470 = vmatpush1.msra.mxu0 %v2463
    %2471 = vmatprep.subr.mxu0 0.0
    %2472 = vmatpush1.msra.mxu0 %v2464
    %2473 = vmatprep.subr.mxu0 0.0
    %2474 = vmatpush1.msra.mxu0 %v2465
    %2475 = vmatprep.subr.mxu0 0.0
    %2476 = vmatpush1.msra.mxu0 %v2466
    %2477 = vmatprep.subr.mxu0 0.0
    %2478 = vmatpush1.msra.mxu0 0.0
    %2479 = vmatprep.subr.mxu0 0.0
    %2480 = vmatpush1.msra.mxu0 0.0
    %2481 = vmatprep.subr.mxu0 0.0
    %2482 = vmatpush1.msra.mxu0 0.0
    %2483 = vmatprep.subr.mxu0 0.0
    %2484 = vmatpush1.msra.mxu0 0.0
    %2485 = vmatprep.subr.mxu0 0.0
    %2486 = vmatpush1.msra.mxu0 0.0
    %2487 = vmatprep.subr.mxu0 0.0
    %2488 = vmatpush1.msra.mxu0 0.0
    %2489 = vmatprep.subr.mxu0 0.0
    %2490 = vmatpush1.msra.mxu0 0.0
    %2491 = vmatprep.subr.mxu0 0.0
    %2492 = vmatpush1.msra.mxu0 0.0
    %2493 = vmatprep.subr.mxu0 0.0
    %2494 = vmatpush1.msra.mxu0 0.0
    %2495 = vmatprep.subr.mxu0 0.0
    %2496 = vmatpush1.msra.mxu0 0.0
    %2497 = vmatprep.subr.mxu0 0.0
    %2498 = vmatpush1.msra.mxu0 0.0
    %2499 = vmatprep.subr.mxu0 0.0
    %2500 = vmatpush1.msra.mxu0 0.0
    %2501 = vmatprep.subr.mxu0 0.0
    %2502 = vmatpush1.msra.mxu0 0.0
    %2503 = vmatprep.subr.mxu0 0.0
    %2504 = vmatpush1.msra.mxu0 0.0
    %2505 = vmatprep.subr.mxu0 0.0
    %2506 = vmatpush1.msra.mxu0 0.0
    %2507 = vmatprep.subr.mxu0 0.0
    %2508 = vmatpush1.msra.mxu0 0.0
    %2509 = vmatprep.subr.mxu0 0.0
    %2510 = vmatpush1.msra.mxu0 0.0
    %2511 = vmatprep.subr.mxu0 0.0
    %2512 = vmatpush1.msra.mxu0 0.0
    %2513 = vmatprep.subr.mxu0 0.0
    %2514 = vmatpush1.msra.mxu0 0.0
    %2515 = vmatprep.subr.mxu0 0.0
    %2516 = vmatpush1.msra.mxu0 0.0
    %2517 = vmatprep.subr.mxu0 0.0
    %2518 = vmatpush1.msra.mxu0 0.0
    %2519 = vmatprep.subr.mxu0 0.0
    %2520 = vmatpush1.msra.mxu0 0.0
    %2521 = vmatprep.subr.mxu0 0.0
    %2522 = vmatpush1.msra.mxu0 0.0
    %2523 = vmatprep.subr.mxu0 0.0
    %2524 = vmatpush1.msra.mxu0 0.0
    %2525 = vmatprep.subr.mxu0 0.0
    %2526 = vmatpush1.msra.mxu0 0.0
    %2527 = vmatprep.subr.mxu0 0.0
    %2528 = vmatpush1.msra.mxu0 0.0
    %2529 = vmatprep.subr.mxu0 0.0
    %2530 = vmatpush1.msra.mxu0 0.0
    %2531 = vmatprep.subr.mxu0 0.0
    %2532 = vmatpush1.msra.mxu0 0.0
    %2533 = vmatprep.mubr.f32.mxu0 0.0
    %2534 = vmatmul.mubr.f32.gmra.mrb[0].mxu0 %v2467
    %v2535 = vpop.f32.mrb[0].mxu0
    %v2536 = vadd.f32 0.0, %v2535
    %v2537 = vpop.f32.mrb[0].mxu0
    %2538 = vdwg.mxu0
    %v2539 = vld [vmem:[%s12] sm:$0x1]
    %v2540 = vadd.f32 %v2460, %v2536
    %v2541 = vxor.u32 %v2540, 2147483648
    %v2542 = vmul.f32 %v2541, 1.442695
    %v2543 = vpow.pop %v2542
    %v2544 = vadd.f32 %v2543, 1.0
    %v2545 = vrcp.pop %v2544
    %v2546 = vmul.f32 1.0, %v2545
    %v2548 = vlaneseq
    %v2549 = vshrl.u32 %v2548, 7
    %v2550 = vsub.s32 0, %v2549
    %v2551 = vrot.slane %v2539, %v2550
    %2552 = vrot.lane.b32.xlu0 %v2551, 64
    %v2553 = vpop.permute.xlu0 %2552
    %v2555 = vadd.f32 %v2536, %v2553
    %2557 = vrot.lane.b32.xlu0 %v2555, 64
    %v2558 = vpop.permute.xlu0 %2557
    %v2560 = vmul.f32 %v2546, %v2558
    %2562 = vrot.lane.b32.xlu0 %v2560, 64
    %v2563 = vpop.permute.xlu0 %2562
    %v2565 = vadd.f32 %v2460, %v2563
    %v2566 = vtanh.pop %v2565
    %v2567 = vsub.f32 1.0, %v2546
    %2569 = vrot.lane.b32.xlu0 %v2566, 96
    %v2570 = vpop.permute.xlu0 %2569
    %v2572 = vmul.f32 %v2567, %v2570
    %v2573 = vmul.f32 %v2546, %v2246
    %v2574 = vadd.f32 %v2572, %v2573
    %2576 = vrot.lane.b32.xlu0 %v2574, 96
    %v2577 = vpop.permute.xlu0 %2576
    %v2578 = vsel %vm237, %v2577, 0
    %2580 = vmatprep.subr.mxu0 0.0
    %2581 = vmatpush1.xpose.msra.mxu0 %v2304
    %2582 = vmatprep.subr.mxu0 0.0
    %2583 = vmatpush1.xpose.msra.mxu0 0.0
    %2584 = vmatprep.subr.mxu0 0.0
    %2585 = vmatpush1.xpose.msra.mxu0 0.0
    %2586 = vmatprep.subr.mxu0 0.0
    %2587 = vmatpush1.xpose.msra.mxu0 0.0
    %2588 = vmatprep.subr.mxu0 0.0
    %2589 = vmatpush1.xpose.msra.mxu0 0.0
    %2590 = vmatprep.subr.mxu0 0.0
    %2591 = vmatpush1.xpose.msra.mxu0 0.0
    %2592 = vmatprep.subr.mxu0 0.0
    %2593 = vmatpush1.xpose.msra.mxu0 0.0
    %2594 = vmatprep.subr.mxu0 0.0
    %2595 = vmatpush1.xpose.msra.mxu0 0.0
    %2596 = vmatprep.subr.mxu0 0.0
    %2597 = vmatpush1.xpose.msra.mxu0 0.0
    %2598 = vmatprep.subr.mxu0 0.0
    %2599 = vmatpush1.xpose.msra.mxu0 0.0
    %2600 = vmatprep.subr.mxu0 0.0
    %2601 = vmatpush1.xpose.msra.mxu0 0.0
    %2602 = vmatprep.subr.mxu0 0.0
    %2603 = vmatpush1.xpose.msra.mxu0 0.0
    %2604 = vmatprep.subr.mxu0 0.0
    %2605 = vmatpush1.xpose.msra.mxu0 0.0
    %2606 = vmatprep.subr.mxu0 0.0
    %2607 = vmatpush1.xpose.msra.mxu0 0.0
    %2608 = vmatprep.subr.mxu0 0.0
    %2609 = vmatpush1.xpose.msra.mxu0 0.0
    %2610 = vmatprep.subr.mxu0 0.0
    %2611 = vmatpush1.xpose.msra.mxu0 0.0
    %2612 = vmatprep.subr.mxu0 0.0
    %2613 = vmatpush1.xpose.msra.mxu0 0.0
    %2614 = vmatprep.subr.mxu0 0.0
    %2615 = vmatpush1.xpose.msra.mxu0 0.0
    %2616 = vmatprep.subr.mxu0 0.0
    %2617 = vmatpush1.xpose.msra.mxu0 0.0
    %2618 = vmatprep.subr.mxu0 0.0
    %2619 = vmatpush1.xpose.msra.mxu0 0.0
    %2620 = vmatprep.subr.mxu0 0.0
    %2621 = vmatpush1.xpose.msra.mxu0 0.0
    %2622 = vmatprep.subr.mxu0 0.0
    %2623 = vmatpush1.xpose.msra.mxu0 0.0
    %2624 = vmatprep.subr.mxu0 0.0
    %2625 = vmatpush1.xpose.msra.mxu0 0.0
    %2626 = vmatprep.subr.mxu0 0.0
    %2627 = vmatpush1.xpose.msra.mxu0 0.0
    %2628 = vmatprep.subr.mxu0 0.0
    %2629 = vmatpush1.xpose.msra.mxu0 0.0
    %2630 = vmatprep.subr.mxu0 0.0
    %2631 = vmatpush1.xpose.msra.mxu0 0.0
    %2632 = vmatprep.subr.mxu0 0.0
    %2633 = vmatpush1.xpose.msra.mxu0 0.0
    %2634 = vmatprep.subr.mxu0 0.0
    %2635 = vmatpush1.xpose.msra.mxu0 0.0
    %2636 = vmatprep.subr.mxu0 0.0
    %2637 = vmatpush1.xpose.msra.mxu0 0.0
    %2638 = vmatprep.subr.mxu0 0.0
    %2639 = vmatpush1.xpose.msra.mxu0 0.0
    %2640 = vmatprep.subr.mxu0 0.0
    %2641 = vmatpush1.xpose.msra.mxu0 0.0
    %2642 = vmatprep.subr.mxu0 0.0
    %2643 = vmatpush1.xpose.msra.mxu0 0.0
    %2644 = vmatprep.mubr.f32.mxu0 0.0
    %2645 = vmatmul.mubr.f32.gmra.mrb[0].mxu0 %v2578
    %v2646 = vpop.f32.mrb[0].mxu0
    %v2647 = vadd.f32 0.0, %v2646
    %v2648 = vpop.f32.mrb[0].mxu0
    %2649 = vdwg.mxu0
    %vm2650 = vcmask 57344
    %v2651 = vsel %vm2650, %v2647, -inf
    %2652 = vmax.xlane.f32.xlu0 %v2651
    %v2653 = vpop.xlane.xlu0 %2652
    %v2654 = vsub.f32 %v2647, %v2653
    %v2655 = vmul.f32 %v2654, 1.442695
    %v2656 = vpow.pop %v2655
    %v2657 = vsel %vm2650, %v2656, 0.0
    %2658 = vadd.xlane.f32.xlu0 %v2657
    %v2659 = vpop.xlane.xlu0 %2658
    %v2660 = vrcp.pop %v2659
    %v2661 = vmul.f32 %v2656, %v2660
    %v2662 = vld [vmem:[#allocation18] sm:$0xff]
    %v2663 = vld [vmem:[#allocation18 + $0x8] sm:$0xff]
    %v2664 = vld [vmem:[#allocation18 + $0x10] sm:$0xff]
    %v2665 = vld [vmem:[#allocation18 + $0x18] sm:$0xff]
    %vm2666 = vcmask 64512
    %v2668 = vsel %vm2666, %v2661, 0
    %2670 = vmatprep.subr.mxu0 0.0
    %2671 = vmatpush1.msra.mxu0 %v2373
    %2672 = vmatprep.subr.mxu0 0.0
    %2673 = vmatpush1.msra.mxu0 0.0
    %2674 = vmatprep.subr.mxu0 0.0
    %2675 = vmatpush1.msra.mxu0 0.0
    %2676 = vmatprep.subr.mxu0 0.0
    %2677 = vmatpush1.msra.mxu0 0.0
    %2678 = vmatprep.subr.mxu0 0.0
    %2679 = vmatpush1.msra.mxu0 0.0
    %2680 = vmatprep.subr.mxu0 0.0
    %2681 = vmatpush1.msra.mxu0 0.0
    %2682 = vmatprep.subr.mxu0 0.0
    %2683 = vmatpush1.msra.mxu0 0.0
    %2684 = vmatprep.subr.mxu0 0.0
    %2685 = vmatpush1.msra.mxu0 0.0
    %2686 = vmatprep.subr.mxu0 0.0
    %2687 = vmatpush1.msra.mxu0 0.0
    %2688 = vmatprep.subr.mxu0 0.0
    %2689 = vmatpush1.msra.mxu0 0.0
    %2690 = vmatprep.subr.mxu0 0.0
    %2691 = vmatpush1.msra.mxu0 0.0
    %2692 = vmatprep.subr.mxu0 0.0
    %2693 = vmatpush1.msra.mxu0 0.0
    %2694 = vmatprep.subr.mxu0 0.0
    %2695 = vmatpush1.msra.mxu0 0.0
    %2696 = vmatprep.subr.mxu0 0.0
    %2697 = vmatpush1.msra.mxu0 0.0
    %2698 = vmatprep.subr.mxu0 0.0
    %2699 = vmatpush1.msra.mxu0 0.0
    %2700 = vmatprep.subr.mxu0 0.0
    %2701 = vmatpush1.msra.mxu0 0.0
    %2702 = vmatprep.subr.mxu0 0.0
    %2703 = vmatpush1.msra.mxu0 0.0
    %2704 = vmatprep.subr.mxu0 0.0
    %2705 = vmatpush1.msra.mxu0 0.0
    %2706 = vmatprep.subr.mxu0 0.0
    %2707 = vmatpush1.msra.mxu0 0.0
    %2708 = vmatprep.subr.mxu0 0.0
    %2709 = vmatpush1.msra.mxu0 0.0
    %2710 = vmatprep.subr.mxu0 0.0
    %2711 = vmatpush1.msra.mxu0 0.0
    %2712 = vmatprep.subr.mxu0 0.0
    %2713 = vmatpush1.msra.mxu0 0.0
    %2714 = vmatprep.subr.mxu0 0.0
    %2715 = vmatpush1.msra.mxu0 0.0
    %2716 = vmatprep.subr.mxu0 0.0
    %2717 = vmatpush1.msra.mxu0 0.0
    %2718 = vmatprep.subr.mxu0 0.0
    %2719 = vmatpush1.msra.mxu0 0.0
    %2720 = vmatprep.subr.mxu0 0.0
    %2721 = vmatpush1.msra.mxu0 0.0
    %2722 = vmatprep.subr.mxu0 0.0
    %2723 = vmatpush1.msra.mxu0 0.0
    %2724 = vmatprep.subr.mxu0 0.0
    %2725 = vmatpush1.msra.mxu0 0.0
    %2726 = vmatprep.subr.mxu0 0.0
    %2727 = vmatpush1.msra.mxu0 0.0
    %2728 = vmatprep.subr.mxu0 0.0
    %2729 = vmatpush1.msra.mxu0 0.0
    %2730 = vmatprep.subr.mxu0 0.0
    %2731 = vmatpush1.msra.mxu0 0.0
    %2732 = vmatprep.subr.mxu0 0.0
    %2733 = vmatpush1.msra.mxu0 0.0
    %2734 = vmatprep.mubr.f32.mxu0 0.0
    %2735 = vmatmul.mubr.f32.gmra.mrb[0].mxu0 %v2668
    %v2736 = vpop.f32.mrb[0].mxu0
    %v2737 = vadd.f32 0.0, %v2736
    %v2738 = vpop.f32.mrb[0].mxu0
    %2739 = vdwg.mxu0
    %2740 = vmatprep.subr.mxu0 0.0
    %2741 = vmatpush1.msra.mxu0 %v2662
    %2742 = vmatprep.subr.mxu0 0.0
    %2743 = vmatpush1.msra.mxu0 %v2663
    %2744 = vmatprep.subr.mxu0 0.0
    %2745 = vmatpush1.msra.mxu0 %v2664
    %2746 = vmatprep.subr.mxu0 0.0
    %2747 = vmatpush1.msra.mxu0 %v2665
    %2748 = vmatprep.subr.mxu0 0.0
    %2749 = vmatpush1.msra.mxu0 0.0
    %2750 = vmatprep.subr.mxu0 0.0
    %2751 = vmatpush1.msra.mxu0 0.0
    %2752 = vmatprep.subr.mxu0 0.0
    %2753 = vmatpush1.msra.mxu0 0.0
    %2754 = vmatprep.subr.mxu0 0.0
    %2755 = vmatpush1.msra.mxu0 0.0
    %2756 = vmatprep.subr.mxu0 0.0
    %2757 = vmatpush1.msra.mxu0 0.0
    %2758 = vmatprep.subr.mxu0 0.0
    %2759 = vmatpush1.msra.mxu0 0.0
    %2760 = vmatprep.subr.mxu0 0.0
    %2761 = vmatpush1.msra.mxu0 0.0
    %2762 = vmatprep.subr.mxu0 0.0
    %2763 = vmatpush1.msra.mxu0 0.0
    %2764 = vmatprep.subr.mxu0 0.0
    %2765 = vmatpush1.msra.mxu0 0.0
    %2766 = vmatprep.subr.mxu0 0.0
    %2767 = vmatpush1.msra.mxu0 0.0
    %2768 = vmatprep.subr.mxu0 0.0
    %2769 = vmatpush1.msra.mxu0 0.0
    %2770 = vmatprep.subr.mxu0 0.0
    %2771 = vmatpush1.msra.mxu0 0.0
    %2772 = vmatprep.subr.mxu0 0.0
    %2773 = vmatpush1.msra.mxu0 0.0
    %2774 = vmatprep.subr.mxu0 0.0
    %2775 = vmatpush1.msra.mxu0 0.0
    %2776 = vmatprep.subr.mxu0 0.0
    %2777 = vmatpush1.msra.mxu0 0.0
    %2778 = vmatprep.subr.mxu0 0.0
    %2779 = vmatpush1.msra.mxu0 0.0
    %2780 = vmatprep.subr.mxu0 0.0
    %2781 = vmatpush1.msra.mxu0 0.0
    %2782 = vmatprep.subr.mxu0 0.0
    %2783 = vmatpush1.msra.mxu0 0.0
    %2784 = vmatprep.subr.mxu0 0.0
    %2785 = vmatpush1.msra.mxu0 0.0
    %2786 = vmatprep.subr.mxu0 0.0
    %2787 = vmatpush1.msra.mxu0 0.0
    %2788 = vmatprep.subr.mxu0 0.0
    %2789 = vmatpush1.msra.mxu0 0.0
    %2790 = vmatprep.subr.mxu0 0.0
    %2791 = vmatpush1.msra.mxu0 0.0
    %2792 = vmatprep.subr.mxu0 0.0
    %2793 = vmatpush1.msra.mxu0 0.0
    %2794 = vmatprep.subr.mxu0 0.0
    %2795 = vmatpush1.msra.mxu0 0.0
    %2796 = vmatprep.subr.mxu0 0.0
    %2797 = vmatpush1.msra.mxu0 0.0
    %2798 = vmatprep.subr.mxu0 0.0
    %2799 = vmatpush1.msra.mxu0 0.0
    %2800 = vmatprep.subr.mxu0 0.0
    %2801 = vmatpush1.msra.mxu0 0.0
    %2802 = vmatprep.subr.mxu0 0.0
    %2803 = vmatpush1.msra.mxu0 0.0
    %2804 = vmatprep.mubr.f32.mxu0 0.0
    %2805 = vmatmul.mubr.f32.gmra.mrb[0].mxu0 %v2578
    %v2806 = vpop.f32.mrb[0].mxu0
    %v2807 = vadd.f32 %v2737, %v2806
    %v2808 = vpop.f32.mrb[0].mxu0
    %2809 = vdwg.mxu0
    %v2810 = vld [vmem:[%s15] sm:$0x1]
    %v2811 = vadd.f32 %v2807, %v2810
    %v2812 = vtanh.pop %v2811
    %v2813 = vld [vmem:[#allocation21] sm:$0xff]
    %v2814 = vld [vmem:[#allocation21 + $0x8] sm:$0xff]
    %v2815 = vld [vmem:[#allocation21 + $0x10] sm:$0xff]
    %v2816 = vld [vmem:[#allocation21 + $0x18] sm:$0xff]
    %v2817 = vld [vmem:[%s17] sm:$0x1]
    %v2819 = vsel %vm237, %v2812, 0
    %2821 = vmatprep.subr.mxu0 0.0
    %2822 = vmatpush1.msra.mxu0 %v2813
    %2823 = vmatprep.subr.mxu0 0.0
    %2824 = vmatpush1.msra.mxu0 %v2814
    %2825 = vmatprep.subr.mxu0 0.0
    %2826 = vmatpush1.msra.mxu0 %v2815
    %2827 = vmatprep.subr.mxu0 0.0
    %2828 = vmatpush1.msra.mxu0 %v2816
    %2829 = vmatprep.subr.mxu0 0.0
    %2830 = vmatpush1.msra.mxu0 0.0
    %2831 = vmatprep.subr.mxu0 0.0
    %2832 = vmatpush1.msra.mxu0 0.0
    %2833 = vmatprep.subr.mxu0 0.0
    %2834 = vmatpush1.msra.mxu0 0.0
    %2835 = vmatprep.subr.mxu0 0.0
    %2836 = vmatpush1.msra.mxu0 0.0
    %2837 = vmatprep.subr.mxu0 0.0
    %2838 = vmatpush1.msra.mxu0 0.0
    %2839 = vmatprep.subr.mxu0 0.0
    %2840 = vmatpush1.msra.mxu0 0.0
    %2841 = vmatprep.subr.mxu0 0.0
    %2842 = vmatpush1.msra.mxu0 0.0
    %2843 = vmatprep.subr.mxu0 0.0
    %2844 = vmatpush1.msra.mxu0 0.0
    %2845 = vmatprep.subr.mxu0 0.0
    %2846 = vmatpush1.msra.mxu0 0.0
    %2847 = vmatprep.subr.mxu0 0.0
    %2848 = vmatpush1.msra.mxu0 0.0
    %2849 = vmatprep.subr.mxu0 0.0
    %2850 = vmatpush1.msra.mxu0 0.0
    %2851 = vmatprep.subr.mxu0 0.0
    %2852 = vmatpush1.msra.mxu0 0.0
    %2853 = vmatprep.subr.mxu0 0.0
    %2854 = vmatpush1.msra.mxu0 0.0
    %2855 = vmatprep.subr.mxu0 0.0
    %2856 = vmatpush1.msra.mxu0 0.0
    %2857 = vmatprep.subr.mxu0 0.0
    %2858 = vmatpush1.msra.mxu0 0.0
    %2859 = vmatprep.subr.mxu0 0.0
    %2860 = vmatpush1.msra.mxu0 0.0
    %2861 = vmatprep.subr.mxu0 0.0
    %2862 = vmatpush1.msra.mxu0 0.0
    %2863 = vmatprep.subr.mxu0 0.0
    %2864 = vmatpush1.msra.mxu0 0.0
    %2865 = vmatprep.subr.mxu0 0.0
    %2866 = vmatpush1.msra.mxu0 0.0
    %2867 = vmatprep.subr.mxu0 0.0
    %2868 = vmatpush1.msra.mxu0 0.0
    %2869 = vmatprep.subr.mxu0 0.0
    %2870 = vmatpush1.msra.mxu0 0.0
    %2871 = vmatprep.subr.mxu0 0.0
    %2872 = vmatpush1.msra.mxu0 0.0
    %2873 = vmatprep.subr.mxu0 0.0
    %2874 = vmatpush1.msra.mxu0 0.0
    %2875 = vmatprep.subr.mxu0 0.0
    %2876 = vmatpush1.msra.mxu0 0.0
    %2877 = vmatprep.subr.mxu0 0.0
    %2878 = vmatpush1.msra.mxu0 0.0
    %2879 = vmatprep.subr.mxu0 0.0
    %2880 = vmatpush1.msra.mxu0 0.0
    %2881 = vmatprep.subr.mxu0 0.0
    %2882 = vmatpush1.msra.mxu0 0.0
    %2883 = vmatprep.subr.mxu0 0.0
    %2884 = vmatpush1.msra.mxu0 0.0
    %2885 = vmatprep.mubr.f32.mxu0 0.0
    %2886 = vmatmul.mubr.f32.gmra.mrb[0].mxu0 %v2819
    %v2887 = vpop.f32.mrb[0].mxu0
    %v2888 = vadd.f32 %v2817, %v2887
    %v2889 = vpop.f32.mrb[0].mxu0
    %2890 = vdwg.mxu0
    %vm2891 = vcmask 516096
    %v2892 = vsel %vm2891, %v2888, -inf
    %2893 = vmax.xlane.f32.xlu0 %v2892
    %v2894 = vpop.xlane.xlu0 %2893
    %v2895 = vsub.f32 %v2888, %v2894
    %v2896 = vmul.f32 %v2895, 1.442695
    %v2897 = vpow.pop %v2896
    %v2898 = vsel %vm2891, %v2897, 0.0
    %2899 = vadd.xlane.f32.xlu0 %v2898
    %v2900 = vpop.xlane.xlu0 %2899
    %v2901 = vrcp.pop %v2900
    %v2902 = vmul.f32 1.0, %v2901
    %vm2903 = vcmp.eq.f32.partialorder %v2888, %v2894
    %v2904 = vsel %vm2903, %v2377, 64
    %v2905 = vsel %vm2891, %v2904, 2147483647
    %v2906 = vand.u32 %v2905, 65535
    %v2907 = vshra.s32 %v2905, 16
    %v2908 = vcvt.s32.f32 %v2906
    %v2909 = vcvt.s32.f32 %v2907
    %2910 = vmin.xlane.f32.xlu0 %v2909
    %v2911 = vpop.xlane.xlu0 %2910
    %vm2912 = vcmp.eq.f32.partialorder %v2909, %v2911
    %v2913 = vsel %vm2912, %v2908, inf
    %2914 = vmin.xlane.f32.xlu0 %v2913
    %v2915 = vpop.xlane.xlu0 %2914
    %v2916 = vcvt.f32.s32 %v2915
    %v2917 = vcvt.f32.s32 %v2911
    %v2918 = vshll.u32 %v2917, 16
    %v2919 = vadd.s32 %v2918, %v2916
    %vm2920 = vcmask 0
    %2921 = vst.msk [vmem:[#allocation22] sm:$0x1] %vm2920, %v2919
    %2922 = vst.msk [vmem:[#allocation23] sm:$0x1] %vm2920, %v2902
    %vm2923 = vcmp.eq.s32.totalorder %v2377, %v2919
    %v2924 = vsel %vm2923, 1, 0
    %v2925 = vcvt.s32.f32 %v2924
    %v2926 = vld [vmem:[%s10] sm:$0xff]
    %v2927 = vld [vmem:[%s10 + $0x8] sm:$0xff]
    %v2928 = vld [vmem:[%s10 + $0x10] sm:$0xff]
    %v2929 = vld [vmem:[%s10 + $0x18] sm:$0xff]
    %v2930 = vld [vmem:[%s10 + $0x20] sm:$0xff]
    %v2931 = vld [vmem:[%s10 + $0x28] sm:$0xff]
    %v2932 = vld [vmem:[%s10 + $0x30] sm:$0xff]
    %v2933 = vld [vmem:[%s10 + $0x38] sm:$0xff]
    %v2935 = vsel %vm2389, %v2925, 0
    %2937 = vmatprep.subr.mxu0 0.0
    %2938 = vmatpush1.msra.mxu0 %v2926
    %2939 = vmatprep.subr.mxu0 0.0
    %2940 = vmatpush1.msra.mxu0 %v2927
    %2941 = vmatprep.subr.mxu0 0.0
    %2942 = vmatpush1.msra.mxu0 %v2928
    %2943 = vmatprep.subr.mxu0 0.0
    %2944 = vmatpush1.msra.mxu0 %v2929
    %2945 = vmatprep.subr.mxu0 0.0
    %2946 = vmatpush1.msra.mxu0 %v2930
    %2947 = vmatprep.subr.mxu0 0.0
    %2948 = vmatpush1.msra.mxu0 %v2931
    %2949 = vmatprep.subr.mxu0 0.0
    %2950 = vmatpush1.msra.mxu0 %v2932
    %2951 = vmatprep.subr.mxu0 0.0
    %2952 = vmatpush1.msra.mxu0 %v2933
    %2953 = vmatprep.subr.mxu0 0.0
    %2954 = vmatpush1.msra.mxu0 0.0
    %2955 = vmatprep.subr.mxu0 0.0
    %2956 = vmatpush1.msra.mxu0 0.0
    %2957 = vmatprep.subr.mxu0 0.0
    %2958 = vmatpush1.msra.mxu0 0.0
    %2959 = vmatprep.subr.mxu0 0.0
    %2960 = vmatpush1.msra.mxu0 0.0
    %2961 = vmatprep.subr.mxu0 0.0
    %2962 = vmatpush1.msra.mxu0 0.0
    %2963 = vmatprep.subr.mxu0 0.0
    %2964 = vmatpush1.msra.mxu0 0.0
    %2965 = vmatprep.subr.mxu0 0.0
    %2966 = vmatpush1.msra.mxu0 0.0
    %2967 = vmatprep.subr.mxu0 0.0
    %2968 = vmatpush1.msra.mxu0 0.0
    %2969 = vmatprep.subr.mxu0 0.0
    %2970 = vmatpush1.msra.mxu0 0.0
    %2971 = vmatprep.subr.mxu0 0.0
    %2972 = vmatpush1.msra.mxu0 0.0
    %2973 = vmatprep.subr.mxu0 0.0
    %2974 = vmatpush1.msra.mxu0 0.0
    %2975 = vmatprep.subr.mxu0 0.0
    %2976 = vmatpush1.msra.mxu0 0.0
    %2977 = vmatprep.subr.mxu0 0.0
    %2978 = vmatpush1.msra.mxu0 0.0
    %2979 = vmatprep.subr.mxu0 0.0
    %2980 = vmatpush1.msra.mxu0 0.0
    %2981 = vmatprep.subr.mxu0 0.0
    %2982 = vmatpush1.msra.mxu0 0.0
    %2983 = vmatprep.subr.mxu0 0.0
    %2984 = vmatpush1.msra.mxu0 0.0
    %2985 = vmatprep.subr.mxu0 0.0
    %2986 = vmatpush1.msra.mxu0 0.0
    %2987 = vmatprep.subr.mxu0 0.0
    %2988 = vmatpush1.msra.mxu0 0.0
    %2989 = vmatprep.subr.mxu0 0.0
    %2990 = vmatpush1.msra.mxu0 0.0
    %2991 = vmatprep.subr.mxu0 0.0
    %2992 = vmatpush1.msra.mxu0 0.0
    %2993 = vmatprep.subr.mxu0 0.0
    %2994 = vmatpush1.msra.mxu0 0.0
    %2995 = vmatprep.subr.mxu0 0.0
    %2996 = vmatpush1.msra.mxu0 0.0
    %2997 = vmatprep.subr.mxu0 0.0
    %2998 = vmatpush1.msra.mxu0 0.0
    %2999 = vmatprep.subr.mxu0 0.0
    %3000 = vmatpush1.msra.mxu0 0.0
    %3001 = vmatprep.mubr.f32.mxu0 0.0
    %3002 = vmatmul.mubr.f32.gmra.mrb[0].mxu0 %v2935
    %v3003 = vpop.f32.mrb[0].mxu0
    %v3004 = vadd.f32 0.0, %v3003
    %v3005 = vpop.f32.mrb[0].mxu0
    %3006 = vdwg.mxu0
    %v3007 = vld [vmem:[%s11] sm:$0xff]
    %v3008 = vld [vmem:[%s11 + $0x8] sm:$0xff]
    %v3009 = vld [vmem:[%s11 + $0x10] sm:$0xff]
    %v3010 = vld [vmem:[%s11 + $0x18] sm:$0xff]
    %3011 = vmatprep.subr.mxu0 0.0
    %3012 = vmatpush1.msra.mxu0 %v3007
    %3013 = vmatprep.subr.mxu0 0.0
    %3014 = vmatpush1.msra.mxu0 %v3008
    %3015 = vmatprep.subr.mxu0 0.0
    %3016 = vmatpush1.msra.mxu0 %v3009
    %3017 = vmatprep.subr.mxu0 0.0
    %3018 = vmatpush1.msra.mxu0 %v3010
    %3019 = vmatprep.subr.mxu0 0.0
    %3020 = vmatpush1.msra.mxu0 0.0
    %3021 = vmatprep.subr.mxu0 0.0
    %3022 = vmatpush1.msra.mxu0 0.0
    %3023 = vmatprep.subr.mxu0 0.0
    %3024 = vmatpush1.msra.mxu0 0.0
    %3025 = vmatprep.subr.mxu0 0.0
    %3026 = vmatpush1.msra.mxu0 0.0
    %3027 = vmatprep.subr.mxu0 0.0
    %3028 = vmatpush1.msra.mxu0 0.0
    %3029 = vmatprep.subr.mxu0 0.0
    %3030 = vmatpush1.msra.mxu0 0.0
    %3031 = vmatprep.subr.mxu0 0.0
    %3032 = vmatpush1.msra.mxu0 0.0
    %3033 = vmatprep.subr.mxu0 0.0
    %3034 = vmatpush1.msra.mxu0 0.0
    %3035 = vmatprep.subr.mxu0 0.0
    %3036 = vmatpush1.msra.mxu0 0.0
    %3037 = vmatprep.subr.mxu0 0.0
    %3038 = vmatpush1.msra.mxu0 0.0
    %3039 = vmatprep.subr.mxu0 0.0
    %3040 = vmatpush1.msra.mxu0 0.0
    %3041 = vmatprep.subr.mxu0 0.0
    %3042 = vmatpush1.msra.mxu0 0.0
    %3043 = vmatprep.subr.mxu0 0.0
    %3044 = vmatpush1.msra.mxu0 0.0
    %3045 = vmatprep.subr.mxu0 0.0
    %3046 = vmatpush1.msra.mxu0 0.0
    %3047 = vmatprep.subr.mxu0 0.0
    %3048 = vmatpush1.msra.mxu0 0.0
    %3049 = vmatprep.subr.mxu0 0.0
    %3050 = vmatpush1.msra.mxu0 0.0
    %3051 = vmatprep.subr.mxu0 0.0
    %3052 = vmatpush1.msra.mxu0 0.0
    %3053 = vmatprep.subr.mxu0 0.0
    %3054 = vmatpush1.msra.mxu0 0.0
    %3055 = vmatprep.subr.mxu0 0.0
    %3056 = vmatpush1.msra.mxu0 0.0
    %3057 = vmatprep.subr.mxu0 0.0
    %3058 = vmatpush1.msra.mxu0 0.0
    %3059 = vmatprep.subr.mxu0 0.0
    %3060 = vmatpush1.msra.mxu0 0.0
    %3061 = vmatprep.subr.mxu0 0.0
    %3062 = vmatpush1.msra.mxu0 0.0
    %3063 = vmatprep.subr.mxu0 0.0
    %3064 = vmatpush1.msra.mxu0 0.0
    %3065 = vmatprep.subr.mxu0 0.0
    %3066 = vmatpush1.msra.mxu0 0.0
    %3067 = vmatprep.subr.mxu0 0.0
    %3068 = vmatpush1.msra.mxu0 0.0
    %3069 = vmatprep.subr.mxu0 0.0
    %3070 = vmatpush1.msra.mxu0 0.0
    %3071 = vmatprep.subr.mxu0 0.0
    %3072 = vmatpush1.msra.mxu0 0.0
    %3073 = vmatprep.subr.mxu0 0.0
    %3074 = vmatpush1.msra.mxu0 0.0
    %3075 = vmatprep.mubr.f32.mxu0 0.0
    %3076 = vmatmul.mubr.f32.gmra.mrb[0].mxu0 %v2578
    %v3077 = vpop.f32.mrb[0].mxu0
    %v3078 = vadd.f32 0.0, %v3077
    %v3079 = vpop.f32.mrb[0].mxu0
    %3080 = vdwg.mxu0
    %v3081 = vld [vmem:[%s12] sm:$0x1]
    %v3082 = vadd.f32 %v3004, %v3078
    %v3083 = vxor.u32 %v3082, 2147483648
    %v3084 = vmul.f32 %v3083, 1.442695
    %v3085 = vpow.pop %v3084
    %v3086 = vadd.f32 %v3085, 1.0
    %v3087 = vrcp.pop %v3086
    %v3088 = vmul.f32 1.0, %v3087
    %v3090 = vlaneseq
    %v3091 = vshrl.u32 %v3090, 7
    %v3092 = vsub.s32 0, %v3091
    %v3093 = vrot.slane %v3081, %v3092
    %3094 = vrot.lane.b32.xlu0 %v3093, 64
    %v3095 = vpop.permute.xlu0 %3094
    %v3097 = vadd.f32 %v3078, %v3095
    %3099 = vrot.lane.b32.xlu0 %v3097, 64
    %v3100 = vpop.permute.xlu0 %3099
    %v3102 = vmul.f32 %v3088, %v3100
    %3104 = vrot.lane.b32.xlu0 %v3102, 64
    %v3105 = vpop.permute.xlu0 %3104
    %v3107 = vadd.f32 %v3004, %v3105
    %v3108 = vtanh.pop %v3107
    %v3109 = vsub.f32 1.0, %v3088
    %3111 = vrot.lane.b32.xlu0 %v3108, 96
    %v3112 = vpop.permute.xlu0 %3111
    %v3114 = vmul.f32 %v3109, %v3112
    %v3115 = vmul.f32 %v3088, %v2574
    %v3116 = vadd.f32 %v3114, %v3115
    %3118 = vrot.lane.b32.xlu0 %v3116, 96
    %v3119 = vpop.permute.xlu0 %3118
    %v3120 = vsel %vm237, %v3119, 0
    %3122 = vmatprep.subr.mxu0 0.0
    %3123 = vmatpush1.xpose.msra.mxu0 %v2304
    %3124 = vmatprep.subr.mxu0 0.0
    %3125 = vmatpush1.xpose.msra.mxu0 0.0
    %3126 = vmatprep.subr.mxu0 0.0
    %3127 = vmatpush1.xpose.msra.mxu0 0.0
    %3128 = vmatprep.subr.mxu0 0.0
    %3129 = vmatpush1.xpose.msra.mxu0 0.0
    %3130 = vmatprep.subr.mxu0 0.0
    %3131 = vmatpush1.xpose.msra.mxu0 0.0
    %3132 = vmatprep.subr.mxu0 0.0
    %3133 = vmatpush1.xpose.msra.mxu0 0.0
    %3134 = vmatprep.subr.mxu0 0.0
    %3135 = vmatpush1.xpose.msra.mxu0 0.0
    %3136 = vmatprep.subr.mxu0 0.0
    %3137 = vmatpush1.xpose.msra.mxu0 0.0
    %3138 = vmatprep.subr.mxu0 0.0
    %3139 = vmatpush1.xpose.msra.mxu0 0.0
    %3140 = vmatprep.subr.mxu0 0.0
    %3141 = vmatpush1.xpose.msra.mxu0 0.0
    %3142 = vmatprep.subr.mxu0 0.0
    %3143 = vmatpush1.xpose.msra.mxu0 0.0
    %3144 = vmatprep.subr.mxu0 0.0
    %3145 = vmatpush1.xpose.msra.mxu0 0.0
    %3146 = vmatprep.subr.mxu0 0.0
    %3147 = vmatpush1.xpose.msra.mxu0 0.0
    %3148 = vmatprep.subr.mxu0 0.0
    %3149 = vmatpush1.xpose.msra.mxu0 0.0
    %3150 = vmatprep.subr.mxu0 0.0
    %3151 = vmatpush1.xpose.msra.mxu0 0.0
    %3152 = vmatprep.subr.mxu0 0.0
    %3153 = vmatpush1.xpose.msra.mxu0 0.0
    %3154 = vmatprep.subr.mxu0 0.0
    %3155 = vmatpush1.xpose.msra.mxu0 0.0
    %3156 = vmatprep.subr.mxu0 0.0
    %3157 = vmatpush1.xpose.msra.mxu0 0.0
    %3158 = vmatprep.subr.mxu0 0.0
    %3159 = vmatpush1.xpose.msra.mxu0 0.0
    %3160 = vmatprep.subr.mxu0 0.0
    %3161 = vmatpush1.xpose.msra.mxu0 0.0
    %3162 = vmatprep.subr.mxu0 0.0
    %3163 = vmatpush1.xpose.msra.mxu0 0.0
    %3164 = vmatprep.subr.mxu0 0.0
    %3165 = vmatpush1.xpose.msra.mxu0 0.0
    %3166 = vmatprep.subr.mxu0 0.0
    %3167 = vmatpush1.xpose.msra.mxu0 0.0
    %3168 = vmatprep.subr.mxu0 0.0
    %3169 = vmatpush1.xpose.msra.mxu0 0.0
    %3170 = vmatprep.subr.mxu0 0.0
    %3171 = vmatpush1.xpose.msra.mxu0 0.0
    %3172 = vmatprep.subr.mxu0 0.0
    %3173 = vmatpush1.xpose.msra.mxu0 0.0
    %3174 = vmatprep.subr.mxu0 0.0
    %3175 = vmatpush1.xpose.msra.mxu0 0.0
    %3176 = vmatprep.subr.mxu0 0.0
    %3177 = vmatpush1.xpose.msra.mxu0 0.0
    %3178 = vmatprep.subr.mxu0 0.0
    %3179 = vmatpush1.xpose.msra.mxu0 0.0
    %3180 = vmatprep.subr.mxu0 0.0
    %3181 = vmatpush1.xpose.msra.mxu0 0.0
    %3182 = vmatprep.subr.mxu0 0.0
    %3183 = vmatpush1.xpose.msra.mxu0 0.0
    %3184 = vmatprep.subr.mxu0 0.0
    %3185 = vmatpush1.xpose.msra.mxu0 0.0
    %3186 = vmatprep.mubr.f32.mxu0 0.0
    %3187 = vmatmul.mubr.f32.gmra.mrb[0].mxu0 %v3120
    %v3188 = vpop.f32.mrb[0].mxu0
    %v3189 = vadd.f32 0.0, %v3188
    %v3190 = vpop.f32.mrb[0].mxu0
    %3191 = vdwg.mxu0
    %v3192 = vsel %vm2650, %v3189, -inf
    %3193 = vmax.xlane.f32.xlu0 %v3192
    %v3194 = vpop.xlane.xlu0 %3193
    %v3195 = vsub.f32 %v3189, %v3194
    %v3196 = vmul.f32 %v3195, 1.442695
    %v3197 = vpow.pop %v3196
    %v3198 = vsel %vm2650, %v3197, 0.0
    %3199 = vadd.xlane.f32.xlu0 %v3198
    %v3200 = vpop.xlane.xlu0 %3199
    %v3201 = vrcp.pop %v3200
    %v3202 = vmul.f32 %v3197, %v3201
    %v3203 = vld [vmem:[#allocation18] sm:$0xff]
    %v3204 = vld [vmem:[#allocation18 + $0x8] sm:$0xff]
    %v3205 = vld [vmem:[#allocation18 + $0x10] sm:$0xff]
    %v3206 = vld [vmem:[#allocation18 + $0x18] sm:$0xff]
    %v3208 = vsel %vm2666, %v3202, 0
    %3210 = vmatprep.subr.mxu0 0.0
    %3211 = vmatpush1.msra.mxu0 %v2373
    %3212 = vmatprep.subr.mxu0 0.0
    %3213 = vmatpush1.msra.mxu0 0.0
    %3214 = vmatprep.subr.mxu0 0.0
    %3215 = vmatpush1.msra.mxu0 0.0
    %3216 = vmatprep.subr.mxu0 0.0
    %3217 = vmatpush1.msra.mxu0 0.0
    %3218 = vmatprep.subr.mxu0 0.0
    %3219 = vmatpush1.msra.mxu0 0.0
    %3220 = vmatprep.subr.mxu0 0.0
    %3221 = vmatpush1.msra.mxu0 0.0
    %3222 = vmatprep.subr.mxu0 0.0
    %3223 = vmatpush1.msra.mxu0 0.0
    %3224 = vmatprep.subr.mxu0 0.0
    %3225 = vmatpush1.msra.mxu0 0.0
    %3226 = vmatprep.subr.mxu0 0.0
    %3227 = vmatpush1.msra.mxu0 0.0
    %3228 = vmatprep.subr.mxu0 0.0
    %3229 = vmatpush1.msra.mxu0 0.0
    %3230 = vmatprep.subr.mxu0 0.0
    %3231 = vmatpush1.msra.mxu0 0.0
    %3232 = vmatprep.subr.mxu0 0.0
    %3233 = vmatpush1.msra.mxu0 0.0
    %3234 = vmatprep.subr.mxu0 0.0
    %3235 = vmatpush1.msra.mxu0 0.0
    %3236 = vmatprep.subr.mxu0 0.0
    %3237 = vmatpush1.msra.mxu0 0.0
    %3238 = vmatprep.subr.mxu0 0.0
    %3239 = vmatpush1.msra.mxu0 0.0
    %3240 = vmatprep.subr.mxu0 0.0
    %3241 = vmatpush1.msra.mxu0 0.0
    %3242 = vmatprep.subr.mxu0 0.0
    %3243 = vmatpush1.msra.mxu0 0.0
    %3244 = vmatprep.subr.mxu0 0.0
    %3245 = vmatpush1.msra.mxu0 0.0
    %3246 = vmatprep.subr.mxu0 0.0
    %3247 = vmatpush1.msra.mxu0 0.0
    %3248 = vmatprep.subr.mxu0 0.0
    %3249 = vmatpush1.msra.mxu0 0.0
    %3250 = vmatprep.subr.mxu0 0.0
    %3251 = vmatpush1.msra.mxu0 0.0
    %3252 = vmatprep.subr.mxu0 0.0
    %3253 = vmatpush1.msra.mxu0 0.0
    %3254 = vmatprep.subr.mxu0 0.0
    %3255 = vmatpush1.msra.mxu0 0.0
    %3256 = vmatprep.subr.mxu0 0.0
    %3257 = vmatpush1.msra.mxu0 0.0
    %3258 = vmatprep.subr.mxu0 0.0
    %3259 = vmatpush1.msra.mxu0 0.0
    %3260 = vmatprep.subr.mxu0 0.0
    %3261 = vmatpush1.msra.mxu0 0.0
    %3262 = vmatprep.subr.mxu0 0.0
    %3263 = vmatpush1.msra.mxu0 0.0
    %3264 = vmatprep.subr.mxu0 0.0
    %3265 = vmatpush1.msra.mxu0 0.0
    %3266 = vmatprep.subr.mxu0 0.0
    %3267 = vmatpush1.msra.mxu0 0.0
    %3268 = vmatprep.subr.mxu0 0.0
    %3269 = vmatpush1.msra.mxu0 0.0
    %3270 = vmatprep.subr.mxu0 0.0
    %3271 = vmatpush1.msra.mxu0 0.0
    %3272 = vmatprep.subr.mxu0 0.0
    %3273 = vmatpush1.msra.mxu0 0.0
    %3274 = vmatprep.mubr.f32.mxu0 0.0
    %3275 = vmatmul.mubr.f32.gmra.mrb[0].mxu0 %v3208
    %v3276 = vpop.f32.mrb[0].mxu0
    %v3277 = vadd.f32 0.0, %v3276
    %v3278 = vpop.f32.mrb[0].mxu0
    %3279 = vdwg.mxu0
    %3280 = vmatprep.subr.mxu0 0.0
    %3281 = vmatpush1.msra.mxu0 %v3203
    %3282 = vmatprep.subr.mxu0 0.0
    %3283 = vmatpush1.msra.mxu0 %v3204
    %3284 = vmatprep.subr.mxu0 0.0
    %3285 = vmatpush1.msra.mxu0 %v3205
    %3286 = vmatprep.subr.mxu0 0.0
    %3287 = vmatpush1.msra.mxu0 %v3206
    %3288 = vmatprep.subr.mxu0 0.0
    %3289 = vmatpush1.msra.mxu0 0.0
    %3290 = vmatprep.subr.mxu0 0.0
    %3291 = vmatpush1.msra.mxu0 0.0
    %3292 = vmatprep.subr.mxu0 0.0
    %3293 = vmatpush1.msra.mxu0 0.0
    %3294 = vmatprep.subr.mxu0 0.0
    %3295 = vmatpush1.msra.mxu0 0.0
    %3296 = vmatprep.subr.mxu0 0.0
    %3297 = vmatpush1.msra.mxu0 0.0
    %3298 = vmatprep.subr.mxu0 0.0
    %3299 = vmatpush1.msra.mxu0 0.0
    %3300 = vmatprep.subr.mxu0 0.0
    %3301 = vmatpush1.msra.mxu0 0.0
    %3302 = vmatprep.subr.mxu0 0.0
    %3303 = vmatpush1.msra.mxu0 0.0
    %3304 = vmatprep.subr.mxu0 0.0
    %3305 = vmatpush1.msra.mxu0 0.0
    %3306 = vmatprep.subr.mxu0 0.0
    %3307 = vmatpush1.msra.mxu0 0.0
    %3308 = vmatprep.subr.mxu0 0.0
    %3309 = vmatpush1.msra.mxu0 0.0
    %3310 = vmatprep.subr.mxu0 0.0
    %3311 = vmatpush1.msra.mxu0 0.0
    %3312 = vmatprep.subr.mxu0 0.0
    %3313 = vmatpush1.msra.mxu0 0.0
    %3314 = vmatprep.subr.mxu0 0.0
    %3315 = vmatpush1.msra.mxu0 0.0
    %3316 = vmatprep.subr.mxu0 0.0
    %3317 = vmatpush1.msra.mxu0 0.0
    %3318 = vmatprep.subr.mxu0 0.0
    %3319 = vmatpush1.msra.mxu0 0.0
    %3320 = vmatprep.subr.mxu0 0.0
    %3321 = vmatpush1.msra.mxu0 0.0
    %3322 = vmatprep.subr.mxu0 0.0
    %3323 = vmatpush1.msra.mxu0 0.0
    %3324 = vmatprep.subr.mxu0 0.0
    %3325 = vmatpush1.msra.mxu0 0.0
    %3326 = vmatprep.subr.mxu0 0.0
    %3327 = vmatpush1.msra.mxu0 0.0
    %3328 = vmatprep.subr.mxu0 0.0
    %3329 = vmatpush1.msra.mxu0 0.0
    %3330 = vmatprep.subr.mxu0 0.0
    %3331 = vmatpush1.msra.mxu0 0.0
    %3332 = vmatprep.subr.mxu0 0.0
    %3333 = vmatpush1.msra.mxu0 0.0
    %3334 = vmatprep.subr.mxu0 0.0
    %3335 = vmatpush1.msra.mxu0 0.0
    %3336 = vmatprep.subr.mxu0 0.0
    %3337 = vmatpush1.msra.mxu0 0.0
    %3338 = vmatprep.subr.mxu0 0.0
    %3339 = vmatpush1.msra.mxu0 0.0
    %3340 = vmatprep.subr.mxu0 0.0
    %3341 = vmatpush1.msra.mxu0 0.0
    %3342 = vmatprep.subr.mxu0 0.0
    %3343 = vmatpush1.msra.mxu0 0.0
    %3344 = vmatprep.mubr.f32.mxu0 0.0
    %3345 = vmatmul.mubr.f32.gmra.mrb[0].mxu0 %v3120
    %v3346 = vpop.f32.mrb[0].mxu0
    %v3347 = vadd.f32 %v3277, %v3346
    %v3348 = vpop.f32.mrb[0].mxu0
    %3349 = vdwg.mxu0
    %v3350 = vld [vmem:[%s15] sm:$0x1]
    %v3351 = vadd.f32 %v3347, %v3350
    %v3352 = vtanh.pop %v3351
    %v3353 = vld [vmem:[#allocation21] sm:$0xff]
    %v3354 = vld [vmem:[#allocation21 + $0x8] sm:$0xff]
    %v3355 = vld [vmem:[#allocation21 + $0x10] sm:$0xff]
    %v3356 = vld [vmem:[#allocation21 + $0x18] sm:$0xff]
    %v3357 = vld [vmem:[%s17] sm:$0x1]
    %v3359 = vsel %vm237, %v3352, 0
    %3361 = vmatprep.subr.mxu0 0.0
    %3362 = vmatpush1.msra.mxu0 %v3353
    %3363 = vmatprep.subr.mxu0 0.0
    %3364 = vmatpush1.msra.mxu0 %v3354
    %3365 = vmatprep.subr.mxu0 0.0
    %3366 = vmatpush1.msra.mxu0 %v3355
    %3367 = vmatprep.subr.mxu0 0.0
    %3368 = vmatpush1.msra.mxu0 %v3356
    %3369 = vmatprep.subr.mxu0 0.0
    %3370 = vmatpush1.msra.mxu0 0.0
    %3371 = vmatprep.subr.mxu0 0.0
    %3372 = vmatpush1.msra.mxu0 0.0
    %3373 = vmatprep.subr.mxu0 0.0
    %3374 = vmatpush1.msra.mxu0 0.0
    %3375 = vmatprep.subr.mxu0 0.0
    %3376 = vmatpush1.msra.mxu0 0.0
    %3377 = vmatprep.subr.mxu0 0.0
    %3378 = vmatpush1.msra.mxu0 0.0
    %3379 = vmatprep.subr.mxu0 0.0
    %3380 = vmatpush1.msra.mxu0 0.0
    %3381 = vmatprep.subr.mxu0 0.0
    %3382 = vmatpush1.msra.mxu0 0.0
    %3383 = vmatprep.subr.mxu0 0.0
    %3384 = vmatpush1.msra.mxu0 0.0
    %3385 = vmatprep.subr.mxu0 0.0
    %3386 = vmatpush1.msra.mxu0 0.0
    %3387 = vmatprep.subr.mxu0 0.0
    %3388 = vmatpush1.msra.mxu0 0.0
    %3389 = vmatprep.subr.mxu0 0.0
    %3390 = vmatpush1.msra.mxu0 0.0
    %3391 = vmatprep.subr.mxu0 0.0
    %3392 = vmatpush1.msra.mxu0 0.0
    %3393 = vmatprep.subr.mxu0 0.0
    %3394 = vmatpush1.msra.mxu0 0.0
    %3395 = vmatprep.subr.mxu0 0.0
    %3396 = vmatpush1.msra.mxu0 0.0
    %3397 = vmatprep.subr.mxu0 0.0
    %3398 = vmatpush1.msra.mxu0 0.0
    %3399 = vmatprep.subr.mxu0 0.0
    %3400 = vmatpush1.msra.mxu0 0.0
    %3401 = vmatprep.subr.mxu0 0.0
    %3402 = vmatpush1.msra.mxu0 0.0
    %3403 = vmatprep.subr.mxu0 0.0
    %3404 = vmatpush1.msra.mxu0 0.0
    %3405 = vmatprep.subr.mxu0 0.0
    %3406 = vmatpush1.msra.mxu0 0.0
    %3407 = vmatprep.subr.mxu0 0.0
    %3408 = vmatpush1.msra.mxu0 0.0
    %3409 = vmatprep.subr.mxu0 0.0
    %3410 = vmatpush1.msra.mxu0 0.0
    %3411 = vmatprep.subr.mxu0 0.0
    %3412 = vmatpush1.msra.mxu0 0.0
    %3413 = vmatprep.subr.mxu0 0.0
    %3414 = vmatpush1.msra.mxu0 0.0
    %3415 = vmatprep.subr.mxu0 0.0
    %3416 = vmatpush1.msra.mxu0 0.0
    %3417 = vmatprep.subr.mxu0 0.0
    %3418 = vmatpush1.msra.mxu0 0.0
    %3419 = vmatprep.subr.mxu0 0.0
    %3420 = vmatpush1.msra.mxu0 0.0
    %3421 = vmatprep.subr.mxu0 0.0
    %3422 = vmatpush1.msra.mxu0 0.0
    %3423 = vmatprep.subr.mxu0 0.0
    %3424 = vmatpush1.msra.mxu0 0.0
    %3425 = vmatprep.mubr.f32.mxu0 0.0
    %3426 = vmatmul.mubr.f32.gmra.mrb[0].mxu0 %v3359
    %v3427 = vpop.f32.mrb[0].mxu0
    %v3428 = vadd.f32 %v3357, %v3427
    %v3429 = vpop.f32.mrb[0].mxu0
    %3430 = vdwg.mxu0
    %v3431 = vsel %vm2891, %v3428, -inf
    %3432 = vmax.xlane.f32.xlu0 %v3431
    %v3433 = vpop.xlane.xlu0 %3432
    %v3434 = vsub.f32 %v3428, %v3433
    %v3435 = vmul.f32 %v3434, 1.442695
    %v3436 = vpow.pop %v3435
    %v3437 = vsel %vm2891, %v3436, 0.0
    %3438 = vadd.xlane.f32.xlu0 %v3437
    %v3439 = vpop.xlane.xlu0 %3438
    %v3440 = vrcp.pop %v3439
    %v3441 = vmul.f32 1.0, %v3440
    %vm3442 = vcmp.eq.f32.partialorder %v3428, %v3433
    %v3443 = vsel %vm3442, %v2377, 64
    %v3444 = vsel %vm2891, %v3443, 2147483647
    %v3445 = vand.u32 %v3444, 65535
    %v3446 = vshra.s32 %v3444, 16
    %v3447 = vcvt.s32.f32 %v3445
    %v3448 = vcvt.s32.f32 %v3446
    %3449 = vmin.xlane.f32.xlu0 %v3448
    %v3450 = vpop.xlane.xlu0 %3449
    %vm3451 = vcmp.eq.f32.partialorder %v3448, %v3450
    %v3452 = vsel %vm3451, %v3447, inf
    %3453 = vmin.xlane.f32.xlu0 %v3452
    %v3454 = vpop.xlane.xlu0 %3453
    %v3455 = vcvt.f32.s32 %v3454
    %v3456 = vcvt.f32.s32 %v3450
    %v3457 = vshll.u32 %v3456, 16
    %v3458 = vadd.s32 %v3457, %v3455
    %vm3459 = vcmask 8200
    %3460 = vst.msk [vmem:[#allocation22] sm:$0x1] %vm3459, %v3458
    %3461 = vst.msk [vmem:[#allocation23] sm:$0x1] %vm3459, %v3441
    %vm3462 = vcmp.eq.s32.totalorder %v2377, %v3458
    %v3463 = vsel %vm3462, 1, 0
    %v3464 = vcvt.s32.f32 %v3463
    %v3465 = vld [vmem:[%s10] sm:$0xff]
    %v3466 = vld [vmem:[%s10 + $0x8] sm:$0xff]
    %v3467 = vld [vmem:[%s10 + $0x10] sm:$0xff]
    %v3468 = vld [vmem:[%s10 + $0x18] sm:$0xff]
    %v3469 = vld [vmem:[%s10 + $0x20] sm:$0xff]
    %v3470 = vld [vmem:[%s10 + $0x28] sm:$0xff]
    %v3471 = vld [vmem:[%s10 + $0x30] sm:$0xff]
    %v3472 = vld [vmem:[%s10 + $0x38] sm:$0xff]
    %v3474 = vsel %vm2389, %v3464, 0
    %3476 = vmatprep.subr.mxu0 0.0
    %3477 = vmatpush1.msra.mxu0 %v3465
    %3478 = vmatprep.subr.mxu0 0.0
    %3479 = vmatpush1.msra.mxu0 %v3466
    %3480 = vmatprep.subr.mxu0 0.0
    %3481 = vmatpush1.msra.mxu0 %v3467
    %3482 = vmatprep.subr.mxu0 0.0
    %3483 = vmatpush1.msra.mxu0 %v3468
    %3484 = vmatprep.subr.mxu0 0.0
    %3485 = vmatpush1.msra.mxu0 %v3469
    %3486 = vmatprep.subr.mxu0 0.0
    %3487 = vmatpush1.msra.mxu0 %v3470
    %3488 = vmatprep.subr.mxu0 0.0
    %3489 = vmatpush1.msra.mxu0 %v3471
    %3490 = vmatprep.subr.mxu0 0.0
    %3491 = vmatpush1.msra.mxu0 %v3472
    %3492 = vmatprep.subr.mxu0 0.0
    %3493 = vmatpush1.msra.mxu0 0.0
    %3494 = vmatprep.subr.mxu0 0.0
    %3495 = vmatpush1.msra.mxu0 0.0
    %3496 = vmatprep.subr.mxu0 0.0
    %3497 = vmatpush1.msra.mxu0 0.0
    %3498 = vmatprep.subr.mxu0 0.0
    %3499 = vmatpush1.msra.mxu0 0.0
    %3500 = vmatprep.subr.mxu0 0.0
    %3501 = vmatpush1.msra.mxu0 0.0
    %3502 = vmatprep.subr.mxu0 0.0
    %3503 = vmatpush1.msra.mxu0 0.0
    %3504 = vmatprep.subr.mxu0 0.0
    %3505 = vmatpush1.msra.mxu0 0.0
    %3506 = vmatprep.subr.mxu0 0.0
    %3507 = vmatpush1.msra.mxu0 0.0
    %3508 = vmatprep.subr.mxu0 0.0
    %3509 = vmatpush1.msra.mxu0 0.0
    %3510 = vmatprep.subr.mxu0 0.0
    %3511 = vmatpush1.msra.mxu0 0.0
    %3512 = vmatprep.subr.mxu0 0.0
    %3513 = vmatpush1.msra.mxu0 0.0
    %3514 = vmatprep.subr.mxu0 0.0
    %3515 = vmatpush1.msra.mxu0 0.0
    %3516 = vmatprep.subr.mxu0 0.0
    %3517 = vmatpush1.msra.mxu0 0.0
    %3518 = vmatprep.subr.mxu0 0.0
    %3519 = vmatpush1.msra.mxu0 0.0
    %3520 = vmatprep.subr.mxu0 0.0
    %3521 = vmatpush1.msra.mxu0 0.0
    %3522 = vmatprep.subr.mxu0 0.0
    %3523 = vmatpush1.msra.mxu0 0.0
    %3524 = vmatprep.subr.mxu0 0.0
    %3525 = vmatpush1.msra.mxu0 0.0
    %3526 = vmatprep.subr.mxu0 0.0
    %3527 = vmatpush1.msra.mxu0 0.0
    %3528 = vmatprep.subr.mxu0 0.0
    %3529 = vmatpush1.msra.mxu0 0.0
    %3530 = vmatprep.subr.mxu0 0.0
    %3531 = vmatpush1.msra.mxu0 0.0
    %3532 = vmatprep.subr.mxu0 0.0
    %3533 = vmatpush1.msra.mxu0 0.0
    %3534 = vmatprep.subr.mxu0 0.0
    %3535 = vmatpush1.msra.mxu0 0.0
    %3536 = vmatprep.subr.mxu0 0.0
    %3537 = vmatpush1.msra.mxu0 0.0
    %3538 = vmatprep.subr.mxu0 0.0
    %3539 = vmatpush1.msra.mxu0 0.0
    %3540 = vmatprep.mubr.f32.mxu0 0.0
    %3541 = vmatmul.mubr.f32.gmra.mrb[0].mxu0 %v3474
    %v3542 = vpop.f32.mrb[0].mxu0
    %v3543 = vadd.f32 0.0, %v3542
    %v3544 = vpop.f32.mrb[0].mxu0
    %3545 = vdwg.mxu0
    %v3546 = vld [vmem:[%s11] sm:$0xff]
    %v3547 = vld [vmem:[%s11 + $0x8] sm:$0xff]
    %v3548 = vld [vmem:[%s11 + $0x10] sm:$0xff]
    %v3549 = vld [vmem:[%s11 + $0x18] sm:$0xff]
    %3550 = vmatprep.subr.mxu0 0.0
    %3551 = vmatpush1.msra.mxu0 %v3546
    %3552 = vmatprep.subr.mxu0 0.0
    %3553 = vmatpush1.msra.mxu0 %v3547
    %3554 = vmatprep.subr.mxu0 0.0
    %3555 = vmatpush1.msra.mxu0 %v3548
    %3556 = vmatprep.subr.mxu0 0.0
    %3557 = vmatpush1.msra.mxu0 %v3549
    %3558 = vmatprep.subr.mxu0 0.0
    %3559 = vmatpush1.msra.mxu0 0.0
    %3560 = vmatprep.subr.mxu0 0.0
    %3561 = vmatpush1.msra.mxu0 0.0
    %3562 = vmatprep.subr.mxu0 0.0
    %3563 = vmatpush1.msra.mxu0 0.0
    %3564 = vmatprep.subr.mxu0 0.0
    %3565 = vmatpush1.msra.mxu0 0.0
    %3566 = vmatprep.subr.mxu0 0.0
    %3567 = vmatpush1.msra.mxu0 0.0
    %3568 = vmatprep.subr.mxu0 0.0
    %3569 = vmatpush1.msra.mxu0 0.0
    %3570 = vmatprep.subr.mxu0 0.0
    %3571 = vmatpush1.msra.mxu0 0.0
    %3572 = vmatprep.subr.mxu0 0.0
    %3573 = vmatpush1.msra.mxu0 0.0
    %3574 = vmatprep.subr.mxu0 0.0
    %3575 = vmatpush1.msra.mxu0 0.0
    %3576 = vmatprep.subr.mxu0 0.0
    %3577 = vmatpush1.msra.mxu0 0.0
    %3578 = vmatprep.subr.mxu0 0.0
    %3579 = vmatpush1.msra.mxu0 0.0
    %3580 = vmatprep.subr.mxu0 0.0
    %3581 = vmatpush1.msra.mxu0 0.0
    %3582 = vmatprep.subr.mxu0 0.0
    %3583 = vmatpush1.msra.mxu0 0.0
    %3584 = vmatprep.subr.mxu0 0.0
    %3585 = vmatpush1.msra.mxu0 0.0
    %3586 = vmatprep.subr.mxu0 0.0
    %3587 = vmatpush1.msra.mxu0 0.0
    %3588 = vmatprep.subr.mxu0 0.0
    %3589 = vmatpush1.msra.mxu0 0.0
    %3590 = vmatprep.subr.mxu0 0.0
    %3591 = vmatpush1.msra.mxu0 0.0
    %3592 = vmatprep.subr.mxu0 0.0
    %3593 = vmatpush1.msra.mxu0 0.0
    %3594 = vmatprep.subr.mxu0 0.0
    %3595 = vmatpush1.msra.mxu0 0.0
    %3596 = vmatprep.subr.mxu0 0.0
    %3597 = vmatpush1.msra.mxu0 0.0
    %3598 = vmatprep.subr.mxu0 0.0
    %3599 = vmatpush1.msra.mxu0 0.0
    %3600 = vmatprep.subr.mxu0 0.0
    %3601 = vmatpush1.msra.mxu0 0.0
    %3602 = vmatprep.subr.mxu0 0.0
    %3603 = vmatpush1.msra.mxu0 0.0
    %3604 = vmatprep.subr.mxu0 0.0
    %3605 = vmatpush1.msra.mxu0 0.0
    %3606 = vmatprep.subr.mxu0 0.0
    %3607 = vmatpush1.msra.mxu0 0.0
    %3608 = vmatprep.subr.mxu0 0.0
    %3609 = vmatpush1.msra.mxu0 0.0
    %3610 = vmatprep.subr.mxu0 0.0
    %3611 = vmatpush1.msra.mxu0 0.0
    %3612 = vmatprep.subr.mxu0 0.0
    %3613 = vmatpush1.msra.mxu0 0.0
    %3614 = vmatprep.mubr.f32.mxu0 0.0
    %3615 = vmatmul.mubr.f32.gmra.mrb[0].mxu0 %v3120
    %v3616 = vpop.f32.mrb[0].mxu0
    %v3617 = vadd.f32 0.0, %v3616
    %v3618 = vpop.f32.mrb[0].mxu0
    %3619 = vdwg.mxu0
    %v3620 = vld [vmem:[%s12] sm:$0x1]
    %v3621 = vadd.f32 %v3543, %v3617
    %v3622 = vxor.u32 %v3621, 2147483648
    %v3623 = vmul.f32 %v3622, 1.442695
    %v3624 = vpow.pop %v3623
    %v3625 = vadd.f32 %v3624, 1.0
    %v3626 = vrcp.pop %v3625
    %v3627 = vmul.f32 1.0, %v3626
    %v3629 = vlaneseq
    %v3630 = vshrl.u32 %v3629, 7
    %v3631 = vsub.s32 0, %v3630
    %v3632 = vrot.slane %v3620, %v3631
    %3633 = vrot.lane.b32.xlu0 %v3632, 64
    %v3634 = vpop.permute.xlu0 %3633
    %v3636 = vadd.f32 %v3617, %v3634
    %3638 = vrot.lane.b32.xlu0 %v3636, 64
    %v3639 = vpop.permute.xlu0 %3638
    %v3641 = vmul.f32 %v3627, %v3639
    %3643 = vrot.lane.b32.xlu0 %v3641, 64
    %v3644 = vpop.permute.xlu0 %3643
    %v3646 = vadd.f32 %v3543, %v3644
    %v3647 = vtanh.pop %v3646
    %v3648 = vsub.f32 1.0, %v3627
    %3650 = vrot.lane.b32.xlu0 %v3647, 96
    %v3651 = vpop.permute.xlu0 %3650
    %v3653 = vmul.f32 %v3648, %v3651
    %v3654 = vmul.f32 %v3627, %v3116
    %v3655 = vadd.f32 %v3653, %v3654
    %3657 = vrot.lane.b32.xlu0 %v3655, 96
    %v3658 = vpop.permute.xlu0 %3657
    %v3659 = vsel %vm237, %v3658, 0
    %3661 = vmatprep.subr.mxu0 0.0
    %3662 = vmatpush1.xpose.msra.mxu0 %v2304
    %3663 = vmatprep.subr.mxu0 0.0
    %3664 = vmatpush1.xpose.msra.mxu0 0.0
    %3665 = vmatprep.subr.mxu0 0.0
    %3666 = vmatpush1.xpose.msra.mxu0 0.0
    %3667 = vmatprep.subr.mxu0 0.0
    %3668 = vmatpush1.xpose.msra.mxu0 0.0
    %3669 = vmatprep.subr.mxu0 0.0
    %3670 = vmatpush1.xpose.msra.mxu0 0.0
    %3671 = vmatprep.subr.mxu0 0.0
    %3672 = vmatpush1.xpose.msra.mxu0 0.0
    %3673 = vmatprep.subr.mxu0 0.0
    %3674 = vmatpush1.xpose.msra.mxu0 0.0
    %3675 = vmatprep.subr.mxu0 0.0
    %3676 = vmatpush1.xpose.msra.mxu0 0.0
    %3677 = vmatprep.subr.mxu0 0.0
    %3678 = vmatpush1.xpose.msra.mxu0 0.0
    %3679 = vmatprep.subr.mxu0 0.0
    %3680 = vmatpush1.xpose.msra.mxu0 0.0
    %3681 = vmatprep.subr.mxu0 0.0
    %3682 = vmatpush1.xpose.msra.mxu0 0.0
    %3683 = vmatprep.subr.mxu0 0.0
    %3684 = vmatpush1.xpose.msra.mxu0 0.0
    %3685 = vmatprep.subr.mxu0 0.0
    %3686 = vmatpush1.xpose.msra.mxu0 0.0
    %3687 = vmatprep.subr.mxu0 0.0
    %3688 = vmatpush1.xpose.msra.mxu0 0.0
    %3689 = vmatprep.subr.mxu0 0.0
    %3690 = vmatpush1.xpose.msra.mxu0 0.0
    %3691 = vmatprep.subr.mxu0 0.0
    %3692 = vmatpush1.xpose.msra.mxu0 0.0
    %3693 = vmatprep.subr.mxu0 0.0
    %3694 = vmatpush1.xpose.msra.mxu0 0.0
    %3695 = vmatprep.subr.mxu0 0.0
    %3696 = vmatpush1.xpose.msra.mxu0 0.0
    %3697 = vmatprep.subr.mxu0 0.0
    %3698 = vmatpush1.xpose.msra.mxu0 0.0
    %3699 = vmatprep.subr.mxu0 0.0
    %3700 = vmatpush1.xpose.msra.mxu0 0.0
    %3701 = vmatprep.subr.mxu0 0.0
    %3702 = vmatpush1.xpose.msra.mxu0 0.0
    %3703 = vmatprep.subr.mxu0 0.0
    %3704 = vmatpush1.xpose.msra.mxu0 0.0
    %3705 = vmatprep.subr.mxu0 0.0
    %3706 = vmatpush1.xpose.msra.mxu0 0.0
    %3707 = vmatprep.subr.mxu0 0.0
    %3708 = vmatpush1.xpose.msra.mxu0 0.0
    %3709 = vmatprep.subr.mxu0 0.0
    %3710 = vmatpush1.xpose.msra.mxu0 0.0
    %3711 = vmatprep.subr.mxu0 0.0
    %3712 = vmatpush1.xpose.msra.mxu0 0.0
    %3713 = vmatprep.subr.mxu0 0.0
    %3714 = vmatpush1.xpose.msra.mxu0 0.0
    %3715 = vmatprep.subr.mxu0 0.0
    %3716 = vmatpush1.xpose.msra.mxu0 0.0
    %3717 = vmatprep.subr.mxu0 0.0
    %3718 = vmatpush1.xpose.msra.mxu0 0.0
    %3719 = vmatprep.subr.mxu0 0.0
    %3720 = vmatpush1.xpose.msra.mxu0 0.0
    %3721 = vmatprep.subr.mxu0 0.0
    %3722 = vmatpush1.xpose.msra.mxu0 0.0
    %3723 = vmatprep.subr.mxu0 0.0
    %3724 = vmatpush1.xpose.msra.mxu0 0.0
    %3725 = vmatprep.mubr.f32.mxu0 0.0
    %3726 = vmatmul.mubr.f32.gmra.mrb[0].mxu0 %v3659
    %v3727 = vpop.f32.mrb[0].mxu0
    %v3728 = vadd.f32 0.0, %v3727
    %v3729 = vpop.f32.mrb[0].mxu0
    %3730 = vdwg.mxu0
    %v3731 = vsel %vm2650, %v3728, -inf
    %3732 = vmax.xlane.f32.xlu0 %v3731
    %v3733 = vpop.xlane.xlu0 %3732
    %v3734 = vsub.f32 %v3728, %v3733
    %v3735 = vmul.f32 %v3734, 1.442695
    %v3736 = vpow.pop %v3735
    %v3737 = vsel %vm2650, %v3736, 0.0
    %3738 = vadd.xlane.f32.xlu0 %v3737
    %v3739 = vpop.xlane.xlu0 %3738
    %v3740 = vrcp.pop %v3739
    %v3741 = vmul.f32 %v3736, %v3740
    %v3742 = vld [vmem:[#allocation18] sm:$0xff]
    %v3743 = vld [vmem:[#allocation18 + $0x8] sm:$0xff]
    %v3744 = vld [vmem:[#allocation18 + $0x10] sm:$0xff]
    %v3745 = vld [vmem:[#allocation18 + $0x18] sm:$0xff]
    %v3747 = vsel %vm2666, %v3741, 0
    %3749 = vmatprep.subr.mxu0 0.0
    %3750 = vmatpush1.msra.mxu0 %v2373
    %3751 = vmatprep.subr.mxu0 0.0
    %3752 = vmatpush1.msra.mxu0 0.0
    %3753 = vmatprep.subr.mxu0 0.0
    %3754 = vmatpush1.msra.mxu0 0.0
    %3755 = vmatprep.subr.mxu0 0.0
    %3756 = vmatpush1.msra.mxu0 0.0
    %3757 = vmatprep.subr.mxu0 0.0
    %3758 = vmatpush1.msra.mxu0 0.0
    %3759 = vmatprep.subr.mxu0 0.0
    %3760 = vmatpush1.msra.mxu0 0.0
    %3761 = vmatprep.subr.mxu0 0.0
    %3762 = vmatpush1.msra.mxu0 0.0
    %3763 = vmatprep.subr.mxu0 0.0
    %3764 = vmatpush1.msra.mxu0 0.0
    %3765 = vmatprep.subr.mxu0 0.0
    %3766 = vmatpush1.msra.mxu0 0.0
    %3767 = vmatprep.subr.mxu0 0.0
    %3768 = vmatpush1.msra.mxu0 0.0
    %3769 = vmatprep.subr.mxu0 0.0
    %3770 = vmatpush1.msra.mxu0 0.0
    %3771 = vmatprep.subr.mxu0 0.0
    %3772 = vmatpush1.msra.mxu0 0.0
    %3773 = vmatprep.subr.mxu0 0.0
    %3774 = vmatpush1.msra.mxu0 0.0
    %3775 = vmatprep.subr.mxu0 0.0
    %3776 = vmatpush1.msra.mxu0 0.0
    %3777 = vmatprep.subr.mxu0 0.0
    %3778 = vmatpush1.msra.mxu0 0.0
    %3779 = vmatprep.subr.mxu0 0.0
    %3780 = vmatpush1.msra.mxu0 0.0
    %3781 = vmatprep.subr.mxu0 0.0
    %3782 = vmatpush1.msra.mxu0 0.0
    %3783 = vmatprep.subr.mxu0 0.0
    %3784 = vmatpush1.msra.mxu0 0.0
    %3785 = vmatprep.subr.mxu0 0.0
    %3786 = vmatpush1.msra.mxu0 0.0
    %3787 = vmatprep.subr.mxu0 0.0
    %3788 = vmatpush1.msra.mxu0 0.0
    %3789 = vmatprep.subr.mxu0 0.0
    %3790 = vmatpush1.msra.mxu0 0.0
    %3791 = vmatprep.subr.mxu0 0.0
    %3792 = vmatpush1.msra.mxu0 0.0
    %3793 = vmatprep.subr.mxu0 0.0
    %3794 = vmatpush1.msra.mxu0 0.0
    %3795 = vmatprep.subr.mxu0 0.0
    %3796 = vmatpush1.msra.mxu0 0.0
    %3797 = vmatprep.subr.mxu0 0.0
    %3798 = vmatpush1.msra.mxu0 0.0
    %3799 = vmatprep.subr.mxu0 0.0
    %3800 = vmatpush1.msra.mxu0 0.0
    %3801 = vmatprep.subr.mxu0 0.0
    %3802 = vmatpush1.msra.mxu0 0.0
    %3803 = vmatprep.subr.mxu0 0.0
    %3804 = vmatpush1.msra.mxu0 0.0
    %3805 = vmatprep.subr.mxu0 0.0
    %3806 = vmatpush1.msra.mxu0 0.0
    %3807 = vmatprep.subr.mxu0 0.0
    %3808 = vmatpush1.msra.mxu0 0.0
    %3809 = vmatprep.subr.mxu0 0.0
    %3810 = vmatpush1.msra.mxu0 0.0
    %3811 = vmatprep.subr.mxu0 0.0
    %3812 = vmatpush1.msra.mxu0 0.0
    %3813 = vmatprep.mubr.f32.mxu0 0.0
    %3814 = vmatmul.mubr.f32.gmra.mrb[0].mxu0 %v3747
    %v3815 = vpop.f32.mrb[0].mxu0
    %v3816 = vadd.f32 0.0, %v3815
    %v3817 = vpop.f32.mrb[0].mxu0
    %3818 = vdwg.mxu0
    %3819 = vmatprep.subr.mxu0 0.0
    %3820 = vmatpush1.msra.mxu0 %v3742
    %3821 = vmatprep.subr.mxu0 0.0
    %3822 = vmatpush1.msra.mxu0 %v3743
    %3823 = vmatprep.subr.mxu0 0.0
    %3824 = vmatpush1.msra.mxu0 %v3744
    %3825 = vmatprep.subr.mxu0 0.0
    %3826 = vmatpush1.msra.mxu0 %v3745
    %3827 = vmatprep.subr.mxu0 0.0
    %3828 = vmatpush1.msra.mxu0 0.0
    %3829 = vmatprep.subr.mxu0 0.0
    %3830 = vmatpush1.msra.mxu0 0.0
    %3831 = vmatprep.subr.mxu0 0.0
    %3832 = vmatpush1.msra.mxu0 0.0
    %3833 = vmatprep.subr.mxu0 0.0
    %3834 = vmatpush1.msra.mxu0 0.0
    %3835 = vmatprep.subr.mxu0 0.0
    %3836 = vmatpush1.msra.mxu0 0.0
    %3837 = vmatprep.subr.mxu0 0.0
    %3838 = vmatpush1.msra.mxu0 0.0
    %3839 = vmatprep.subr.mxu0 0.0
    %3840 = vmatpush1.msra.mxu0 0.0
    %3841 = vmatprep.subr.mxu0 0.0
    %3842 = vmatpush1.msra.mxu0 0.0
    %3843 = vmatprep.subr.mxu0 0.0
    %3844 = vmatpush1.msra.mxu0 0.0
    %3845 = vmatprep.subr.mxu0 0.0
    %3846 = vmatpush1.msra.mxu0 0.0
    %3847 = vmatprep.subr.mxu0 0.0
    %3848 = vmatpush1.msra.mxu0 0.0
    %3849 = vmatprep.subr.mxu0 0.0
    %3850 = vmatpush1.msra.mxu0 0.0
    %3851 = vmatprep.subr.mxu0 0.0
    %3852 = vmatpush1.msra.mxu0 0.0
    %3853 = vmatprep.subr.mxu0 0.0
    %3854 = vmatpush1.msra.mxu0 0.0
    %3855 = vmatprep.subr.mxu0 0.0
    %3856 = vmatpush1.msra.mxu0 0.0
    %3857 = vmatprep.subr.mxu0 0.0
    %3858 = vmatpush1.msra.mxu0 0.0
    %3859 = vmatprep.subr.mxu0 0.0
    %3860 = vmatpush1.msra.mxu0 0.0
    %3861 = vmatprep.subr.mxu0 0.0
    %3862 = vmatpush1.msra.mxu0 0.0
    %3863 = vmatprep.subr.mxu0 0.0
    %3864 = vmatpush1.msra.mxu0 0.0
    %3865 = vmatprep.subr.mxu0 0.0
    %3866 = vmatpush1.msra.mxu0 0.0
    %3867 = vmatprep.subr.mxu0 0.0
    %3868 = vmatpush1.msra.mxu0 0.0
    %3869 = vmatprep.subr.mxu0 0.0
    %3870 = vmatpush1.msra.mxu0 0.0
    %3871 = vmatprep.subr.mxu0 0.0
    %3872 = vmatpush1.msra.mxu0 0.0
    %3873 = vmatprep.subr.mxu0 0.0
    %3874 = vmatpush1.msra.mxu0 0.0
    %3875 = vmatprep.subr.mxu0 0.0
    %3876 = vmatpush1.msra.mxu0 0.0
    %3877 = vmatprep.subr.mxu0 0.0
    %3878 = vmatpush1.msra.mxu0 0.0
    %3879 = vmatprep.subr.mxu0 0.0
    %3880 = vmatpush1.msra.mxu0 0.0
    %3881 = vmatprep.subr.mxu0 0.0
    %3882 = vmatpush1.msra.mxu0 0.0
    %3883 = vmatprep.mubr.f32.mxu0 0.0
    %3884 = vmatmul.mubr.f32.gmra.mrb[0].mxu0 %v3659
    %v3885 = vpop.f32.mrb[0].mxu0
    %v3886 = vadd.f32 %v3816, %v3885
    %v3887 = vpop.f32.mrb[0].mxu0
    %3888 = vdwg.mxu0
    %v3889 = vld [vmem:[%s15] sm:$0x1]
    %v3890 = vadd.f32 %v3886, %v3889
    %v3891 = vtanh.pop %v3890
    %v3892 = vld [vmem:[#allocation21] sm:$0xff]
    %v3893 = vld [vmem:[#allocation21 + $0x8] sm:$0xff]
    %v3894 = vld [vmem:[#allocation21 + $0x10] sm:$0xff]
    %v3895 = vld [vmem:[#allocation21 + $0x18] sm:$0xff]
    %v3896 = vld [vmem:[%s17] sm:$0x1]
    %v3898 = vsel %vm237, %v3891, 0
    %3900 = vmatprep.subr.mxu0 0.0
    %3901 = vmatpush1.msra.mxu0 %v3892
    %3902 = vmatprep.subr.mxu0 0.0
    %3903 = vmatpush1.msra.mxu0 %v3893
    %3904 = vmatprep.subr.mxu0 0.0
    %3905 = vmatpush1.msra.mxu0 %v3894
    %3906 = vmatprep.subr.mxu0 0.0
    %3907 = vmatpush1.msra.mxu0 %v3895
    %3908 = vmatprep.subr.mxu0 0.0
    %3909 = vmatpush1.msra.mxu0 0.0
    %3910 = vmatprep.subr.mxu0 0.0
    %3911 = vmatpush1.msra.mxu0 0.0
    %3912 = vmatprep.subr.mxu0 0.0
    %3913 = vmatpush1.msra.mxu0 0.0
    %3914 = vmatprep.subr.mxu0 0.0
    %3915 = vmatpush1.msra.mxu0 0.0
    %3916 = vmatprep.subr.mxu0 0.0
    %3917 = vmatpush1.msra.mxu0 0.0
    %3918 = vmatprep.subr.mxu0 0.0
    %3919 = vmatpush1.msra.mxu0 0.0
    %3920 = vmatprep.subr.mxu0 0.0
    %3921 = vmatpush1.msra.mxu0 0.0
    %3922 = vmatprep.subr.mxu0 0.0
    %3923 = vmatpush1.msra.mxu0 0.0
    %3924 = vmatprep.subr.mxu0 0.0
    %3925 = vmatpush1.msra.mxu0 0.0
    %3926 = vmatprep.subr.mxu0 0.0
    %3927 = vmatpush1.msra.mxu0 0.0
    %3928 = vmatprep.subr.mxu0 0.0
    %3929 = vmatpush1.msra.mxu0 0.0
    %3930 = vmatprep.subr.mxu0 0.0
    %3931 = vmatpush1.msra.mxu0 0.0
    %3932 = vmatprep.subr.mxu0 0.0
    %3933 = vmatpush1.msra.mxu0 0.0
    %3934 = vmatprep.subr.mxu0 0.0
    %3935 = vmatpush1.msra.mxu0 0.0
    %3936 = vmatprep.subr.mxu0 0.0
    %3937 = vmatpush1.msra.mxu0 0.0
    %3938 = vmatprep.subr.mxu0 0.0
    %3939 = vmatpush1.msra.mxu0 0.0
    %3940 = vmatprep.subr.mxu0 0.0
    %3941 = vmatpush1.msra.mxu0 0.0
    %3942 = vmatprep.subr.mxu0 0.0
    %3943 = vmatpush1.msra.mxu0 0.0
    %3944 = vmatprep.subr.mxu0 0.0
    %3945 = vmatpush1.msra.mxu0 0.0
    %3946 = vmatprep.subr.mxu0 0.0
    %3947 = vmatpush1.msra.mxu0 0.0
    %3948 = vmatprep.subr.mxu0 0.0
    %3949 = vmatpush1.msra.mxu0 0.0
    %3950 = vmatprep.subr.mxu0 0.0
    %3951 = vmatpush1.msra.mxu0 0.0
    %3952 = vmatprep.subr.mxu0 0.0
    %3953 = vmatpush1.msra.mxu0 0.0
    %3954 = vmatprep.subr.mxu0 0.0
    %3955 = vmatpush1.msra.mxu0 0.0
    %3956 = vmatprep.subr.mxu0 0.0
    %3957 = vmatpush1.msra.mxu0 0.0
    %3958 = vmatprep.subr.mxu0 0.0
    %3959 = vmatpush1.msra.mxu0 0.0
    %3960 = vmatprep.subr.mxu0 0.0
    %3961 = vmatpush1.msra.mxu0 0.0
    %3962 = vmatprep.subr.mxu0 0.0
    %3963 = vmatpush1.msra.mxu0 0.0
    %3964 = vmatprep.mubr.f32.mxu0 0.0
    %3965 = vmatmul.mubr.f32.gmra.mrb[0].mxu0 %v3898
    %v3966 = vpop.f32.mrb[0].mxu0
    %v3967 = vadd.f32 %v3896, %v3966
    %v3968 = vpop.f32.mrb[0].mxu0
    %3969 = vdwg.mxu0
    %v3970 = vsel %vm2891, %v3967, -inf
    %3971 = vmax.xlane.f32.xlu0 %v3970
    %v3972 = vpop.xlane.xlu0 %3971
    %v3973 = vsub.f32 %v3967, %v3972
    %v3974 = vmul.f32 %v3973, 1.442695
    %v3975 = vpow.pop %v3974
    %v3976 = vsel %vm2891, %v3975, 0.0
    %3977 = vadd.xlane.f32.xlu0 %v3976
    %v3978 = vpop.xlane.xlu0 %3977
    %v3979 = vrcp.pop %v3978
    %v3980 = vmul.f32 1.0, %v3979
    %vm3981 = vcmp.eq.f32.partialorder %v3967, %v3972
    %v3982 = vsel %vm3981, %v2377, 64
    %v3983 = vsel %vm2891, %v3982, 2147483647
    %v3984 = vand.u32 %v3983, 65535
    %v3985 = vshra.s32 %v3983, 16
    %v3986 = vcvt.s32.f32 %v3984
    %v3987 = vcvt.s32.f32 %v3985
    %3988 = vmin.xlane.f32.xlu0 %v3987
    %v3989 = vpop.xlane.xlu0 %3988
    %vm3990 = vcmp.eq.f32.partialorder %v3987, %v3989
    %v3991 = vsel %vm3990, %v3986, inf
    %3992 = vmin.xlane.f32.xlu0 %v3991
    %v3993 = vpop.xlane.xlu0 %3992
    %v3994 = vcvt.f32.s32 %v3993
    %v3995 = vcvt.f32.s32 %v3989
    %v3996 = vshll.u32 %v3995, 16
    %v3997 = vadd.s32 %v3996, %v3994
    %vm3998 = vcmask 16400
    %3999 = vst.msk [vmem:[#allocation22] sm:$0x1] %vm3998, %v3997
    %4000 = vst.msk [vmem:[#allocation23] sm:$0x1] %vm3998, %v3980
    %vm4001 = vcmp.eq.s32.totalorder %v2377, %v3997
    %v4002 = vsel %vm4001, 1, 0
    %v4003 = vcvt.s32.f32 %v4002
    %v4004 = vld [vmem:[%s10] sm:$0xff]
    %v4005 = vld [vmem:[%s10 + $0x8] sm:$0xff]
    %v4006 = vld [vmem:[%s10 + $0x10] sm:$0xff]
    %v4007 = vld [vmem:[%s10 + $0x18] sm:$0xff]
    %v4008 = vld [vmem:[%s10 + $0x20] sm:$0xff]
    %v4009 = vld [vmem:[%s10 + $0x28] sm:$0xff]
    %v4010 = vld [vmem:[%s10 + $0x30] sm:$0xff]
    %v4011 = vld [vmem:[%s10 + $0x38] sm:$0xff]
    %v4013 = vsel %vm2389, %v4003, 0
    %4015 = vmatprep.subr.mxu0 0.0
    %4016 = vmatpush1.msra.mxu0 %v4004
    %4017 = vmatprep.subr.mxu0 0.0
    %4018 = vmatpush1.msra.mxu0 %v4005
    %4019 = vmatprep.subr.mxu0 0.0
    %4020 = vmatpush1.msra.mxu0 %v4006
    %4021 = vmatprep.subr.mxu0 0.0
    %4022 = vmatpush1.msra.mxu0 %v4007
    %4023 = vmatprep.subr.mxu0 0.0
    %4024 = vmatpush1.msra.mxu0 %v4008
    %4025 = vmatprep.subr.mxu0 0.0
    %4026 = vmatpush1.msra.mxu0 %v4009
    %4027 = vmatprep.subr.mxu0 0.0
    %4028 = vmatpush1.msra.mxu0 %v4010
    %4029 = vmatprep.subr.mxu0 0.0
    %4030 = vmatpush1.msra.mxu0 %v4011
    %4031 = vmatprep.subr.mxu0 0.0
    %4032 = vmatpush1.msra.mxu0 0.0
    %4033 = vmatprep.subr.mxu0 0.0
    %4034 = vmatpush1.msra.mxu0 0.0
    %4035 = vmatprep.subr.mxu0 0.0
    %4036 = vmatpush1.msra.mxu0 0.0
    %4037 = vmatprep.subr.mxu0 0.0
    %4038 = vmatpush1.msra.mxu0 0.0
    %4039 = vmatprep.subr.mxu0 0.0
    %4040 = vmatpush1.msra.mxu0 0.0
    %4041 = vmatprep.subr.mxu0 0.0
    %4042 = vmatpush1.msra.mxu0 0.0
    %4043 = vmatprep.subr.mxu0 0.0
    %4044 = vmatpush1.msra.mxu0 0.0
    %4045 = vmatprep.subr.mxu0 0.0
    %4046 = vmatpush1.msra.mxu0 0.0
    %4047 = vmatprep.subr.mxu0 0.0
    %4048 = vmatpush1.msra.mxu0 0.0
    %4049 = vmatprep.subr.mxu0 0.0
    %4050 = vmatpush1.msra.mxu0 0.0
    %4051 = vmatprep.subr.mxu0 0.0
    %4052 = vmatpush1.msra.mxu0 0.0
    %4053 = vmatprep.subr.mxu0 0.0
    %4054 = vmatpush1.msra.mxu0 0.0
    %4055 = vmatprep.subr.mxu0 0.0
    %4056 = vmatpush1.msra.mxu0 0.0
    %4057 = vmatprep.subr.mxu0 0.0
    %4058 = vmatpush1.msra.mxu0 0.0
    %4059 = vmatprep.subr.mxu0 0.0
    %4060 = vmatpush1.msra.mxu0 0.0
    %4061 = vmatprep.subr.mxu0 0.0
    %4062 = vmatpush1.msra.mxu0 0.0
    %4063 = vmatprep.subr.mxu0 0.0
    %4064 = vmatpush1.msra.mxu0 0.0
    %4065 = vmatprep.subr.mxu0 0.0
    %4066 = vmatpush1.msra.mxu0 0.0
    %4067 = vmatprep.subr.mxu0 0.0
    %4068 = vmatpush1.msra.mxu0 0.0
    %4069 = vmatprep.subr.mxu0 0.0
    %4070 = vmatpush1.msra.mxu0 0.0
    %4071 = vmatprep.subr.mxu0 0.0
    %4072 = vmatpush1.msra.mxu0 0.0
    %4073 = vmatprep.subr.mxu0 0.0
    %4074 = vmatpush1.msra.mxu0 0.0
    %4075 = vmatprep.subr.mxu0 0.0
    %4076 = vmatpush1.msra.mxu0 0.0
    %4077 = vmatprep.subr.mxu0 0.0
    %4078 = vmatpush1.msra.mxu0 0.0
    %4079 = vmatprep.mubr.f32.mxu0 0.0
    %4080 = vmatmul.mubr.f32.gmra.mrb[0].mxu0 %v4013
    %v4081 = vpop.f32.mrb[0].mxu0
    %v4082 = vadd.f32 0.0, %v4081
    %v4083 = vpop.f32.mrb[0].mxu0
    %4084 = vdwg.mxu0
    %v4085 = vld [vmem:[%s11] sm:$0xff]
    %v4086 = vld [vmem:[%s11 + $0x8] sm:$0xff]
    %v4087 = vld [vmem:[%s11 + $0x10] sm:$0xff]
    %v4088 = vld [vmem:[%s11 + $0x18] sm:$0xff]
    %4089 = vmatprep.subr.mxu0 0.0
    %4090 = vmatpush1.msra.mxu0 %v4085
    %4091 = vmatprep.subr.mxu0 0.0
    %4092 = vmatpush1.msra.mxu0 %v4086
    %4093 = vmatprep.subr.mxu0 0.0
    %4094 = vmatpush1.msra.mxu0 %v4087
    %4095 = vmatprep.subr.mxu0 0.0
    %4096 = vmatpush1.msra.mxu0 %v4088
    %4097 = vmatprep.subr.mxu0 0.0
    %4098 = vmatpush1.msra.mxu0 0.0
    %4099 = vmatprep.subr.mxu0 0.0
    %4100 = vmatpush1.msra.mxu0 0.0
    %4101 = vmatprep.subr.mxu0 0.0
    %4102 = vmatpush1.msra.mxu0 0.0
    %4103 = vmatprep.subr.mxu0 0.0
    %4104 = vmatpush1.msra.mxu0 0.0
    %4105 = vmatprep.subr.mxu0 0.0
    %4106 = vmatpush1.msra.mxu0 0.0
    %4107 = vmatprep.subr.mxu0 0.0
    %4108 = vmatpush1.msra.mxu0 0.0
    %4109 = vmatprep.subr.mxu0 0.0
    %4110 = vmatpush1.msra.mxu0 0.0
    %4111 = vmatprep.subr.mxu0 0.0
    %4112 = vmatpush1.msra.mxu0 0.0
    %4113 = vmatprep.subr.mxu0 0.0
    %4114 = vmatpush1.msra.mxu0 0.0
    %4115 = vmatprep.subr.mxu0 0.0
    %4116 = vmatpush1.msra.mxu0 0.0
    %4117 = vmatprep.subr.mxu0 0.0
    %4118 = vmatpush1.msra.mxu0 0.0
    %4119 = vmatprep.subr.mxu0 0.0
    %4120 = vmatpush1.msra.mxu0 0.0
    %4121 = vmatprep.subr.mxu0 0.0
    %4122 = vmatpush1.msra.mxu0 0.0
    %4123 = vmatprep.subr.mxu0 0.0
    %4124 = vmatpush1.msra.mxu0 0.0
    %4125 = vmatprep.subr.mxu0 0.0
    %4126 = vmatpush1.msra.mxu0 0.0
    %4127 = vmatprep.subr.mxu0 0.0
    %4128 = vmatpush1.msra.mxu0 0.0
    %4129 = vmatprep.subr.mxu0 0.0
    %4130 = vmatpush1.msra.mxu0 0.0
    %4131 = vmatprep.subr.mxu0 0.0
    %4132 = vmatpush1.msra.mxu0 0.0
    %4133 = vmatprep.subr.mxu0 0.0
    %4134 = vmatpush1.msra.mxu0 0.0
    %4135 = vmatprep.subr.mxu0 0.0
    %4136 = vmatpush1.msra.mxu0 0.0
    %4137 = vmatprep.subr.mxu0 0.0
    %4138 = vmatpush1.msra.mxu0 0.0
    %4139 = vmatprep.subr.mxu0 0.0
    %4140 = vmatpush1.msra.mxu0 0.0
    %4141 = vmatprep.subr.mxu0 0.0
    %4142 = vmatpush1.msra.mxu0 0.0
    %4143 = vmatprep.subr.mxu0 0.0
    %4144 = vmatpush1.msra.mxu0 0.0
    %4145 = vmatprep.subr.mxu0 0.0
    %4146 = vmatpush1.msra.mxu0 0.0
    %4147 = vmatprep.subr.mxu0 0.0
    %4148 = vmatpush1.msra.mxu0 0.0
    %4149 = vmatprep.subr.mxu0 0.0
    %4150 = vmatpush1.msra.mxu0 0.0
    %4151 = vmatprep.subr.mxu0 0.0
    %4152 = vmatpush1.msra.mxu0 0.0
    %4153 = vmatprep.mubr.f32.mxu0 0.0
    %4154 = vmatmul.mubr.f32.gmra.mrb[0].mxu0 %v3659
    %v4155 = vpop.f32.mrb[0].mxu0
    %v4156 = vadd.f32 0.0, %v4155
    %v4157 = vpop.f32.mrb[0].mxu0
    %4158 = vdwg.mxu0
    %v4159 = vld [vmem:[%s12] sm:$0x1]
    %v4160 = vadd.f32 %v4082, %v4156
    %v4161 = vxor.u32 %v4160, 2147483648
    %v4162 = vmul.f32 %v4161, 1.442695
    %v4163 = vpow.pop %v4162
    %v4164 = vadd.f32 %v4163, 1.0
    %v4165 = vrcp.pop %v4164
    %v4166 = vmul.f32 1.0, %v4165
    %v4168 = vlaneseq
    %v4169 = vshrl.u32 %v4168, 7
    %v4170 = vsub.s32 0, %v4169
    %v4171 = vrot.slane %v4159, %v4170
    %4172 = vrot.lane.b32.xlu0 %v4171, 64
    %v4173 = vpop.permute.xlu0 %4172
    %v4175 = vadd.f32 %v4156, %v4173
    %4177 = vrot.lane.b32.xlu0 %v4175, 64
    %v4178 = vpop.permute.xlu0 %4177
    %v4180 = vmul.f32 %v4166, %v4178
    %4182 = vrot.lane.b32.xlu0 %v4180, 64
    %v4183 = vpop.permute.xlu0 %4182
    %v4185 = vadd.f32 %v4082, %v4183
    %v4186 = vtanh.pop %v4185
    %v4187 = vsub.f32 1.0, %v4166
    %4189 = vrot.lane.b32.xlu0 %v4186, 96
    %v4190 = vpop.permute.xlu0 %4189
    %v4192 = vmul.f32 %v4187, %v4190
    %v4193 = vmul.f32 %v4166, %v3655
    %v4194 = vadd.f32 %v4192, %v4193
    %4196 = vrot.lane.b32.xlu0 %v4194, 96
    %v4197 = vpop.permute.xlu0 %4196
    %v4198 = vsel %vm237, %v4197, 0
    %4200 = vmatprep.subr.mxu0 0.0
    %4201 = vmatpush1.xpose.msra.mxu0 %v2304
    %4202 = vmatprep.subr.mxu0 0.0
    %4203 = vmatpush1.xpose.msra.mxu0 0.0
    %4204 = vmatprep.subr.mxu0 0.0
    %4205 = vmatpush1.xpose.msra.mxu0 0.0
    %4206 = vmatprep.subr.mxu0 0.0
    %4207 = vmatpush1.xpose.msra.mxu0 0.0
    %4208 = vmatprep.subr.mxu0 0.0
    %4209 = vmatpush1.xpose.msra.mxu0 0.0
    %4210 = vmatprep.subr.mxu0 0.0
    %4211 = vmatpush1.xpose.msra.mxu0 0.0
    %4212 = vmatprep.subr.mxu0 0.0
    %4213 = vmatpush1.xpose.msra.mxu0 0.0
    %4214 = vmatprep.subr.mxu0 0.0
    %4215 = vmatpush1.xpose.msra.mxu0 0.0
    %4216 = vmatprep.subr.mxu0 0.0
    %4217 = vmatpush1.xpose.msra.mxu0 0.0
    %4218 = vmatprep.subr.mxu0 0.0
    %4219 = vmatpush1.xpose.msra.mxu0 0.0
    %4220 = vmatprep.subr.mxu0 0.0
    %4221 = vmatpush1.xpose.msra.mxu0 0.0
    %4222 = vmatprep.subr.mxu0 0.0
    %4223 = vmatpush1.xpose.msra.mxu0 0.0
    %4224 = vmatprep.subr.mxu0 0.0
    %4225 = vmatpush1.xpose.msra.mxu0 0.0
    %4226 = vmatprep.subr.mxu0 0.0
    %4227 = vmatpush1.xpose.msra.mxu0 0.0
    %4228 = vmatprep.subr.mxu0 0.0
    %4229 = vmatpush1.xpose.msra.mxu0 0.0
    %4230 = vmatprep.subr.mxu0 0.0
    %4231 = vmatpush1.xpose.msra.mxu0 0.0
    %4232 = vmatprep.subr.mxu0 0.0
    %4233 = vmatpush1.xpose.msra.mxu0 0.0
    %4234 = vmatprep.subr.mxu0 0.0
    %4235 = vmatpush1.xpose.msra.mxu0 0.0
    %4236 = vmatprep.subr.mxu0 0.0
    %4237 = vmatpush1.xpose.msra.mxu0 0.0
    %4238 = vmatprep.subr.mxu0 0.0
    %4239 = vmatpush1.xpose.msra.mxu0 0.0
    %4240 = vmatprep.subr.mxu0 0.0
    %4241 = vmatpush1.xpose.msra.mxu0 0.0
    %4242 = vmatprep.subr.mxu0 0.0
    %4243 = vmatpush1.xpose.msra.mxu0 0.0
    %4244 = vmatprep.subr.mxu0 0.0
    %4245 = vmatpush1.xpose.msra.mxu0 0.0
    %4246 = vmatprep.subr.mxu0 0.0
    %4247 = vmatpush1.xpose.msra.mxu0 0.0
    %4248 = vmatprep.subr.mxu0 0.0
    %4249 = vmatpush1.xpose.msra.mxu0 0.0
    %4250 = vmatprep.subr.mxu0 0.0
    %4251 = vmatpush1.xpose.msra.mxu0 0.0
    %4252 = vmatprep.subr.mxu0 0.0
    %4253 = vmatpush1.xpose.msra.mxu0 0.0
    %4254 = vmatprep.subr.mxu0 0.0
    %4255 = vmatpush1.xpose.msra.mxu0 0.0
    %4256 = vmatprep.subr.mxu0 0.0
    %4257 = vmatpush1.xpose.msra.mxu0 0.0
    %4258 = vmatprep.subr.mxu0 0.0
    %4259 = vmatpush1.xpose.msra.mxu0 0.0
    %4260 = vmatprep.subr.mxu0 0.0
    %4261 = vmatpush1.xpose.msra.mxu0 0.0
    %4262 = vmatprep.subr.mxu0 0.0
    %4263 = vmatpush1.xpose.msra.mxu0 0.0
    %4264 = vmatprep.mubr.f32.mxu0 0.0
    %4265 = vmatmul.mubr.f32.gmra.mrb[0].mxu0 %v4198
    %v4266 = vpop.f32.mrb[0].mxu0
    %v4267 = vadd.f32 0.0, %v4266
    %v4268 = vpop.f32.mrb[0].mxu0
    %4269 = vdwg.mxu0
    %v4270 = vsel %vm2650, %v4267, -inf
    %4271 = vmax.xlane.f32.xlu0 %v4270
    %v4272 = vpop.xlane.xlu0 %4271
    %v4273 = vsub.f32 %v4267, %v4272
    %v4274 = vmul.f32 %v4273, 1.442695
    %v4275 = vpow.pop %v4274
    %v4276 = vsel %vm2650, %v4275, 0.0
    %4277 = vadd.xlane.f32.xlu0 %v4276
    %v4278 = vpop.xlane.xlu0 %4277
    %v4279 = vrcp.pop %v4278
    %v4280 = vmul.f32 %v4275, %v4279
    %v4281 = vld [vmem:[#allocation18] sm:$0xff]
    %v4282 = vld [vmem:[#allocation18 + $0x8] sm:$0xff]
    %v4283 = vld [vmem:[#allocation18 + $0x10] sm:$0xff]
    %v4284 = vld [vmem:[#allocation18 + $0x18] sm:$0xff]
    %v4286 = vsel %vm2666, %v4280, 0
    %4288 = vmatprep.subr.mxu0 0.0
    %4289 = vmatpush1.msra.mxu0 %v2373
    %4290 = vmatprep.subr.mxu0 0.0
    %4291 = vmatpush1.msra.mxu0 0.0
    %4292 = vmatprep.subr.mxu0 0.0
    %4293 = vmatpush1.msra.mxu0 0.0
    %4294 = vmatprep.subr.mxu0 0.0
    %4295 = vmatpush1.msra.mxu0 0.0
    %4296 = vmatprep.subr.mxu0 0.0
    %4297 = vmatpush1.msra.mxu0 0.0
    %4298 = vmatprep.subr.mxu0 0.0
    %4299 = vmatpush1.msra.mxu0 0.0
    %4300 = vmatprep.subr.mxu0 0.0
    %4301 = vmatpush1.msra.mxu0 0.0
    %4302 = vmatprep.subr.mxu0 0.0
    %4303 = vmatpush1.msra.mxu0 0.0
    %4304 = vmatprep.subr.mxu0 0.0
    %4305 = vmatpush1.msra.mxu0 0.0
    %4306 = vmatprep.subr.mxu0 0.0
    %4307 = vmatpush1.msra.mxu0 0.0
    %4308 = vmatprep.subr.mxu0 0.0
    %4309 = vmatpush1.msra.mxu0 0.0
    %4310 = vmatprep.subr.mxu0 0.0
    %4311 = vmatpush1.msra.mxu0 0.0
    %4312 = vmatprep.subr.mxu0 0.0
    %4313 = vmatpush1.msra.mxu0 0.0
    %4314 = vmatprep.subr.mxu0 0.0
    %4315 = vmatpush1.msra.mxu0 0.0
    %4316 = vmatprep.subr.mxu0 0.0
    %4317 = vmatpush1.msra.mxu0 0.0
    %4318 = vmatprep.subr.mxu0 0.0
    %4319 = vmatpush1.msra.mxu0 0.0
    %4320 = vmatprep.subr.mxu0 0.0
    %4321 = vmatpush1.msra.mxu0 0.0
    %4322 = vmatprep.subr.mxu0 0.0
    %4323 = vmatpush1.msra.mxu0 0.0
    %4324 = vmatprep.subr.mxu0 0.0
    %4325 = vmatpush1.msra.mxu0 0.0
    %4326 = vmatprep.subr.mxu0 0.0
    %4327 = vmatpush1.msra.mxu0 0.0
    %4328 = vmatprep.subr.mxu0 0.0
    %4329 = vmatpush1.msra.mxu0 0.0
    %4330 = vmatprep.subr.mxu0 0.0
    %4331 = vmatpush1.msra.mxu0 0.0
    %4332 = vmatprep.subr.mxu0 0.0
    %4333 = vmatpush1.msra.mxu0 0.0
    %4334 = vmatprep.subr.mxu0 0.0
    %4335 = vmatpush1.msra.mxu0 0.0
    %4336 = vmatprep.subr.mxu0 0.0
    %4337 = vmatpush1.msra.mxu0 0.0
    %4338 = vmatprep.subr.mxu0 0.0
    %4339 = vmatpush1.msra.mxu0 0.0
    %4340 = vmatprep.subr.mxu0 0.0
    %4341 = vmatpush1.msra.mxu0 0.0
    %4342 = vmatprep.subr.mxu0 0.0
    %4343 = vmatpush1.msra.mxu0 0.0
    %4344 = vmatprep.subr.mxu0 0.0
    %4345 = vmatpush1.msra.mxu0 0.0
    %4346 = vmatprep.subr.mxu0 0.0
    %4347 = vmatpush1.msra.mxu0 0.0
    %4348 = vmatprep.subr.mxu0 0.0
    %4349 = vmatpush1.msra.mxu0 0.0
    %4350 = vmatprep.subr.mxu0 0.0
    %4351 = vmatpush1.msra.mxu0 0.0
    %4352 = vmatprep.mubr.f32.mxu0 0.0
    %4353 = vmatmul.mubr.f32.gmra.mrb[0].mxu0 %v4286
    %v4354 = vpop.f32.mrb[0].mxu0
    %v4355 = vadd.f32 0.0, %v4354
    %v4356 = vpop.f32.mrb[0].mxu0
    %4357 = vdwg.mxu0
    %4358 = vmatprep.subr.mxu0 0.0
    %4359 = vmatpush1.msra.mxu0 %v4281
    %4360 = vmatprep.subr.mxu0 0.0
    %4361 = vmatpush1.msra.mxu0 %v4282
    %4362 = vmatprep.subr.mxu0 0.0
    %4363 = vmatpush1.msra.mxu0 %v4283
    %4364 = vmatprep.subr.mxu0 0.0
    %4365 = vmatpush1.msra.mxu0 %v4284
    %4366 = vmatprep.subr.mxu0 0.0
    %4367 = vmatpush1.msra.mxu0 0.0
    %4368 = vmatprep.subr.mxu0 0.0
    %4369 = vmatpush1.msra.mxu0 0.0
    %4370 = vmatprep.subr.mxu0 0.0
    %4371 = vmatpush1.msra.mxu0 0.0
    %4372 = vmatprep.subr.mxu0 0.0
    %4373 = vmatpush1.msra.mxu0 0.0
    %4374 = vmatprep.subr.mxu0 0.0
    %4375 = vmatpush1.msra.mxu0 0.0
    %4376 = vmatprep.subr.mxu0 0.0
    %4377 = vmatpush1.msra.mxu0 0.0
    %4378 = vmatprep.subr.mxu0 0.0
    %4379 = vmatpush1.msra.mxu0 0.0
    %4380 = vmatprep.subr.mxu0 0.0
    %4381 = vmatpush1.msra.mxu0 0.0
    %4382 = vmatprep.subr.mxu0 0.0
    %4383 = vmatpush1.msra.mxu0 0.0
    %4384 = vmatprep.subr.mxu0 0.0
    %4385 = vmatpush1.msra.mxu0 0.0
    %4386 = vmatprep.subr.mxu0 0.0
    %4387 = vmatpush1.msra.mxu0 0.0
    %4388 = vmatprep.subr.mxu0 0.0
    %4389 = vmatpush1.msra.mxu0 0.0
    %4390 = vmatprep.subr.mxu0 0.0
    %4391 = vmatpush1.msra.mxu0 0.0
    %4392 = vmatprep.subr.mxu0 0.0
    %4393 = vmatpush1.msra.mxu0 0.0
    %4394 = vmatprep.subr.mxu0 0.0
    %4395 = vmatpush1.msra.mxu0 0.0
    %4396 = vmatprep.subr.mxu0 0.0
    %4397 = vmatpush1.msra.mxu0 0.0
    %4398 = vmatprep.subr.mxu0 0.0
    %4399 = vmatpush1.msra.mxu0 0.0
    %4400 = vmatprep.subr.mxu0 0.0
    %4401 = vmatpush1.msra.mxu0 0.0
    %4402 = vmatprep.subr.mxu0 0.0
    %4403 = vmatpush1.msra.mxu0 0.0
    %4404 = vmatprep.subr.mxu0 0.0
    %4405 = vmatpush1.msra.mxu0 0.0
    %4406 = vmatprep.subr.mxu0 0.0
    %4407 = vmatpush1.msra.mxu0 0.0
    %4408 = vmatprep.subr.mxu0 0.0
    %4409 = vmatpush1.msra.mxu0 0.0
    %4410 = vmatprep.subr.mxu0 0.0
    %4411 = vmatpush1.msra.mxu0 0.0
    %4412 = vmatprep.subr.mxu0 0.0
    %4413 = vmatpush1.msra.mxu0 0.0
    %4414 = vmatprep.subr.mxu0 0.0
    %4415 = vmatpush1.msra.mxu0 0.0
    %4416 = vmatprep.subr.mxu0 0.0
    %4417 = vmatpush1.msra.mxu0 0.0
    %4418 = vmatprep.subr.mxu0 0.0
    %4419 = vmatpush1.msra.mxu0 0.0
    %4420 = vmatprep.subr.mxu0 0.0
    %4421 = vmatpush1.msra.mxu0 0.0
    %4422 = vmatprep.mubr.f32.mxu0 0.0
    %4423 = vmatmul.mubr.f32.gmra.mrb[0].mxu0 %v4198
    %v4424 = vpop.f32.mrb[0].mxu0
    %v4425 = vadd.f32 %v4355, %v4424
    %v4426 = vpop.f32.mrb[0].mxu0
    %4427 = vdwg.mxu0
    %v4428 = vld [vmem:[%s15] sm:$0x1]
    %v4429 = vadd.f32 %v4425, %v4428
    %v4430 = vtanh.pop %v4429
    %v4431 = vld [vmem:[#allocation21] sm:$0xff]
    %v4432 = vld [vmem:[#allocation21 + $0x8] sm:$0xff]
    %v4433 = vld [vmem:[#allocation21 + $0x10] sm:$0xff]
    %v4434 = vld [vmem:[#allocation21 + $0x18] sm:$0xff]
    %v4435 = vld [vmem:[%s17] sm:$0x1]
    %v4437 = vsel %vm237, %v4430, 0
    %4439 = vmatprep.subr.mxu0 0.0
    %4440 = vmatpush1.msra.mxu0 %v4431
    %4441 = vmatprep.subr.mxu0 0.0
    %4442 = vmatpush1.msra.mxu0 %v4432
    %4443 = vmatprep.subr.mxu0 0.0
    %4444 = vmatpush1.msra.mxu0 %v4433
    %4445 = vmatprep.subr.mxu0 0.0
    %4446 = vmatpush1.msra.mxu0 %v4434
    %4447 = vmatprep.subr.mxu0 0.0
    %4448 = vmatpush1.msra.mxu0 0.0
    %4449 = vmatprep.subr.mxu0 0.0
    %4450 = vmatpush1.msra.mxu0 0.0
    %4451 = vmatprep.subr.mxu0 0.0
    %4452 = vmatpush1.msra.mxu0 0.0
    %4453 = vmatprep.subr.mxu0 0.0
    %4454 = vmatpush1.msra.mxu0 0.0
    %4455 = vmatprep.subr.mxu0 0.0
    %4456 = vmatpush1.msra.mxu0 0.0
    %4457 = vmatprep.subr.mxu0 0.0
    %4458 = vmatpush1.msra.mxu0 0.0
    %4459 = vmatprep.subr.mxu0 0.0
    %4460 = vmatpush1.msra.mxu0 0.0
    %4461 = vmatprep.subr.mxu0 0.0
    %4462 = vmatpush1.msra.mxu0 0.0
    %4463 = vmatprep.subr.mxu0 0.0
    %4464 = vmatpush1.msra.mxu0 0.0
    %4465 = vmatprep.subr.mxu0 0.0
    %4466 = vmatpush1.msra.mxu0 0.0
    %4467 = vmatprep.subr.mxu0 0.0
    %4468 = vmatpush1.msra.mxu0 0.0
    %4469 = vmatprep.subr.mxu0 0.0
    %4470 = vmatpush1.msra.mxu0 0.0
    %4471 = vmatprep.subr.mxu0 0.0
    %4472 = vmatpush1.msra.mxu0 0.0
    %4473 = vmatprep.subr.mxu0 0.0
    %4474 = vmatpush1.msra.mxu0 0.0
    %4475 = vmatprep.subr.mxu0 0.0
    %4476 = vmatpush1.msra.mxu0 0.0
    %4477 = vmatprep.subr.mxu0 0.0
    %4478 = vmatpush1.msra.mxu0 0.0
    %4479 = vmatprep.subr.mxu0 0.0
    %4480 = vmatpush1.msra.mxu0 0.0
    %4481 = vmatprep.subr.mxu0 0.0
    %4482 = vmatpush1.msra.mxu0 0.0
    %4483 = vmatprep.subr.mxu0 0.0
    %4484 = vmatpush1.msra.mxu0 0.0
    %4485 = vmatprep.subr.mxu0 0.0
    %4486 = vmatpush1.msra.mxu0 0.0
    %4487 = vmatprep.subr.mxu0 0.0
    %4488 = vmatpush1.msra.mxu0 0.0
    %4489 = vmatprep.subr.mxu0 0.0
    %4490 = vmatpush1.msra.mxu0 0.0
    %4491 = vmatprep.subr.mxu0 0.0
    %4492 = vmatpush1.msra.mxu0 0.0
    %4493 = vmatprep.subr.mxu0 0.0
    %4494 = vmatpush1.msra.mxu0 0.0
    %4495 = vmatprep.subr.mxu0 0.0
    %4496 = vmatpush1.msra.mxu0 0.0
    %4497 = vmatprep.subr.mxu0 0.0
    %4498 = vmatpush1.msra.mxu0 0.0
    %4499 = vmatprep.subr.mxu0 0.0
    %4500 = vmatpush1.msra.mxu0 0.0
    %4501 = vmatprep.subr.mxu0 0.0
    %4502 = vmatpush1.msra.mxu0 0.0
    %4503 = vmatprep.mubr.f32.mxu0 0.0
    %4504 = vmatmul.mubr.f32.gmra.mrb[0].mxu0 %v4437
    %v4505 = vpop.f32.mrb[0].mxu0
    %v4506 = vadd.f32 %v4435, %v4505
    %v4507 = vpop.f32.mrb[0].mxu0
    %4508 = vdwg.mxu0
    %v4509 = vsel %vm2891, %v4506, -inf
    %4510 = vmax.xlane.f32.xlu0 %v4509
    %v4511 = vpop.xlane.xlu0 %4510
    %v4512 = vsub.f32 %v4506, %v4511
    %v4513 = vmul.f32 %v4512, 1.442695
    %v4514 = vpow.pop %v4513
    %v4515 = vsel %vm2891, %v4514, 0.0
    %4516 = vadd.xlane.f32.xlu0 %v4515
    %v4517 = vpop.xlane.xlu0 %4516
    %v4518 = vrcp.pop %v4517
    %v4519 = vmul.f32 1.0, %v4518
    %vm4520 = vcmp.eq.f32.partialorder %v4506, %v4511
    %v4521 = vsel %vm4520, %v2377, 64
    %v4522 = vsel %vm2891, %v4521, 2147483647
    %v4523 = vand.u32 %v4522, 65535
    %v4524 = vshra.s32 %v4522, 16
    %v4525 = vcvt.s32.f32 %v4523
    %v4526 = vcvt.s32.f32 %v4524
    %4527 = vmin.xlane.f32.xlu0 %v4526
    %v4528 = vpop.xlane.xlu0 %4527
    %vm4529 = vcmp.eq.f32.partialorder %v4526, %v4528
    %v4530 = vsel %vm4529, %v4525, inf
    %4531 = vmin.xlane.f32.xlu0 %v4530
    %v4532 = vpop.xlane.xlu0 %4531
    %v4533 = vcvt.f32.s32 %v4532
    %v4534 = vcvt.f32.s32 %v4528
    %v4535 = vshll.u32 %v4534, 16
    %v4536 = vadd.s32 %v4535, %v4533
    %vm4537 = vcmask 24600
    %4538 = vst.msk [vmem:[#allocation22] sm:$0x1] %vm4537, %v4536
    %4539 = vst.msk [vmem:[#allocation23] sm:$0x1] %vm4537, %v4519
    %vm4540 = vcmp.eq.s32.totalorder %v2377, %v4536
    %v4541 = vsel %vm4540, 1, 0
    %v4542 = vcvt.s32.f32 %v4541
    %v4543 = vld [vmem:[%s10] sm:$0xff]
    %v4544 = vld [vmem:[%s10 + $0x8] sm:$0xff]
    %v4545 = vld [vmem:[%s10 + $0x10] sm:$0xff]
    %v4546 = vld [vmem:[%s10 + $0x18] sm:$0xff]
    %v4547 = vld [vmem:[%s10 + $0x20] sm:$0xff]
    %v4548 = vld [vmem:[%s10 + $0x28] sm:$0xff]
    %v4549 = vld [vmem:[%s10 + $0x30] sm:$0xff]
    %v4550 = vld [vmem:[%s10 + $0x38] sm:$0xff]
    %v4552 = vsel %vm2389, %v4542, 0
    %4554 = vmatprep.subr.mxu0 0.0
    %4555 = vmatpush1.msra.mxu0 %v4543
    %4556 = vmatprep.subr.mxu0 0.0
    %4557 = vmatpush1.msra.mxu0 %v4544
    %4558 = vmatprep.subr.mxu0 0.0
    %4559 = vmatpush1.msra.mxu0 %v4545
    %4560 = vmatprep.subr.mxu0 0.0
    %4561 = vmatpush1.msra.mxu0 %v4546
    %4562 = vmatprep.subr.mxu0 0.0
    %4563 = vmatpush1.msra.mxu0 %v4547
    %4564 = vmatprep.subr.mxu0 0.0
    %4565 = vmatpush1.msra.mxu0 %v4548
    %4566 = vmatprep.subr.mxu0 0.0
    %4567 = vmatpush1.msra.mxu0 %v4549
    %4568 = vmatprep.subr.mxu0 0.0
    %4569 = vmatpush1.msra.mxu0 %v4550
    %4570 = vmatprep.subr.mxu0 0.0
    %4571 = vmatpush1.msra.mxu0 0.0
    %4572 = vmatprep.subr.mxu0 0.0
    %4573 = vmatpush1.msra.mxu0 0.0
    %4574 = vmatprep.subr.mxu0 0.0
    %4575 = vmatpush1.msra.mxu0 0.0
    %4576 = vmatprep.subr.mxu0 0.0
    %4577 = vmatpush1.msra.mxu0 0.0
    %4578 = vmatprep.subr.mxu0 0.0
    %4579 = vmatpush1.msra.mxu0 0.0
    %4580 = vmatprep.subr.mxu0 0.0
    %4581 = vmatpush1.msra.mxu0 0.0
    %4582 = vmatprep.subr.mxu0 0.0
    %4583 = vmatpush1.msra.mxu0 0.0
    %4584 = vmatprep.subr.mxu0 0.0
    %4585 = vmatpush1.msra.mxu0 0.0
    %4586 = vmatprep.subr.mxu0 0.0
    %4587 = vmatpush1.msra.mxu0 0.0
    %4588 = vmatprep.subr.mxu0 0.0
    %4589 = vmatpush1.msra.mxu0 0.0
    %4590 = vmatprep.subr.mxu0 0.0
    %4591 = vmatpush1.msra.mxu0 0.0
    %4592 = vmatprep.subr.mxu0 0.0
    %4593 = vmatpush1.msra.mxu0 0.0
    %4594 = vmatprep.subr.mxu0 0.0
    %4595 = vmatpush1.msra.mxu0 0.0
    %4596 = vmatprep.subr.mxu0 0.0
    %4597 = vmatpush1.msra.mxu0 0.0
    %4598 = vmatprep.subr.mxu0 0.0
    %4599 = vmatpush1.msra.mxu0 0.0
    %4600 = vmatprep.subr.mxu0 0.0
    %4601 = vmatpush1.msra.mxu0 0.0
    %4602 = vmatprep.subr.mxu0 0.0
    %4603 = vmatpush1.msra.mxu0 0.0
    %4604 = vmatprep.subr.mxu0 0.0
    %4605 = vmatpush1.msra.mxu0 0.0
    %4606 = vmatprep.subr.mxu0 0.0
    %4607 = vmatpush1.msra.mxu0 0.0
    %4608 = vmatprep.subr.mxu0 0.0
    %4609 = vmatpush1.msra.mxu0 0.0
    %4610 = vmatprep.subr.mxu0 0.0
    %4611 = vmatpush1.msra.mxu0 0.0
    %4612 = vmatprep.subr.mxu0 0.0
    %4613 = vmatpush1.msra.mxu0 0.0
    %4614 = vmatprep.subr.mxu0 0.0
    %4615 = vmatpush1.msra.mxu0 0.0
    %4616 = vmatprep.subr.mxu0 0.0
    %4617 = vmatpush1.msra.mxu0 0.0
    %4618 = vmatprep.mubr.f32.mxu0 0.0
    %4619 = vmatmul.mubr.f32.gmra.mrb[0].mxu0 %v4552
    %v4620 = vpop.f32.mrb[0].mxu0
    %v4621 = vadd.f32 0.0, %v4620
    %v4622 = vpop.f32.mrb[0].mxu0
    %4623 = vdwg.mxu0
    %v4624 = vld [vmem:[%s11] sm:$0xff]
    %v4625 = vld [vmem:[%s11 + $0x8] sm:$0xff]
    %v4626 = vld [vmem:[%s11 + $0x10] sm:$0xff]
    %v4627 = vld [vmem:[%s11 + $0x18] sm:$0xff]
    %4628 = vmatprep.subr.mxu0 0.0
    %4629 = vmatpush1.msra.mxu0 %v4624
    %4630 = vmatprep.subr.mxu0 0.0
    %4631 = vmatpush1.msra.mxu0 %v4625
    %4632 = vmatprep.subr.mxu0 0.0
    %4633 = vmatpush1.msra.mxu0 %v4626
    %4634 = vmatprep.subr.mxu0 0.0
    %4635 = vmatpush1.msra.mxu0 %v4627
    %4636 = vmatprep.subr.mxu0 0.0
    %4637 = vmatpush1.msra.mxu0 0.0
    %4638 = vmatprep.subr.mxu0 0.0
    %4639 = vmatpush1.msra.mxu0 0.0
    %4640 = vmatprep.subr.mxu0 0.0
    %4641 = vmatpush1.msra.mxu0 0.0
    %4642 = vmatprep.subr.mxu0 0.0
    %4643 = vmatpush1.msra.mxu0 0.0
    %4644 = vmatprep.subr.mxu0 0.0
    %4645 = vmatpush1.msra.mxu0 0.0
    %4646 = vmatprep.subr.mxu0 0.0
    %4647 = vmatpush1.msra.mxu0 0.0
    %4648 = vmatprep.subr.mxu0 0.0
    %4649 = vmatpush1.msra.mxu0 0.0
    %4650 = vmatprep.subr.mxu0 0.0
    %4651 = vmatpush1.msra.mxu0 0.0
    %4652 = vmatprep.subr.mxu0 0.0
    %4653 = vmatpush1.msra.mxu0 0.0
    %4654 = vmatprep.subr.mxu0 0.0
    %4655 = vmatpush1.msra.mxu0 0.0
    %4656 = vmatprep.subr.mxu0 0.0
    %4657 = vmatpush1.msra.mxu0 0.0
    %4658 = vmatprep.subr.mxu0 0.0
    %4659 = vmatpush1.msra.mxu0 0.0
    %4660 = vmatprep.subr.mxu0 0.0
    %4661 = vmatpush1.msra.mxu0 0.0
    %4662 = vmatprep.subr.mxu0 0.0
    %4663 = vmatpush1.msra.mxu0 0.0
    %4664 = vmatprep.subr.mxu0 0.0
    %4665 = vmatpush1.msra.mxu0 0.0
    %4666 = vmatprep.subr.mxu0 0.0
    %4667 = vmatpush1.msra.mxu0 0.0
    %4668 = vmatprep.subr.mxu0 0.0
    %4669 = vmatpush1.msra.mxu0 0.0
    %4670 = vmatprep.subr.mxu0 0.0
    %4671 = vmatpush1.msra.mxu0 0.0
    %4672 = vmatprep.subr.mxu0 0.0
    %4673 = vmatpush1.msra.mxu0 0.0
    %4674 = vmatprep.subr.mxu0 0.0
    %4675 = vmatpush1.msra.mxu0 0.0
    %4676 = vmatprep.subr.mxu0 0.0
    %4677 = vmatpush1.msra.mxu0 0.0
    %4678 = vmatprep.subr.mxu0 0.0
    %4679 = vmatpush1.msra.mxu0 0.0
    %4680 = vmatprep.subr.mxu0 0.0
    %4681 = vmatpush1.msra.mxu0 0.0
    %4682 = vmatprep.subr.mxu0 0.0
    %4683 = vmatpush1.msra.mxu0 0.0
    %4684 = vmatprep.subr.mxu0 0.0
    %4685 = vmatpush1.msra.mxu0 0.0
    %4686 = vmatprep.subr.mxu0 0.0
    %4687 = vmatpush1.msra.mxu0 0.0
    %4688 = vmatprep.subr.mxu0 0.0
    %4689 = vmatpush1.msra.mxu0 0.0
    %4690 = vmatprep.subr.mxu0 0.0
    %4691 = vmatpush1.msra.mxu0 0.0
    %4692 = vmatprep.mubr.f32.mxu0 0.0
    %4693 = vmatmul.mubr.f32.gmra.mrb[0].mxu0 %v4198
    %v4694 = vpop.f32.mrb[0].mxu0
    %v4695 = vadd.f32 0.0, %v4694
    %v4696 = vpop.f32.mrb[0].mxu0
    %4697 = vdwg.mxu0
    %v4698 = vld [vmem:[%s12] sm:$0x1]
    %v4699 = vadd.f32 %v4621, %v4695
    %v4700 = vxor.u32 %v4699, 2147483648
    %v4701 = vmul.f32 %v4700, 1.442695
    %v4702 = vpow.pop %v4701
    %v4703 = vadd.f32 %v4702, 1.0
    %v4704 = vrcp.pop %v4703
    %v4705 = vmul.f32 1.0, %v4704
    %v4707 = vlaneseq
    %v4708 = vshrl.u32 %v4707, 7
    %v4709 = vsub.s32 0, %v4708
    %v4710 = vrot.slane %v4698, %v4709
    %4711 = vrot.lane.b32.xlu0 %v4710, 64
    %v4712 = vpop.permute.xlu0 %4711
    %v4714 = vadd.f32 %v4695, %v4712
    %4716 = vrot.lane.b32.xlu0 %v4714, 64
    %v4717 = vpop.permute.xlu0 %4716
    %v4719 = vmul.f32 %v4705, %v4717
    %4721 = vrot.lane.b32.xlu0 %v4719, 64
    %v4722 = vpop.permute.xlu0 %4721
    %v4724 = vadd.f32 %v4621, %v4722
    %v4725 = vtanh.pop %v4724
    %v4726 = vsub.f32 1.0, %v4705
    %4728 = vrot.lane.b32.xlu0 %v4725, 96
    %v4729 = vpop.permute.xlu0 %4728
    %v4731 = vmul.f32 %v4726, %v4729
    %v4732 = vmul.f32 %v4705, %v4194
    %v4733 = vadd.f32 %v4731, %v4732
    %4735 = vrot.lane.b32.xlu0 %v4733, 96
    %v4736 = vpop.permute.xlu0 %4735
    %v4737 = vsel %vm237, %v4736, 0
    %4739 = vmatprep.subr.mxu0 0.0
    %4740 = vmatpush1.xpose.msra.mxu0 %v2304
    %4741 = vmatprep.subr.mxu0 0.0
    %4742 = vmatpush1.xpose.msra.mxu0 0.0
    %4743 = vmatprep.subr.mxu0 0.0
    %4744 = vmatpush1.xpose.msra.mxu0 0.0
    %4745 = vmatprep.subr.mxu0 0.0
    %4746 = vmatpush1.xpose.msra.mxu0 0.0
    %4747 = vmatprep.subr.mxu0 0.0
    %4748 = vmatpush1.xpose.msra.mxu0 0.0
    %4749 = vmatprep.subr.mxu0 0.0
    %4750 = vmatpush1.xpose.msra.mxu0 0.0
    %4751 = vmatprep.subr.mxu0 0.0
    %4752 = vmatpush1.xpose.msra.mxu0 0.0
    %4753 = vmatprep.subr.mxu0 0.0
    %4754 = vmatpush1.xpose.msra.mxu0 0.0
    %4755 = vmatprep.subr.mxu0 0.0
    %4756 = vmatpush1.xpose.msra.mxu0 0.0
    %4757 = vmatprep.subr.mxu0 0.0
    %4758 = vmatpush1.xpose.msra.mxu0 0.0
    %4759 = vmatprep.subr.mxu0 0.0
    %4760 = vmatpush1.xpose.msra.mxu0 0.0
    %4761 = vmatprep.subr.mxu0 0.0
    %4762 = vmatpush1.xpose.msra.mxu0 0.0
    %4763 = vmatprep.subr.mxu0 0.0
    %4764 = vmatpush1.xpose.msra.mxu0 0.0
    %4765 = vmatprep.subr.mxu0 0.0
    %4766 = vmatpush1.xpose.msra.mxu0 0.0
    %4767 = vmatprep.subr.mxu0 0.0
    %4768 = vmatpush1.xpose.msra.mxu0 0.0
    %4769 = vmatprep.subr.mxu0 0.0
    %4770 = vmatpush1.xpose.msra.mxu0 0.0
    %4771 = vmatprep.subr.mxu0 0.0
    %4772 = vmatpush1.xpose.msra.mxu0 0.0
    %4773 = vmatprep.subr.mxu0 0.0
    %4774 = vmatpush1.xpose.msra.mxu0 0.0
    %4775 = vmatprep.subr.mxu0 0.0
    %4776 = vmatpush1.xpose.msra.mxu0 0.0
    %4777 = vmatprep.subr.mxu0 0.0
    %4778 = vmatpush1.xpose.msra.mxu0 0.0
    %4779 = vmatprep.subr.mxu0 0.0
    %4780 = vmatpush1.xpose.msra.mxu0 0.0
    %4781 = vmatprep.subr.mxu0 0.0
    %4782 = vmatpush1.xpose.msra.mxu0 0.0
    %4783 = vmatprep.subr.mxu0 0.0
    %4784 = vmatpush1.xpose.msra.mxu0 0.0
    %4785 = vmatprep.subr.mxu0 0.0
    %4786 = vmatpush1.xpose.msra.mxu0 0.0
    %4787 = vmatprep.subr.mxu0 0.0
    %4788 = vmatpush1.xpose.msra.mxu0 0.0
    %4789 = vmatprep.subr.mxu0 0.0
    %4790 = vmatpush1.xpose.msra.mxu0 0.0
    %4791 = vmatprep.subr.mxu0 0.0
    %4792 = vmatpush1.xpose.msra.mxu0 0.0
    %4793 = vmatprep.subr.mxu0 0.0
    %4794 = vmatpush1.xpose.msra.mxu0 0.0
    %4795 = vmatprep.subr.mxu0 0.0
    %4796 = vmatpush1.xpose.msra.mxu0 0.0
    %4797 = vmatprep.subr.mxu0 0.0
    %4798 = vmatpush1.xpose.msra.mxu0 0.0
    %4799 = vmatprep.subr.mxu0 0.0
    %4800 = vmatpush1.xpose.msra.mxu0 0.0
    %4801 = vmatprep.subr.mxu0 0.0
    %4802 = vmatpush1.xpose.msra.mxu0 0.0
    %4803 = vmatprep.mubr.f32.mxu0 0.0
    %4804 = vmatmul.mubr.f32.gmra.mrb[0].mxu0 %v4737
    %v4805 = vpop.f32.mrb[0].mxu0
    %v4806 = vadd.f32 0.0, %v4805
    %v4807 = vpop.f32.mrb[0].mxu0
    %4808 = vdwg.mxu0
    %v4809 = vsel %vm2650, %v4806, -inf
    %4810 = vmax.xlane.f32.xlu0 %v4809
    %v4811 = vpop.xlane.xlu0 %4810
    %v4812 = vsub.f32 %v4806, %v4811
    %v4813 = vmul.f32 %v4812, 1.442695
    %v4814 = vpow.pop %v4813
    %v4815 = vsel %vm2650, %v4814, 0.0
    %4816 = vadd.xlane.f32.xlu0 %v4815
    %v4817 = vpop.xlane.xlu0 %4816
    %v4818 = vrcp.pop %v4817
    %v4819 = vmul.f32 %v4814, %v4818
    %v4820 = vld [vmem:[#allocation18] sm:$0xff]
    %v4821 = vld [vmem:[#allocation18 + $0x8] sm:$0xff]
    %v4822 = vld [vmem:[#allocation18 + $0x10] sm:$0xff]
    %v4823 = vld [vmem:[#allocation18 + $0x18] sm:$0xff]
    %v4825 = vsel %vm2666, %v4819, 0
    %4827 = vmatprep.subr.mxu0 0.0
    %4828 = vmatpush1.msra.mxu0 %v2373
    %4829 = vmatprep.subr.mxu0 0.0
    %4830 = vmatpush1.msra.mxu0 0.0
    %4831 = vmatprep.subr.mxu0 0.0
    %4832 = vmatpush1.msra.mxu0 0.0
    %4833 = vmatprep.subr.mxu0 0.0
    %4834 = vmatpush1.msra.mxu0 0.0
    %4835 = vmatprep.subr.mxu0 0.0
    %4836 = vmatpush1.msra.mxu0 0.0
    %4837 = vmatprep.subr.mxu0 0.0
    %4838 = vmatpush1.msra.mxu0 0.0
    %4839 = vmatprep.subr.mxu0 0.0
    %4840 = vmatpush1.msra.mxu0 0.0
    %4841 = vmatprep.subr.mxu0 0.0
    %4842 = vmatpush1.msra.mxu0 0.0
    %4843 = vmatprep.subr.mxu0 0.0
    %4844 = vmatpush1.msra.mxu0 0.0
    %4845 = vmatprep.subr.mxu0 0.0
    %4846 = vmatpush1.msra.mxu0 0.0
    %4847 = vmatprep.subr.mxu0 0.0
    %4848 = vmatpush1.msra.mxu0 0.0
    %4849 = vmatprep.subr.mxu0 0.0
    %4850 = vmatpush1.msra.mxu0 0.0
    %4851 = vmatprep.subr.mxu0 0.0
    %4852 = vmatpush1.msra.mxu0 0.0
    %4853 = vmatprep.subr.mxu0 0.0
    %4854 = vmatpush1.msra.mxu0 0.0
    %4855 = vmatprep.subr.mxu0 0.0
    %4856 = vmatpush1.msra.mxu0 0.0
    %4857 = vmatprep.subr.mxu0 0.0
    %4858 = vmatpush1.msra.mxu0 0.0
    %4859 = vmatprep.subr.mxu0 0.0
    %4860 = vmatpush1.msra.mxu0 0.0
    %4861 = vmatprep.subr.mxu0 0.0
    %4862 = vmatpush1.msra.mxu0 0.0
    %4863 = vmatprep.subr.mxu0 0.0
    %4864 = vmatpush1.msra.mxu0 0.0
    %4865 = vmatprep.subr.mxu0 0.0
    %4866 = vmatpush1.msra.mxu0 0.0
    %4867 = vmatprep.subr.mxu0 0.0
    %4868 = vmatpush1.msra.mxu0 0.0
    %4869 = vmatprep.subr.mxu0 0.0
    %4870 = vmatpush1.msra.mxu0 0.0
    %4871 = vmatprep.subr.mxu0 0.0
    %4872 = vmatpush1.msra.mxu0 0.0
    %4873 = vmatprep.subr.mxu0 0.0
    %4874 = vmatpush1.msra.mxu0 0.0
    %4875 = vmatprep.subr.mxu0 0.0
    %4876 = vmatpush1.msra.mxu0 0.0
    %4877 = vmatprep.subr.mxu0 0.0
    %4878 = vmatpush1.msra.mxu0 0.0
    %4879 = vmatprep.subr.mxu0 0.0
    %4880 = vmatpush1.msra.mxu0 0.0
    %4881 = vmatprep.subr.mxu0 0.0
    %4882 = vmatpush1.msra.mxu0 0.0
    %4883 = vmatprep.subr.mxu0 0.0
    %4884 = vmatpush1.msra.mxu0 0.0
    %4885 = vmatprep.subr.mxu0 0.0
    %4886 = vmatpush1.msra.mxu0 0.0
    %4887 = vmatprep.subr.mxu0 0.0
    %4888 = vmatpush1.msra.mxu0 0.0
    %4889 = vmatprep.subr.mxu0 0.0
    %4890 = vmatpush1.msra.mxu0 0.0
    %4891 = vmatprep.mubr.f32.mxu0 0.0
    %4892 = vmatmul.mubr.f32.gmra.mrb[0].mxu0 %v4825
    %v4893 = vpop.f32.mrb[0].mxu0
    %v4894 = vadd.f32 0.0, %v4893
    %v4895 = vpop.f32.mrb[0].mxu0
    %4896 = vdwg.mxu0
    %4897 = vmatprep.subr.mxu0 0.0
    %4898 = vmatpush1.msra.mxu0 %v4820
    %4899 = vmatprep.subr.mxu0 0.0
    %4900 = vmatpush1.msra.mxu0 %v4821
    %4901 = vmatprep.subr.mxu0 0.0
    %4902 = vmatpush1.msra.mxu0 %v4822
    %4903 = vmatprep.subr.mxu0 0.0
    %4904 = vmatpush1.msra.mxu0 %v4823
    %4905 = vmatprep.subr.mxu0 0.0
    %4906 = vmatpush1.msra.mxu0 0.0
    %4907 = vmatprep.subr.mxu0 0.0
    %4908 = vmatpush1.msra.mxu0 0.0
    %4909 = vmatprep.subr.mxu0 0.0
    %4910 = vmatpush1.msra.mxu0 0.0
    %4911 = vmatprep.subr.mxu0 0.0
    %4912 = vmatpush1.msra.mxu0 0.0
    %4913 = vmatprep.subr.mxu0 0.0
    %4914 = vmatpush1.msra.mxu0 0.0
    %4915 = vmatprep.subr.mxu0 0.0
    %4916 = vmatpush1.msra.mxu0 0.0
    %4917 = vmatprep.subr.mxu0 0.0
    %4918 = vmatpush1.msra.mxu0 0.0
    %4919 = vmatprep.subr.mxu0 0.0
    %4920 = vmatpush1.msra.mxu0 0.0
    %4921 = vmatprep.subr.mxu0 0.0
    %4922 = vmatpush1.msra.mxu0 0.0
    %4923 = vmatprep.subr.mxu0 0.0
    %4924 = vmatpush1.msra.mxu0 0.0
    %4925 = vmatprep.subr.mxu0 0.0
    %4926 = vmatpush1.msra.mxu0 0.0
    %4927 = vmatprep.subr.mxu0 0.0
    %4928 = vmatpush1.msra.mxu0 0.0
    %4929 = vmatprep.subr.mxu0 0.0
    %4930 = vmatpush1.msra.mxu0 0.0
    %4931 = vmatprep.subr.mxu0 0.0
    %4932 = vmatpush1.msra.mxu0 0.0
    %4933 = vmatprep.subr.mxu0 0.0
    %4934 = vmatpush1.msra.mxu0 0.0
    %4935 = vmatprep.subr.mxu0 0.0
    %4936 = vmatpush1.msra.mxu0 0.0
    %4937 = vmatprep.subr.mxu0 0.0
    %4938 = vmatpush1.msra.mxu0 0.0
    %4939 = vmatprep.subr.mxu0 0.0
    %4940 = vmatpush1.msra.mxu0 0.0
    %4941 = vmatprep.subr.mxu0 0.0
    %4942 = vmatpush1.msra.mxu0 0.0
    %4943 = vmatprep.subr.mxu0 0.0
    %4944 = vmatpush1.msra.mxu0 0.0
    %4945 = vmatprep.subr.mxu0 0.0
    %4946 = vmatpush1.msra.mxu0 0.0
    %4947 = vmatprep.subr.mxu0 0.0
    %4948 = vmatpush1.msra.mxu0 0.0
    %4949 = vmatprep.subr.mxu0 0.0
    %4950 = vmatpush1.msra.mxu0 0.0
    %4951 = vmatprep.subr.mxu0 0.0
    %4952 = vmatpush1.msra.mxu0 0.0
    %4953 = vmatprep.subr.mxu0 0.0
    %4954 = vmatpush1.msra.mxu0 0.0
    %4955 = vmatprep.subr.mxu0 0.0
    %4956 = vmatpush1.msra.mxu0 0.0
    %4957 = vmatprep.subr.mxu0 0.0
    %4958 = vmatpush1.msra.mxu0 0.0
    %4959 = vmatprep.subr.mxu0 0.0
    %4960 = vmatpush1.msra.mxu0 0.0
    %4961 = vmatprep.mubr.f32.mxu0 0.0
    %4962 = vmatmul.mubr.f32.gmra.mrb[0].mxu0 %v4737
    %v4963 = vpop.f32.mrb[0].mxu0
    %v4964 = vadd.f32 %v4894, %v4963
    %v4965 = vpop.f32.mrb[0].mxu0
    %4966 = vdwg.mxu0
    %v4967 = vld [vmem:[%s15] sm:$0x1]
    %v4968 = vadd.f32 %v4964, %v4967
    %v4969 = vtanh.pop %v4968
    %v4970 = vld [vmem:[#allocation21] sm:$0xff]
    %v4971 = vld [vmem:[#allocation21 + $0x8] sm:$0xff]
    %v4972 = vld [vmem:[#allocation21 + $0x10] sm:$0xff]
    %v4973 = vld [vmem:[#allocation21 + $0x18] sm:$0xff]
    %v4974 = vld [vmem:[%s17] sm:$0x1]
    %v4976 = vsel %vm237, %v4969, 0
    %4978 = vmatprep.subr.mxu0 0.0
    %4979 = vmatpush1.msra.mxu0 %v4970
    %4980 = vmatprep.subr.mxu0 0.0
    %4981 = vmatpush1.msra.mxu0 %v4971
    %4982 = vmatprep.subr.mxu0 0.0
    %4983 = vmatpush1.msra.mxu0 %v4972
    %4984 = vmatprep.subr.mxu0 0.0
    %4985 = vmatpush1.msra.mxu0 %v4973
    %4986 = vmatprep.subr.mxu0 0.0
    %4987 = vmatpush1.msra.mxu0 0.0
    %4988 = vmatprep.subr.mxu0 0.0
    %4989 = vmatpush1.msra.mxu0 0.0
    %4990 = vmatprep.subr.mxu0 0.0
    %4991 = vmatpush1.msra.mxu0 0.0
    %4992 = vmatprep.subr.mxu0 0.0
    %4993 = vmatpush1.msra.mxu0 0.0
    %4994 = vmatprep.subr.mxu0 0.0
    %4995 = vmatpush1.msra.mxu0 0.0
    %4996 = vmatprep.subr.mxu0 0.0
    %4997 = vmatpush1.msra.mxu0 0.0
    %4998 = vmatprep.subr.mxu0 0.0
    %4999 = vmatpush1.msra.mxu0 0.0
    %5000 = vmatprep.subr.mxu0 0.0
    %5001 = vmatpush1.msra.mxu0 0.0
    %5002 = vmatprep.subr.mxu0 0.0
    %5003 = vmatpush1.msra.mxu0 0.0
    %5004 = vmatprep.subr.mxu0 0.0
    %5005 = vmatpush1.msra.mxu0 0.0
    %5006 = vmatprep.subr.mxu0 0.0
    %5007 = vmatpush1.msra.mxu0 0.0
    %5008 = vmatprep.subr.mxu0 0.0
    %5009 = vmatpush1.msra.mxu0 0.0
    %5010 = vmatprep.subr.mxu0 0.0
    %5011 = vmatpush1.msra.mxu0 0.0
    %5012 = vmatprep.subr.mxu0 0.0
    %5013 = vmatpush1.msra.mxu0 0.0
    %5014 = vmatprep.subr.mxu0 0.0
    %5015 = vmatpush1.msra.mxu0 0.0
    %5016 = vmatprep.subr.mxu0 0.0
    %5017 = vmatpush1.msra.mxu0 0.0
    %5018 = vmatprep.subr.mxu0 0.0
    %5019 = vmatpush1.msra.mxu0 0.0
    %5020 = vmatprep.subr.mxu0 0.0
    %5021 = vmatpush1.msra.mxu0 0.0
    %5022 = vmatprep.subr.mxu0 0.0
    %5023 = vmatpush1.msra.mxu0 0.0
    %5024 = vmatprep.subr.mxu0 0.0
    %5025 = vmatpush1.msra.mxu0 0.0
    %5026 = vmatprep.subr.mxu0 0.0
    %5027 = vmatpush1.msra.mxu0 0.0
    %5028 = vmatprep.subr.mxu0 0.0
    %5029 = vmatpush1.msra.mxu0 0.0
    %5030 = vmatprep.subr.mxu0 0.0
    %5031 = vmatpush1.msra.mxu0 0.0
    %5032 = vmatprep.subr.mxu0 0.0
    %5033 = vmatpush1.msra.mxu0 0.0
    %5034 = vmatprep.subr.mxu0 0.0
    %5035 = vmatpush1.msra.mxu0 0.0
    %5036 = vmatprep.subr.mxu0 0.0
    %5037 = vmatpush1.msra.mxu0 0.0
    %5038 = vmatprep.subr.mxu0 0.0
    %5039 = vmatpush1.msra.mxu0 0.0
    %5040 = vmatprep.subr.mxu0 0.0
    %5041 = vmatpush1.msra.mxu0 0.0
    %5042 = vmatprep.mubr.f32.mxu0 0.0
    %5043 = vmatmul.mubr.f32.gmra.mrb[0].mxu0 %v4976
    %v5044 = vpop.f32.mrb[0].mxu0
    %v5045 = vadd.f32 %v4974, %v5044
    %v5046 = vpop.f32.mrb[0].mxu0
    %5047 = vdwg.mxu0
    %v5048 = vsel %vm2891, %v5045, -inf
    %5049 = vmax.xlane.f32.xlu0 %v5048
    %v5050 = vpop.xlane.xlu0 %5049
    %v5051 = vsub.f32 %v5045, %v5050
    %v5052 = vmul.f32 %v5051, 1.442695
    %v5053 = vpow.pop %v5052
    %v5054 = vsel %vm2891, %v5053, 0.0
    %5055 = vadd.xlane.f32.xlu0 %v5054
    %v5056 = vpop.xlane.xlu0 %5055
    %v5057 = vrcp.pop %v5056
    %v5058 = vmul.f32 1.0, %v5057
    %vm5059 = vcmp.eq.f32.partialorder %v5045, %v5050
    %v5060 = vsel %vm5059, %v2377, 64
    %v5061 = vsel %vm2891, %v5060, 2147483647
    %v5062 = vand.u32 %v5061, 65535
    %v5063 = vshra.s32 %v5061, 16
    %v5064 = vcvt.s32.f32 %v5062
    %v5065 = vcvt.s32.f32 %v5063
    %5066 = vmin.xlane.f32.xlu0 %v5065
    %v5067 = vpop.xlane.xlu0 %5066
    %vm5068 = vcmp.eq.f32.partialorder %v5065, %v5067
    %v5069 = vsel %vm5068, %v5064, inf
    %5070 = vmin.xlane.f32.xlu0 %v5069
    %v5071 = vpop.xlane.xlu0 %5070
    %v5072 = vcvt.f32.s32 %v5071
    %v5073 = vcvt.f32.s32 %v5067
    %v5074 = vshll.u32 %v5073, 16
    %v5075 = vadd.s32 %v5074, %v5072
    %vm5076 = vcmask 32800
    %5077 = vst.msk [vmem:[#allocation22] sm:$0x1] %vm5076, %v5075
    %5078 = vst.msk [vmem:[#allocation23] sm:$0x1] %vm5076, %v5058
    %vm5079 = vcmp.eq.s32.totalorder %v2377, %v5075
    %v5080 = vsel %vm5079, 1, 0
    %v5081 = vcvt.s32.f32 %v5080
    %v5082 = vld [vmem:[%s10] sm:$0xff]
    %v5083 = vld [vmem:[%s10 + $0x8] sm:$0xff]
    %v5084 = vld [vmem:[%s10 + $0x10] sm:$0xff]
    %v5085 = vld [vmem:[%s10 + $0x18] sm:$0xff]
    %v5086 = vld [vmem:[%s10 + $0x20] sm:$0xff]
    %v5087 = vld [vmem:[%s10 + $0x28] sm:$0xff]
    %v5088 = vld [vmem:[%s10 + $0x30] sm:$0xff]
    %v5089 = vld [vmem:[%s10 + $0x38] sm:$0xff]
    %v5091 = vsel %vm2389, %v5081, 0
    %5093 = vmatprep.subr.mxu0 0.0
    %5094 = vmatpush1.msra.mxu0 %v5082
    %5095 = vmatprep.subr.mxu0 0.0
    %5096 = vmatpush1.msra.mxu0 %v5083
    %5097 = vmatprep.subr.mxu0 0.0
    %5098 = vmatpush1.msra.mxu0 %v5084
    %5099 = vmatprep.subr.mxu0 0.0
    %5100 = vmatpush1.msra.mxu0 %v5085
    %5101 = vmatprep.subr.mxu0 0.0
    %5102 = vmatpush1.msra.mxu0 %v5086
    %5103 = vmatprep.subr.mxu0 0.0
    %5104 = vmatpush1.msra.mxu0 %v5087
    %5105 = vmatprep.subr.mxu0 0.0
    %5106 = vmatpush1.msra.mxu0 %v5088
    %5107 = vmatprep.subr.mxu0 0.0
    %5108 = vmatpush1.msra.mxu0 %v5089
    %5109 = vmatprep.subr.mxu0 0.0
    %5110 = vmatpush1.msra.mxu0 0.0
    %5111 = vmatprep.subr.mxu0 0.0
    %5112 = vmatpush1.msra.mxu0 0.0
    %5113 = vmatprep.subr.mxu0 0.0
    %5114 = vmatpush1.msra.mxu0 0.0
    %5115 = vmatprep.subr.mxu0 0.0
    %5116 = vmatpush1.msra.mxu0 0.0
    %5117 = vmatprep.subr.mxu0 0.0
    %5118 = vmatpush1.msra.mxu0 0.0
    %5119 = vmatprep.subr.mxu0 0.0
    %5120 = vmatpush1.msra.mxu0 0.0
    %5121 = vmatprep.subr.mxu0 0.0
    %5122 = vmatpush1.msra.mxu0 0.0
    %5123 = vmatprep.subr.mxu0 0.0
    %5124 = vmatpush1.msra.mxu0 0.0
    %5125 = vmatprep.subr.mxu0 0.0
    %5126 = vmatpush1.msra.mxu0 0.0
    %5127 = vmatprep.subr.mxu0 0.0
    %5128 = vmatpush1.msra.mxu0 0.0
    %5129 = vmatprep.subr.mxu0 0.0
    %5130 = vmatpush1.msra.mxu0 0.0
    %5131 = vmatprep.subr.mxu0 0.0
    %5132 = vmatpush1.msra.mxu0 0.0
    %5133 = vmatprep.subr.mxu0 0.0
    %5134 = vmatpush1.msra.mxu0 0.0
    %5135 = vmatprep.subr.mxu0 0.0
    %5136 = vmatpush1.msra.mxu0 0.0
    %5137 = vmatprep.subr.mxu0 0.0
    %5138 = vmatpush1.msra.mxu0 0.0
    %5139 = vmatprep.subr.mxu0 0.0
    %5140 = vmatpush1.msra.mxu0 0.0
    %5141 = vmatprep.subr.mxu0 0.0
    %5142 = vmatpush1.msra.mxu0 0.0
    %5143 = vmatprep.subr.mxu0 0.0
    %5144 = vmatpush1.msra.mxu0 0.0
    %5145 = vmatprep.subr.mxu0 0.0
    %5146 = vmatpush1.msra.mxu0 0.0
    %5147 = vmatprep.subr.mxu0 0.0
    %5148 = vmatpush1.msra.mxu0 0.0
    %5149 = vmatprep.subr.mxu0 0.0
    %5150 = vmatpush1.msra.mxu0 0.0
    %5151 = vmatprep.subr.mxu0 0.0
    %5152 = vmatpush1.msra.mxu0 0.0
    %5153 = vmatprep.subr.mxu0 0.0
    %5154 = vmatpush1.msra.mxu0 0.0
    %5155 = vmatprep.subr.mxu0 0.0
    %5156 = vmatpush1.msra.mxu0 0.0
    %5157 = vmatprep.mubr.f32.mxu0 0.0
    %5158 = vmatmul.mubr.f32.gmra.mrb[0].mxu0 %v5091
    %v5159 = vpop.f32.mrb[0].mxu0
    %v5160 = vadd.f32 0.0, %v5159
    %v5161 = vpop.f32.mrb[0].mxu0
    %5162 = vdwg.mxu0
    %v5163 = vld [vmem:[%s11] sm:$0xff]
    %v5164 = vld [vmem:[%s11 + $0x8] sm:$0xff]
    %v5165 = vld [vmem:[%s11 + $0x10] sm:$0xff]
    %v5166 = vld [vmem:[%s11 + $0x18] sm:$0xff]
    %5167 = vmatprep.subr.mxu0 0.0
    %5168 = vmatpush1.msra.mxu0 %v5163
    %5169 = vmatprep.subr.mxu0 0.0
    %5170 = vmatpush1.msra.mxu0 %v5164
    %5171 = vmatprep.subr.mxu0 0.0
    %5172 = vmatpush1.msra.mxu0 %v5165
    %5173 = vmatprep.subr.mxu0 0.0
    %5174 = vmatpush1.msra.mxu0 %v5166
    %5175 = vmatprep.subr.mxu0 0.0
    %5176 = vmatpush1.msra.mxu0 0.0
    %5177 = vmatprep.subr.mxu0 0.0
    %5178 = vmatpush1.msra.mxu0 0.0
    %5179 = vmatprep.subr.mxu0 0.0
    %5180 = vmatpush1.msra.mxu0 0.0
    %5181 = vmatprep.subr.mxu0 0.0
    %5182 = vmatpush1.msra.mxu0 0.0
    %5183 = vmatprep.subr.mxu0 0.0
    %5184 = vmatpush1.msra.mxu0 0.0
    %5185 = vmatprep.subr.mxu0 0.0
    %5186 = vmatpush1.msra.mxu0 0.0
    %5187 = vmatprep.subr.mxu0 0.0
    %5188 = vmatpush1.msra.mxu0 0.0
    %5189 = vmatprep.subr.mxu0 0.0
    %5190 = vmatpush1.msra.mxu0 0.0
    %5191 = vmatprep.subr.mxu0 0.0
    %5192 = vmatpush1.msra.mxu0 0.0
    %5193 = vmatprep.subr.mxu0 0.0
    %5194 = vmatpush1.msra.mxu0 0.0
    %5195 = vmatprep.subr.mxu0 0.0
    %5196 = vmatpush1.msra.mxu0 0.0
    %5197 = vmatprep.subr.mxu0 0.0
    %5198 = vmatpush1.msra.mxu0 0.0
    %5199 = vmatprep.subr.mxu0 0.0
    %5200 = vmatpush1.msra.mxu0 0.0
    %5201 = vmatprep.subr.mxu0 0.0
    %5202 = vmatpush1.msra.mxu0 0.0
    %5203 = vmatprep.subr.mxu0 0.0
    %5204 = vmatpush1.msra.mxu0 0.0
    %5205 = vmatprep.subr.mxu0 0.0
    %5206 = vmatpush1.msra.mxu0 0.0
    %5207 = vmatprep.subr.mxu0 0.0
    %5208 = vmatpush1.msra.mxu0 0.0
    %5209 = vmatprep.subr.mxu0 0.0
    %5210 = vmatpush1.msra.mxu0 0.0
    %5211 = vmatprep.subr.mxu0 0.0
    %5212 = vmatpush1.msra.mxu0 0.0
    %5213 = vmatprep.subr.mxu0 0.0
    %5214 = vmatpush1.msra.mxu0 0.0
    %5215 = vmatprep.subr.mxu0 0.0
    %5216 = vmatpush1.msra.mxu0 0.0
    %5217 = vmatprep.subr.mxu0 0.0
    %5218 = vmatpush1.msra.mxu0 0.0
    %5219 = vmatprep.subr.mxu0 0.0
    %5220 = vmatpush1.msra.mxu0 0.0
    %5221 = vmatprep.subr.mxu0 0.0
    %5222 = vmatpush1.msra.mxu0 0.0
    %5223 = vmatprep.subr.mxu0 0.0
    %5224 = vmatpush1.msra.mxu0 0.0
    %5225 = vmatprep.subr.mxu0 0.0
    %5226 = vmatpush1.msra.mxu0 0.0
    %5227 = vmatprep.subr.mxu0 0.0
    %5228 = vmatpush1.msra.mxu0 0.0
    %5229 = vmatprep.subr.mxu0 0.0
    %5230 = vmatpush1.msra.mxu0 0.0
    %5231 = vmatprep.mubr.f32.mxu0 0.0
    %5232 = vmatmul.mubr.f32.gmra.mrb[0].mxu0 %v4737
    %v5233 = vpop.f32.mrb[0].mxu0
    %v5234 = vadd.f32 0.0, %v5233
    %v5235 = vpop.f32.mrb[0].mxu0
    %5236 = vdwg.mxu0
    %v5237 = vld [vmem:[%s12] sm:$0x1]
    %v5238 = vadd.f32 %v5160, %v5234
    %v5239 = vxor.u32 %v5238, 2147483648
    %v5240 = vmul.f32 %v5239, 1.442695
    %v5241 = vpow.pop %v5240
    %v5242 = vadd.f32 %v5241, 1.0
    %v5243 = vrcp.pop %v5242
    %v5244 = vmul.f32 1.0, %v5243
    %v5246 = vlaneseq
    %v5247 = vshrl.u32 %v5246, 7
    %v5248 = vsub.s32 0, %v5247
    %v5249 = vrot.slane %v5237, %v5248
    %5250 = vrot.lane.b32.xlu0 %v5249, 64
    %v5251 = vpop.permute.xlu0 %5250
    %v5253 = vadd.f32 %v5234, %v5251
    %5255 = vrot.lane.b32.xlu0 %v5253, 64
    %v5256 = vpop.permute.xlu0 %5255
    %v5258 = vmul.f32 %v5244, %v5256
    %5260 = vrot.lane.b32.xlu0 %v5258, 64
    %v5261 = vpop.permute.xlu0 %5260
    %v5263 = vadd.f32 %v5160, %v5261
    %v5264 = vtanh.pop %v5263
    %v5265 = vsub.f32 1.0, %v5244
    %5267 = vrot.lane.b32.xlu0 %v5264, 96
    %v5268 = vpop.permute.xlu0 %5267
    %v5270 = vmul.f32 %v5265, %v5268
    %v5271 = vmul.f32 %v5244, %v4733
    %v5272 = vadd.f32 %v5270, %v5271
    %5274 = vrot.lane.b32.xlu0 %v5272, 96
    %v5275 = vpop.permute.xlu0 %5274
    %v5276 = vsel %vm237, %v5275, 0
    %5278 = vmatprep.subr.mxu0 0.0
    %5279 = vmatpush1.xpose.msra.mxu0 %v2304
    %5280 = vmatprep.subr.mxu0 0.0
    %5281 = vmatpush1.xpose.msra.mxu0 0.0
    %5282 = vmatprep.subr.mxu0 0.0
    %5283 = vmatpush1.xpose.msra.mxu0 0.0
    %5284 = vmatprep.subr.mxu0 0.0
    %5285 = vmatpush1.xpose.msra.mxu0 0.0
    %5286 = vmatprep.subr.mxu0 0.0
    %5287 = vmatpush1.xpose.msra.mxu0 0.0
    %5288 = vmatprep.subr.mxu0 0.0
    %5289 = vmatpush1.xpose.msra.mxu0 0.0
    %5290 = vmatprep.subr.mxu0 0.0
    %5291 = vmatpush1.xpose.msra.mxu0 0.0
    %5292 = vmatprep.subr.mxu0 0.0
    %5293 = vmatpush1.xpose.msra.mxu0 0.0
    %5294 = vmatprep.subr.mxu0 0.0
    %5295 = vmatpush1.xpose.msra.mxu0 0.0
    %5296 = vmatprep.subr.mxu0 0.0
    %5297 = vmatpush1.xpose.msra.mxu0 0.0
    %5298 = vmatprep.subr.mxu0 0.0
    %5299 = vmatpush1.xpose.msra.mxu0 0.0
    %5300 = vmatprep.subr.mxu0 0.0
    %5301 = vmatpush1.xpose.msra.mxu0 0.0
    %5302 = vmatprep.subr.mxu0 0.0
    %5303 = vmatpush1.xpose.msra.mxu0 0.0
    %5304 = vmatprep.subr.mxu0 0.0
    %5305 = vmatpush1.xpose.msra.mxu0 0.0
    %5306 = vmatprep.subr.mxu0 0.0
    %5307 = vmatpush1.xpose.msra.mxu0 0.0
    %5308 = vmatprep.subr.mxu0 0.0
    %5309 = vmatpush1.xpose.msra.mxu0 0.0
    %5310 = vmatprep.subr.mxu0 0.0
    %5311 = vmatpush1.xpose.msra.mxu0 0.0
    %5312 = vmatprep.subr.mxu0 0.0
    %5313 = vmatpush1.xpose.msra.mxu0 0.0
    %5314 = vmatprep.subr.mxu0 0.0
    %5315 = vmatpush1.xpose.msra.mxu0 0.0
    %5316 = vmatprep.subr.mxu0 0.0
    %5317 = vmatpush1.xpose.msra.mxu0 0.0
    %5318 = vmatprep.subr.mxu0 0.0
    %5319 = vmatpush1.xpose.msra.mxu0 0.0
    %5320 = vmatprep.subr.mxu0 0.0
    %5321 = vmatpush1.xpose.msra.mxu0 0.0
    %5322 = vmatprep.subr.mxu0 0.0
    %5323 = vmatpush1.xpose.msra.mxu0 0.0
    %5324 = vmatprep.subr.mxu0 0.0
    %5325 = vmatpush1.xpose.msra.mxu0 0.0
    %5326 = vmatprep.subr.mxu0 0.0
    %5327 = vmatpush1.xpose.msra.mxu0 0.0
    %5328 = vmatprep.subr.mxu0 0.0
    %5329 = vmatpush1.xpose.msra.mxu0 0.0
    %5330 = vmatprep.subr.mxu0 0.0
    %5331 = vmatpush1.xpose.msra.mxu0 0.0
    %5332 = vmatprep.subr.mxu0 0.0
    %5333 = vmatpush1.xpose.msra.mxu0 0.0
    %5334 = vmatprep.subr.mxu0 0.0
    %5335 = vmatpush1.xpose.msra.mxu0 0.0
    %5336 = vmatprep.subr.mxu0 0.0
    %5337 = vmatpush1.xpose.msra.mxu0 0.0
    %5338 = vmatprep.subr.mxu0 0.0
    %5339 = vmatpush1.xpose.msra.mxu0 0.0
    %5340 = vmatprep.subr.mxu0 0.0
    %5341 = vmatpush1.xpose.msra.mxu0 0.0
    %5342 = vmatprep.mubr.f32.mxu0 0.0
    %5343 = vmatmul.mubr.f32.gmra.mrb[0].mxu0 %v5276
    %v5344 = vpop.f32.mrb[0].mxu0
    %v5345 = vadd.f32 0.0, %v5344
    %v5346 = vpop.f32.mrb[0].mxu0
    %5347 = vdwg.mxu0
    %v5348 = vsel %vm2650, %v5345, -inf
    %5349 = vmax.xlane.f32.xlu0 %v5348
    %v5350 = vpop.xlane.xlu0 %5349
    %v5351 = vsub.f32 %v5345, %v5350
    %v5352 = vmul.f32 %v5351, 1.442695
    %v5353 = vpow.pop %v5352
    %v5354 = vsel %vm2650, %v5353, 0.0
    %5355 = vadd.xlane.f32.xlu0 %v5354
    %v5356 = vpop.xlane.xlu0 %5355
    %v5357 = vrcp.pop %v5356
    %v5358 = vmul.f32 %v5353, %v5357
    %v5359 = vld [vmem:[#allocation18] sm:$0xff]
    %v5360 = vld [vmem:[#allocation18 + $0x8] sm:$0xff]
    %v5361 = vld [vmem:[#allocation18 + $0x10] sm:$0xff]
    %v5362 = vld [vmem:[#allocation18 + $0x18] sm:$0xff]
    %v5364 = vsel %vm2666, %v5358, 0
    %5366 = vmatprep.subr.mxu0 0.0
    %5367 = vmatpush1.msra.mxu0 %v2373
    %5368 = vmatprep.subr.mxu0 0.0
    %5369 = vmatpush1.msra.mxu0 0.0
    %5370 = vmatprep.subr.mxu0 0.0
    %5371 = vmatpush1.msra.mxu0 0.0
    %5372 = vmatprep.subr.mxu0 0.0
    %5373 = vmatpush1.msra.mxu0 0.0
    %5374 = vmatprep.subr.mxu0 0.0
    %5375 = vmatpush1.msra.mxu0 0.0
    %5376 = vmatprep.subr.mxu0 0.0
    %5377 = vmatpush1.msra.mxu0 0.0
    %5378 = vmatprep.subr.mxu0 0.0
    %5379 = vmatpush1.msra.mxu0 0.0
    %5380 = vmatprep.subr.mxu0 0.0
    %5381 = vmatpush1.msra.mxu0 0.0
    %5382 = vmatprep.subr.mxu0 0.0
    %5383 = vmatpush1.msra.mxu0 0.0
    %5384 = vmatprep.subr.mxu0 0.0
    %5385 = vmatpush1.msra.mxu0 0.0
    %5386 = vmatprep.subr.mxu0 0.0
    %5387 = vmatpush1.msra.mxu0 0.0
    %5388 = vmatprep.subr.mxu0 0.0
    %5389 = vmatpush1.msra.mxu0 0.0
    %5390 = vmatprep.subr.mxu0 0.0
    %5391 = vmatpush1.msra.mxu0 0.0
    %5392 = vmatprep.subr.mxu0 0.0
    %5393 = vmatpush1.msra.mxu0 0.0
    %5394 = vmatprep.subr.mxu0 0.0
    %5395 = vmatpush1.msra.mxu0 0.0
    %5396 = vmatprep.subr.mxu0 0.0
    %5397 = vmatpush1.msra.mxu0 0.0
    %5398 = vmatprep.subr.mxu0 0.0
    %5399 = vmatpush1.msra.mxu0 0.0
    %5400 = vmatprep.subr.mxu0 0.0
    %5401 = vmatpush1.msra.mxu0 0.0
    %5402 = vmatprep.subr.mxu0 0.0
    %5403 = vmatpush1.msra.mxu0 0.0
    %5404 = vmatprep.subr.mxu0 0.0
    %5405 = vmatpush1.msra.mxu0 0.0
    %5406 = vmatprep.subr.mxu0 0.0
    %5407 = vmatpush1.msra.mxu0 0.0
    %5408 = vmatprep.subr.mxu0 0.0
    %5409 = vmatpush1.msra.mxu0 0.0
    %5410 = vmatprep.subr.mxu0 0.0
    %5411 = vmatpush1.msra.mxu0 0.0
    %5412 = vmatprep.subr.mxu0 0.0
    %5413 = vmatpush1.msra.mxu0 0.0
    %5414 = vmatprep.subr.mxu0 0.0
    %5415 = vmatpush1.msra.mxu0 0.0
    %5416 = vmatprep.subr.mxu0 0.0
    %5417 = vmatpush1.msra.mxu0 0.0
    %5418 = vmatprep.subr.mxu0 0.0
    %5419 = vmatpush1.msra.mxu0 0.0
    %5420 = vmatprep.subr.mxu0 0.0
    %5421 = vmatpush1.msra.mxu0 0.0
    %5422 = vmatprep.subr.mxu0 0.0
    %5423 = vmatpush1.msra.mxu0 0.0
    %5424 = vmatprep.subr.mxu0 0.0
    %5425 = vmatpush1.msra.mxu0 0.0
    %5426 = vmatprep.subr.mxu0 0.0
    %5427 = vmatpush1.msra.mxu0 0.0
    %5428 = vmatprep.subr.mxu0 0.0
    %5429 = vmatpush1.msra.mxu0 0.0
    %5430 = vmatprep.mubr.f32.mxu0 0.0
    %5431 = vmatmul.mubr.f32.gmra.mrb[0].mxu0 %v5364
    %v5432 = vpop.f32.mrb[0].mxu0
    %v5433 = vadd.f32 0.0, %v5432
    %v5434 = vpop.f32.mrb[0].mxu0
    %5435 = vdwg.mxu0
    %5436 = vmatprep.subr.mxu0 0.0
    %5437 = vmatpush1.msra.mxu0 %v5359
    %5438 = vmatprep.subr.mxu0 0.0
    %5439 = vmatpush1.msra.mxu0 %v5360
    %5440 = vmatprep.subr.mxu0 0.0
    %5441 = vmatpush1.msra.mxu0 %v5361
    %5442 = vmatprep.subr.mxu0 0.0
    %5443 = vmatpush1.msra.mxu0 %v5362
    %5444 = vmatprep.subr.mxu0 0.0
    %5445 = vmatpush1.msra.mxu0 0.0
    %5446 = vmatprep.subr.mxu0 0.0
    %5447 = vmatpush1.msra.mxu0 0.0
    %5448 = vmatprep.subr.mxu0 0.0
    %5449 = vmatpush1.msra.mxu0 0.0
    %5450 = vmatprep.subr.mxu0 0.0
    %5451 = vmatpush1.msra.mxu0 0.0
    %5452 = vmatprep.subr.mxu0 0.0
    %5453 = vmatpush1.msra.mxu0 0.0
    %5454 = vmatprep.subr.mxu0 0.0
    %5455 = vmatpush1.msra.mxu0 0.0
    %5456 = vmatprep.subr.mxu0 0.0
    %5457 = vmatpush1.msra.mxu0 0.0
    %5458 = vmatprep.subr.mxu0 0.0
    %5459 = vmatpush1.msra.mxu0 0.0
    %5460 = vmatprep.subr.mxu0 0.0
    %5461 = vmatpush1.msra.mxu0 0.0
    %5462 = vmatprep.subr.mxu0 0.0
    %5463 = vmatpush1.msra.mxu0 0.0
    %5464 = vmatprep.subr.mxu0 0.0
    %5465 = vmatpush1.msra.mxu0 0.0
    %5466 = vmatprep.subr.mxu0 0.0
    %5467 = vmatpush1.msra.mxu0 0.0
    %5468 = vmatprep.subr.mxu0 0.0
    %5469 = vmatpush1.msra.mxu0 0.0
    %5470 = vmatprep.subr.mxu0 0.0
    %5471 = vmatpush1.msra.mxu0 0.0
    %5472 = vmatprep.subr.mxu0 0.0
    %5473 = vmatpush1.msra.mxu0 0.0
    %5474 = vmatprep.subr.mxu0 0.0
    %5475 = vmatpush1.msra.mxu0 0.0
    %5476 = vmatprep.subr.mxu0 0.0
    %5477 = vmatpush1.msra.mxu0 0.0
    %5478 = vmatprep.subr.mxu0 0.0
    %5479 = vmatpush1.msra.mxu0 0.0
    %5480 = vmatprep.subr.mxu0 0.0
    %5481 = vmatpush1.msra.mxu0 0.0
    %5482 = vmatprep.subr.mxu0 0.0
    %5483 = vmatpush1.msra.mxu0 0.0
    %5484 = vmatprep.subr.mxu0 0.0
    %5485 = vmatpush1.msra.mxu0 0.0
    %5486 = vmatprep.subr.mxu0 0.0
    %5487 = vmatpush1.msra.mxu0 0.0
    %5488 = vmatprep.subr.mxu0 0.0
    %5489 = vmatpush1.msra.mxu0 0.0
    %5490 = vmatprep.subr.mxu0 0.0
    %5491 = vmatpush1.msra.mxu0 0.0
    %5492 = vmatprep.subr.mxu0 0.0
    %5493 = vmatpush1.msra.mxu0 0.0
    %5494 = vmatprep.subr.mxu0 0.0
    %5495 = vmatpush1.msra.mxu0 0.0
    %5496 = vmatprep.subr.mxu0 0.0
    %5497 = vmatpush1.msra.mxu0 0.0
    %5498 = vmatprep.subr.mxu0 0.0
    %5499 = vmatpush1.msra.mxu0 0.0
    %5500 = vmatprep.mubr.f32.mxu0 0.0
    %5501 = vmatmul.mubr.f32.gmra.mrb[0].mxu0 %v5276
    %v5502 = vpop.f32.mrb[0].mxu0
    %v5503 = vadd.f32 %v5433, %v5502
    %v5504 = vpop.f32.mrb[0].mxu0
    %5505 = vdwg.mxu0
    %v5506 = vld [vmem:[%s15] sm:$0x1]
    %v5507 = vadd.f32 %v5503, %v5506
    %v5508 = vtanh.pop %v5507
    %v5509 = vld [vmem:[#allocation21] sm:$0xff]
    %v5510 = vld [vmem:[#allocation21 + $0x8] sm:$0xff]
    %v5511 = vld [vmem:[#allocation21 + $0x10] sm:$0xff]
    %v5512 = vld [vmem:[#allocation21 + $0x18] sm:$0xff]
    %v5513 = vld [vmem:[%s17] sm:$0x1]
    %v5515 = vsel %vm237, %v5508, 0
    %5517 = vmatprep.subr.mxu0 0.0
    %5518 = vmatpush1.msra.mxu0 %v5509
    %5519 = vmatprep.subr.mxu0 0.0
    %5520 = vmatpush1.msra.mxu0 %v5510
    %5521 = vmatprep.subr.mxu0 0.0
    %5522 = vmatpush1.msra.mxu0 %v5511
    %5523 = vmatprep.subr.mxu0 0.0
    %5524 = vmatpush1.msra.mxu0 %v5512
    %5525 = vmatprep.subr.mxu0 0.0
    %5526 = vmatpush1.msra.mxu0 0.0
    %5527 = vmatprep.subr.mxu0 0.0
    %5528 = vmatpush1.msra.mxu0 0.0
    %5529 = vmatprep.subr.mxu0 0.0
    %5530 = vmatpush1.msra.mxu0 0.0
    %5531 = vmatprep.subr.mxu0 0.0
    %5532 = vmatpush1.msra.mxu0 0.0
    %5533 = vmatprep.subr.mxu0 0.0
    %5534 = vmatpush1.msra.mxu0 0.0
    %5535 = vmatprep.subr.mxu0 0.0
    %5536 = vmatpush1.msra.mxu0 0.0
    %5537 = vmatprep.subr.mxu0 0.0
    %5538 = vmatpush1.msra.mxu0 0.0
    %5539 = vmatprep.subr.mxu0 0.0
    %5540 = vmatpush1.msra.mxu0 0.0
    %5541 = vmatprep.subr.mxu0 0.0
    %5542 = vmatpush1.msra.mxu0 0.0
    %5543 = vmatprep.subr.mxu0 0.0
    %5544 = vmatpush1.msra.mxu0 0.0
    %5545 = vmatprep.subr.mxu0 0.0
    %5546 = vmatpush1.msra.mxu0 0.0
    %5547 = vmatprep.subr.mxu0 0.0
    %5548 = vmatpush1.msra.mxu0 0.0
    %5549 = vmatprep.subr.mxu0 0.0
    %5550 = vmatpush1.msra.mxu0 0.0
    %5551 = vmatprep.subr.mxu0 0.0
    %5552 = vmatpush1.msra.mxu0 0.0
    %5553 = vmatprep.subr.mxu0 0.0
    %5554 = vmatpush1.msra.mxu0 0.0
    %5555 = vmatprep.subr.mxu0 0.0
    %5556 = vmatpush1.msra.mxu0 0.0
    %5557 = vmatprep.subr.mxu0 0.0
    %5558 = vmatpush1.msra.mxu0 0.0
    %5559 = vmatprep.subr.mxu0 0.0
    %5560 = vmatpush1.msra.mxu0 0.0
    %5561 = vmatprep.subr.mxu0 0.0
    %5562 = vmatpush1.msra.mxu0 0.0
    %5563 = vmatprep.subr.mxu0 0.0
    %5564 = vmatpush1.msra.mxu0 0.0
    %5565 = vmatprep.subr.mxu0 0.0
    %5566 = vmatpush1.msra.mxu0 0.0
    %5567 = vmatprep.subr.mxu0 0.0
    %5568 = vmatpush1.msra.mxu0 0.0
    %5569 = vmatprep.subr.mxu0 0.0
    %5570 = vmatpush1.msra.mxu0 0.0
    %5571 = vmatprep.subr.mxu0 0.0
    %5572 = vmatpush1.msra.mxu0 0.0
    %5573 = vmatprep.subr.mxu0 0.0
    %5574 = vmatpush1.msra.mxu0 0.0
    %5575 = vmatprep.subr.mxu0 0.0
    %5576 = vmatpush1.msra.mxu0 0.0
    %5577 = vmatprep.subr.mxu0 0.0
    %5578 = vmatpush1.msra.mxu0 0.0
    %5579 = vmatprep.subr.mxu0 0.0
    %5580 = vmatpush1.msra.mxu0 0.0
    %5581 = vmatprep.mubr.f32.mxu0 0.0
    %5582 = vmatmul.mubr.f32.gmra.mrb[0].mxu0 %v5515
    %v5583 = vpop.f32.mrb[0].mxu0
    %v5584 = vadd.f32 %v5513, %v5583
    %v5585 = vpop.f32.mrb[0].mxu0
    %5586 = vdwg.mxu0
    %v5587 = vsel %vm2891, %v5584, -inf
    %5588 = vmax.xlane.f32.xlu0 %v5587
    %v5589 = vpop.xlane.xlu0 %5588
    %v5590 = vsub.f32 %v5584, %v5589
    %v5591 = vmul.f32 %v5590, 1.442695
    %v5592 = vpow.pop %v5591
    %v5593 = vsel %vm2891, %v5592, 0.0
    %5594 = vadd.xlane.f32.xlu0 %v5593
    %v5595 = vpop.xlane.xlu0 %5594
    %v5596 = vrcp.pop %v5595
    %v5597 = vmul.f32 1.0, %v5596
    %vm5598 = vcmp.eq.f32.partialorder %v5584, %v5589
    %v5599 = vsel %vm5598, %v2377, 64
    %v5600 = vsel %vm2891, %v5599, 2147483647
    %v5601 = vand.u32 %v5600, 65535
    %v5602 = vshra.s32 %v5600, 16
    %v5603 = vcvt.s32.f32 %v5601
    %v5604 = vcvt.s32.f32 %v5602
    %5605 = vmin.xlane.f32.xlu0 %v5604
    %v5606 = vpop.xlane.xlu0 %5605
    %vm5607 = vcmp.eq.f32.partialorder %v5604, %v5606
    %v5608 = vsel %vm5607, %v5603, inf
    %5609 = vmin.xlane.f32.xlu0 %v5608
    %v5610 = vpop.xlane.xlu0 %5609
    %v5611 = vcvt.f32.s32 %v5610
    %v5612 = vcvt.f32.s32 %v5606
    %v5613 = vshll.u32 %v5612, 16
    %v5614 = vadd.s32 %v5613, %v5611
    %vm5615 = vcmask 41000
    %5616 = vst.msk [vmem:[#allocation22] sm:$0x1] %vm5615, %v5614
    %5617 = vst.msk [vmem:[#allocation23] sm:$0x1] %vm5615, %v5597
    // Predicated region
    $region114: #{tpu_custom_call.1} parent=1 // pred_check
      _
    $region115: #{tpu_custom_call.1} parent=1 // pred_check_branch
      %5619 = sbr.rel (0) target = $region117
    $region116: #{tpu_custom_call.1} parent=1 // pred_region
      %s5621 = ssub.s32 16, 16
      %5622 = vsyncadd [#allocation7], %s5621
      %s5624 = sshll.u32 [#allocation22], 4
      %s5625 = int_to_ptr.vmem [resolvable:$true] %s5624
      %5627 = dma.vmem_to_hbm [thread:$0]  %s5625, 16, %s18, [#allocation7]
    $region117: #{tpu_custom_call.1} parent=1 // pred_fallthru
      _
    // Predicated region
    $region118: #{tpu_custom_call.1} parent=1 // pred_check
      _
    $region119: #{tpu_custom_call.1} parent=1 // pred_check_branch
      %5629 = sbr.rel (0) target = $region121
    $region120: #{tpu_custom_call.1} parent=1 // pred_region
      %s5631 = ssub.s32 16, 16
      %5632 = vsyncadd [#allocation24], %s5631
      %s5634 = sshll.u32 [#allocation23], 4
      %s5635 = int_to_ptr.vmem [resolvable:$true] %s5634
      %5637 = dma.vmem_to_hbm [thread:$0]  %s5635, 16, %s19, [#allocation24]
    $region121: #{tpu_custom_call.1} parent=1 // pred_fallthru
      _
    // Predicated region
    $region122: #{tpu_custom_call.1} parent=1 // pred_check
      _
    $region123: #{tpu_custom_call.1} parent=1 // pred_check_branch
      %5639 = sbr.rel (0) target = $region125
    $region124: #{tpu_custom_call.1} parent=1 // pred_region
      %5640 = dma.done [#allocation7], 16
    $region125: #{tpu_custom_call.1} parent=1 // pred_fallthru
      _
    // Predicated region
    $region126: #{tpu_custom_call.1} parent=1 // pred_check
      _
    $region127: #{tpu_custom_call.1} parent=1 // pred_check_branch
      %5642 = sbr.rel (0) target = $region129
    $region128: #{tpu_custom_call.1} parent=1 // pred_region
      %5643 = dma.done [#allocation24], 16
    $region129: #{tpu_custom_call.1} parent=1 // pred_fallthru
      _
    %5644 = vsyncpa [#allocation6], 1
    %5645 = vsyncpa [#allocation11], 1
    %5646 = vsyncpa [#allocation14], 1
    %5647 = vsyncpa [#allocation17], 1
    %5648 = vsyncpa [#allocation20], 1
    %5649 = vsyncpa [#allocation7], 1
    %5650 = vsyncpa [#allocation24], 1
    %5651 = vsyncpa [#allocation8], 1

</llo_original>
